<compile_context>
chip_gen: v7x
topology: tpu7x:2x2x1
jax: 0.10.0
libtpu: 0.0.40
codegen_flags: <defaults>
</compile_context>

<pallas_src>
import functools

import jax
import jax.numpy as jnp
import numpy as np
from jax import lax
from jax.experimental import pallas as pl
from jax.experimental.pallas import tpu as pltpu

DICT_SIZE = 10000
EMBED_DIM = 70
HIDDEN = 400
HPAD = 512          # per-gate padded width: multiple of 128/256 (v5e/v6e/v7x MXU)
TC_MAX = 32         # max timesteps per grid step


def _round_up(x, m):
    return ((x + m - 1) // m) * m


def _sigmoid_tanh(x):
    # sigmoid(x) == 0.5 * tanh(0.5 * x) + 0.5 : one EUP op (tanh) plus two cheap
    # VPU ops, instead of exp + reciprocal (two EUP ops). The EUP has a single
    # VLIW slot and saturates in the gate phase; the VPU has spare VALU slots.
    return 0.5 * jnp.tanh(0.5 * x) + 0.5


def _pick_batch_block(b8):
    # Aim for >=2 batch blocks once the batch allows it (so the "parallel" grid
    # axis shards across both v7x TensorCores) while keeping each block >=16 rows
    # so the in-kernel 2-way sub-recurrence interleave stays enabled.
    if b8 <= 8:
        return 8
    if b8 <= 48:
        return 16
    return 32


def _pick_time_chunk(T, tc_max):
    # Prefer an exact divisor of T so the per-step validity blend is never needed.
    tc_cap = min(T, tc_max)
    best = 1
    for d in range(1, tc_cap + 1):
        if T % d == 0:
            best = d
    if best == T or 2 * best >= tc_cap:
        return best, False
    return tc_cap, True          # ragged tail -> fall back to masked blend


def lstm_chunk_kernel(xproj_ref, whh_ref, wout_ref, bout_ref, out_ref,
                      h_scr, c_scr, *, seq_len, tc, hpad, bc, n_sub, needs_mask):
    """One grid step == one (batch block, time chunk).

    xproj_ref : (Tc, Bc, 4*Hpad) bf16  precomputed x @ W_ih + (b_ih + b_hh)
    whh_ref   : (4, Hpad, Hpad)  bf16  per-gate hidden->gate weights (VMEM resident)
    wout_ref  : (1, Hpad)        f32   classifier Linear weight (zero-padded lanes)
    bout_ref  : (1, 1)           f32   classifier Linear bias
    out_ref   : (Bc, 1)          f32   sigmoid(logits), written on the last chunk
    h_scr     : (Bc, Hpad)       bf16  recurrent hidden state (bf16: only MXU input)
    c_scr     : (Bc, Hpad)       f32   recurrent cell state (f32 accumulator)
    """
    t_idx = pl.program_id(1)
    bs = bc // n_sub

    @pl.when(t_idx == 0)
    def _init():
        h_scr[...] = jnp.zeros_like(h_scr)
        c_scr[...] = jnp.zeros_like(c_scr)

    def step(i, carry):
        new_carry = []
        # Two independent sub-recurrences in the same basic block: the scheduler
        # overlaps one sub-block's MXU dots with the other's EUP/VPU gate phase.
        for s in range(n_sub):
            h = carry[2 * s]            # (bs, hpad) bf16
            c = carry[2 * s + 1]        # (bs, hpad) f32
            r0 = s * bs

            def gate(k, h=h, r0=r0):
                # Per-gate dot keeps at most one (bs, hpad) gate slice live.
                z = jnp.dot(h, whh_ref[k], preferred_element_type=jnp.float32)
                xp = xproj_ref[i, pl.ds(r0, bs), pl.ds(k * hpad, hpad)]
                return z + xp.astype(jnp.float32)

            # torch gate order [i, f, g, o]; consume each gate immediately.
            i_g = _sigmoid_tanh(gate(0))
            f_g = _sigmoid_tanh(gate(1))
            c_new = f_g * c
            g_g = jnp.tanh(gate(2))
            c_new = c_new + i_g * g_g
            o_g = _sigmoid_tanh(gate(3))
            h_new = (o_g * jnp.tanh(c_new)).astype(h.dtype)

            if needs_mask:  # only compiled in when T has a ragged padded tail
                valid = (t_idx * tc + i) < seq_len
                h_new = jnp.where(valid, h_new, h)
                c_new = jnp.where(valid, c_new, c)
            new_carry += [h_new, c_new]
        return tuple(new_carry)

    init = []
    for s in range(n_sub):
        r0 = s * bs
        init += [h_scr[pl.ds(r0, bs), :], c_scr[pl.ds(r0, bs), :]]

    carry = lax.fori_loop(0, tc, step, tuple(init),
                          unroll=True if tc <= 16 else 8)

    for s in range(n_sub):
        r0 = s * bs
        h_scr[pl.ds(r0, bs), :] = carry[2 * s]
        c_scr[pl.ds(r0, bs), :] = carry[2 * s + 1]

    @pl.when(t_idx == pl.num_programs(1) - 1)
    def _final():
        # Classifier head: N=1 matmul replaced with VPU multiply + XLU lane reduce.
        h_full = h_scr[...].astype(jnp.float32)                    # (bc, hpad)
        logit = jnp.sum(h_full * wout_ref[...], axis=-1, keepdims=True)
        logit = logit + bout_ref[...]
        out_ref[...] = pl.reciprocal(1.0 + jnp.exp(-logit), approx=False)


def classifier_forward(tokens, params):
    """tokens: (B, T) int32 -> (B, 1) float32 probabilities."""
    B, T = tokens.shape
    H, E, Hpad = HIDDEN, EMBED_DIM, HPAD

    b8 = _round_up(B, 8)
    Bc = _pick_batch_block(b8)
    Bpad = _round_up(b8, Bc)
    n_sub = 2 if Bc >= 16 else 1
    Tc, needs_mask = _pick_time_chunk(T, TC_MAX)
    Tpad = _round_up(T, Tc)

    # ---- plain-JAX glue: embedding gather + hoisted input projection ----------
    # TODO(synk): embedding gather and the one-shot input projection stay in plain
    # JAX (XLA); they are single large MXU/DMA-friendly ops with no recurrence.
    tok = jnp.pad(tokens, ((0, Bpad - B), (0, 0)))
    emb = jnp.take(params["embed"], tok, axis=0).astype(jnp.float32)   # (Bpad,T,E)

    # Pack W_ih into (E, 4*Hpad): gate k occupies lanes [k*Hpad, k*Hpad + H).
    wih = params["w_ih"].reshape(4, H, E)
    wih = jnp.pad(wih, ((0, 0), (0, Hpad - H), (0, 0)))
    wih_packed = wih.transpose(2, 0, 1).reshape(E, 4 * Hpad)

    bias = (params["b_ih"] + params["b_hh"]).reshape(4, H)
    bias = jnp.pad(bias, ((0, 0), (0, Hpad - H))).reshape(4 * Hpad)

    # Hoisted input projection for all timesteps (one big matmul), time-major.
    # TODO(synk): xproj stays bf16 in HBM; keep f32 if tighter tolerance is needed.
    xproj = jnp.einsum("bte,eg->tbg", emb, wih_packed,
                       preferred_element_type=jnp.float32) + bias
    xproj = jnp.pad(xproj, ((0, Tpad - T), (0, 0), (0, 0))).astype(jnp.bfloat16)

    # Per-gate hidden->gate weights: (4, Hpad, Hpad), bf16, zero padded rows/cols.
    whh = params["w_hh"].reshape(4, H, H).transpose(0, 2, 1)      # (gate, in, out)
    whh = jnp.pad(whh, ((0, 0), (0, Hpad - H), (0, Hpad - H))).astype(jnp.bfloat16)

    wout = jnp.pad(params["w_fc"], ((0, 0), (0, Hpad - H))).astype(jnp.float32)
    bout = params["b_fc"].reshape(1, 1).astype(jnp.float32)

    nB = Bpad // Bc
    nT = Tpad // Tc

    kernel = functools.partial(lstm_chunk_kernel, seq_len=T, tc=Tc, hpad=Hpad,
                               bc=Bc, n_sub=n_sub, needs_mask=needs_mask)

    grid_spec = pltpu.PrefetchScalarGridSpec(
        num_scalar_prefetch=0,
        grid=(nB, nT),
        in_specs=[
            # time-chunked, pipelined input pre-activations
            pl.BlockSpec((Tc, Bc, 4 * Hpad), lambda b, t: (t, b, 0)),
            # constant weights: whole-array VMEM residents (single-buffered)
            pl.BlockSpec(memory_space=pltpu.MemorySpace.VMEM),   # whh
            pl.BlockSpec(memory_space=pltpu.MemorySpace.VMEM),   # wout
            pl.BlockSpec(memory_space=pltpu.MemorySpace.VMEM),   # bout
        ],
        out_specs=pl.BlockSpec((Bc, 1), lambda b, t: (b, 0)),
        scratch_shapes=[
            pltpu.VMEM((Bc, Hpad), jnp.bfloat16),   # h state (bf16 carry)
            pltpu.VMEM((Bc, Hpad), jnp.float32),    # c state (f32 accumulator)
        ],
    )

    out = pl.pallas_call(
        kernel,
        out_shape=jax.ShapeDtypeStruct((Bpad, 1), jnp.float32),
        grid_spec=grid_spec,
        compiler_params=pltpu.CompilerParams(
            dimension_semantics=("parallel", "arbitrary"),
            # xproj block (<=32*32*2048 bf16 = 4 MiB) x2 buffers + 2 MiB whh +
            # scratch: well under v7x's 64 MiB physical VMEM.
            vmem_limit_bytes=48 * 1024 * 1024,
        ),
    )(xproj, whh, wout, bout)

    return out[:B]


def reference_forward(tokens, params):
    """Pure-JAX f32 reference matching torch semantics (gate order i, f, g, o)."""
    emb = jnp.take(params["embed"], tokens, axis=0).astype(jnp.float32)
    B, T, _ = emb.shape
    H = HIDDEN
    h = jnp.zeros((B, H), jnp.float32)
    c = jnp.zeros((B, H), jnp.float32)
    for t in range(T):
        gates = (emb[:, t] @ params["w_ih"].T + params["b_ih"]
                 + h @ params["w_hh"].T + params["b_hh"])
        i, f, g, o = jnp.split(gates, 4, axis=-1)
        i, f = jax.nn.sigmoid(i), jax.nn.sigmoid(f)
        g, o = jnp.tanh(g), jax.nn.sigmoid(o)
        c = f * c + i * g
        h = o * jnp.tanh(c)
    logit = h @ params["w_fc"].T + params["b_fc"]
    return jax.nn.sigmoid(logit)


def init_params(key):
    H, E = HIDDEN, EMBED_DIM
    ks = jax.random.split(key, 8)
    bound = 1.0 / np.sqrt(H)
    return {
        # nn.Embedding default init: N(0, 1)
        "embed": jax.random.normal(ks[0], (DICT_SIZE, E), jnp.float32),
        # nn.LSTM default init: U(-1/sqrt(H), 1/sqrt(H)); gate order [i, f, g, o]
        "w_ih": jax.random.uniform(ks[1], (4 * H, E), jnp.float32, -bound, bound),
        "w_hh": jax.random.uniform(ks[2], (4 * H, H), jnp.float32, -bound, bound),
        "b_ih": jax.random.uniform(ks[3], (4 * H,), jnp.float32, -bound, bound),
        "b_hh": jax.random.uniform(ks[4], (4 * H,), jnp.float32, -bound, bound),
        # nn.Linear(400, 1) default init
        "w_fc": jax.random.uniform(ks[5], (1, H), jnp.float32, -bound, bound),
        "b_fc": jax.random.uniform(ks[6], (1,), jnp.float32, -bound, bound),
    }


if __name__ == "__main__":
    key = jax.random.PRNGKey(0)
    pkey, tkey = jax.random.split(key)
    params = init_params(pkey)

    B, T = 2, 8
    tokens = jax.random.randint(tkey, (B, T), 0, DICT_SIZE, dtype=jnp.int32)

    out = jax.block_until_ready(classifier_forward(tokens, params))
    ref = jax.block_until_ready(reference_forward(tokens, params))

    assert out.shape == (B, 1), out.shape
    # bf16 matmul operands / bf16 h carry in the recurrence -> 2e-3 tolerance.
    np.testing.assert_allclose(np.asarray(out), np.asarray(ref), rtol=2e-3, atol=2e-3)
    print("KERNEL_OK")
</pallas_src>

<mosaic_0001>
module attributes {stable_mosaic.version = 11 : i64} {
  func.func @lstm_chunk_kernel(%arg0: i32, %arg1: i32, %arg2: memref<8x8x2048xbf16, #tpu.memory_space<vmem>>, %arg3: memref<4x512x512xbf16, #tpu.memory_space<vmem>>, %arg4: memref<1x512xf32, #tpu.memory_space<vmem>>, %arg5: memref<1x1xf32, #tpu.memory_space<vmem>>, %arg6: memref<8x1xf32, #tpu.memory_space<vmem>>, %arg7: memref<8x512xbf16, #tpu.memory_space<vmem>>, %arg8: memref<8x512xf32, #tpu.memory_space<vmem>>) attributes {dimension_semantics = [#tpu.dimension_semantics<parallel>, #tpu.dimension_semantics<arbitrary>], iteration_bounds = array<i64: 1, 1>, scalar_prefetch = 0 : i64, scratch_operands = 2 : i64, tpu.core_type = #tpu.core_type<tc>, window_params = [{transform_indices = @transform_0, window_bounds = array<i64: 8, 8, 2048>}, {pipeline_mode = #tpu.pipeline_mode<synchronous>, transform_indices = @transform_1, window_bounds = array<i64: 4, 512, 512>}, {pipeline_mode = #tpu.pipeline_mode<synchronous>, transform_indices = @transform_2, window_bounds = array<i64: 1, 512>}, {pipeline_mode = #tpu.pipeline_mode<synchronous>, transform_indices = @transform_3, window_bounds = array<i64: 1, 1>}, {transform_indices = @transform_4, window_bounds = array<i64: 8, 1>}]} {
    %c0_i32 = arith.constant 0 : i32
    %0 = arith.cmpi eq, %arg1, %c0_i32 : i32
    %1 = arith.extui %0 : i1 to i32
    %c0_i32_0 = arith.constant 0 : i32
    %2 = arith.cmpi ne, %1, %c0_i32_0 : i32
    scf.if %2 {
      %cst_268 = arith.constant 0.000000e+00 : bf16
      %490 = vector.broadcast %cst_268 : bf16 to vector<8x512xbf16>
      %c0_269 = arith.constant 0 : index
      %c0_270 = arith.constant 0 : index
      %491 = vector.load %arg7[%c0_269, %c0_270] : memref<8x512xbf16, #tpu.memory_space<vmem>>, vector<8x512xbf16>
      tpu.vector_store %arg7[%c0_269, %c0_270], %490 {strides = array<i32>} : memref<8x512xbf16, #tpu.memory_space<vmem>>, vector<8x512xbf16>,
      %cst_271 = arith.constant 0.000000e+00 : f32
      %492 = vector.broadcast %cst_271 : f32 to vector<8x512xf32>
      %c0_272 = arith.constant 0 : index
      %c0_273 = arith.constant 0 : index
      %493 = vector.load %arg8[%c0_272, %c0_273] : memref<8x512xf32, #tpu.memory_space<vmem>>, vector<8x512xf32>
      tpu.vector_store %arg8[%c0_272, %c0_273], %492 {strides = array<i32>} : memref<8x512xf32, #tpu.memory_space<vmem>>, vector<8x512xf32>,
    } else {
    }
    %c0 = arith.constant 0 : index
    %c0_1 = arith.constant 0 : index
    %3 = vector.load %arg7[%c0, %c0_1] : memref<8x512xbf16, #tpu.memory_space<vmem>>, vector<8x512xbf16>
    %c0_2 = arith.constant 0 : index
    %c0_3 = arith.constant 0 : index
    %4 = vector.load %arg8[%c0_2, %c0_3] : memref<8x512xf32, #tpu.memory_space<vmem>>, vector<8x512xf32>
    %c0_i32_4 = arith.constant 0 : i32
    %c0_5 = arith.constant 0 : index
    %c0_6 = arith.constant 0 : index
    %c0_7 = arith.constant 0 : index
    %5 = vector.load %arg3[%c0_5, %c0_6, %c0_7] : memref<4x512x512xbf16, #tpu.memory_space<vmem>>, vector<1x512x512xbf16>
    %6 = vector.shape_cast %5 : vector<1x512x512xbf16> to vector<512x512xbf16>
    %cst = arith.constant dense<0.000000e+00> : vector<8x512xf32>
    %7 = tpu.matmul %3, %6, %cst {dimension_numbers = #tpu.dot_dimension_numbers<[1], [0], [0], [1], [0, 0, 1, 1], [], []>} : vector<8x512xbf16>, vector<512x512xbf16>, vector<8x512xf32> -> vector<8x512xf32>
    %8 = arith.index_cast %c0_i32_4 : i32 to index
    %c0_8 = arith.constant 0 : index
    %c0_9 = arith.constant 0 : index
    %9 = vector.load %arg2[%8, %c0_8, %c0_9] : memref<8x8x2048xbf16, #tpu.memory_space<vmem>>, vector<1x8x512xbf16>
    %10 = vector.shape_cast %9 : vector<1x8x512xbf16> to vector<8x512xbf16>
    %11 = arith.extf %10 : vector<8x512xbf16> to vector<8x512xf32>
    %12 = arith.addf %7, %11 : vector<8x512xf32>
    %cst_10 = arith.constant 5.000000e-01 : f32
    %13 = vector.broadcast %cst_10 : f32 to vector<8x512xf32>
    %14 = arith.mulf %13, %12 : vector<8x512xf32>
    %15 = math.tanh %14 : vector<8x512xf32>
    %cst_11 = arith.constant 5.000000e-01 : f32
    %16 = vector.broadcast %cst_11 : f32 to vector<8x512xf32>
    %17 = arith.mulf %16, %15 : vector<8x512xf32>
    %cst_12 = arith.constant 5.000000e-01 : f32
    %18 = vector.broadcast %cst_12 : f32 to vector<8x512xf32>
    %19 = arith.addf %17, %18 : vector<8x512xf32>
    %c1 = arith.constant 1 : index
    %c0_13 = arith.constant 0 : index
    %c0_14 = arith.constant 0 : index
    %20 = vector.load %arg3[%c1, %c0_13, %c0_14] : memref<4x512x512xbf16, #tpu.memory_space<vmem>>, vector<1x512x512xbf16>
    %21 = vector.shape_cast %20 : vector<1x512x512xbf16> to vector<512x512xbf16>
    %cst_15 = arith.constant dense<0.000000e+00> : vector<8x512xf32>
    %22 = tpu.matmul %3, %21, %cst_15 {dimension_numbers = #tpu.dot_dimension_numbers<[1], [0], [0], [1], [0, 0, 1, 1], [], []>} : vector<8x512xbf16>, vector<512x512xbf16>, vector<8x512xf32> -> vector<8x512xf32>
    %23 = arith.index_cast %c0_i32_4 : i32 to index
    %c0_16 = arith.constant 0 : index
    %c512 = arith.constant 512 : index
    %24 = vector.load %arg2[%23, %c0_16, %c512] : memref<8x8x2048xbf16, #tpu.memory_space<vmem>>, vector<1x8x512xbf16>
    %25 = vector.shape_cast %24 : vector<1x8x512xbf16> to vector<8x512xbf16>
    %26 = arith.extf %25 : vector<8x512xbf16> to vector<8x512xf32>
    %27 = arith.addf %22, %26 : vector<8x512xf32>
    %cst_17 = arith.constant 5.000000e-01 : f32
    %28 = vector.broadcast %cst_17 : f32 to vector<8x512xf32>
    %29 = arith.mulf %28, %27 : vector<8x512xf32>
    %30 = math.tanh %29 : vector<8x512xf32>
    %cst_18 = arith.constant 5.000000e-01 : f32
    %31 = vector.broadcast %cst_18 : f32 to vector<8x512xf32>
    %32 = arith.mulf %31, %30 : vector<8x512xf32>
    %cst_19 = arith.constant 5.000000e-01 : f32
    %33 = vector.broadcast %cst_19 : f32 to vector<8x512xf32>
    %34 = arith.addf %32, %33 : vector<8x512xf32>
    %35 = arith.mulf %34, %4 : vector<8x512xf32>
    %c2 = arith.constant 2 : index
    %c0_20 = arith.constant 0 : index
    %c0_21 = arith.constant 0 : index
    %36 = vector.load %arg3[%c2, %c0_20, %c0_21] : memref<4x512x512xbf16, #tpu.memory_space<vmem>>, vector<1x512x512xbf16>
    %37 = vector.shape_cast %36 : vector<1x512x512xbf16> to vector<512x512xbf16>
    %cst_22 = arith.constant dense<0.000000e+00> : vector<8x512xf32>
    %38 = tpu.matmul %3, %37, %cst_22 {dimension_numbers = #tpu.dot_dimension_numbers<[1], [0], [0], [1], [0, 0, 1, 1], [], []>} : vector<8x512xbf16>, vector<512x512xbf16>, vector<8x512xf32> -> vector<8x512xf32>
    %39 = arith.index_cast %c0_i32_4 : i32 to index
    %c0_23 = arith.constant 0 : index
    %c1024 = arith.constant 1024 : index
    %40 = vector.load %arg2[%39, %c0_23, %c1024] : memref<8x8x2048xbf16, #tpu.memory_space<vmem>>, vector<1x8x512xbf16>
    %41 = vector.shape_cast %40 : vector<1x8x512xbf16> to vector<8x512xbf16>
    %42 = arith.extf %41 : vector<8x512xbf16> to vector<8x512xf32>
    %43 = arith.addf %38, %42 : vector<8x512xf32>
    %44 = math.tanh %43 : vector<8x512xf32>
    %45 = arith.mulf %19, %44 : vector<8x512xf32>
    %46 = arith.addf %35, %45 : vector<8x512xf32>
    %c3 = arith.constant 3 : index
    %c0_24 = arith.constant 0 : index
    %c0_25 = arith.constant 0 : index
    %47 = vector.load %arg3[%c3, %c0_24, %c0_25] : memref<4x512x512xbf16, #tpu.memory_space<vmem>>, vector<1x512x512xbf16>
    %48 = vector.shape_cast %47 : vector<1x512x512xbf16> to vector<512x512xbf16>
    %cst_26 = arith.constant dense<0.000000e+00> : vector<8x512xf32>
    %49 = tpu.matmul %3, %48, %cst_26 {dimension_numbers = #tpu.dot_dimension_numbers<[1], [0], [0], [1], [0, 0, 1, 1], [], []>} : vector<8x512xbf16>, vector<512x512xbf16>, vector<8x512xf32> -> vector<8x512xf32>
    %50 = arith.index_cast %c0_i32_4 : i32 to index
    %c0_27 = arith.constant 0 : index
    %c1536 = arith.constant 1536 : index
    %51 = vector.load %arg2[%50, %c0_27, %c1536] : memref<8x8x2048xbf16, #tpu.memory_space<vmem>>, vector<1x8x512xbf16>
    %52 = vector.shape_cast %51 : vector<1x8x512xbf16> to vector<8x512xbf16>
    %53 = arith.extf %52 : vector<8x512xbf16> to vector<8x512xf32>
    %54 = arith.addf %49, %53 : vector<8x512xf32>
    %cst_28 = arith.constant 5.000000e-01 : f32
    %55 = vector.broadcast %cst_28 : f32 to vector<8x512xf32>
    %56 = arith.mulf %55, %54 : vector<8x512xf32>
    %57 = math.tanh %56 : vector<8x512xf32>
    %cst_29 = arith.constant 5.000000e-01 : f32
    %58 = vector.broadcast %cst_29 : f32 to vector<8x512xf32>
    %59 = arith.mulf %58, %57 : vector<8x512xf32>
    %cst_30 = arith.constant 5.000000e-01 : f32
    %60 = vector.broadcast %cst_30 : f32 to vector<8x512xf32>
    %61 = arith.addf %59, %60 : vector<8x512xf32>
    %62 = math.tanh %46 : vector<8x512xf32>
    %63 = arith.mulf %61, %62 : vector<8x512xf32>
    %64 = arith.truncf %63 : vector<8x512xf32> to vector<8x512xbf16>
    %c1_i32 = arith.constant 1 : i32
    %c0_31 = arith.constant 0 : index
    %c0_32 = arith.constant 0 : index
    %c0_33 = arith.constant 0 : index
    %65 = vector.load %arg3[%c0_31, %c0_32, %c0_33] : memref<4x512x512xbf16, #tpu.memory_space<vmem>>, vector<1x512x512xbf16>
    %66 = vector.shape_cast %65 : vector<1x512x512xbf16> to vector<512x512xbf16>
    %cst_34 = arith.constant dense<0.000000e+00> : vector<8x512xf32>
    %67 = tpu.matmul %64, %66, %cst_34 {dimension_numbers = #tpu.dot_dimension_numbers<[1], [0], [0], [1], [0, 0, 1, 1], [], []>} : vector<8x512xbf16>, vector<512x512xbf16>, vector<8x512xf32> -> vector<8x512xf32>
    %68 = arith.index_cast %c1_i32 : i32 to index
    %c0_35 = arith.constant 0 : index
    %c0_36 = arith.constant 0 : index
    %69 = vector.load %arg2[%68, %c0_35, %c0_36] : memref<8x8x2048xbf16, #tpu.memory_space<vmem>>, vector<1x8x512xbf16>
    %70 = vector.shape_cast %69 : vector<1x8x512xbf16> to vector<8x512xbf16>
    %71 = arith.extf %70 : vector<8x512xbf16> to vector<8x512xf32>
    %72 = arith.addf %67, %71 : vector<8x512xf32>
    %cst_37 = arith.constant 5.000000e-01 : f32
    %73 = vector.broadcast %cst_37 : f32 to vector<8x512xf32>
    %74 = arith.mulf %73, %72 : vector<8x512xf32>
    %75 = math.tanh %74 : vector<8x512xf32>
    %cst_38 = arith.constant 5.000000e-01 : f32
    %76 = vector.broadcast %cst_38 : f32 to vector<8x512xf32>
    %77 = arith.mulf %76, %75 : vector<8x512xf32>
    %cst_39 = arith.constant 5.000000e-01 : f32
    %78 = vector.broadcast %cst_39 : f32 to vector<8x512xf32>
    %79 = arith.addf %77, %78 : vector<8x512xf32>
    %c1_40 = arith.constant 1 : index
    %c0_41 = arith.constant 0 : index
    %c0_42 = arith.constant 0 : index
    %80 = vector.load %arg3[%c1_40, %c0_41, %c0_42] : memref<4x512x512xbf16, #tpu.memory_space<vmem>>, vector<1x512x512xbf16>
    %81 = vector.shape_cast %80 : vector<1x512x512xbf16> to vector<512x512xbf16>
    %cst_43 = arith.constant dense<0.000000e+00> : vector<8x512xf32>
    %82 = tpu.matmul %64, %81, %cst_43 {dimension_numbers = #tpu.dot_dimension_numbers<[1], [0], [0], [1], [0, 0, 1, 1], [], []>} : vector<8x512xbf16>, vector<512x512xbf16>, vector<8x512xf32> -> vector<8x512xf32>
    %83 = arith.index_cast %c1_i32 : i32 to index
    %c0_44 = arith.constant 0 : index
    %c512_45 = arith.constant 512 : index
    %84 = vector.load %arg2[%83, %c0_44, %c512_45] : memref<8x8x2048xbf16, #tpu.memory_space<vmem>>, vector<1x8x512xbf16>
    %85 = vector.shape_cast %84 : vector<1x8x512xbf16> to vector<8x512xbf16>
    %86 = arith.extf %85 : vector<8x512xbf16> to vector<8x512xf32>
    %87 = arith.addf %82, %86 : vector<8x512xf32>
    %cst_46 = arith.constant 5.000000e-01 : f32
    %88 = vector.broadcast %cst_46 : f32 to vector<8x512xf32>
    %89 = arith.mulf %88, %87 : vector<8x512xf32>
    %90 = math.tanh %89 : vector<8x512xf32>
    %cst_47 = arith.constant 5.000000e-01 : f32
    %91 = vector.broadcast %cst_47 : f32 to vector<8x512xf32>
    %92 = arith.mulf %91, %90 : vector<8x512xf32>
    %cst_48 = arith.constant 5.000000e-01 : f32
    %93 = vector.broadcast %cst_48 : f32 to vector<8x512xf32>
    %94 = arith.addf %92, %93 : vector<8x512xf32>
    %95 = arith.mulf %94, %46 : vector<8x512xf32>
    %c2_49 = arith.constant 2 : index
    %c0_50 = arith.constant 0 : index
    %c0_51 = arith.constant 0 : index
    %96 = vector.load %arg3[%c2_49, %c0_50, %c0_51] : memref<4x512x512xbf16, #tpu.memory_space<vmem>>, vector<1x512x512xbf16>
    %97 = vector.shape_cast %96 : vector<1x512x512xbf16> to vector<512x512xbf16>
    %cst_52 = arith.constant dense<0.000000e+00> : vector<8x512xf32>
    %98 = tpu.matmul %64, %97, %cst_52 {dimension_numbers = #tpu.dot_dimension_numbers<[1], [0], [0], [1], [0, 0, 1, 1], [], []>} : vector<8x512xbf16>, vector<512x512xbf16>, vector<8x512xf32> -> vector<8x512xf32>
    %99 = arith.index_cast %c1_i32 : i32 to index
    %c0_53 = arith.constant 0 : index
    %c1024_54 = arith.constant 1024 : index
    %100 = vector.load %arg2[%99, %c0_53, %c1024_54] : memref<8x8x2048xbf16, #tpu.memory_space<vmem>>, vector<1x8x512xbf16>
    %101 = vector.shape_cast %100 : vector<1x8x512xbf16> to vector<8x512xbf16>
    %102 = arith.extf %101 : vector<8x512xbf16> to vector<8x512xf32>
    %103 = arith.addf %98, %102 : vector<8x512xf32>
    %104 = math.tanh %103 : vector<8x512xf32>
    %105 = arith.mulf %79, %104 : vector<8x512xf32>
    %106 = arith.addf %95, %105 : vector<8x512xf32>
    %c3_55 = arith.constant 3 : index
    %c0_56 = arith.constant 0 : index
    %c0_57 = arith.constant 0 : index
    %107 = vector.load %arg3[%c3_55, %c0_56, %c0_57] : memref<4x512x512xbf16, #tpu.memory_space<vmem>>, vector<1x512x512xbf16>
    %108 = vector.shape_cast %107 : vector<1x512x512xbf16> to vector<512x512xbf16>
    %cst_58 = arith.constant dense<0.000000e+00> : vector<8x512xf32>
    %109 = tpu.matmul %64, %108, %cst_58 {dimension_numbers = #tpu.dot_dimension_numbers<[1], [0], [0], [1], [0, 0, 1, 1], [], []>} : vector<8x512xbf16>, vector<512x512xbf16>, vector<8x512xf32> -> vector<8x512xf32>
    %110 = arith.index_cast %c1_i32 : i32 to index
    %c0_59 = arith.constant 0 : index
    %c1536_60 = arith.constant 1536 : index
    %111 = vector.load %arg2[%110, %c0_59, %c1536_60] : memref<8x8x2048xbf16, #tpu.memory_space<vmem>>, vector<1x8x512xbf16>
    %112 = vector.shape_cast %111 : vector<1x8x512xbf16> to vector<8x512xbf16>
    %113 = arith.extf %112 : vector<8x512xbf16> to vector<8x512xf32>
    %114 = arith.addf %109, %113 : vector<8x512xf32>
    %cst_61 = arith.constant 5.000000e-01 : f32
    %115 = vector.broadcast %cst_61 : f32 to vector<8x512xf32>
    %116 = arith.mulf %115, %114 : vector<8x512xf32>
    %117 = math.tanh %116 : vector<8x512xf32>
    %cst_62 = arith.constant 5.000000e-01 : f32
    %118 = vector.broadcast %cst_62 : f32 to vector<8x512xf32>
    %119 = arith.mulf %118, %117 : vector<8x512xf32>
    %cst_63 = arith.constant 5.000000e-01 : f32
    %120 = vector.broadcast %cst_63 : f32 to vector<8x512xf32>
    %121 = arith.addf %119, %120 : vector<8x512xf32>
    %122 = math.tanh %106 : vector<8x512xf32>
    %123 = arith.mulf %121, %122 : vector<8x512xf32>
    %124 = arith.truncf %123 : vector<8x512xf32> to vector<8x512xbf16>
    %c2_i32 = arith.constant 2 : i32
    %c0_64 = arith.constant 0 : index
    %c0_65 = arith.constant 0 : index
    %c0_66 = arith.constant 0 : index
    %125 = vector.load %arg3[%c0_64, %c0_65, %c0_66] : memref<4x512x512xbf16, #tpu.memory_space<vmem>>, vector<1x512x512xbf16>
    %126 = vector.shape_cast %125 : vector<1x512x512xbf16> to vector<512x512xbf16>
    %cst_67 = arith.constant dense<0.000000e+00> : vector<8x512xf32>
    %127 = tpu.matmul %124, %126, %cst_67 {dimension_numbers = #tpu.dot_dimension_numbers<[1], [0], [0], [1], [0, 0, 1, 1], [], []>} : vector<8x512xbf16>, vector<512x512xbf16>, vector<8x512xf32> -> vector<8x512xf32>
    %128 = arith.index_cast %c2_i32 : i32 to index
    %c0_68 = arith.constant 0 : index
    %c0_69 = arith.constant 0 : index
    %129 = vector.load %arg2[%128, %c0_68, %c0_69] : memref<8x8x2048xbf16, #tpu.memory_space<vmem>>, vector<1x8x512xbf16>
    %130 = vector.shape_cast %129 : vector<1x8x512xbf16> to vector<8x512xbf16>
    %131 = arith.extf %130 : vector<8x512xbf16> to vector<8x512xf32>
    %132 = arith.addf %127, %131 : vector<8x512xf32>
    %cst_70 = arith.constant 5.000000e-01 : f32
    %133 = vector.broadcast %cst_70 : f32 to vector<8x512xf32>
    %134 = arith.mulf %133, %132 : vector<8x512xf32>
    %135 = math.tanh %134 : vector<8x512xf32>
    %cst_71 = arith.constant 5.000000e-01 : f32
    %136 = vector.broadcast %cst_71 : f32 to vector<8x512xf32>
    %137 = arith.mulf %136, %135 : vector<8x512xf32>
    %cst_72 = arith.constant 5.000000e-01 : f32
    %138 = vector.broadcast %cst_72 : f32 to vector<8x512xf32>
    %139 = arith.addf %137, %138 : vector<8x512xf32>
    %c1_73 = arith.constant 1 : index
    %c0_74 = arith.constant 0 : index
    %c0_75 = arith.constant 0 : index
    %140 = vector.load %arg3[%c1_73, %c0_74, %c0_75] : memref<4x512x512xbf16, #tpu.memory_space<vmem>>, vector<1x512x512xbf16>
    %141 = vector.shape_cast %140 : vector<1x512x512xbf16> to vector<512x512xbf16>
    %cst_76 = arith.constant dense<0.000000e+00> : vector<8x512xf32>
    %142 = tpu.matmul %124, %141, %cst_76 {dimension_numbers = #tpu.dot_dimension_numbers<[1], [0], [0], [1], [0, 0, 1, 1], [], []>} : vector<8x512xbf16>, vector<512x512xbf16>, vector<8x512xf32> -> vector<8x512xf32>
    %143 = arith.index_cast %c2_i32 : i32 to index
    %c0_77 = arith.constant 0 : index
    %c512_78 = arith.constant 512 : index
    %144 = vector.load %arg2[%143, %c0_77, %c512_78] : memref<8x8x2048xbf16, #tpu.memory_space<vmem>>, vector<1x8x512xbf16>
    %145 = vector.shape_cast %144 : vector<1x8x512xbf16> to vector<8x512xbf16>
    %146 = arith.extf %145 : vector<8x512xbf16> to vector<8x512xf32>
    %147 = arith.addf %142, %146 : vector<8x512xf32>
    %cst_79 = arith.constant 5.000000e-01 : f32
    %148 = vector.broadcast %cst_79 : f32 to vector<8x512xf32>
    %149 = arith.mulf %148, %147 : vector<8x512xf32>
    %150 = math.tanh %149 : vector<8x512xf32>
    %cst_80 = arith.constant 5.000000e-01 : f32
    %151 = vector.broadcast %cst_80 : f32 to vector<8x512xf32>
    %152 = arith.mulf %151, %150 : vector<8x512xf32>
    %cst_81 = arith.constant 5.000000e-01 : f32
    %153 = vector.broadcast %cst_81 : f32 to vector<8x512xf32>
    %154 = arith.addf %152, %153 : vector<8x512xf32>
    %155 = arith.mulf %154, %106 : vector<8x512xf32>
    %c2_82 = arith.constant 2 : index
    %c0_83 = arith.constant 0 : index
    %c0_84 = arith.constant 0 : index
    %156 = vector.load %arg3[%c2_82, %c0_83, %c0_84] : memref<4x512x512xbf16, #tpu.memory_space<vmem>>, vector<1x512x512xbf16>
    %157 = vector.shape_cast %156 : vector<1x512x512xbf16> to vector<512x512xbf16>
    %cst_85 = arith.constant dense<0.000000e+00> : vector<8x512xf32>
    %158 = tpu.matmul %124, %157, %cst_85 {dimension_numbers = #tpu.dot_dimension_numbers<[1], [0], [0], [1], [0, 0, 1, 1], [], []>} : vector<8x512xbf16>, vector<512x512xbf16>, vector<8x512xf32> -> vector<8x512xf32>
    %159 = arith.index_cast %c2_i32 : i32 to index
    %c0_86 = arith.constant 0 : index
    %c1024_87 = arith.constant 1024 : index
    %160 = vector.load %arg2[%159, %c0_86, %c1024_87] : memref<8x8x2048xbf16, #tpu.memory_space<vmem>>, vector<1x8x512xbf16>
    %161 = vector.shape_cast %160 : vector<1x8x512xbf16> to vector<8x512xbf16>
    %162 = arith.extf %161 : vector<8x512xbf16> to vector<8x512xf32>
    %163 = arith.addf %158, %162 : vector<8x512xf32>
    %164 = math.tanh %163 : vector<8x512xf32>
    %165 = arith.mulf %139, %164 : vector<8x512xf32>
    %166 = arith.addf %155, %165 : vector<8x512xf32>
    %c3_88 = arith.constant 3 : index
    %c0_89 = arith.constant 0 : index
    %c0_90 = arith.constant 0 : index
    %167 = vector.load %arg3[%c3_88, %c0_89, %c0_90] : memref<4x512x512xbf16, #tpu.memory_space<vmem>>, vector<1x512x512xbf16>
    %168 = vector.shape_cast %167 : vector<1x512x512xbf16> to vector<512x512xbf16>
    %cst_91 = arith.constant dense<0.000000e+00> : vector<8x512xf32>
    %169 = tpu.matmul %124, %168, %cst_91 {dimension_numbers = #tpu.dot_dimension_numbers<[1], [0], [0], [1], [0, 0, 1, 1], [], []>} : vector<8x512xbf16>, vector<512x512xbf16>, vector<8x512xf32> -> vector<8x512xf32>
    %170 = arith.index_cast %c2_i32 : i32 to index
    %c0_92 = arith.constant 0 : index
    %c1536_93 = arith.constant 1536 : index
    %171 = vector.load %arg2[%170, %c0_92, %c1536_93] : memref<8x8x2048xbf16, #tpu.memory_space<vmem>>, vector<1x8x512xbf16>
    %172 = vector.shape_cast %171 : vector<1x8x512xbf16> to vector<8x512xbf16>
    %173 = arith.extf %172 : vector<8x512xbf16> to vector<8x512xf32>
    %174 = arith.addf %169, %173 : vector<8x512xf32>
    %cst_94 = arith.constant 5.000000e-01 : f32
    %175 = vector.broadcast %cst_94 : f32 to vector<8x512xf32>
    %176 = arith.mulf %175, %174 : vector<8x512xf32>
    %177 = math.tanh %176 : vector<8x512xf32>
    %cst_95 = arith.constant 5.000000e-01 : f32
    %178 = vector.broadcast %cst_95 : f32 to vector<8x512xf32>
    %179 = arith.mulf %178, %177 : vector<8x512xf32>
    %cst_96 = arith.constant 5.000000e-01 : f32
    %180 = vector.broadcast %cst_96 : f32 to vector<8x512xf32>
    %181 = arith.addf %179, %180 : vector<8x512xf32>
    %182 = math.tanh %166 : vector<8x512xf32>
    %183 = arith.mulf %181, %182 : vector<8x512xf32>
    %184 = arith.truncf %183 : vector<8x512xf32> to vector<8x512xbf16>
    %c3_i32 = arith.constant 3 : i32
    %c0_97 = arith.constant 0 : index
    %c0_98 = arith.constant 0 : index
    %c0_99 = arith.constant 0 : index
    %185 = vector.load %arg3[%c0_97, %c0_98, %c0_99] : memref<4x512x512xbf16, #tpu.memory_space<vmem>>, vector<1x512x512xbf16>
    %186 = vector.shape_cast %185 : vector<1x512x512xbf16> to vector<512x512xbf16>
    %cst_100 = arith.constant dense<0.000000e+00> : vector<8x512xf32>
    %187 = tpu.matmul %184, %186, %cst_100 {dimension_numbers = #tpu.dot_dimension_numbers<[1], [0], [0], [1], [0, 0, 1, 1], [], []>} : vector<8x512xbf16>, vector<512x512xbf16>, vector<8x512xf32> -> vector<8x512xf32>
    %188 = arith.index_cast %c3_i32 : i32 to index
    %c0_101 = arith.constant 0 : index
    %c0_102 = arith.constant 0 : index
    %189 = vector.load %arg2[%188, %c0_101, %c0_102] : memref<8x8x2048xbf16, #tpu.memory_space<vmem>>, vector<1x8x512xbf16>
    %190 = vector.shape_cast %189 : vector<1x8x512xbf16> to vector<8x512xbf16>
    %191 = arith.extf %190 : vector<8x512xbf16> to vector<8x512xf32>
    %192 = arith.addf %187, %191 : vector<8x512xf32>
    %cst_103 = arith.constant 5.000000e-01 : f32
    %193 = vector.broadcast %cst_103 : f32 to vector<8x512xf32>
    %194 = arith.mulf %193, %192 : vector<8x512xf32>
    %195 = math.tanh %194 : vector<8x512xf32>
    %cst_104 = arith.constant 5.000000e-01 : f32
    %196 = vector.broadcast %cst_104 : f32 to vector<8x512xf32>
    %197 = arith.mulf %196, %195 : vector<8x512xf32>
    %cst_105 = arith.constant 5.000000e-01 : f32
    %198 = vector.broadcast %cst_105 : f32 to vector<8x512xf32>
    %199 = arith.addf %197, %198 : vector<8x512xf32>
    %c1_106 = arith.constant 1 : index
    %c0_107 = arith.constant 0 : index
    %c0_108 = arith.constant 0 : index
    %200 = vector.load %arg3[%c1_106, %c0_107, %c0_108] : memref<4x512x512xbf16, #tpu.memory_space<vmem>>, vector<1x512x512xbf16>
    %201 = vector.shape_cast %200 : vector<1x512x512xbf16> to vector<512x512xbf16>
    %cst_109 = arith.constant dense<0.000000e+00> : vector<8x512xf32>
    %202 = tpu.matmul %184, %201, %cst_109 {dimension_numbers = #tpu.dot_dimension_numbers<[1], [0], [0], [1], [0, 0, 1, 1], [], []>} : vector<8x512xbf16>, vector<512x512xbf16>, vector<8x512xf32> -> vector<8x512xf32>
    %203 = arith.index_cast %c3_i32 : i32 to index
    %c0_110 = arith.constant 0 : index
    %c512_111 = arith.constant 512 : index
    %204 = vector.load %arg2[%203, %c0_110, %c512_111] : memref<8x8x2048xbf16, #tpu.memory_space<vmem>>, vector<1x8x512xbf16>
    %205 = vector.shape_cast %204 : vector<1x8x512xbf16> to vector<8x512xbf16>
    %206 = arith.extf %205 : vector<8x512xbf16> to vector<8x512xf32>
    %207 = arith.addf %202, %206 : vector<8x512xf32>
    %cst_112 = arith.constant 5.000000e-01 : f32
    %208 = vector.broadcast %cst_112 : f32 to vector<8x512xf32>
    %209 = arith.mulf %208, %207 : vector<8x512xf32>
    %210 = math.tanh %209 : vector<8x512xf32>
    %cst_113 = arith.constant 5.000000e-01 : f32
    %211 = vector.broadcast %cst_113 : f32 to vector<8x512xf32>
    %212 = arith.mulf %211, %210 : vector<8x512xf32>
    %cst_114 = arith.constant 5.000000e-01 : f32
    %213 = vector.broadcast %cst_114 : f32 to vector<8x512xf32>
    %214 = arith.addf %212, %213 : vector<8x512xf32>
    %215 = arith.mulf %214, %166 : vector<8x512xf32>
    %c2_115 = arith.constant 2 : index
    %c0_116 = arith.constant 0 : index
    %c0_117 = arith.constant 0 : index
    %216 = vector.load %arg3[%c2_115, %c0_116, %c0_117] : memref<4x512x512xbf16, #tpu.memory_space<vmem>>, vector<1x512x512xbf16>
    %217 = vector.shape_cast %216 : vector<1x512x512xbf16> to vector<512x512xbf16>
    %cst_118 = arith.constant dense<0.000000e+00> : vector<8x512xf32>
    %218 = tpu.matmul %184, %217, %cst_118 {dimension_numbers = #tpu.dot_dimension_numbers<[1], [0], [0], [1], [0, 0, 1, 1], [], []>} : vector<8x512xbf16>, vector<512x512xbf16>, vector<8x512xf32> -> vector<8x512xf32>
    %219 = arith.index_cast %c3_i32 : i32 to index
    %c0_119 = arith.constant 0 : index
    %c1024_120 = arith.constant 1024 : index
    %220 = vector.load %arg2[%219, %c0_119, %c1024_120] : memref<8x8x2048xbf16, #tpu.memory_space<vmem>>, vector<1x8x512xbf16>
    %221 = vector.shape_cast %220 : vector<1x8x512xbf16> to vector<8x512xbf16>
    %222 = arith.extf %221 : vector<8x512xbf16> to vector<8x512xf32>
    %223 = arith.addf %218, %222 : vector<8x512xf32>
    %224 = math.tanh %223 : vector<8x512xf32>
    %225 = arith.mulf %199, %224 : vector<8x512xf32>
    %226 = arith.addf %215, %225 : vector<8x512xf32>
    %c3_121 = arith.constant 3 : index
    %c0_122 = arith.constant 0 : index
    %c0_123 = arith.constant 0 : index
    %227 = vector.load %arg3[%c3_121, %c0_122, %c0_123] : memref<4x512x512xbf16, #tpu.memory_space<vmem>>, vector<1x512x512xbf16>
    %228 = vector.shape_cast %227 : vector<1x512x512xbf16> to vector<512x512xbf16>
    %cst_124 = arith.constant dense<0.000000e+00> : vector<8x512xf32>
    %229 = tpu.matmul %184, %228, %cst_124 {dimension_numbers = #tpu.dot_dimension_numbers<[1], [0], [0], [1], [0, 0, 1, 1], [], []>} : vector<8x512xbf16>, vector<512x512xbf16>, vector<8x512xf32> -> vector<8x512xf32>
    %230 = arith.index_cast %c3_i32 : i32 to index
    %c0_125 = arith.constant 0 : index
    %c1536_126 = arith.constant 1536 : index
    %231 = vector.load %arg2[%230, %c0_125, %c1536_126] : memref<8x8x2048xbf16, #tpu.memory_space<vmem>>, vector<1x8x512xbf16>
    %232 = vector.shape_cast %231 : vector<1x8x512xbf16> to vector<8x512xbf16>
    %233 = arith.extf %232 : vector<8x512xbf16> to vector<8x512xf32>
    %234 = arith.addf %229, %233 : vector<8x512xf32>
    %cst_127 = arith.constant 5.000000e-01 : f32
    %235 = vector.broadcast %cst_127 : f32 to vector<8x512xf32>
    %236 = arith.mulf %235, %234 : vector<8x512xf32>
    %237 = math.tanh %236 : vector<8x512xf32>
    %cst_128 = arith.constant 5.000000e-01 : f32
    %238 = vector.broadcast %cst_128 : f32 to vector<8x512xf32>
    %239 = arith.mulf %238, %237 : vector<8x512xf32>
    %cst_129 = arith.constant 5.000000e-01 : f32
    %240 = vector.broadcast %cst_129 : f32 to vector<8x512xf32>
    %241 = arith.addf %239, %240 : vector<8x512xf32>
    %242 = math.tanh %226 : vector<8x512xf32>
    %243 = arith.mulf %241, %242 : vector<8x512xf32>
    %244 = arith.truncf %243 : vector<8x512xf32> to vector<8x512xbf16>
    %c4_i32 = arith.constant 4 : i32
    %c0_130 = arith.constant 0 : index
    %c0_131 = arith.constant 0 : index
    %c0_132 = arith.constant 0 : index
    %245 = vector.load %arg3[%c0_130, %c0_131, %c0_132] : memref<4x512x512xbf16, #tpu.memory_space<vmem>>, vector<1x512x512xbf16>
    %246 = vector.shape_cast %245 : vector<1x512x512xbf16> to vector<512x512xbf16>
    %cst_133 = arith.constant dense<0.000000e+00> : vector<8x512xf32>
    %247 = tpu.matmul %244, %246, %cst_133 {dimension_numbers = #tpu.dot_dimension_numbers<[1], [0], [0], [1], [0, 0, 1, 1], [], []>} : vector<8x512xbf16>, vector<512x512xbf16>, vector<8x512xf32> -> vector<8x512xf32>
    %248 = arith.index_cast %c4_i32 : i32 to index
    %c0_134 = arith.constant 0 : index
    %c0_135 = arith.constant 0 : index
    %249 = vector.load %arg2[%248, %c0_134, %c0_135] : memref<8x8x2048xbf16, #tpu.memory_space<vmem>>, vector<1x8x512xbf16>
    %250 = vector.shape_cast %249 : vector<1x8x512xbf16> to vector<8x512xbf16>
    %251 = arith.extf %250 : vector<8x512xbf16> to vector<8x512xf32>
    %252 = arith.addf %247, %251 : vector<8x512xf32>
    %cst_136 = arith.constant 5.000000e-01 : f32
    %253 = vector.broadcast %cst_136 : f32 to vector<8x512xf32>
    %254 = arith.mulf %253, %252 : vector<8x512xf32>
    %255 = math.tanh %254 : vector<8x512xf32>
    %cst_137 = arith.constant 5.000000e-01 : f32
    %256 = vector.broadcast %cst_137 : f32 to vector<8x512xf32>
    %257 = arith.mulf %256, %255 : vector<8x512xf32>
    %cst_138 = arith.constant 5.000000e-01 : f32
    %258 = vector.broadcast %cst_138 : f32 to vector<8x512xf32>
    %259 = arith.addf %257, %258 : vector<8x512xf32>
    %c1_139 = arith.constant 1 : index
    %c0_140 = arith.constant 0 : index
    %c0_141 = arith.constant 0 : index
    %260 = vector.load %arg3[%c1_139, %c0_140, %c0_141] : memref<4x512x512xbf16, #tpu.memory_space<vmem>>, vector<1x512x512xbf16>
    %261 = vector.shape_cast %260 : vector<1x512x512xbf16> to vector<512x512xbf16>
    %cst_142 = arith.constant dense<0.000000e+00> : vector<8x512xf32>
    %262 = tpu.matmul %244, %261, %cst_142 {dimension_numbers = #tpu.dot_dimension_numbers<[1], [0], [0], [1], [0, 0, 1, 1], [], []>} : vector<8x512xbf16>, vector<512x512xbf16>, vector<8x512xf32> -> vector<8x512xf32>
    %263 = arith.index_cast %c4_i32 : i32 to index
    %c0_143 = arith.constant 0 : index
    %c512_144 = arith.constant 512 : index
    %264 = vector.load %arg2[%263, %c0_143, %c512_144] : memref<8x8x2048xbf16, #tpu.memory_space<vmem>>, vector<1x8x512xbf16>
    %265 = vector.shape_cast %264 : vector<1x8x512xbf16> to vector<8x512xbf16>
    %266 = arith.extf %265 : vector<8x512xbf16> to vector<8x512xf32>
    %267 = arith.addf %262, %266 : vector<8x512xf32>
    %cst_145 = arith.constant 5.000000e-01 : f32
    %268 = vector.broadcast %cst_145 : f32 to vector<8x512xf32>
    %269 = arith.mulf %268, %267 : vector<8x512xf32>
    %270 = math.tanh %269 : vector<8x512xf32>
    %cst_146 = arith.constant 5.000000e-01 : f32
    %271 = vector.broadcast %cst_146 : f32 to vector<8x512xf32>
    %272 = arith.mulf %271, %270 : vector<8x512xf32>
    %cst_147 = arith.constant 5.000000e-01 : f32
    %273 = vector.broadcast %cst_147 : f32 to vector<8x512xf32>
    %274 = arith.addf %272, %273 : vector<8x512xf32>
    %275 = arith.mulf %274, %226 : vector<8x512xf32>
    %c2_148 = arith.constant 2 : index
    %c0_149 = arith.constant 0 : index
    %c0_150 = arith.constant 0 : index
    %276 = vector.load %arg3[%c2_148, %c0_149, %c0_150] : memref<4x512x512xbf16, #tpu.memory_space<vmem>>, vector<1x512x512xbf16>
    %277 = vector.shape_cast %276 : vector<1x512x512xbf16> to vector<512x512xbf16>
    %cst_151 = arith.constant dense<0.000000e+00> : vector<8x512xf32>
    %278 = tpu.matmul %244, %277, %cst_151 {dimension_numbers = #tpu.dot_dimension_numbers<[1], [0], [0], [1], [0, 0, 1, 1], [], []>} : vector<8x512xbf16>, vector<512x512xbf16>, vector<8x512xf32> -> vector<8x512xf32>
    %279 = arith.index_cast %c4_i32 : i32 to index
    %c0_152 = arith.constant 0 : index
    %c1024_153 = arith.constant 1024 : index
    %280 = vector.load %arg2[%279, %c0_152, %c1024_153] : memref<8x8x2048xbf16, #tpu.memory_space<vmem>>, vector<1x8x512xbf16>
    %281 = vector.shape_cast %280 : vector<1x8x512xbf16> to vector<8x512xbf16>
    %282 = arith.extf %281 : vector<8x512xbf16> to vector<8x512xf32>
    %283 = arith.addf %278, %282 : vector<8x512xf32>
    %284 = math.tanh %283 : vector<8x512xf32>
    %285 = arith.mulf %259, %284 : vector<8x512xf32>
    %286 = arith.addf %275, %285 : vector<8x512xf32>
    %c3_154 = arith.constant 3 : index
    %c0_155 = arith.constant 0 : index
    %c0_156 = arith.constant 0 : index
    %287 = vector.load %arg3[%c3_154, %c0_155, %c0_156] : memref<4x512x512xbf16, #tpu.memory_space<vmem>>, vector<1x512x512xbf16>
    %288 = vector.shape_cast %287 : vector<1x512x512xbf16> to vector<512x512xbf16>
    %cst_157 = arith.constant dense<0.000000e+00> : vector<8x512xf32>
    %289 = tpu.matmul %244, %288, %cst_157 {dimension_numbers = #tpu.dot_dimension_numbers<[1], [0], [0], [1], [0, 0, 1, 1], [], []>} : vector<8x512xbf16>, vector<512x512xbf16>, vector<8x512xf32> -> vector<8x512xf32>
    %290 = arith.index_cast %c4_i32 : i32 to index
    %c0_158 = arith.constant 0 : index
    %c1536_159 = arith.constant 1536 : index
    %291 = vector.load %arg2[%290, %c0_158, %c1536_159] : memref<8x8x2048xbf16, #tpu.memory_space<vmem>>, vector<1x8x512xbf16>
    %292 = vector.shape_cast %291 : vector<1x8x512xbf16> to vector<8x512xbf16>
    %293 = arith.extf %292 : vector<8x512xbf16> to vector<8x512xf32>
    %294 = arith.addf %289, %293 : vector<8x512xf32>
    %cst_160 = arith.constant 5.000000e-01 : f32
    %295 = vector.broadcast %cst_160 : f32 to vector<8x512xf32>
    %296 = arith.mulf %295, %294 : vector<8x512xf32>
    %297 = math.tanh %296 : vector<8x512xf32>
    %cst_161 = arith.constant 5.000000e-01 : f32
    %298 = vector.broadcast %cst_161 : f32 to vector<8x512xf32>
    %299 = arith.mulf %298, %297 : vector<8x512xf32>
    %cst_162 = arith.constant 5.000000e-01 : f32
    %300 = vector.broadcast %cst_162 : f32 to vector<8x512xf32>
    %301 = arith.addf %299, %300 : vector<8x512xf32>
    %302 = math.tanh %286 : vector<8x512xf32>
    %303 = arith.mulf %301, %302 : vector<8x512xf32>
    %304 = arith.truncf %303 : vector<8x512xf32> to vector<8x512xbf16>
    %c5_i32 = arith.constant 5 : i32
    %c0_163 = arith.constant 0 : index
    %c0_164 = arith.constant 0 : index
    %c0_165 = arith.constant 0 : index
    %305 = vector.load %arg3[%c0_163, %c0_164, %c0_165] : memref<4x512x512xbf16, #tpu.memory_space<vmem>>, vector<1x512x512xbf16>
    %306 = vector.shape_cast %305 : vector<1x512x512xbf16> to vector<512x512xbf16>
    %cst_166 = arith.constant dense<0.000000e+00> : vector<8x512xf32>
    %307 = tpu.matmul %304, %306, %cst_166 {dimension_numbers = #tpu.dot_dimension_numbers<[1], [0], [0], [1], [0, 0, 1, 1], [], []>} : vector<8x512xbf16>, vector<512x512xbf16>, vector<8x512xf32> -> vector<8x512xf32>
    %308 = arith.index_cast %c5_i32 : i32 to index
    %c0_167 = arith.constant 0 : index
    %c0_168 = arith.constant 0 : index
    %309 = vector.load %arg2[%308, %c0_167, %c0_168] : memref<8x8x2048xbf16, #tpu.memory_space<vmem>>, vector<1x8x512xbf16>
    %310 = vector.shape_cast %309 : vector<1x8x512xbf16> to vector<8x512xbf16>
    %311 = arith.extf %310 : vector<8x512xbf16> to vector<8x512xf32>
    %312 = arith.addf %307, %311 : vector<8x512xf32>
    %cst_169 = arith.constant 5.000000e-01 : f32
    %313 = vector.broadcast %cst_169 : f32 to vector<8x512xf32>
    %314 = arith.mulf %313, %312 : vector<8x512xf32>
    %315 = math.tanh %314 : vector<8x512xf32>
    %cst_170 = arith.constant 5.000000e-01 : f32
    %316 = vector.broadcast %cst_170 : f32 to vector<8x512xf32>
    %317 = arith.mulf %316, %315 : vector<8x512xf32>
    %cst_171 = arith.constant 5.000000e-01 : f32
    %318 = vector.broadcast %cst_171 : f32 to vector<8x512xf32>
    %319 = arith.addf %317, %318 : vector<8x512xf32>
    %c1_172 = arith.constant 1 : index
    %c0_173 = arith.constant 0 : index
    %c0_174 = arith.constant 0 : index
    %320 = vector.load %arg3[%c1_172, %c0_173, %c0_174] : memref<4x512x512xbf16, #tpu.memory_space<vmem>>, vector<1x512x512xbf16>
    %321 = vector.shape_cast %320 : vector<1x512x512xbf16> to vector<512x512xbf16>
    %cst_175 = arith.constant dense<0.000000e+00> : vector<8x512xf32>
    %322 = tpu.matmul %304, %321, %cst_175 {dimension_numbers = #tpu.dot_dimension_numbers<[1], [0], [0], [1], [0, 0, 1, 1], [], []>} : vector<8x512xbf16>, vector<512x512xbf16>, vector<8x512xf32> -> vector<8x512xf32>
    %323 = arith.index_cast %c5_i32 : i32 to index
    %c0_176 = arith.constant 0 : index
    %c512_177 = arith.constant 512 : index
    %324 = vector.load %arg2[%323, %c0_176, %c512_177] : memref<8x8x2048xbf16, #tpu.memory_space<vmem>>, vector<1x8x512xbf16>
    %325 = vector.shape_cast %324 : vector<1x8x512xbf16> to vector<8x512xbf16>
    %326 = arith.extf %325 : vector<8x512xbf16> to vector<8x512xf32>
    %327 = arith.addf %322, %326 : vector<8x512xf32>
    %cst_178 = arith.constant 5.000000e-01 : f32
    %328 = vector.broadcast %cst_178 : f32 to vector<8x512xf32>
    %329 = arith.mulf %328, %327 : vector<8x512xf32>
    %330 = math.tanh %329 : vector<8x512xf32>
    %cst_179 = arith.constant 5.000000e-01 : f32
    %331 = vector.broadcast %cst_179 : f32 to vector<8x512xf32>
    %332 = arith.mulf %331, %330 : vector<8x512xf32>
    %cst_180 = arith.constant 5.000000e-01 : f32
    %333 = vector.broadcast %cst_180 : f32 to vector<8x512xf32>
    %334 = arith.addf %332, %333 : vector<8x512xf32>
    %335 = arith.mulf %334, %286 : vector<8x512xf32>
    %c2_181 = arith.constant 2 : index
    %c0_182 = arith.constant 0 : index
    %c0_183 = arith.constant 0 : index
    %336 = vector.load %arg3[%c2_181, %c0_182, %c0_183] : memref<4x512x512xbf16, #tpu.memory_space<vmem>>, vector<1x512x512xbf16>
    %337 = vector.shape_cast %336 : vector<1x512x512xbf16> to vector<512x512xbf16>
    %cst_184 = arith.constant dense<0.000000e+00> : vector<8x512xf32>
    %338 = tpu.matmul %304, %337, %cst_184 {dimension_numbers = #tpu.dot_dimension_numbers<[1], [0], [0], [1], [0, 0, 1, 1], [], []>} : vector<8x512xbf16>, vector<512x512xbf16>, vector<8x512xf32> -> vector<8x512xf32>
    %339 = arith.index_cast %c5_i32 : i32 to index
    %c0_185 = arith.constant 0 : index
    %c1024_186 = arith.constant 1024 : index
    %340 = vector.load %arg2[%339, %c0_185, %c1024_186] : memref<8x8x2048xbf16, #tpu.memory_space<vmem>>, vector<1x8x512xbf16>
    %341 = vector.shape_cast %340 : vector<1x8x512xbf16> to vector<8x512xbf16>
    %342 = arith.extf %341 : vector<8x512xbf16> to vector<8x512xf32>
    %343 = arith.addf %338, %342 : vector<8x512xf32>
    %344 = math.tanh %343 : vector<8x512xf32>
    %345 = arith.mulf %319, %344 : vector<8x512xf32>
    %346 = arith.addf %335, %345 : vector<8x512xf32>
    %c3_187 = arith.constant 3 : index
    %c0_188 = arith.constant 0 : index
    %c0_189 = arith.constant 0 : index
    %347 = vector.load %arg3[%c3_187, %c0_188, %c0_189] : memref<4x512x512xbf16, #tpu.memory_space<vmem>>, vector<1x512x512xbf16>
    %348 = vector.shape_cast %347 : vector<1x512x512xbf16> to vector<512x512xbf16>
    %cst_190 = arith.constant dense<0.000000e+00> : vector<8x512xf32>
    %349 = tpu.matmul %304, %348, %cst_190 {dimension_numbers = #tpu.dot_dimension_numbers<[1], [0], [0], [1], [0, 0, 1, 1], [], []>} : vector<8x512xbf16>, vector<512x512xbf16>, vector<8x512xf32> -> vector<8x512xf32>
    %350 = arith.index_cast %c5_i32 : i32 to index
    %c0_191 = arith.constant 0 : index
    %c1536_192 = arith.constant 1536 : index
    %351 = vector.load %arg2[%350, %c0_191, %c1536_192] : memref<8x8x2048xbf16, #tpu.memory_space<vmem>>, vector<1x8x512xbf16>
    %352 = vector.shape_cast %351 : vector<1x8x512xbf16> to vector<8x512xbf16>
    %353 = arith.extf %352 : vector<8x512xbf16> to vector<8x512xf32>
    %354 = arith.addf %349, %353 : vector<8x512xf32>
    %cst_193 = arith.constant 5.000000e-01 : f32
    %355 = vector.broadcast %cst_193 : f32 to vector<8x512xf32>
    %356 = arith.mulf %355, %354 : vector<8x512xf32>
    %357 = math.tanh %356 : vector<8x512xf32>
    %cst_194 = arith.constant 5.000000e-01 : f32
    %358 = vector.broadcast %cst_194 : f32 to vector<8x512xf32>
    %359 = arith.mulf %358, %357 : vector<8x512xf32>
    %cst_195 = arith.constant 5.000000e-01 : f32
    %360 = vector.broadcast %cst_195 : f32 to vector<8x512xf32>
    %361 = arith.addf %359, %360 : vector<8x512xf32>
    %362 = math.tanh %346 : vector<8x512xf32>
    %363 = arith.mulf %361, %362 : vector<8x512xf32>
    %364 = arith.truncf %363 : vector<8x512xf32> to vector<8x512xbf16>
    %c6_i32 = arith.constant 6 : i32
    %c0_196 = arith.constant 0 : index
    %c0_197 = arith.constant 0 : index
    %c0_198 = arith.constant 0 : index
    %365 = vector.load %arg3[%c0_196, %c0_197, %c0_198] : memref<4x512x512xbf16, #tpu.memory_space<vmem>>, vector<1x512x512xbf16>
    %366 = vector.shape_cast %365 : vector<1x512x512xbf16> to vector<512x512xbf16>
    %cst_199 = arith.constant dense<0.000000e+00> : vector<8x512xf32>
    %367 = tpu.matmul %364, %366, %cst_199 {dimension_numbers = #tpu.dot_dimension_numbers<[1], [0], [0], [1], [0, 0, 1, 1], [], []>} : vector<8x512xbf16>, vector<512x512xbf16>, vector<8x512xf32> -> vector<8x512xf32>
    %368 = arith.index_cast %c6_i32 : i32 to index
    %c0_200 = arith.constant 0 : index
    %c0_201 = arith.constant 0 : index
    %369 = vector.load %arg2[%368, %c0_200, %c0_201] : memref<8x8x2048xbf16, #tpu.memory_space<vmem>>, vector<1x8x512xbf16>
    %370 = vector.shape_cast %369 : vector<1x8x512xbf16> to vector<8x512xbf16>
    %371 = arith.extf %370 : vector<8x512xbf16> to vector<8x512xf32>
    %372 = arith.addf %367, %371 : vector<8x512xf32>
    %cst_202 = arith.constant 5.000000e-01 : f32
    %373 = vector.broadcast %cst_202 : f32 to vector<8x512xf32>
    %374 = arith.mulf %373, %372 : vector<8x512xf32>
    %375 = math.tanh %374 : vector<8x512xf32>
    %cst_203 = arith.constant 5.000000e-01 : f32
    %376 = vector.broadcast %cst_203 : f32 to vector<8x512xf32>
    %377 = arith.mulf %376, %375 : vector<8x512xf32>
    %cst_204 = arith.constant 5.000000e-01 : f32
    %378 = vector.broadcast %cst_204 : f32 to vector<8x512xf32>
    %379 = arith.addf %377, %378 : vector<8x512xf32>
    %c1_205 = arith.constant 1 : index
    %c0_206 = arith.constant 0 : index
    %c0_207 = arith.constant 0 : index
    %380 = vector.load %arg3[%c1_205, %c0_206, %c0_207] : memref<4x512x512xbf16, #tpu.memory_space<vmem>>, vector<1x512x512xbf16>
    %381 = vector.shape_cast %380 : vector<1x512x512xbf16> to vector<512x512xbf16>
    %cst_208 = arith.constant dense<0.000000e+00> : vector<8x512xf32>
    %382 = tpu.matmul %364, %381, %cst_208 {dimension_numbers = #tpu.dot_dimension_numbers<[1], [0], [0], [1], [0, 0, 1, 1], [], []>} : vector<8x512xbf16>, vector<512x512xbf16>, vector<8x512xf32> -> vector<8x512xf32>
    %383 = arith.index_cast %c6_i32 : i32 to index
    %c0_209 = arith.constant 0 : index
    %c512_210 = arith.constant 512 : index
    %384 = vector.load %arg2[%383, %c0_209, %c512_210] : memref<8x8x2048xbf16, #tpu.memory_space<vmem>>, vector<1x8x512xbf16>
    %385 = vector.shape_cast %384 : vector<1x8x512xbf16> to vector<8x512xbf16>
    %386 = arith.extf %385 : vector<8x512xbf16> to vector<8x512xf32>
    %387 = arith.addf %382, %386 : vector<8x512xf32>
    %cst_211 = arith.constant 5.000000e-01 : f32
    %388 = vector.broadcast %cst_211 : f32 to vector<8x512xf32>
    %389 = arith.mulf %388, %387 : vector<8x512xf32>
    %390 = math.tanh %389 : vector<8x512xf32>
    %cst_212 = arith.constant 5.000000e-01 : f32
    %391 = vector.broadcast %cst_212 : f32 to vector<8x512xf32>
    %392 = arith.mulf %391, %390 : vector<8x512xf32>
    %cst_213 = arith.constant 5.000000e-01 : f32
    %393 = vector.broadcast %cst_213 : f32 to vector<8x512xf32>
    %394 = arith.addf %392, %393 : vector<8x512xf32>
    %395 = arith.mulf %394, %346 : vector<8x512xf32>
    %c2_214 = arith.constant 2 : index
    %c0_215 = arith.constant 0 : index
    %c0_216 = arith.constant 0 : index
    %396 = vector.load %arg3[%c2_214, %c0_215, %c0_216] : memref<4x512x512xbf16, #tpu.memory_space<vmem>>, vector<1x512x512xbf16>
    %397 = vector.shape_cast %396 : vector<1x512x512xbf16> to vector<512x512xbf16>
    %cst_217 = arith.constant dense<0.000000e+00> : vector<8x512xf32>
    %398 = tpu.matmul %364, %397, %cst_217 {dimension_numbers = #tpu.dot_dimension_numbers<[1], [0], [0], [1], [0, 0, 1, 1], [], []>} : vector<8x512xbf16>, vector<512x512xbf16>, vector<8x512xf32> -> vector<8x512xf32>
    %399 = arith.index_cast %c6_i32 : i32 to index
    %c0_218 = arith.constant 0 : index
    %c1024_219 = arith.constant 1024 : index
    %400 = vector.load %arg2[%399, %c0_218, %c1024_219] : memref<8x8x2048xbf16, #tpu.memory_space<vmem>>, vector<1x8x512xbf16>
    %401 = vector.shape_cast %400 : vector<1x8x512xbf16> to vector<8x512xbf16>
    %402 = arith.extf %401 : vector<8x512xbf16> to vector<8x512xf32>
    %403 = arith.addf %398, %402 : vector<8x512xf32>
    %404 = math.tanh %403 : vector<8x512xf32>
    %405 = arith.mulf %379, %404 : vector<8x512xf32>
    %406 = arith.addf %395, %405 : vector<8x512xf32>
    %c3_220 = arith.constant 3 : index
    %c0_221 = arith.constant 0 : index
    %c0_222 = arith.constant 0 : index
    %407 = vector.load %arg3[%c3_220, %c0_221, %c0_222] : memref<4x512x512xbf16, #tpu.memory_space<vmem>>, vector<1x512x512xbf16>
    %408 = vector.shape_cast %407 : vector<1x512x512xbf16> to vector<512x512xbf16>
    %cst_223 = arith.constant dense<0.000000e+00> : vector<8x512xf32>
    %409 = tpu.matmul %364, %408, %cst_223 {dimension_numbers = #tpu.dot_dimension_numbers<[1], [0], [0], [1], [0, 0, 1, 1], [], []>} : vector<8x512xbf16>, vector<512x512xbf16>, vector<8x512xf32> -> vector<8x512xf32>
    %410 = arith.index_cast %c6_i32 : i32 to index
    %c0_224 = arith.constant 0 : index
    %c1536_225 = arith.constant 1536 : index
    %411 = vector.load %arg2[%410, %c0_224, %c1536_225] : memref<8x8x2048xbf16, #tpu.memory_space<vmem>>, vector<1x8x512xbf16>
    %412 = vector.shape_cast %411 : vector<1x8x512xbf16> to vector<8x512xbf16>
    %413 = arith.extf %412 : vector<8x512xbf16> to vector<8x512xf32>
    %414 = arith.addf %409, %413 : vector<8x512xf32>
    %cst_226 = arith.constant 5.000000e-01 : f32
    %415 = vector.broadcast %cst_226 : f32 to vector<8x512xf32>
    %416 = arith.mulf %415, %414 : vector<8x512xf32>
    %417 = math.tanh %416 : vector<8x512xf32>
    %cst_227 = arith.constant 5.000000e-01 : f32
    %418 = vector.broadcast %cst_227 : f32 to vector<8x512xf32>
    %419 = arith.mulf %418, %417 : vector<8x512xf32>
    %cst_228 = arith.constant 5.000000e-01 : f32
    %420 = vector.broadcast %cst_228 : f32 to vector<8x512xf32>
    %421 = arith.addf %419, %420 : vector<8x512xf32>
    %422 = math.tanh %406 : vector<8x512xf32>
    %423 = arith.mulf %421, %422 : vector<8x512xf32>
    %424 = arith.truncf %423 : vector<8x512xf32> to vector<8x512xbf16>
    %c7_i32 = arith.constant 7 : i32
    %c0_229 = arith.constant 0 : index
    %c0_230 = arith.constant 0 : index
    %c0_231 = arith.constant 0 : index
    %425 = vector.load %arg3[%c0_229, %c0_230, %c0_231] : memref<4x512x512xbf16, #tpu.memory_space<vmem>>, vector<1x512x512xbf16>
    %426 = vector.shape_cast %425 : vector<1x512x512xbf16> to vector<512x512xbf16>
    %cst_232 = arith.constant dense<0.000000e+00> : vector<8x512xf32>
    %427 = tpu.matmul %424, %426, %cst_232 {dimension_numbers = #tpu.dot_dimension_numbers<[1], [0], [0], [1], [0, 0, 1, 1], [], []>} : vector<8x512xbf16>, vector<512x512xbf16>, vector<8x512xf32> -> vector<8x512xf32>
    %428 = arith.index_cast %c7_i32 : i32 to index
    %c0_233 = arith.constant 0 : index
    %c0_234 = arith.constant 0 : index
    %429 = vector.load %arg2[%428, %c0_233, %c0_234] : memref<8x8x2048xbf16, #tpu.memory_space<vmem>>, vector<1x8x512xbf16>
    %430 = vector.shape_cast %429 : vector<1x8x512xbf16> to vector<8x512xbf16>
    %431 = arith.extf %430 : vector<8x512xbf16> to vector<8x512xf32>
    %432 = arith.addf %427, %431 : vector<8x512xf32>
    %cst_235 = arith.constant 5.000000e-01 : f32
    %433 = vector.broadcast %cst_235 : f32 to vector<8x512xf32>
    %434 = arith.mulf %433, %432 : vector<8x512xf32>
    %435 = math.tanh %434 : vector<8x512xf32>
    %cst_236 = arith.constant 5.000000e-01 : f32
    %436 = vector.broadcast %cst_236 : f32 to vector<8x512xf32>
    %437 = arith.mulf %436, %435 : vector<8x512xf32>
    %cst_237 = arith.constant 5.000000e-01 : f32
    %438 = vector.broadcast %cst_237 : f32 to vector<8x512xf32>
    %439 = arith.addf %437, %438 : vector<8x512xf32>
    %c1_238 = arith.constant 1 : index
    %c0_239 = arith.constant 0 : index
    %c0_240 = arith.constant 0 : index
    %440 = vector.load %arg3[%c1_238, %c0_239, %c0_240] : memref<4x512x512xbf16, #tpu.memory_space<vmem>>, vector<1x512x512xbf16>
    %441 = vector.shape_cast %440 : vector<1x512x512xbf16> to vector<512x512xbf16>
    %cst_241 = arith.constant dense<0.000000e+00> : vector<8x512xf32>
    %442 = tpu.matmul %424, %441, %cst_241 {dimension_numbers = #tpu.dot_dimension_numbers<[1], [0], [0], [1], [0, 0, 1, 1], [], []>} : vector<8x512xbf16>, vector<512x512xbf16>, vector<8x512xf32> -> vector<8x512xf32>
    %443 = arith.index_cast %c7_i32 : i32 to index
    %c0_242 = arith.constant 0 : index
    %c512_243 = arith.constant 512 : index
    %444 = vector.load %arg2[%443, %c0_242, %c512_243] : memref<8x8x2048xbf16, #tpu.memory_space<vmem>>, vector<1x8x512xbf16>
    %445 = vector.shape_cast %444 : vector<1x8x512xbf16> to vector<8x512xbf16>
    %446 = arith.extf %445 : vector<8x512xbf16> to vector<8x512xf32>
    %447 = arith.addf %442, %446 : vector<8x512xf32>
    %cst_244 = arith.constant 5.000000e-01 : f32
    %448 = vector.broadcast %cst_244 : f32 to vector<8x512xf32>
    %449 = arith.mulf %448, %447 : vector<8x512xf32>
    %450 = math.tanh %449 : vector<8x512xf32>
    %cst_245 = arith.constant 5.000000e-01 : f32
    %451 = vector.broadcast %cst_245 : f32 to vector<8x512xf32>
    %452 = arith.mulf %451, %450 : vector<8x512xf32>
    %cst_246 = arith.constant 5.000000e-01 : f32
    %453 = vector.broadcast %cst_246 : f32 to vector<8x512xf32>
    %454 = arith.addf %452, %453 : vector<8x512xf32>
    %455 = arith.mulf %454, %406 : vector<8x512xf32>
    %c2_247 = arith.constant 2 : index
    %c0_248 = arith.constant 0 : index
    %c0_249 = arith.constant 0 : index
    %456 = vector.load %arg3[%c2_247, %c0_248, %c0_249] : memref<4x512x512xbf16, #tpu.memory_space<vmem>>, vector<1x512x512xbf16>
    %457 = vector.shape_cast %456 : vector<1x512x512xbf16> to vector<512x512xbf16>
    %cst_250 = arith.constant dense<0.000000e+00> : vector<8x512xf32>
    %458 = tpu.matmul %424, %457, %cst_250 {dimension_numbers = #tpu.dot_dimension_numbers<[1], [0], [0], [1], [0, 0, 1, 1], [], []>} : vector<8x512xbf16>, vector<512x512xbf16>, vector<8x512xf32> -> vector<8x512xf32>
    %459 = arith.index_cast %c7_i32 : i32 to index
    %c0_251 = arith.constant 0 : index
    %c1024_252 = arith.constant 1024 : index
    %460 = vector.load %arg2[%459, %c0_251, %c1024_252] : memref<8x8x2048xbf16, #tpu.memory_space<vmem>>, vector<1x8x512xbf16>
    %461 = vector.shape_cast %460 : vector<1x8x512xbf16> to vector<8x512xbf16>
    %462 = arith.extf %461 : vector<8x512xbf16> to vector<8x512xf32>
    %463 = arith.addf %458, %462 : vector<8x512xf32>
    %464 = math.tanh %463 : vector<8x512xf32>
    %465 = arith.mulf %439, %464 : vector<8x512xf32>
    %466 = arith.addf %455, %465 : vector<8x512xf32>
    %c3_253 = arith.constant 3 : index
    %c0_254 = arith.constant 0 : index
    %c0_255 = arith.constant 0 : index
    %467 = vector.load %arg3[%c3_253, %c0_254, %c0_255] : memref<4x512x512xbf16, #tpu.memory_space<vmem>>, vector<1x512x512xbf16>
    %468 = vector.shape_cast %467 : vector<1x512x512xbf16> to vector<512x512xbf16>
    %cst_256 = arith.constant dense<0.000000e+00> : vector<8x512xf32>
    %469 = tpu.matmul %424, %468, %cst_256 {dimension_numbers = #tpu.dot_dimension_numbers<[1], [0], [0], [1], [0, 0, 1, 1], [], []>} : vector<8x512xbf16>, vector<512x512xbf16>, vector<8x512xf32> -> vector<8x512xf32>
    %470 = arith.index_cast %c7_i32 : i32 to index
    %c0_257 = arith.constant 0 : index
    %c1536_258 = arith.constant 1536 : index
    %471 = vector.load %arg2[%470, %c0_257, %c1536_258] : memref<8x8x2048xbf16, #tpu.memory_space<vmem>>, vector<1x8x512xbf16>
    %472 = vector.shape_cast %471 : vector<1x8x512xbf16> to vector<8x512xbf16>
    %473 = arith.extf %472 : vector<8x512xbf16> to vector<8x512xf32>
    %474 = arith.addf %469, %473 : vector<8x512xf32>
    %cst_259 = arith.constant 5.000000e-01 : f32
    %475 = vector.broadcast %cst_259 : f32 to vector<8x512xf32>
    %476 = arith.mulf %475, %474 : vector<8x512xf32>
    %477 = math.tanh %476 : vector<8x512xf32>
    %cst_260 = arith.constant 5.000000e-01 : f32
    %478 = vector.broadcast %cst_260 : f32 to vector<8x512xf32>
    %479 = arith.mulf %478, %477 : vector<8x512xf32>
    %cst_261 = arith.constant 5.000000e-01 : f32
    %480 = vector.broadcast %cst_261 : f32 to vector<8x512xf32>
    %481 = arith.addf %479, %480 : vector<8x512xf32>
    %482 = math.tanh %466 : vector<8x512xf32>
    %483 = arith.mulf %481, %482 : vector<8x512xf32>
    %484 = arith.truncf %483 : vector<8x512xf32> to vector<8x512xbf16>
    %c8_i32 = arith.constant 8 : i32
    %c0_262 = arith.constant 0 : index
    %c0_263 = arith.constant 0 : index
    %485 = vector.load %arg7[%c0_262, %c0_263] : memref<8x512xbf16, #tpu.memory_space<vmem>>, vector<8x512xbf16>
    tpu.vector_store %arg7[%c0_262, %c0_263], %484 {strides = array<i32>} : memref<8x512xbf16, #tpu.memory_space<vmem>>, vector<8x512xbf16>,
    %c0_264 = arith.constant 0 : index
    %c0_265 = arith.constant 0 : index
    %486 = vector.load %arg8[%c0_264, %c0_265] : memref<8x512xf32, #tpu.memory_space<vmem>>, vector<8x512xf32>
    tpu.vector_store %arg8[%c0_264, %c0_265], %466 {strides = array<i32>} : memref<8x512xf32, #tpu.memory_space<vmem>>, vector<8x512xf32>,
    %c0_i32_266 = arith.constant 0 : i32
    %487 = arith.cmpi eq, %arg1, %c0_i32_266 : i32
    %488 = arith.extui %487 : i1 to i32
    %c0_i32_267 = arith.constant 0 : i32
    %489 = arith.cmpi ne, %488, %c0_i32_267 : i32
    scf.if %489 {
      %c0_268 = arith.constant 0 : index
      %c0_269 = arith.constant 0 : index
      %490 = vector.load %arg7[%c0_268, %c0_269] : memref<8x512xbf16, #tpu.memory_space<vmem>>, vector<8x512xbf16>
      %491 = arith.extf %490 : vector<8x512xbf16> to vector<8x512xf32>
      %c0_270 = arith.constant 0 : index
      %c0_271 = arith.constant 0 : index
      %492 = vector.load %arg4[%c0_270, %c0_271] : memref<1x512xf32, #tpu.memory_space<vmem>>, vector<1x512xf32>
      %493 = vector.broadcast %492 : vector<1x512xf32> to vector<8x512xf32>
      %494 = arith.mulf %491, %493 : vector<8x512xf32>
      %cst_272 = arith.constant dense<0.000000e+00> : vector<8xf32>
      %495 = vector.multi_reduction <add>, %494, %cst_272 [1] : vector<8x512xf32> to vector<8xf32>
      %496 = vector.shape_cast %495 : vector<8xf32> to vector<8x1xf32>
      %c0_273 = arith.constant 0 : index
      %c0_274 = arith.constant 0 : index
      %497 = vector.load %arg5[%c0_273, %c0_274] : memref<1x1xf32, #tpu.memory_space<vmem>>, vector<1x1xf32>
      %498 = vector.broadcast %497 : vector<1x1xf32> to vector<8x1xf32>
      %499 = arith.addf %496, %498 : vector<8x1xf32>
      %cst_275 = arith.constant 0.000000e+00 : f32
      %500 = vector.broadcast %cst_275 : f32 to vector<8x1xf32>
      %501 = arith.subf %500, %499 : vector<8x1xf32>
      %502 = math.exp %501 : vector<8x1xf32>
      %cst_276 = arith.constant 1.000000e+00 : f32
      %503 = vector.broadcast %cst_276 : f32 to vector<8x1xf32>
      %504 = arith.addf %503, %502 : vector<8x1xf32>
      %505 = tpu.reciprocal %504 : vector<8x1xf32> -> vector<8x1xf32>
      %c0_277 = arith.constant 0 : index
      %c0_278 = arith.constant 0 : index
      %506 = vector.load %arg6[%c0_277, %c0_278] : memref<8x1xf32, #tpu.memory_space<vmem>>, vector<8x1xf32>
      tpu.vector_store %arg6[%c0_277, %c0_278], %505 {strides = array<i32>} : memref<8x1xf32, #tpu.memory_space<vmem>>, vector<8x1xf32>,
    } else {
    }
    return
  }
  func.func @transform_0(%arg0: i32, %arg1: i32) -> (i32, i32, i32) {
    %c0_i32 = arith.constant 0 : i32
    %c0_i32_0 = arith.constant 0 : i32
    return %arg1, %arg0, %c0_i32 : i32, i32, i32
  }
  func.func @transform_1(%arg0: i32, %arg1: i32) -> (i32, i32, i32) {
    %c0_i32 = arith.constant 0 : i32
    %c0_i32_0 = arith.constant 0 : i32
    %c0_i32_1 = arith.constant 0 : i32
    %c0_i32_2 = arith.constant 0 : i32
    return %c0_i32, %c0_i32_0, %c0_i32_1 : i32, i32, i32
  }
  func.func @transform_2(%arg0: i32, %arg1: i32) -> (i32, i32) {
    %c0_i32 = arith.constant 0 : i32
    %c0_i32_0 = arith.constant 0 : i32
    %c0_i32_1 = arith.constant 0 : i32
    return %c0_i32, %c0_i32_0 : i32, i32
  }
  func.func @transform_3(%arg0: i32, %arg1: i32) -> (i32, i32) {
    %c0_i32 = arith.constant 0 : i32
    %c0_i32_0 = arith.constant 0 : i32
    %c0_i32_1 = arith.constant 0 : i32
    return %c0_i32, %c0_i32_0 : i32, i32
  }
  func.func @transform_4(%arg0: i32, %arg1: i32) -> (i32, i32) {
    %c0_i32 = arith.constant 0 : i32
    %c0_i32_0 = arith.constant 0 : i32
    return %arg0, %c0_i32 : i32, i32
  }
}

</mosaic_0001>

<llo_original>
// kernel: tpu_custom_call.1
$region0: #{tpu_custom_call.1}
  #allocation0 [shape = 'u32[]', space=smem, size = 0x4, offset = 0x4, fixed_abs, tag = 'smem constant byte address 0x4 - core index']
  #allocation1 [shape = 'u32[144,128]{1,0:T(1,128)}', space=vmem, size = 0x12000, scoped, tag = 'internal scratch']
  #allocation2 [shape = 'bf16[8,512]{1,0:T(8,128)(2,1)}', space=vmem, size = 0x2000, scoped, tag = 'scratch operand']
  #allocation3 [shape = 'f32[8,512]{1,0:T(8,128)}', space=vmem, size = 0x4000, scoped, tag = 'scratch operand']
  #allocation4 [shape = 'f32[1,1]{1,0:T(1,128)S(1)}', space=vmem, size = 0x200, scoped, tag = 'scoped memory for tpu_custom_call.1']
  %s0 = inlined_call_operand.hbm [shape: bf16[8,8,2048], index: 0, kind: input, shape index: {}]
  %s1 = inlined_call_operand.hbm [shape: bf16[4,512,512], index: 1, kind: input, shape index: {}]
  %s2 = inlined_call_operand.hbm [shape: f32[1,512], index: 2, kind: input, shape index: {}]
  %s3 = inlined_call_operand.<no memory space> [shape: f32[1,1], index: 3, kind: input, shape index: {}]
  %s4 = inlined_call_operand.vmem [shape: f32[8,1], index: 4, kind: output, shape index: {}]
  %s5 = sld [smem:[#allocation0]]
  $region46: #{tpu_custom_call.1} parent=0
    _
  %s7 = ssub.s32 1, %s5
  %s8 = scalar_select 0, %s7, %s5
  %v9 = vstv %s3
  %10 = vst [vmem:[#allocation4] sm:$0x1] %v9
  $region1: #{tpu_custom_call.1} parent=0
    #allocation5 [shape = 'u8[262144]{0}', space=vmem, size = 0x40000, scoped, tag = 'input window, operand 0, single buffered']
    #allocation6 [shape = 's32[1]{0}', space=sflag, size = 0x4, scoped, tag = 'scoped memory for tpu_custom_call.1']
    #allocation7 [shape = 'u8[2097152]{0}', space=vmem, size = 0x200000, scoped, tag = 'input window, operand 1, single buffered']
    #allocation8 [shape = 's32[1]{0}', space=sflag, size = 0x4, scoped, tag = 'scoped memory for tpu_custom_call.1']
    #allocation9 [shape = 'u8[2048]{0}', space=vmem, size = 0x800, scoped, tag = 'input window, operand 2, single buffered']
    %11 = vsyncpa [#allocation6], 0
    %12 = vsyncpa [#allocation8], 0
    // Predicated region
    $region2: #{tpu_custom_call.1} parent=1 // pred_check
      _
    $region3: #{tpu_custom_call.1} parent=1 // pred_check_branch
      %14 = sbr.rel (0) target = $region5
    $region4: #{tpu_custom_call.1} parent=1 // pred_region
      %s16 = ssub.s32 8192, 8192
      %17 = vsyncadd [#allocation6], %s16
      %s18 = sshll.u32 [#allocation5], 4
      %s19 = int_to_ptr.vmem [resolvable:$true] %s18
      %24 = dma.hbm_to_vmem [thread:$0]  %s0, 8192, %s19, [#allocation6], 1024, 1024, 64
    $region5: #{tpu_custom_call.1} parent=1 // pred_fallthru
      _
    // Predicated region
    $region6: #{tpu_custom_call.1} parent=1 // pred_check
      _
    $region7: #{tpu_custom_call.1} parent=1 // pred_check_branch
      %26 = sbr.rel (0) target = $region9
    $region8: #{tpu_custom_call.1} parent=1 // pred_region
      %s28 = ssub.s32 65536, 65536
      %29 = vsyncadd [#allocation8], %s28
      %s30 = sshll.u32 [#allocation7], 4
      %s31 = int_to_ptr.vmem [resolvable:$true] %s30
      %36 = dma.hbm_to_vmem [thread:$0]  %s1, 65536, %s31, [#allocation8], 256, 256, 16
    $region9: #{tpu_custom_call.1} parent=1 // pred_fallthru
      _
    // Predicated region
    $region10: #{tpu_custom_call.1} parent=1 // pred_check
      _
    $region11: #{tpu_custom_call.1} parent=1 // pred_check_branch
      %38 = sbr.rel (0) target = $region13
    $region12: #{tpu_custom_call.1} parent=1 // pred_region
      %s40 = ssub.s32 64, 64
      %41 = vsyncadd [#allocation8], %s40
      %s43 = sshll.u32 [#allocation9], 4
      %s44 = int_to_ptr.vmem [resolvable:$true] %s43
      %46 = dma.hbm_to_vmem [thread:$0]  %s2, 64, %s44, [#allocation8]
    $region13: #{tpu_custom_call.1} parent=1 // pred_fallthru
      _
    // Predicated region
    $region14: #{tpu_custom_call.1} parent=1 // pred_check
      _
    $region15: #{tpu_custom_call.1} parent=1 // pred_check_branch
      %48 = sbr.rel (0) target = $region17
    $region16: #{tpu_custom_call.1} parent=1 // pred_region
      _
    $region17: #{tpu_custom_call.1} parent=1 // pred_fallthru
      _
    // Predicated region
    $region18: #{tpu_custom_call.1} parent=1 // pred_check
      _
    $region19: #{tpu_custom_call.1} parent=1 // pred_check_branch
      %50 = sbr.rel (0) target = $region21
    $region20: #{tpu_custom_call.1} parent=1 // pred_region
      %51 = dma.done [#allocation6], 8192
    $region21: #{tpu_custom_call.1} parent=1 // pred_fallthru
      _
    // Predicated region
    $region22: #{tpu_custom_call.1} parent=1 // pred_check
      _
    $region23: #{tpu_custom_call.1} parent=1 // pred_check_branch
      %53 = sbr.rel (0) target = $region25
    $region24: #{tpu_custom_call.1} parent=1 // pred_region
      %54 = dma.done [#allocation8], 65536
    $region25: #{tpu_custom_call.1} parent=1 // pred_fallthru
      _
    // Predicated region
    $region26: #{tpu_custom_call.1} parent=1 // pred_check
      _
    $region27: #{tpu_custom_call.1} parent=1 // pred_check_branch
      %56 = sbr.rel (0) target = $region29
    $region28: #{tpu_custom_call.1} parent=1 // pred_region
      %57 = dma.done [#allocation8], 64
    $region29: #{tpu_custom_call.1} parent=1 // pred_fallthru
      _
    %p59 = scmp.eq.s32.totalorder 0, 0
    // Predicated region
    $region30: #{tpu_custom_call.1} parent=1 // pred_check
      %p60 = pneg %p59
    $region31: #{tpu_custom_call.1} parent=1 // pred_check_branch
      %62 = sbr.rel (%p60) target = $region33
    $region32: #{tpu_custom_call.1} parent=1 // pred_region
      %63 = vst [vmem:[#allocation2] sm:$0xff] 0
      %64 = vst [vmem:[#allocation2 + $0x8] sm:$0xff] 0
      %65 = vst [vmem:[#allocation3] sm:$0xff] 0.0
      %66 = vst [vmem:[#allocation3 + $0x8] sm:$0xff] 0.0
      %67 = vst [vmem:[#allocation3 + $0x10] sm:$0xff] 0.0
      %68 = vst [vmem:[#allocation3 + $0x18] sm:$0xff] 0.0
    $region33: #{tpu_custom_call.1} parent=1 // pred_fallthru
      _
    %v69 = vld [vmem:[#allocation2] sm:$0xff]
    %v70 = vld [vmem:[#allocation2 + $0x8] sm:$0xff]
    %v71 = vld [vmem:[#allocation3] sm:$0xff]
    %v72 = vld [vmem:[#allocation3 + $0x8] sm:$0xff]
    %v73 = vld [vmem:[#allocation3 + $0x10] sm:$0xff]
    %v74 = vld [vmem:[#allocation3 + $0x18] sm:$0xff]
    %v75 = vld [vmem:[#allocation7] sm:$0xff]
    %v76 = vld [vmem:[#allocation7 + $0x8] sm:$0xff]
    %v77 = vld [vmem:[#allocation7 + $0x10] sm:$0xff]
    %v78 = vld [vmem:[#allocation7 + $0x18] sm:$0xff]
    %v79 = vld [vmem:[#allocation7 + $0x20] sm:$0xff]
    %v80 = vld [vmem:[#allocation7 + $0x28] sm:$0xff]
    %v81 = vld [vmem:[#allocation7 + $0x30] sm:$0xff]
    %v82 = vld [vmem:[#allocation7 + $0x38] sm:$0xff]
    %v83 = vld [vmem:[#allocation7 + $0x40] sm:$0xff]
    %v84 = vld [vmem:[#allocation7 + $0x48] sm:$0xff]
    %v85 = vld [vmem:[#allocation7 + $0x50] sm:$0xff]
    %v86 = vld [vmem:[#allocation7 + $0x58] sm:$0xff]
    %v87 = vld [vmem:[#allocation7 + $0x60] sm:$0xff]
    %v88 = vld [vmem:[#allocation7 + $0x68] sm:$0xff]
    %v89 = vld [vmem:[#allocation7 + $0x70] sm:$0xff]
    %v90 = vld [vmem:[#allocation7 + $0x78] sm:$0xff]
    %v91 = vld [vmem:[#allocation7 + $0x80] sm:$0xff]
    %v92 = vld [vmem:[#allocation7 + $0x88] sm:$0xff]
    %v93 = vld [vmem:[#allocation7 + $0x90] sm:$0xff]
    %v94 = vld [vmem:[#allocation7 + $0x98] sm:$0xff]
    %v95 = vld [vmem:[#allocation7 + $0xa0] sm:$0xff]
    %v96 = vld [vmem:[#allocation7 + $0xa8] sm:$0xff]
    %v97 = vld [vmem:[#allocation7 + $0xb0] sm:$0xff]
    %v98 = vld [vmem:[#allocation7 + $0xb8] sm:$0xff]
    %v99 = vld [vmem:[#allocation7 + $0xc0] sm:$0xff]
    %v100 = vld [vmem:[#allocation7 + $0xc8] sm:$0xff]
    %v101 = vld [vmem:[#allocation7 + $0xd0] sm:$0xff]
    %v102 = vld [vmem:[#allocation7 + $0xd8] sm:$0xff]
    %v103 = vld [vmem:[#allocation7 + $0xe0] sm:$0xff]
    %v104 = vld [vmem:[#allocation7 + $0xe8] sm:$0xff]
    %v105 = vld [vmem:[#allocation7 + $0xf0] sm:$0xff]
    %v106 = vld [vmem:[#allocation7 + $0xf8] sm:$0xff]
    %v107 = vld [vmem:[#allocation7 + $0x100] sm:$0xff]
    %v108 = vld [vmem:[#allocation7 + $0x108] sm:$0xff]
    %v109 = vld [vmem:[#allocation7 + $0x110] sm:$0xff]
    %v110 = vld [vmem:[#allocation7 + $0x118] sm:$0xff]
    %v111 = vld [vmem:[#allocation7 + $0x120] sm:$0xff]
    %v112 = vld [vmem:[#allocation7 + $0x128] sm:$0xff]
    %v113 = vld [vmem:[#allocation7 + $0x130] sm:$0xff]
    %v114 = vld [vmem:[#allocation7 + $0x138] sm:$0xff]
    %v115 = vld [vmem:[#allocation7 + $0x140] sm:$0xff]
    %v116 = vld [vmem:[#allocation7 + $0x148] sm:$0xff]
    %v117 = vld [vmem:[#allocation7 + $0x150] sm:$0xff]
    %v118 = vld [vmem:[#allocation7 + $0x158] sm:$0xff]
    %v119 = vld [vmem:[#allocation7 + $0x160] sm:$0xff]
    %v120 = vld [vmem:[#allocation7 + $0x168] sm:$0xff]
    %v121 = vld [vmem:[#allocation7 + $0x170] sm:$0xff]
    %v122 = vld [vmem:[#allocation7 + $0x178] sm:$0xff]
    %v123 = vld [vmem:[#allocation7 + $0x180] sm:$0xff]
    %v124 = vld [vmem:[#allocation7 + $0x188] sm:$0xff]
    %v125 = vld [vmem:[#allocation7 + $0x190] sm:$0xff]
    %v126 = vld [vmem:[#allocation7 + $0x198] sm:$0xff]
    %v127 = vld [vmem:[#allocation7 + $0x1a0] sm:$0xff]
    %v128 = vld [vmem:[#allocation7 + $0x1a8] sm:$0xff]
    %v129 = vld [vmem:[#allocation7 + $0x1b0] sm:$0xff]
    %v130 = vld [vmem:[#allocation7 + $0x1b8] sm:$0xff]
    %v131 = vld [vmem:[#allocation7 + $0x1c0] sm:$0xff]
    %v132 = vld [vmem:[#allocation7 + $0x1c8] sm:$0xff]
    %v133 = vld [vmem:[#allocation7 + $0x1d0] sm:$0xff]
    %v134 = vld [vmem:[#allocation7 + $0x1d8] sm:$0xff]
    %v135 = vld [vmem:[#allocation7 + $0x1e0] sm:$0xff]
    %v136 = vld [vmem:[#allocation7 + $0x1e8] sm:$0xff]
    %v137 = vld [vmem:[#allocation7 + $0x1f0] sm:$0xff]
    %v138 = vld [vmem:[#allocation7 + $0x1f8] sm:$0xff]
    %v139 = vld [vmem:[#allocation7 + $0x200] sm:$0xff]
    %v140 = vld [vmem:[#allocation7 + $0x208] sm:$0xff]
    %v141 = vld [vmem:[#allocation7 + $0x210] sm:$0xff]
    %v142 = vld [vmem:[#allocation7 + $0x218] sm:$0xff]
    %v143 = vld [vmem:[#allocation7 + $0x220] sm:$0xff]
    %v144 = vld [vmem:[#allocation7 + $0x228] sm:$0xff]
    %v145 = vld [vmem:[#allocation7 + $0x230] sm:$0xff]
    %v146 = vld [vmem:[#allocation7 + $0x238] sm:$0xff]
    %v147 = vld [vmem:[#allocation7 + $0x240] sm:$0xff]
    %v148 = vld [vmem:[#allocation7 + $0x248] sm:$0xff]
    %v149 = vld [vmem:[#allocation7 + $0x250] sm:$0xff]
    %v150 = vld [vmem:[#allocation7 + $0x258] sm:$0xff]
    %v151 = vld [vmem:[#allocation7 + $0x260] sm:$0xff]
    %v152 = vld [vmem:[#allocation7 + $0x268] sm:$0xff]
    %v153 = vld [vmem:[#allocation7 + $0x270] sm:$0xff]
    %v154 = vld [vmem:[#allocation7 + $0x278] sm:$0xff]
    %v155 = vld [vmem:[#allocation7 + $0x280] sm:$0xff]
    %v156 = vld [vmem:[#allocation7 + $0x288] sm:$0xff]
    %v157 = vld [vmem:[#allocation7 + $0x290] sm:$0xff]
    %v158 = vld [vmem:[#allocation7 + $0x298] sm:$0xff]
    %v159 = vld [vmem:[#allocation7 + $0x2a0] sm:$0xff]
    %v160 = vld [vmem:[#allocation7 + $0x2a8] sm:$0xff]
    %v161 = vld [vmem:[#allocation7 + $0x2b0] sm:$0xff]
    %v162 = vld [vmem:[#allocation7 + $0x2b8] sm:$0xff]
    %v163 = vld [vmem:[#allocation7 + $0x2c0] sm:$0xff]
    %v164 = vld [vmem:[#allocation7 + $0x2c8] sm:$0xff]
    %v165 = vld [vmem:[#allocation7 + $0x2d0] sm:$0xff]
    %v166 = vld [vmem:[#allocation7 + $0x2d8] sm:$0xff]
    %v167 = vld [vmem:[#allocation7 + $0x2e0] sm:$0xff]
    %v168 = vld [vmem:[#allocation7 + $0x2e8] sm:$0xff]
    %v169 = vld [vmem:[#allocation7 + $0x2f0] sm:$0xff]
    %v170 = vld [vmem:[#allocation7 + $0x2f8] sm:$0xff]
    %v171 = vld [vmem:[#allocation7 + $0x300] sm:$0xff]
    %v172 = vld [vmem:[#allocation7 + $0x308] sm:$0xff]
    %v173 = vld [vmem:[#allocation7 + $0x310] sm:$0xff]
    %v174 = vld [vmem:[#allocation7 + $0x318] sm:$0xff]
    %v175 = vld [vmem:[#allocation7 + $0x320] sm:$0xff]
    %v176 = vld [vmem:[#allocation7 + $0x328] sm:$0xff]
    %v177 = vld [vmem:[#allocation7 + $0x330] sm:$0xff]
    %v178 = vld [vmem:[#allocation7 + $0x338] sm:$0xff]
    %v179 = vld [vmem:[#allocation7 + $0x340] sm:$0xff]
    %v180 = vld [vmem:[#allocation7 + $0x348] sm:$0xff]
    %v181 = vld [vmem:[#allocation7 + $0x350] sm:$0xff]
    %v182 = vld [vmem:[#allocation7 + $0x358] sm:$0xff]
    %v183 = vld [vmem:[#allocation7 + $0x360] sm:$0xff]
    %v184 = vld [vmem:[#allocation7 + $0x368] sm:$0xff]
    %v185 = vld [vmem:[#allocation7 + $0x370] sm:$0xff]
    %v186 = vld [vmem:[#allocation7 + $0x378] sm:$0xff]
    %v187 = vld [vmem:[#allocation7 + $0x380] sm:$0xff]
    %v188 = vld [vmem:[#allocation7 + $0x388] sm:$0xff]
    %v189 = vld [vmem:[#allocation7 + $0x390] sm:$0xff]
    %v190 = vld [vmem:[#allocation7 + $0x398] sm:$0xff]
    %v191 = vld [vmem:[#allocation7 + $0x3a0] sm:$0xff]
    %v192 = vld [vmem:[#allocation7 + $0x3a8] sm:$0xff]
    %v193 = vld [vmem:[#allocation7 + $0x3b0] sm:$0xff]
    %v194 = vld [vmem:[#allocation7 + $0x3b8] sm:$0xff]
    %v195 = vld [vmem:[#allocation7 + $0x3c0] sm:$0xff]
    %v196 = vld [vmem:[#allocation7 + $0x3c8] sm:$0xff]
    %v197 = vld [vmem:[#allocation7 + $0x3d0] sm:$0xff]
    %v198 = vld [vmem:[#allocation7 + $0x3d8] sm:$0xff]
    %v199 = vld [vmem:[#allocation7 + $0x3e0] sm:$0xff]
    %v200 = vld [vmem:[#allocation7 + $0x3e8] sm:$0xff]
    %v201 = vld [vmem:[#allocation7 + $0x3f0] sm:$0xff]
    %v202 = vld [vmem:[#allocation7 + $0x3f8] sm:$0xff]
    %v203 = vld [vmem:[#allocation5] sm:$0xff]
    %v204 = vld [vmem:[#allocation5 + $0x8] sm:$0xff]
    %v205 = vunpack.c.l.bf16 %v203
    %v206 = vunpack.c.h.bf16 %v203
    %v207 = vunpack.c.l.bf16 %v204
    %v208 = vunpack.c.h.bf16 %v204
    %v211 = vunpack.c.l.b16 %v69
    %v212 = vunpack.c.h.b16 %v69
    %v213 = vunpack.c.l.b16 %v70
    %v214 = vunpack.c.h.b16 %v70
    %v215 = vpack.c.b16 %v211, %v211
    %v216 = vpack.c.b16 %v212, %v212
    %v217 = vpack.c.b16 %v213, %v213
    %v218 = vpack.c.b16 %v214, %v214
    %v351 = vunpack.c.l.b16 %v75
    %v352 = vunpack.c.h.b16 %v75
    %v353 = vunpack.c.l.b16 %v76
    %v354 = vunpack.c.h.b16 %v76
    %v355 = vunpack.c.l.b16 %v77
    %v356 = vunpack.c.h.b16 %v77
    %v357 = vunpack.c.l.b16 %v78
    %v358 = vunpack.c.h.b16 %v78
    %v359 = vunpack.c.l.b16 %v79
    %v360 = vunpack.c.h.b16 %v79
    %v361 = vunpack.c.l.b16 %v80
    %v362 = vunpack.c.h.b16 %v80
    %v363 = vunpack.c.l.b16 %v81
    %v364 = vunpack.c.h.b16 %v81
    %v365 = vunpack.c.l.b16 %v82
    %v366 = vunpack.c.h.b16 %v82
    %v367 = vunpack.c.l.b16 %v83
    %v368 = vunpack.c.h.b16 %v83
    %v369 = vunpack.c.l.b16 %v84
    %v370 = vunpack.c.h.b16 %v84
    %v371 = vunpack.c.l.b16 %v85
    %v372 = vunpack.c.h.b16 %v85
    %v373 = vunpack.c.l.b16 %v86
    %v374 = vunpack.c.h.b16 %v86
    %v375 = vunpack.c.l.b16 %v87
    %v376 = vunpack.c.h.b16 %v87
    %v377 = vunpack.c.l.b16 %v88
    %v378 = vunpack.c.h.b16 %v88
    %v379 = vunpack.c.l.b16 %v89
    %v380 = vunpack.c.h.b16 %v89
    %v381 = vunpack.c.l.b16 %v90
    %v382 = vunpack.c.h.b16 %v90
    %v383 = vunpack.c.l.b16 %v91
    %v384 = vunpack.c.h.b16 %v91
    %v385 = vunpack.c.l.b16 %v92
    %v386 = vunpack.c.h.b16 %v92
    %v387 = vunpack.c.l.b16 %v93
    %v388 = vunpack.c.h.b16 %v93
    %v389 = vunpack.c.l.b16 %v94
    %v390 = vunpack.c.h.b16 %v94
    %v391 = vunpack.c.l.b16 %v95
    %v392 = vunpack.c.h.b16 %v95
    %v393 = vunpack.c.l.b16 %v96
    %v394 = vunpack.c.h.b16 %v96
    %v395 = vunpack.c.l.b16 %v97
    %v396 = vunpack.c.h.b16 %v97
    %v397 = vunpack.c.l.b16 %v98
    %v398 = vunpack.c.h.b16 %v98
    %v399 = vunpack.c.l.b16 %v99
    %v400 = vunpack.c.h.b16 %v99
    %v401 = vunpack.c.l.b16 %v100
    %v402 = vunpack.c.h.b16 %v100
    %v403 = vunpack.c.l.b16 %v101
    %v404 = vunpack.c.h.b16 %v101
    %v405 = vunpack.c.l.b16 %v102
    %v406 = vunpack.c.h.b16 %v102
    %v407 = vunpack.c.l.b16 %v103
    %v408 = vunpack.c.h.b16 %v103
    %v409 = vunpack.c.l.b16 %v104
    %v410 = vunpack.c.h.b16 %v104
    %v411 = vunpack.c.l.b16 %v105
    %v412 = vunpack.c.h.b16 %v105
    %v413 = vunpack.c.l.b16 %v106
    %v414 = vunpack.c.h.b16 %v106
    %v415 = vunpack.c.l.b16 %v107
    %v416 = vunpack.c.h.b16 %v107
    %v417 = vunpack.c.l.b16 %v108
    %v418 = vunpack.c.h.b16 %v108
    %v419 = vunpack.c.l.b16 %v109
    %v420 = vunpack.c.h.b16 %v109
    %v421 = vunpack.c.l.b16 %v110
    %v422 = vunpack.c.h.b16 %v110
    %v423 = vunpack.c.l.b16 %v111
    %v424 = vunpack.c.h.b16 %v111
    %v425 = vunpack.c.l.b16 %v112
    %v426 = vunpack.c.h.b16 %v112
    %v427 = vunpack.c.l.b16 %v113
    %v428 = vunpack.c.h.b16 %v113
    %v429 = vunpack.c.l.b16 %v114
    %v430 = vunpack.c.h.b16 %v114
    %v431 = vunpack.c.l.b16 %v115
    %v432 = vunpack.c.h.b16 %v115
    %v433 = vunpack.c.l.b16 %v116
    %v434 = vunpack.c.h.b16 %v116
    %v435 = vunpack.c.l.b16 %v117
    %v436 = vunpack.c.h.b16 %v117
    %v437 = vunpack.c.l.b16 %v118
    %v438 = vunpack.c.h.b16 %v118
    %v439 = vunpack.c.l.b16 %v119
    %v440 = vunpack.c.h.b16 %v119
    %v441 = vunpack.c.l.b16 %v120
    %v442 = vunpack.c.h.b16 %v120
    %v443 = vunpack.c.l.b16 %v121
    %v444 = vunpack.c.h.b16 %v121
    %v445 = vunpack.c.l.b16 %v122
    %v446 = vunpack.c.h.b16 %v122
    %v447 = vunpack.c.l.b16 %v123
    %v448 = vunpack.c.h.b16 %v123
    %v449 = vunpack.c.l.b16 %v124
    %v450 = vunpack.c.h.b16 %v124
    %v451 = vunpack.c.l.b16 %v125
    %v452 = vunpack.c.h.b16 %v125
    %v453 = vunpack.c.l.b16 %v126
    %v454 = vunpack.c.h.b16 %v126
    %v455 = vunpack.c.l.b16 %v127
    %v456 = vunpack.c.h.b16 %v127
    %v457 = vunpack.c.l.b16 %v128
    %v458 = vunpack.c.h.b16 %v128
    %v459 = vunpack.c.l.b16 %v129
    %v460 = vunpack.c.h.b16 %v129
    %v461 = vunpack.c.l.b16 %v130
    %v462 = vunpack.c.h.b16 %v130
    %v463 = vunpack.c.l.b16 %v131
    %v464 = vunpack.c.h.b16 %v131
    %v465 = vunpack.c.l.b16 %v132
    %v466 = vunpack.c.h.b16 %v132
    %v467 = vunpack.c.l.b16 %v133
    %v468 = vunpack.c.h.b16 %v133
    %v469 = vunpack.c.l.b16 %v134
    %v470 = vunpack.c.h.b16 %v134
    %v471 = vunpack.c.l.b16 %v135
    %v472 = vunpack.c.h.b16 %v135
    %v473 = vunpack.c.l.b16 %v136
    %v474 = vunpack.c.h.b16 %v136
    %v475 = vunpack.c.l.b16 %v137
    %v476 = vunpack.c.h.b16 %v137
    %v477 = vunpack.c.l.b16 %v138
    %v478 = vunpack.c.h.b16 %v138
    %v479 = vunpack.c.l.b16 %v139
    %v480 = vunpack.c.h.b16 %v139
    %v481 = vunpack.c.l.b16 %v140
    %v482 = vunpack.c.h.b16 %v140
    %v483 = vunpack.c.l.b16 %v141
    %v484 = vunpack.c.h.b16 %v141
    %v485 = vunpack.c.l.b16 %v142
    %v486 = vunpack.c.h.b16 %v142
    %v487 = vunpack.c.l.b16 %v143
    %v488 = vunpack.c.h.b16 %v143
    %v489 = vunpack.c.l.b16 %v144
    %v490 = vunpack.c.h.b16 %v144
    %v491 = vunpack.c.l.b16 %v145
    %v492 = vunpack.c.h.b16 %v145
    %v493 = vunpack.c.l.b16 %v146
    %v494 = vunpack.c.h.b16 %v146
    %v495 = vunpack.c.l.b16 %v147
    %v496 = vunpack.c.h.b16 %v147
    %v497 = vunpack.c.l.b16 %v148
    %v498 = vunpack.c.h.b16 %v148
    %v499 = vunpack.c.l.b16 %v149
    %v500 = vunpack.c.h.b16 %v149
    %v501 = vunpack.c.l.b16 %v150
    %v502 = vunpack.c.h.b16 %v150
    %v503 = vunpack.c.l.b16 %v151
    %v504 = vunpack.c.h.b16 %v151
    %v505 = vunpack.c.l.b16 %v152
    %v506 = vunpack.c.h.b16 %v152
    %v507 = vunpack.c.l.b16 %v153
    %v508 = vunpack.c.h.b16 %v153
    %v509 = vunpack.c.l.b16 %v154
    %v510 = vunpack.c.h.b16 %v154
    %v511 = vunpack.c.l.b16 %v155
    %v512 = vunpack.c.h.b16 %v155
    %v513 = vunpack.c.l.b16 %v156
    %v514 = vunpack.c.h.b16 %v156
    %v515 = vunpack.c.l.b16 %v157
    %v516 = vunpack.c.h.b16 %v157
    %v517 = vunpack.c.l.b16 %v158
    %v518 = vunpack.c.h.b16 %v158
    %v519 = vunpack.c.l.b16 %v159
    %v520 = vunpack.c.h.b16 %v159
    %v521 = vunpack.c.l.b16 %v160
    %v522 = vunpack.c.h.b16 %v160
    %v523 = vunpack.c.l.b16 %v161
    %v524 = vunpack.c.h.b16 %v161
    %v525 = vunpack.c.l.b16 %v162
    %v526 = vunpack.c.h.b16 %v162
    %v527 = vunpack.c.l.b16 %v163
    %v528 = vunpack.c.h.b16 %v163
    %v529 = vunpack.c.l.b16 %v164
    %v530 = vunpack.c.h.b16 %v164
    %v531 = vunpack.c.l.b16 %v165
    %v532 = vunpack.c.h.b16 %v165
    %v533 = vunpack.c.l.b16 %v166
    %v534 = vunpack.c.h.b16 %v166
    %v535 = vunpack.c.l.b16 %v167
    %v536 = vunpack.c.h.b16 %v167
    %v537 = vunpack.c.l.b16 %v168
    %v538 = vunpack.c.h.b16 %v168
    %v539 = vunpack.c.l.b16 %v169
    %v540 = vunpack.c.h.b16 %v169
    %v541 = vunpack.c.l.b16 %v170
    %v542 = vunpack.c.h.b16 %v170
    %v543 = vunpack.c.l.b16 %v171
    %v544 = vunpack.c.h.b16 %v171
    %v545 = vunpack.c.l.b16 %v172
    %v546 = vunpack.c.h.b16 %v172
    %v547 = vunpack.c.l.b16 %v173
    %v548 = vunpack.c.h.b16 %v173
    %v549 = vunpack.c.l.b16 %v174
    %v550 = vunpack.c.h.b16 %v174
    %v551 = vunpack.c.l.b16 %v175
    %v552 = vunpack.c.h.b16 %v175
    %v553 = vunpack.c.l.b16 %v176
    %v554 = vunpack.c.h.b16 %v176
    %v555 = vunpack.c.l.b16 %v177
    %v556 = vunpack.c.h.b16 %v177
    %v557 = vunpack.c.l.b16 %v178
    %v558 = vunpack.c.h.b16 %v178
    %v559 = vunpack.c.l.b16 %v179
    %v560 = vunpack.c.h.b16 %v179
    %v561 = vunpack.c.l.b16 %v180
    %v562 = vunpack.c.h.b16 %v180
    %v563 = vunpack.c.l.b16 %v181
    %v564 = vunpack.c.h.b16 %v181
    %v565 = vunpack.c.l.b16 %v182
    %v566 = vunpack.c.h.b16 %v182
    %v567 = vunpack.c.l.b16 %v183
    %v568 = vunpack.c.h.b16 %v183
    %v569 = vunpack.c.l.b16 %v184
    %v570 = vunpack.c.h.b16 %v184
    %v571 = vunpack.c.l.b16 %v185
    %v572 = vunpack.c.h.b16 %v185
    %v573 = vunpack.c.l.b16 %v186
    %v574 = vunpack.c.h.b16 %v186
    %v575 = vunpack.c.l.b16 %v187
    %v576 = vunpack.c.h.b16 %v187
    %v577 = vunpack.c.l.b16 %v188
    %v578 = vunpack.c.h.b16 %v188
    %v579 = vunpack.c.l.b16 %v189
    %v580 = vunpack.c.h.b16 %v189
    %v581 = vunpack.c.l.b16 %v190
    %v582 = vunpack.c.h.b16 %v190
    %v583 = vunpack.c.l.b16 %v191
    %v584 = vunpack.c.h.b16 %v191
    %v585 = vunpack.c.l.b16 %v192
    %v586 = vunpack.c.h.b16 %v192
    %v587 = vunpack.c.l.b16 %v193
    %v588 = vunpack.c.h.b16 %v193
    %v589 = vunpack.c.l.b16 %v194
    %v590 = vunpack.c.h.b16 %v194
    %v591 = vunpack.c.l.b16 %v195
    %v592 = vunpack.c.h.b16 %v195
    %v593 = vunpack.c.l.b16 %v196
    %v594 = vunpack.c.h.b16 %v196
    %v595 = vunpack.c.l.b16 %v197
    %v596 = vunpack.c.h.b16 %v197
    %v597 = vunpack.c.l.b16 %v198
    %v598 = vunpack.c.h.b16 %v198
    %v599 = vunpack.c.l.b16 %v199
    %v600 = vunpack.c.h.b16 %v199
    %v601 = vunpack.c.l.b16 %v200
    %v602 = vunpack.c.h.b16 %v200
    %v603 = vunpack.c.l.b16 %v201
    %v604 = vunpack.c.h.b16 %v201
    %v605 = vunpack.c.l.b16 %v202
    %v606 = vunpack.c.h.b16 %v202
    %v607 = vpack.c.b16 %v355, %v351
    %v608 = vpack.c.b16 %v356, %v352
    %v609 = vpack.c.b16 %v357, %v353
    %v610 = vpack.c.b16 %v358, %v354
    %v611 = vpack.c.b16 %v363, %v359
    %v612 = vpack.c.b16 %v364, %v360
    %v613 = vpack.c.b16 %v365, %v361
    %v614 = vpack.c.b16 %v366, %v362
    %v615 = vpack.c.b16 %v371, %v367
    %v616 = vpack.c.b16 %v372, %v368
    %v617 = vpack.c.b16 %v373, %v369
    %v618 = vpack.c.b16 %v374, %v370
    %v619 = vpack.c.b16 %v379, %v375
    %v620 = vpack.c.b16 %v380, %v376
    %v621 = vpack.c.b16 %v381, %v377
    %v622 = vpack.c.b16 %v382, %v378
    %v623 = vpack.c.b16 %v387, %v383
    %v624 = vpack.c.b16 %v388, %v384
    %v625 = vpack.c.b16 %v389, %v385
    %v626 = vpack.c.b16 %v390, %v386
    %v627 = vpack.c.b16 %v395, %v391
    %v628 = vpack.c.b16 %v396, %v392
    %v629 = vpack.c.b16 %v397, %v393
    %v630 = vpack.c.b16 %v398, %v394
    %v631 = vpack.c.b16 %v403, %v399
    %v632 = vpack.c.b16 %v404, %v400
    %v633 = vpack.c.b16 %v405, %v401
    %v634 = vpack.c.b16 %v406, %v402
    %v635 = vpack.c.b16 %v411, %v407
    %v636 = vpack.c.b16 %v412, %v408
    %v637 = vpack.c.b16 %v413, %v409
    %v638 = vpack.c.b16 %v414, %v410
    %v639 = vpack.c.b16 %v419, %v415
    %v640 = vpack.c.b16 %v420, %v416
    %v641 = vpack.c.b16 %v421, %v417
    %v642 = vpack.c.b16 %v422, %v418
    %v643 = vpack.c.b16 %v427, %v423
    %v644 = vpack.c.b16 %v428, %v424
    %v645 = vpack.c.b16 %v429, %v425
    %v646 = vpack.c.b16 %v430, %v426
    %v647 = vpack.c.b16 %v435, %v431
    %v648 = vpack.c.b16 %v436, %v432
    %v649 = vpack.c.b16 %v437, %v433
    %v650 = vpack.c.b16 %v438, %v434
    %v651 = vpack.c.b16 %v443, %v439
    %v652 = vpack.c.b16 %v444, %v440
    %v653 = vpack.c.b16 %v445, %v441
    %v654 = vpack.c.b16 %v446, %v442
    %v655 = vpack.c.b16 %v451, %v447
    %v656 = vpack.c.b16 %v452, %v448
    %v657 = vpack.c.b16 %v453, %v449
    %v658 = vpack.c.b16 %v454, %v450
    %v659 = vpack.c.b16 %v459, %v455
    %v660 = vpack.c.b16 %v460, %v456
    %v661 = vpack.c.b16 %v461, %v457
    %v662 = vpack.c.b16 %v462, %v458
    %v663 = vpack.c.b16 %v467, %v463
    %v664 = vpack.c.b16 %v468, %v464
    %v665 = vpack.c.b16 %v469, %v465
    %v666 = vpack.c.b16 %v470, %v466
    %v667 = vpack.c.b16 %v475, %v471
    %v668 = vpack.c.b16 %v476, %v472
    %v669 = vpack.c.b16 %v477, %v473
    %v670 = vpack.c.b16 %v478, %v474
    %v671 = vpack.c.b16 %v483, %v479
    %v672 = vpack.c.b16 %v484, %v480
    %v673 = vpack.c.b16 %v485, %v481
    %v674 = vpack.c.b16 %v486, %v482
    %v675 = vpack.c.b16 %v491, %v487
    %v676 = vpack.c.b16 %v492, %v488
    %v677 = vpack.c.b16 %v493, %v489
    %v678 = vpack.c.b16 %v494, %v490
    %v679 = vpack.c.b16 %v499, %v495
    %v680 = vpack.c.b16 %v500, %v496
    %v681 = vpack.c.b16 %v501, %v497
    %v682 = vpack.c.b16 %v502, %v498
    %v683 = vpack.c.b16 %v507, %v503
    %v684 = vpack.c.b16 %v508, %v504
    %v685 = vpack.c.b16 %v509, %v505
    %v686 = vpack.c.b16 %v510, %v506
    %v687 = vpack.c.b16 %v515, %v511
    %v688 = vpack.c.b16 %v516, %v512
    %v689 = vpack.c.b16 %v517, %v513
    %v690 = vpack.c.b16 %v518, %v514
    %v691 = vpack.c.b16 %v523, %v519
    %v692 = vpack.c.b16 %v524, %v520
    %v693 = vpack.c.b16 %v525, %v521
    %v694 = vpack.c.b16 %v526, %v522
    %v695 = vpack.c.b16 %v531, %v527
    %v696 = vpack.c.b16 %v532, %v528
    %v697 = vpack.c.b16 %v533, %v529
    %v698 = vpack.c.b16 %v534, %v530
    %v699 = vpack.c.b16 %v539, %v535
    %v700 = vpack.c.b16 %v540, %v536
    %v701 = vpack.c.b16 %v541, %v537
    %v702 = vpack.c.b16 %v542, %v538
    %v703 = vpack.c.b16 %v547, %v543
    %v704 = vpack.c.b16 %v548, %v544
    %v705 = vpack.c.b16 %v549, %v545
    %v706 = vpack.c.b16 %v550, %v546
    %v707 = vpack.c.b16 %v555, %v551
    %v708 = vpack.c.b16 %v556, %v552
    %v709 = vpack.c.b16 %v557, %v553
    %v710 = vpack.c.b16 %v558, %v554
    %v711 = vpack.c.b16 %v563, %v559
    %v712 = vpack.c.b16 %v564, %v560
    %v713 = vpack.c.b16 %v565, %v561
    %v714 = vpack.c.b16 %v566, %v562
    %v715 = vpack.c.b16 %v571, %v567
    %v716 = vpack.c.b16 %v572, %v568
    %v717 = vpack.c.b16 %v573, %v569
    %v718 = vpack.c.b16 %v574, %v570
    %v719 = vpack.c.b16 %v579, %v575
    %v720 = vpack.c.b16 %v580, %v576
    %v721 = vpack.c.b16 %v581, %v577
    %v722 = vpack.c.b16 %v582, %v578
    %v723 = vpack.c.b16 %v587, %v583
    %v724 = vpack.c.b16 %v588, %v584
    %v725 = vpack.c.b16 %v589, %v585
    %v726 = vpack.c.b16 %v590, %v586
    %v727 = vpack.c.b16 %v595, %v591
    %v728 = vpack.c.b16 %v596, %v592
    %v729 = vpack.c.b16 %v597, %v593
    %v730 = vpack.c.b16 %v598, %v594
    %v731 = vpack.c.b16 %v603, %v599
    %v732 = vpack.c.b16 %v604, %v600
    %v733 = vpack.c.b16 %v605, %v601
    %v734 = vpack.c.b16 %v606, %v602
    %863 = vmatprep.subr.bf16.mxu0 %v608
    %864 = vmatpush1.bf16.msra.mxu0 %v607
    %865 = vmatprep.subr.bf16.mxu0 %v612
    %866 = vmatpush1.bf16.msra.mxu0 %v611
    %867 = vmatprep.subr.bf16.mxu0 %v616
    %868 = vmatpush1.bf16.msra.mxu0 %v615
    %869 = vmatprep.subr.bf16.mxu0 %v620
    %870 = vmatpush1.bf16.msra.mxu0 %v619
    %871 = vmatprep.subr.bf16.mxu0 %v624
    %872 = vmatpush1.bf16.msra.mxu0 %v623
    %873 = vmatprep.subr.bf16.mxu0 %v628
    %874 = vmatpush1.bf16.msra.mxu0 %v627
    %875 = vmatprep.subr.bf16.mxu0 %v632
    %876 = vmatpush1.bf16.msra.mxu0 %v631
    %877 = vmatprep.subr.bf16.mxu0 %v636
    %878 = vmatpush1.bf16.msra.mxu0 %v635
    %879 = vmatprep.subr.bf16.mxu0 %v640
    %880 = vmatpush1.bf16.msra.mxu0 %v639
    %881 = vmatprep.subr.bf16.mxu0 %v644
    %882 = vmatpush1.bf16.msra.mxu0 %v643
    %883 = vmatprep.subr.bf16.mxu0 %v648
    %884 = vmatpush1.bf16.msra.mxu0 %v647
    %885 = vmatprep.subr.bf16.mxu0 %v652
    %886 = vmatpush1.bf16.msra.mxu0 %v651
    %887 = vmatprep.subr.bf16.mxu0 %v656
    %888 = vmatpush1.bf16.msra.mxu0 %v655
    %889 = vmatprep.subr.bf16.mxu0 %v660
    %890 = vmatpush1.bf16.msra.mxu0 %v659
    %891 = vmatprep.subr.bf16.mxu0 %v664
    %892 = vmatpush1.bf16.msra.mxu0 %v663
    %893 = vmatprep.subr.bf16.mxu0 %v668
    %894 = vmatpush1.bf16.msra.mxu0 %v667
    %895 = vmatprep.mubr.bf16.mxu0 %v216
    %896 = vmatmul.mubr.bf16.gmra.mrb[0].mxu0 %v215
    %v897 = vpop.f32.mrb[0].mxu0
    %v898 = vadd.f32 %v205, %v897
    %v899 = vpop.f32.mrb[0].mxu0
    %v900 = vadd.f32 %v206, %v899
    %v901 = vpop.f32.mrb[0].mxu0
    %v902 = vpop.f32.mrb[0].mxu0
    %903 = vdwg.mxu0
    %904 = vmatprep.subr.bf16.mxu0 %v672
    %905 = vmatpush1.bf16.msra.mxu0 %v671
    %906 = vmatprep.subr.bf16.mxu0 %v676
    %907 = vmatpush1.bf16.msra.mxu0 %v675
    %908 = vmatprep.subr.bf16.mxu0 %v680
    %909 = vmatpush1.bf16.msra.mxu0 %v679
    %910 = vmatprep.subr.bf16.mxu0 %v684
    %911 = vmatpush1.bf16.msra.mxu0 %v683
    %912 = vmatprep.subr.bf16.mxu0 %v688
    %913 = vmatpush1.bf16.msra.mxu0 %v687
    %914 = vmatprep.subr.bf16.mxu0 %v692
    %915 = vmatpush1.bf16.msra.mxu0 %v691
    %916 = vmatprep.subr.bf16.mxu0 %v696
    %917 = vmatpush1.bf16.msra.mxu0 %v695
    %918 = vmatprep.subr.bf16.mxu0 %v700
    %919 = vmatpush1.bf16.msra.mxu0 %v699
    %920 = vmatprep.subr.bf16.mxu0 %v704
    %921 = vmatpush1.bf16.msra.mxu0 %v703
    %922 = vmatprep.subr.bf16.mxu0 %v708
    %923 = vmatpush1.bf16.msra.mxu0 %v707
    %924 = vmatprep.subr.bf16.mxu0 %v712
    %925 = vmatpush1.bf16.msra.mxu0 %v711
    %926 = vmatprep.subr.bf16.mxu0 %v716
    %927 = vmatpush1.bf16.msra.mxu0 %v715
    %928 = vmatprep.subr.bf16.mxu0 %v720
    %929 = vmatpush1.bf16.msra.mxu0 %v719
    %930 = vmatprep.subr.bf16.mxu0 %v724
    %931 = vmatpush1.bf16.msra.mxu0 %v723
    %932 = vmatprep.subr.bf16.mxu0 %v728
    %933 = vmatpush1.bf16.msra.mxu0 %v727
    %934 = vmatprep.subr.bf16.mxu0 %v732
    %935 = vmatpush1.bf16.msra.mxu0 %v731
    %936 = vmatprep.mubr.bf16.mxu0 %v218
    %937 = vmatmul.mubr.bf16.gmra.mrb[0].mxu0 %v217
    %v938 = vpop.f32.mrb[0].mxu0
    %v939 = vadd.f32 %v898, %v938
    %v940 = vpop.f32.mrb[0].mxu0
    %v941 = vadd.f32 %v900, %v940
    %v942 = vpop.f32.mrb[0].mxu0
    %v943 = vpop.f32.mrb[0].mxu0
    %944 = vdwg.mxu0
    %945 = vmatprep.subr.bf16.mxu0 %v610
    %946 = vmatpush1.bf16.msra.mxu0 %v609
    %947 = vmatprep.subr.bf16.mxu0 %v614
    %948 = vmatpush1.bf16.msra.mxu0 %v613
    %949 = vmatprep.subr.bf16.mxu0 %v618
    %950 = vmatpush1.bf16.msra.mxu0 %v617
    %951 = vmatprep.subr.bf16.mxu0 %v622
    %952 = vmatpush1.bf16.msra.mxu0 %v621
    %953 = vmatprep.subr.bf16.mxu0 %v626
    %954 = vmatpush1.bf16.msra.mxu0 %v625
    %955 = vmatprep.subr.bf16.mxu0 %v630
    %956 = vmatpush1.bf16.msra.mxu0 %v629
    %957 = vmatprep.subr.bf16.mxu0 %v634
    %958 = vmatpush1.bf16.msra.mxu0 %v633
    %959 = vmatprep.subr.bf16.mxu0 %v638
    %960 = vmatpush1.bf16.msra.mxu0 %v637
    %961 = vmatprep.subr.bf16.mxu0 %v642
    %962 = vmatpush1.bf16.msra.mxu0 %v641
    %963 = vmatprep.subr.bf16.mxu0 %v646
    %964 = vmatpush1.bf16.msra.mxu0 %v645
    %965 = vmatprep.subr.bf16.mxu0 %v650
    %966 = vmatpush1.bf16.msra.mxu0 %v649
    %967 = vmatprep.subr.bf16.mxu0 %v654
    %968 = vmatpush1.bf16.msra.mxu0 %v653
    %969 = vmatprep.subr.bf16.mxu0 %v658
    %970 = vmatpush1.bf16.msra.mxu0 %v657
    %971 = vmatprep.subr.bf16.mxu0 %v662
    %972 = vmatpush1.bf16.msra.mxu0 %v661
    %973 = vmatprep.subr.bf16.mxu0 %v666
    %974 = vmatpush1.bf16.msra.mxu0 %v665
    %975 = vmatprep.subr.bf16.mxu0 %v670
    %976 = vmatpush1.bf16.msra.mxu0 %v669
    %977 = vmatprep.mubr.bf16.mxu0 %v216
    %978 = vmatmul.mubr.bf16.gmra.mrb[0].mxu0 %v215
    %v979 = vpop.f32.mrb[0].mxu0
    %v980 = vadd.f32 %v207, %v979
    %v981 = vpop.f32.mrb[0].mxu0
    %v982 = vadd.f32 %v208, %v981
    %v983 = vpop.f32.mrb[0].mxu0
    %v984 = vpop.f32.mrb[0].mxu0
    %985 = vdwg.mxu0
    %986 = vmatprep.subr.bf16.mxu0 %v674
    %987 = vmatpush1.bf16.msra.mxu0 %v673
    %988 = vmatprep.subr.bf16.mxu0 %v678
    %989 = vmatpush1.bf16.msra.mxu0 %v677
    %990 = vmatprep.subr.bf16.mxu0 %v682
    %991 = vmatpush1.bf16.msra.mxu0 %v681
    %992 = vmatprep.subr.bf16.mxu0 %v686
    %993 = vmatpush1.bf16.msra.mxu0 %v685
    %994 = vmatprep.subr.bf16.mxu0 %v690
    %995 = vmatpush1.bf16.msra.mxu0 %v689
    %996 = vmatprep.subr.bf16.mxu0 %v694
    %997 = vmatpush1.bf16.msra.mxu0 %v693
    %998 = vmatprep.subr.bf16.mxu0 %v698
    %999 = vmatpush1.bf16.msra.mxu0 %v697
    %1000 = vmatprep.subr.bf16.mxu0 %v702
    %1001 = vmatpush1.bf16.msra.mxu0 %v701
    %1002 = vmatprep.subr.bf16.mxu0 %v706
    %1003 = vmatpush1.bf16.msra.mxu0 %v705
    %1004 = vmatprep.subr.bf16.mxu0 %v710
    %1005 = vmatpush1.bf16.msra.mxu0 %v709
    %1006 = vmatprep.subr.bf16.mxu0 %v714
    %1007 = vmatpush1.bf16.msra.mxu0 %v713
    %1008 = vmatprep.subr.bf16.mxu0 %v718
    %1009 = vmatpush1.bf16.msra.mxu0 %v717
    %1010 = vmatprep.subr.bf16.mxu0 %v722
    %1011 = vmatpush1.bf16.msra.mxu0 %v721
    %1012 = vmatprep.subr.bf16.mxu0 %v726
    %1013 = vmatpush1.bf16.msra.mxu0 %v725
    %1014 = vmatprep.subr.bf16.mxu0 %v730
    %1015 = vmatpush1.bf16.msra.mxu0 %v729
    %1016 = vmatprep.subr.bf16.mxu0 %v734
    %1017 = vmatpush1.bf16.msra.mxu0 %v733
    %1018 = vmatprep.mubr.bf16.mxu0 %v218
    %1019 = vmatmul.mubr.bf16.gmra.mrb[0].mxu0 %v217
    %v1020 = vpop.f32.mrb[0].mxu0
    %v1021 = vadd.f32 %v980, %v1020
    %v1022 = vpop.f32.mrb[0].mxu0
    %v1023 = vadd.f32 %v982, %v1022
    %v1024 = vpop.f32.mrb[0].mxu0
    %v1025 = vpop.f32.mrb[0].mxu0
    %1026 = vdwg.mxu0
    %v1027 = vmul.f32 %v939, 0.5
    %v1028 = vmul.f32 %v941, 0.5
    %v1029 = vmul.f32 %v1021, 0.5
    %v1030 = vmul.f32 %v1023, 0.5
    %v1031 = vtanh.pop %v1027
    %v1032 = vtanh.pop %v1028
    %v1033 = vtanh.pop %v1029
    %v1034 = vtanh.pop %v1030
    %v1035 = vmul.f32 %v1031, 0.5
    %v1036 = vmul.f32 %v1032, 0.5
    %v1037 = vmul.f32 %v1033, 0.5
    %v1038 = vmul.f32 %v1034, 0.5
    %v1039 = vadd.f32 %v1035, 0.5
    %v1040 = vadd.f32 %v1036, 0.5
    %v1041 = vadd.f32 %v1037, 0.5
    %v1042 = vadd.f32 %v1038, 0.5
    %s1043 = scalar_lea.vmem [#allocation7], 1024
    %v1044 = vld [vmem:[%s1043] sm:$0xff]
    %v1045 = vld [vmem:[%s1043 + $0x8] sm:$0xff]
    %v1046 = vld [vmem:[%s1043 + $0x10] sm:$0xff]
    %v1047 = vld [vmem:[%s1043 + $0x18] sm:$0xff]
    %v1048 = vld [vmem:[%s1043 + $0x20] sm:$0xff]
    %v1049 = vld [vmem:[%s1043 + $0x28] sm:$0xff]
    %v1050 = vld [vmem:[%s1043 + $0x30] sm:$0xff]
    %v1051 = vld [vmem:[%s1043 + $0x38] sm:$0xff]
    %v1052 = vld [vmem:[%s1043 + $0x40] sm:$0xff]
    %v1053 = vld [vmem:[%s1043 + $0x48] sm:$0xff]
    %v1054 = vld [vmem:[%s1043 + $0x50] sm:$0xff]
    %v1055 = vld [vmem:[%s1043 + $0x58] sm:$0xff]
    %v1056 = vld [vmem:[%s1043 + $0x60] sm:$0xff]
    %v1057 = vld [vmem:[%s1043 + $0x68] sm:$0xff]
    %v1058 = vld [vmem:[%s1043 + $0x70] sm:$0xff]
    %v1059 = vld [vmem:[%s1043 + $0x78] sm:$0xff]
    %v1060 = vld [vmem:[%s1043 + $0x80] sm:$0xff]
    %v1061 = vld [vmem:[%s1043 + $0x88] sm:$0xff]
    %v1062 = vld [vmem:[%s1043 + $0x90] sm:$0xff]
    %v1063 = vld [vmem:[%s1043 + $0x98] sm:$0xff]
    %v1064 = vld [vmem:[%s1043 + $0xa0] sm:$0xff]
    %v1065 = vld [vmem:[%s1043 + $0xa8] sm:$0xff]
    %v1066 = vld [vmem:[%s1043 + $0xb0] sm:$0xff]
    %v1067 = vld [vmem:[%s1043 + $0xb8] sm:$0xff]
    %v1068 = vld [vmem:[%s1043 + $0xc0] sm:$0xff]
    %v1069 = vld [vmem:[%s1043 + $0xc8] sm:$0xff]
    %v1070 = vld [vmem:[%s1043 + $0xd0] sm:$0xff]
    %v1071 = vld [vmem:[%s1043 + $0xd8] sm:$0xff]
    %v1072 = vld [vmem:[%s1043 + $0xe0] sm:$0xff]
    %v1073 = vld [vmem:[%s1043 + $0xe8] sm:$0xff]
    %v1074 = vld [vmem:[%s1043 + $0xf0] sm:$0xff]
    %v1075 = vld [vmem:[%s1043 + $0xf8] sm:$0xff]
    %v1076 = vld [vmem:[%s1043 + $0x100] sm:$0xff]
    %v1077 = vld [vmem:[%s1043 + $0x108] sm:$0xff]
    %v1078 = vld [vmem:[%s1043 + $0x110] sm:$0xff]
    %v1079 = vld [vmem:[%s1043 + $0x118] sm:$0xff]
    %v1080 = vld [vmem:[%s1043 + $0x120] sm:$0xff]
    %v1081 = vld [vmem:[%s1043 + $0x128] sm:$0xff]
    %v1082 = vld [vmem:[%s1043 + $0x130] sm:$0xff]
    %v1083 = vld [vmem:[%s1043 + $0x138] sm:$0xff]
    %v1084 = vld [vmem:[%s1043 + $0x140] sm:$0xff]
    %v1085 = vld [vmem:[%s1043 + $0x148] sm:$0xff]
    %v1086 = vld [vmem:[%s1043 + $0x150] sm:$0xff]
    %v1087 = vld [vmem:[%s1043 + $0x158] sm:$0xff]
    %v1088 = vld [vmem:[%s1043 + $0x160] sm:$0xff]
    %v1089 = vld [vmem:[%s1043 + $0x168] sm:$0xff]
    %v1090 = vld [vmem:[%s1043 + $0x170] sm:$0xff]
    %v1091 = vld [vmem:[%s1043 + $0x178] sm:$0xff]
    %v1092 = vld [vmem:[%s1043 + $0x180] sm:$0xff]
    %v1093 = vld [vmem:[%s1043 + $0x188] sm:$0xff]
    %v1094 = vld [vmem:[%s1043 + $0x190] sm:$0xff]
    %v1095 = vld [vmem:[%s1043 + $0x198] sm:$0xff]
    %v1096 = vld [vmem:[%s1043 + $0x1a0] sm:$0xff]
    %v1097 = vld [vmem:[%s1043 + $0x1a8] sm:$0xff]
    %v1098 = vld [vmem:[%s1043 + $0x1b0] sm:$0xff]
    %v1099 = vld [vmem:[%s1043 + $0x1b8] sm:$0xff]
    %v1100 = vld [vmem:[%s1043 + $0x1c0] sm:$0xff]
    %v1101 = vld [vmem:[%s1043 + $0x1c8] sm:$0xff]
    %v1102 = vld [vmem:[%s1043 + $0x1d0] sm:$0xff]
    %v1103 = vld [vmem:[%s1043 + $0x1d8] sm:$0xff]
    %v1104 = vld [vmem:[%s1043 + $0x1e0] sm:$0xff]
    %v1105 = vld [vmem:[%s1043 + $0x1e8] sm:$0xff]
    %v1106 = vld [vmem:[%s1043 + $0x1f0] sm:$0xff]
    %v1107 = vld [vmem:[%s1043 + $0x1f8] sm:$0xff]
    %v1108 = vld [vmem:[%s1043 + $0x200] sm:$0xff]
    %v1109 = vld [vmem:[%s1043 + $0x208] sm:$0xff]
    %v1110 = vld [vmem:[%s1043 + $0x210] sm:$0xff]
    %v1111 = vld [vmem:[%s1043 + $0x218] sm:$0xff]
    %v1112 = vld [vmem:[%s1043 + $0x220] sm:$0xff]
    %v1113 = vld [vmem:[%s1043 + $0x228] sm:$0xff]
    %v1114 = vld [vmem:[%s1043 + $0x230] sm:$0xff]
    %v1115 = vld [vmem:[%s1043 + $0x238] sm:$0xff]
    %v1116 = vld [vmem:[%s1043 + $0x240] sm:$0xff]
    %v1117 = vld [vmem:[%s1043 + $0x248] sm:$0xff]
    %v1118 = vld [vmem:[%s1043 + $0x250] sm:$0xff]
    %v1119 = vld [vmem:[%s1043 + $0x258] sm:$0xff]
    %v1120 = vld [vmem:[%s1043 + $0x260] sm:$0xff]
    %v1121 = vld [vmem:[%s1043 + $0x268] sm:$0xff]
    %v1122 = vld [vmem:[%s1043 + $0x270] sm:$0xff]
    %v1123 = vld [vmem:[%s1043 + $0x278] sm:$0xff]
    %v1124 = vld [vmem:[%s1043 + $0x280] sm:$0xff]
    %v1125 = vld [vmem:[%s1043 + $0x288] sm:$0xff]
    %v1126 = vld [vmem:[%s1043 + $0x290] sm:$0xff]
    %v1127 = vld [vmem:[%s1043 + $0x298] sm:$0xff]
    %v1128 = vld [vmem:[%s1043 + $0x2a0] sm:$0xff]
    %v1129 = vld [vmem:[%s1043 + $0x2a8] sm:$0xff]
    %v1130 = vld [vmem:[%s1043 + $0x2b0] sm:$0xff]
    %v1131 = vld [vmem:[%s1043 + $0x2b8] sm:$0xff]
    %v1132 = vld [vmem:[%s1043 + $0x2c0] sm:$0xff]
    %v1133 = vld [vmem:[%s1043 + $0x2c8] sm:$0xff]
    %v1134 = vld [vmem:[%s1043 + $0x2d0] sm:$0xff]
    %v1135 = vld [vmem:[%s1043 + $0x2d8] sm:$0xff]
    %v1136 = vld [vmem:[%s1043 + $0x2e0] sm:$0xff]
    %v1137 = vld [vmem:[%s1043 + $0x2e8] sm:$0xff]
    %v1138 = vld [vmem:[%s1043 + $0x2f0] sm:$0xff]
    %v1139 = vld [vmem:[%s1043 + $0x2f8] sm:$0xff]
    %v1140 = vld [vmem:[%s1043 + $0x300] sm:$0xff]
    %v1141 = vld [vmem:[%s1043 + $0x308] sm:$0xff]
    %v1142 = vld [vmem:[%s1043 + $0x310] sm:$0xff]
    %v1143 = vld [vmem:[%s1043 + $0x318] sm:$0xff]
    %v1144 = vld [vmem:[%s1043 + $0x320] sm:$0xff]
    %v1145 = vld [vmem:[%s1043 + $0x328] sm:$0xff]
    %v1146 = vld [vmem:[%s1043 + $0x330] sm:$0xff]
    %v1147 = vld [vmem:[%s1043 + $0x338] sm:$0xff]
    %v1148 = vld [vmem:[%s1043 + $0x340] sm:$0xff]
    %v1149 = vld [vmem:[%s1043 + $0x348] sm:$0xff]
    %v1150 = vld [vmem:[%s1043 + $0x350] sm:$0xff]
    %v1151 = vld [vmem:[%s1043 + $0x358] sm:$0xff]
    %v1152 = vld [vmem:[%s1043 + $0x360] sm:$0xff]
    %v1153 = vld [vmem:[%s1043 + $0x368] sm:$0xff]
    %v1154 = vld [vmem:[%s1043 + $0x370] sm:$0xff]
    %v1155 = vld [vmem:[%s1043 + $0x378] sm:$0xff]
    %v1156 = vld [vmem:[%s1043 + $0x380] sm:$0xff]
    %v1157 = vld [vmem:[%s1043 + $0x388] sm:$0xff]
    %v1158 = vld [vmem:[%s1043 + $0x390] sm:$0xff]
    %v1159 = vld [vmem:[%s1043 + $0x398] sm:$0xff]
    %v1160 = vld [vmem:[%s1043 + $0x3a0] sm:$0xff]
    %v1161 = vld [vmem:[%s1043 + $0x3a8] sm:$0xff]
    %v1162 = vld [vmem:[%s1043 + $0x3b0] sm:$0xff]
    %v1163 = vld [vmem:[%s1043 + $0x3b8] sm:$0xff]
    %v1164 = vld [vmem:[%s1043 + $0x3c0] sm:$0xff]
    %v1165 = vld [vmem:[%s1043 + $0x3c8] sm:$0xff]
    %v1166 = vld [vmem:[%s1043 + $0x3d0] sm:$0xff]
    %v1167 = vld [vmem:[%s1043 + $0x3d8] sm:$0xff]
    %v1168 = vld [vmem:[%s1043 + $0x3e0] sm:$0xff]
    %v1169 = vld [vmem:[%s1043 + $0x3e8] sm:$0xff]
    %v1170 = vld [vmem:[%s1043 + $0x3f0] sm:$0xff]
    %v1171 = vld [vmem:[%s1043 + $0x3f8] sm:$0xff]
    %v1172 = vld [vmem:[#allocation5 + $0x10] sm:$0xff]
    %v1173 = vld [vmem:[#allocation5 + $0x18] sm:$0xff]
    %v1174 = vunpack.c.l.bf16 %v1172
    %v1175 = vunpack.c.h.bf16 %v1172
    %v1176 = vunpack.c.l.bf16 %v1173
    %v1177 = vunpack.c.h.bf16 %v1173
    %v1306 = vunpack.c.l.b16 %v1044
    %v1307 = vunpack.c.h.b16 %v1044
    %v1308 = vunpack.c.l.b16 %v1045
    %v1309 = vunpack.c.h.b16 %v1045
    %v1310 = vunpack.c.l.b16 %v1046
    %v1311 = vunpack.c.h.b16 %v1046
    %v1312 = vunpack.c.l.b16 %v1047
    %v1313 = vunpack.c.h.b16 %v1047
    %v1314 = vunpack.c.l.b16 %v1048
    %v1315 = vunpack.c.h.b16 %v1048
    %v1316 = vunpack.c.l.b16 %v1049
    %v1317 = vunpack.c.h.b16 %v1049
    %v1318 = vunpack.c.l.b16 %v1050
    %v1319 = vunpack.c.h.b16 %v1050
    %v1320 = vunpack.c.l.b16 %v1051
    %v1321 = vunpack.c.h.b16 %v1051
    %v1322 = vunpack.c.l.b16 %v1052
    %v1323 = vunpack.c.h.b16 %v1052
    %v1324 = vunpack.c.l.b16 %v1053
    %v1325 = vunpack.c.h.b16 %v1053
    %v1326 = vunpack.c.l.b16 %v1054
    %v1327 = vunpack.c.h.b16 %v1054
    %v1328 = vunpack.c.l.b16 %v1055
    %v1329 = vunpack.c.h.b16 %v1055
    %v1330 = vunpack.c.l.b16 %v1056
    %v1331 = vunpack.c.h.b16 %v1056
    %v1332 = vunpack.c.l.b16 %v1057
    %v1333 = vunpack.c.h.b16 %v1057
    %v1334 = vunpack.c.l.b16 %v1058
    %v1335 = vunpack.c.h.b16 %v1058
    %v1336 = vunpack.c.l.b16 %v1059
    %v1337 = vunpack.c.h.b16 %v1059
    %v1338 = vunpack.c.l.b16 %v1060
    %v1339 = vunpack.c.h.b16 %v1060
    %v1340 = vunpack.c.l.b16 %v1061
    %v1341 = vunpack.c.h.b16 %v1061
    %v1342 = vunpack.c.l.b16 %v1062
    %v1343 = vunpack.c.h.b16 %v1062
    %v1344 = vunpack.c.l.b16 %v1063
    %v1345 = vunpack.c.h.b16 %v1063
    %v1346 = vunpack.c.l.b16 %v1064
    %v1347 = vunpack.c.h.b16 %v1064
    %v1348 = vunpack.c.l.b16 %v1065
    %v1349 = vunpack.c.h.b16 %v1065
    %v1350 = vunpack.c.l.b16 %v1066
    %v1351 = vunpack.c.h.b16 %v1066
    %v1352 = vunpack.c.l.b16 %v1067
    %v1353 = vunpack.c.h.b16 %v1067
    %v1354 = vunpack.c.l.b16 %v1068
    %v1355 = vunpack.c.h.b16 %v1068
    %v1356 = vunpack.c.l.b16 %v1069
    %v1357 = vunpack.c.h.b16 %v1069
    %v1358 = vunpack.c.l.b16 %v1070
    %v1359 = vunpack.c.h.b16 %v1070
    %v1360 = vunpack.c.l.b16 %v1071
    %v1361 = vunpack.c.h.b16 %v1071
    %v1362 = vunpack.c.l.b16 %v1072
    %v1363 = vunpack.c.h.b16 %v1072
    %v1364 = vunpack.c.l.b16 %v1073
    %v1365 = vunpack.c.h.b16 %v1073
    %v1366 = vunpack.c.l.b16 %v1074
    %v1367 = vunpack.c.h.b16 %v1074
    %v1368 = vunpack.c.l.b16 %v1075
    %v1369 = vunpack.c.h.b16 %v1075
    %v1370 = vunpack.c.l.b16 %v1076
    %v1371 = vunpack.c.h.b16 %v1076
    %v1372 = vunpack.c.l.b16 %v1077
    %v1373 = vunpack.c.h.b16 %v1077
    %v1374 = vunpack.c.l.b16 %v1078
    %v1375 = vunpack.c.h.b16 %v1078
    %v1376 = vunpack.c.l.b16 %v1079
    %v1377 = vunpack.c.h.b16 %v1079
    %v1378 = vunpack.c.l.b16 %v1080
    %v1379 = vunpack.c.h.b16 %v1080
    %v1380 = vunpack.c.l.b16 %v1081
    %v1381 = vunpack.c.h.b16 %v1081
    %v1382 = vunpack.c.l.b16 %v1082
    %v1383 = vunpack.c.h.b16 %v1082
    %v1384 = vunpack.c.l.b16 %v1083
    %v1385 = vunpack.c.h.b16 %v1083
    %v1386 = vunpack.c.l.b16 %v1084
    %v1387 = vunpack.c.h.b16 %v1084
    %v1388 = vunpack.c.l.b16 %v1085
    %v1389 = vunpack.c.h.b16 %v1085
    %v1390 = vunpack.c.l.b16 %v1086
    %v1391 = vunpack.c.h.b16 %v1086
    %v1392 = vunpack.c.l.b16 %v1087
    %v1393 = vunpack.c.h.b16 %v1087
    %v1394 = vunpack.c.l.b16 %v1088
    %v1395 = vunpack.c.h.b16 %v1088
    %v1396 = vunpack.c.l.b16 %v1089
    %v1397 = vunpack.c.h.b16 %v1089
    %v1398 = vunpack.c.l.b16 %v1090
    %v1399 = vunpack.c.h.b16 %v1090
    %v1400 = vunpack.c.l.b16 %v1091
    %v1401 = vunpack.c.h.b16 %v1091
    %v1402 = vunpack.c.l.b16 %v1092
    %v1403 = vunpack.c.h.b16 %v1092
    %v1404 = vunpack.c.l.b16 %v1093
    %v1405 = vunpack.c.h.b16 %v1093
    %v1406 = vunpack.c.l.b16 %v1094
    %v1407 = vunpack.c.h.b16 %v1094
    %v1408 = vunpack.c.l.b16 %v1095
    %v1409 = vunpack.c.h.b16 %v1095
    %v1410 = vunpack.c.l.b16 %v1096
    %v1411 = vunpack.c.h.b16 %v1096
    %v1412 = vunpack.c.l.b16 %v1097
    %v1413 = vunpack.c.h.b16 %v1097
    %v1414 = vunpack.c.l.b16 %v1098
    %v1415 = vunpack.c.h.b16 %v1098
    %v1416 = vunpack.c.l.b16 %v1099
    %v1417 = vunpack.c.h.b16 %v1099
    %v1418 = vunpack.c.l.b16 %v1100
    %v1419 = vunpack.c.h.b16 %v1100
    %v1420 = vunpack.c.l.b16 %v1101
    %v1421 = vunpack.c.h.b16 %v1101
    %v1422 = vunpack.c.l.b16 %v1102
    %v1423 = vunpack.c.h.b16 %v1102
    %v1424 = vunpack.c.l.b16 %v1103
    %v1425 = vunpack.c.h.b16 %v1103
    %v1426 = vunpack.c.l.b16 %v1104
    %v1427 = vunpack.c.h.b16 %v1104
    %v1428 = vunpack.c.l.b16 %v1105
    %v1429 = vunpack.c.h.b16 %v1105
    %v1430 = vunpack.c.l.b16 %v1106
    %v1431 = vunpack.c.h.b16 %v1106
    %v1432 = vunpack.c.l.b16 %v1107
    %v1433 = vunpack.c.h.b16 %v1107
    %v1434 = vunpack.c.l.b16 %v1108
    %v1435 = vunpack.c.h.b16 %v1108
    %v1436 = vunpack.c.l.b16 %v1109
    %v1437 = vunpack.c.h.b16 %v1109
    %v1438 = vunpack.c.l.b16 %v1110
    %v1439 = vunpack.c.h.b16 %v1110
    %v1440 = vunpack.c.l.b16 %v1111
    %v1441 = vunpack.c.h.b16 %v1111
    %v1442 = vunpack.c.l.b16 %v1112
    %v1443 = vunpack.c.h.b16 %v1112
    %v1444 = vunpack.c.l.b16 %v1113
    %v1445 = vunpack.c.h.b16 %v1113
    %v1446 = vunpack.c.l.b16 %v1114
    %v1447 = vunpack.c.h.b16 %v1114
    %v1448 = vunpack.c.l.b16 %v1115
    %v1449 = vunpack.c.h.b16 %v1115
    %v1450 = vunpack.c.l.b16 %v1116
    %v1451 = vunpack.c.h.b16 %v1116
    %v1452 = vunpack.c.l.b16 %v1117
    %v1453 = vunpack.c.h.b16 %v1117
    %v1454 = vunpack.c.l.b16 %v1118
    %v1455 = vunpack.c.h.b16 %v1118
    %v1456 = vunpack.c.l.b16 %v1119
    %v1457 = vunpack.c.h.b16 %v1119
    %v1458 = vunpack.c.l.b16 %v1120
    %v1459 = vunpack.c.h.b16 %v1120
    %v1460 = vunpack.c.l.b16 %v1121
    %v1461 = vunpack.c.h.b16 %v1121
    %v1462 = vunpack.c.l.b16 %v1122
    %v1463 = vunpack.c.h.b16 %v1122
    %v1464 = vunpack.c.l.b16 %v1123
    %v1465 = vunpack.c.h.b16 %v1123
    %v1466 = vunpack.c.l.b16 %v1124
    %v1467 = vunpack.c.h.b16 %v1124
    %v1468 = vunpack.c.l.b16 %v1125
    %v1469 = vunpack.c.h.b16 %v1125
    %v1470 = vunpack.c.l.b16 %v1126
    %v1471 = vunpack.c.h.b16 %v1126
    %v1472 = vunpack.c.l.b16 %v1127
    %v1473 = vunpack.c.h.b16 %v1127
    %v1474 = vunpack.c.l.b16 %v1128
    %v1475 = vunpack.c.h.b16 %v1128
    %v1476 = vunpack.c.l.b16 %v1129
    %v1477 = vunpack.c.h.b16 %v1129
    %v1478 = vunpack.c.l.b16 %v1130
    %v1479 = vunpack.c.h.b16 %v1130
    %v1480 = vunpack.c.l.b16 %v1131
    %v1481 = vunpack.c.h.b16 %v1131
    %v1482 = vunpack.c.l.b16 %v1132
    %v1483 = vunpack.c.h.b16 %v1132
    %v1484 = vunpack.c.l.b16 %v1133
    %v1485 = vunpack.c.h.b16 %v1133
    %v1486 = vunpack.c.l.b16 %v1134
    %v1487 = vunpack.c.h.b16 %v1134
    %v1488 = vunpack.c.l.b16 %v1135
    %v1489 = vunpack.c.h.b16 %v1135
    %v1490 = vunpack.c.l.b16 %v1136
    %v1491 = vunpack.c.h.b16 %v1136
    %v1492 = vunpack.c.l.b16 %v1137
    %v1493 = vunpack.c.h.b16 %v1137
    %v1494 = vunpack.c.l.b16 %v1138
    %v1495 = vunpack.c.h.b16 %v1138
    %v1496 = vunpack.c.l.b16 %v1139
    %v1497 = vunpack.c.h.b16 %v1139
    %v1498 = vunpack.c.l.b16 %v1140
    %v1499 = vunpack.c.h.b16 %v1140
    %v1500 = vunpack.c.l.b16 %v1141
    %v1501 = vunpack.c.h.b16 %v1141
    %v1502 = vunpack.c.l.b16 %v1142
    %v1503 = vunpack.c.h.b16 %v1142
    %v1504 = vunpack.c.l.b16 %v1143
    %v1505 = vunpack.c.h.b16 %v1143
    %v1506 = vunpack.c.l.b16 %v1144
    %v1507 = vunpack.c.h.b16 %v1144
    %v1508 = vunpack.c.l.b16 %v1145
    %v1509 = vunpack.c.h.b16 %v1145
    %v1510 = vunpack.c.l.b16 %v1146
    %v1511 = vunpack.c.h.b16 %v1146
    %v1512 = vunpack.c.l.b16 %v1147
    %v1513 = vunpack.c.h.b16 %v1147
    %v1514 = vunpack.c.l.b16 %v1148
    %v1515 = vunpack.c.h.b16 %v1148
    %v1516 = vunpack.c.l.b16 %v1149
    %v1517 = vunpack.c.h.b16 %v1149
    %v1518 = vunpack.c.l.b16 %v1150
    %v1519 = vunpack.c.h.b16 %v1150
    %v1520 = vunpack.c.l.b16 %v1151
    %v1521 = vunpack.c.h.b16 %v1151
    %v1522 = vunpack.c.l.b16 %v1152
    %v1523 = vunpack.c.h.b16 %v1152
    %v1524 = vunpack.c.l.b16 %v1153
    %v1525 = vunpack.c.h.b16 %v1153
    %v1526 = vunpack.c.l.b16 %v1154
    %v1527 = vunpack.c.h.b16 %v1154
    %v1528 = vunpack.c.l.b16 %v1155
    %v1529 = vunpack.c.h.b16 %v1155
    %v1530 = vunpack.c.l.b16 %v1156
    %v1531 = vunpack.c.h.b16 %v1156
    %v1532 = vunpack.c.l.b16 %v1157
    %v1533 = vunpack.c.h.b16 %v1157
    %v1534 = vunpack.c.l.b16 %v1158
    %v1535 = vunpack.c.h.b16 %v1158
    %v1536 = vunpack.c.l.b16 %v1159
    %v1537 = vunpack.c.h.b16 %v1159
    %v1538 = vunpack.c.l.b16 %v1160
    %v1539 = vunpack.c.h.b16 %v1160
    %v1540 = vunpack.c.l.b16 %v1161
    %v1541 = vunpack.c.h.b16 %v1161
    %v1542 = vunpack.c.l.b16 %v1162
    %v1543 = vunpack.c.h.b16 %v1162
    %v1544 = vunpack.c.l.b16 %v1163
    %v1545 = vunpack.c.h.b16 %v1163
    %v1546 = vunpack.c.l.b16 %v1164
    %v1547 = vunpack.c.h.b16 %v1164
    %v1548 = vunpack.c.l.b16 %v1165
    %v1549 = vunpack.c.h.b16 %v1165
    %v1550 = vunpack.c.l.b16 %v1166
    %v1551 = vunpack.c.h.b16 %v1166
    %v1552 = vunpack.c.l.b16 %v1167
    %v1553 = vunpack.c.h.b16 %v1167
    %v1554 = vunpack.c.l.b16 %v1168
    %v1555 = vunpack.c.h.b16 %v1168
    %v1556 = vunpack.c.l.b16 %v1169
    %v1557 = vunpack.c.h.b16 %v1169
    %v1558 = vunpack.c.l.b16 %v1170
    %v1559 = vunpack.c.h.b16 %v1170
    %v1560 = vunpack.c.l.b16 %v1171
    %v1561 = vunpack.c.h.b16 %v1171
    %v1562 = vpack.c.b16 %v1310, %v1306
    %v1563 = vpack.c.b16 %v1311, %v1307
    %v1564 = vpack.c.b16 %v1312, %v1308
    %v1565 = vpack.c.b16 %v1313, %v1309
    %v1566 = vpack.c.b16 %v1318, %v1314
    %v1567 = vpack.c.b16 %v1319, %v1315
    %v1568 = vpack.c.b16 %v1320, %v1316
    %v1569 = vpack.c.b16 %v1321, %v1317
    %v1570 = vpack.c.b16 %v1326, %v1322
    %v1571 = vpack.c.b16 %v1327, %v1323
    %v1572 = vpack.c.b16 %v1328, %v1324
    %v1573 = vpack.c.b16 %v1329, %v1325
    %v1574 = vpack.c.b16 %v1334, %v1330
    %v1575 = vpack.c.b16 %v1335, %v1331
    %v1576 = vpack.c.b16 %v1336, %v1332
    %v1577 = vpack.c.b16 %v1337, %v1333
    %v1578 = vpack.c.b16 %v1342, %v1338
    %v1579 = vpack.c.b16 %v1343, %v1339
    %v1580 = vpack.c.b16 %v1344, %v1340
    %v1581 = vpack.c.b16 %v1345, %v1341
    %v1582 = vpack.c.b16 %v1350, %v1346
    %v1583 = vpack.c.b16 %v1351, %v1347
    %v1584 = vpack.c.b16 %v1352, %v1348
    %v1585 = vpack.c.b16 %v1353, %v1349
    %v1586 = vpack.c.b16 %v1358, %v1354
    %v1587 = vpack.c.b16 %v1359, %v1355
    %v1588 = vpack.c.b16 %v1360, %v1356
    %v1589 = vpack.c.b16 %v1361, %v1357
    %v1590 = vpack.c.b16 %v1366, %v1362
    %v1591 = vpack.c.b16 %v1367, %v1363
    %v1592 = vpack.c.b16 %v1368, %v1364
    %v1593 = vpack.c.b16 %v1369, %v1365
    %v1594 = vpack.c.b16 %v1374, %v1370
    %v1595 = vpack.c.b16 %v1375, %v1371
    %v1596 = vpack.c.b16 %v1376, %v1372
    %v1597 = vpack.c.b16 %v1377, %v1373
    %v1598 = vpack.c.b16 %v1382, %v1378
    %v1599 = vpack.c.b16 %v1383, %v1379
    %v1600 = vpack.c.b16 %v1384, %v1380
    %v1601 = vpack.c.b16 %v1385, %v1381
    %v1602 = vpack.c.b16 %v1390, %v1386
    %v1603 = vpack.c.b16 %v1391, %v1387
    %v1604 = vpack.c.b16 %v1392, %v1388
    %v1605 = vpack.c.b16 %v1393, %v1389
    %v1606 = vpack.c.b16 %v1398, %v1394
    %v1607 = vpack.c.b16 %v1399, %v1395
    %v1608 = vpack.c.b16 %v1400, %v1396
    %v1609 = vpack.c.b16 %v1401, %v1397
    %v1610 = vpack.c.b16 %v1406, %v1402
    %v1611 = vpack.c.b16 %v1407, %v1403
    %v1612 = vpack.c.b16 %v1408, %v1404
    %v1613 = vpack.c.b16 %v1409, %v1405
    %v1614 = vpack.c.b16 %v1414, %v1410
    %v1615 = vpack.c.b16 %v1415, %v1411
    %v1616 = vpack.c.b16 %v1416, %v1412
    %v1617 = vpack.c.b16 %v1417, %v1413
    %v1618 = vpack.c.b16 %v1422, %v1418
    %v1619 = vpack.c.b16 %v1423, %v1419
    %v1620 = vpack.c.b16 %v1424, %v1420
    %v1621 = vpack.c.b16 %v1425, %v1421
    %v1622 = vpack.c.b16 %v1430, %v1426
    %v1623 = vpack.c.b16 %v1431, %v1427
    %v1624 = vpack.c.b16 %v1432, %v1428
    %v1625 = vpack.c.b16 %v1433, %v1429
    %v1626 = vpack.c.b16 %v1438, %v1434
    %v1627 = vpack.c.b16 %v1439, %v1435
    %v1628 = vpack.c.b16 %v1440, %v1436
    %v1629 = vpack.c.b16 %v1441, %v1437
    %v1630 = vpack.c.b16 %v1446, %v1442
    %v1631 = vpack.c.b16 %v1447, %v1443
    %v1632 = vpack.c.b16 %v1448, %v1444
    %v1633 = vpack.c.b16 %v1449, %v1445
    %v1634 = vpack.c.b16 %v1454, %v1450
    %v1635 = vpack.c.b16 %v1455, %v1451
    %v1636 = vpack.c.b16 %v1456, %v1452
    %v1637 = vpack.c.b16 %v1457, %v1453
    %v1638 = vpack.c.b16 %v1462, %v1458
    %v1639 = vpack.c.b16 %v1463, %v1459
    %v1640 = vpack.c.b16 %v1464, %v1460
    %v1641 = vpack.c.b16 %v1465, %v1461
    %v1642 = vpack.c.b16 %v1470, %v1466
    %v1643 = vpack.c.b16 %v1471, %v1467
    %v1644 = vpack.c.b16 %v1472, %v1468
    %v1645 = vpack.c.b16 %v1473, %v1469
    %v1646 = vpack.c.b16 %v1478, %v1474
    %v1647 = vpack.c.b16 %v1479, %v1475
    %v1648 = vpack.c.b16 %v1480, %v1476
    %v1649 = vpack.c.b16 %v1481, %v1477
    %v1650 = vpack.c.b16 %v1486, %v1482
    %v1651 = vpack.c.b16 %v1487, %v1483
    %v1652 = vpack.c.b16 %v1488, %v1484
    %v1653 = vpack.c.b16 %v1489, %v1485
    %v1654 = vpack.c.b16 %v1494, %v1490
    %v1655 = vpack.c.b16 %v1495, %v1491
    %v1656 = vpack.c.b16 %v1496, %v1492
    %v1657 = vpack.c.b16 %v1497, %v1493
    %v1658 = vpack.c.b16 %v1502, %v1498
    %v1659 = vpack.c.b16 %v1503, %v1499
    %v1660 = vpack.c.b16 %v1504, %v1500
    %v1661 = vpack.c.b16 %v1505, %v1501
    %v1662 = vpack.c.b16 %v1510, %v1506
    %v1663 = vpack.c.b16 %v1511, %v1507
    %v1664 = vpack.c.b16 %v1512, %v1508
    %v1665 = vpack.c.b16 %v1513, %v1509
    %v1666 = vpack.c.b16 %v1518, %v1514
    %v1667 = vpack.c.b16 %v1519, %v1515
    %v1668 = vpack.c.b16 %v1520, %v1516
    %v1669 = vpack.c.b16 %v1521, %v1517
    %v1670 = vpack.c.b16 %v1526, %v1522
    %v1671 = vpack.c.b16 %v1527, %v1523
    %v1672 = vpack.c.b16 %v1528, %v1524
    %v1673 = vpack.c.b16 %v1529, %v1525
    %v1674 = vpack.c.b16 %v1534, %v1530
    %v1675 = vpack.c.b16 %v1535, %v1531
    %v1676 = vpack.c.b16 %v1536, %v1532
    %v1677 = vpack.c.b16 %v1537, %v1533
    %v1678 = vpack.c.b16 %v1542, %v1538
    %v1679 = vpack.c.b16 %v1543, %v1539
    %v1680 = vpack.c.b16 %v1544, %v1540
    %v1681 = vpack.c.b16 %v1545, %v1541
    %v1682 = vpack.c.b16 %v1550, %v1546
    %v1683 = vpack.c.b16 %v1551, %v1547
    %v1684 = vpack.c.b16 %v1552, %v1548
    %v1685 = vpack.c.b16 %v1553, %v1549
    %v1686 = vpack.c.b16 %v1558, %v1554
    %v1687 = vpack.c.b16 %v1559, %v1555
    %v1688 = vpack.c.b16 %v1560, %v1556
    %v1689 = vpack.c.b16 %v1561, %v1557
    %1818 = vmatprep.subr.bf16.mxu0 %v1563
    %1819 = vmatpush1.bf16.msra.mxu0 %v1562
    %1820 = vmatprep.subr.bf16.mxu0 %v1567
    %1821 = vmatpush1.bf16.msra.mxu0 %v1566
    %1822 = vmatprep.subr.bf16.mxu0 %v1571
    %1823 = vmatpush1.bf16.msra.mxu0 %v1570
    %1824 = vmatprep.subr.bf16.mxu0 %v1575
    %1825 = vmatpush1.bf16.msra.mxu0 %v1574
    %1826 = vmatprep.subr.bf16.mxu0 %v1579
    %1827 = vmatpush1.bf16.msra.mxu0 %v1578
    %1828 = vmatprep.subr.bf16.mxu0 %v1583
    %1829 = vmatpush1.bf16.msra.mxu0 %v1582
    %1830 = vmatprep.subr.bf16.mxu0 %v1587
    %1831 = vmatpush1.bf16.msra.mxu0 %v1586
    %1832 = vmatprep.subr.bf16.mxu0 %v1591
    %1833 = vmatpush1.bf16.msra.mxu0 %v1590
    %1834 = vmatprep.subr.bf16.mxu0 %v1595
    %1835 = vmatpush1.bf16.msra.mxu0 %v1594
    %1836 = vmatprep.subr.bf16.mxu0 %v1599
    %1837 = vmatpush1.bf16.msra.mxu0 %v1598
    %1838 = vmatprep.subr.bf16.mxu0 %v1603
    %1839 = vmatpush1.bf16.msra.mxu0 %v1602
    %1840 = vmatprep.subr.bf16.mxu0 %v1607
    %1841 = vmatpush1.bf16.msra.mxu0 %v1606
    %1842 = vmatprep.subr.bf16.mxu0 %v1611
    %1843 = vmatpush1.bf16.msra.mxu0 %v1610
    %1844 = vmatprep.subr.bf16.mxu0 %v1615
    %1845 = vmatpush1.bf16.msra.mxu0 %v1614
    %1846 = vmatprep.subr.bf16.mxu0 %v1619
    %1847 = vmatpush1.bf16.msra.mxu0 %v1618
    %1848 = vmatprep.subr.bf16.mxu0 %v1623
    %1849 = vmatpush1.bf16.msra.mxu0 %v1622
    %1850 = vmatprep.mubr.bf16.mxu0 %v216
    %1851 = vmatmul.mubr.bf16.gmra.mrb[0].mxu0 %v215
    %v1852 = vpop.f32.mrb[0].mxu0
    %v1853 = vadd.f32 %v1174, %v1852
    %v1854 = vpop.f32.mrb[0].mxu0
    %v1855 = vadd.f32 %v1175, %v1854
    %v1856 = vpop.f32.mrb[0].mxu0
    %v1857 = vpop.f32.mrb[0].mxu0
    %1858 = vdwg.mxu0
    %1859 = vmatprep.subr.bf16.mxu0 %v1627
    %1860 = vmatpush1.bf16.msra.mxu0 %v1626
    %1861 = vmatprep.subr.bf16.mxu0 %v1631
    %1862 = vmatpush1.bf16.msra.mxu0 %v1630
    %1863 = vmatprep.subr.bf16.mxu0 %v1635
    %1864 = vmatpush1.bf16.msra.mxu0 %v1634
    %1865 = vmatprep.subr.bf16.mxu0 %v1639
    %1866 = vmatpush1.bf16.msra.mxu0 %v1638
    %1867 = vmatprep.subr.bf16.mxu0 %v1643
    %1868 = vmatpush1.bf16.msra.mxu0 %v1642
    %1869 = vmatprep.subr.bf16.mxu0 %v1647
    %1870 = vmatpush1.bf16.msra.mxu0 %v1646
    %1871 = vmatprep.subr.bf16.mxu0 %v1651
    %1872 = vmatpush1.bf16.msra.mxu0 %v1650
    %1873 = vmatprep.subr.bf16.mxu0 %v1655
    %1874 = vmatpush1.bf16.msra.mxu0 %v1654
    %1875 = vmatprep.subr.bf16.mxu0 %v1659
    %1876 = vmatpush1.bf16.msra.mxu0 %v1658
    %1877 = vmatprep.subr.bf16.mxu0 %v1663
    %1878 = vmatpush1.bf16.msra.mxu0 %v1662
    %1879 = vmatprep.subr.bf16.mxu0 %v1667
    %1880 = vmatpush1.bf16.msra.mxu0 %v1666
    %1881 = vmatprep.subr.bf16.mxu0 %v1671
    %1882 = vmatpush1.bf16.msra.mxu0 %v1670
    %1883 = vmatprep.subr.bf16.mxu0 %v1675
    %1884 = vmatpush1.bf16.msra.mxu0 %v1674
    %1885 = vmatprep.subr.bf16.mxu0 %v1679
    %1886 = vmatpush1.bf16.msra.mxu0 %v1678
    %1887 = vmatprep.subr.bf16.mxu0 %v1683
    %1888 = vmatpush1.bf16.msra.mxu0 %v1682
    %1889 = vmatprep.subr.bf16.mxu0 %v1687
    %1890 = vmatpush1.bf16.msra.mxu0 %v1686
    %1891 = vmatprep.mubr.bf16.mxu0 %v218
    %1892 = vmatmul.mubr.bf16.gmra.mrb[0].mxu0 %v217
    %v1893 = vpop.f32.mrb[0].mxu0
    %v1894 = vadd.f32 %v1853, %v1893
    %v1895 = vpop.f32.mrb[0].mxu0
    %v1896 = vadd.f32 %v1855, %v1895
    %v1897 = vpop.f32.mrb[0].mxu0
    %v1898 = vpop.f32.mrb[0].mxu0
    %1899 = vdwg.mxu0
    %1900 = vmatprep.subr.bf16.mxu0 %v1565
    %1901 = vmatpush1.bf16.msra.mxu0 %v1564
    %1902 = vmatprep.subr.bf16.mxu0 %v1569
    %1903 = vmatpush1.bf16.msra.mxu0 %v1568
    %1904 = vmatprep.subr.bf16.mxu0 %v1573
    %1905 = vmatpush1.bf16.msra.mxu0 %v1572
    %1906 = vmatprep.subr.bf16.mxu0 %v1577
    %1907 = vmatpush1.bf16.msra.mxu0 %v1576
    %1908 = vmatprep.subr.bf16.mxu0 %v1581
    %1909 = vmatpush1.bf16.msra.mxu0 %v1580
    %1910 = vmatprep.subr.bf16.mxu0 %v1585
    %1911 = vmatpush1.bf16.msra.mxu0 %v1584
    %1912 = vmatprep.subr.bf16.mxu0 %v1589
    %1913 = vmatpush1.bf16.msra.mxu0 %v1588
    %1914 = vmatprep.subr.bf16.mxu0 %v1593
    %1915 = vmatpush1.bf16.msra.mxu0 %v1592
    %1916 = vmatprep.subr.bf16.mxu0 %v1597
    %1917 = vmatpush1.bf16.msra.mxu0 %v1596
    %1918 = vmatprep.subr.bf16.mxu0 %v1601
    %1919 = vmatpush1.bf16.msra.mxu0 %v1600
    %1920 = vmatprep.subr.bf16.mxu0 %v1605
    %1921 = vmatpush1.bf16.msra.mxu0 %v1604
    %1922 = vmatprep.subr.bf16.mxu0 %v1609
    %1923 = vmatpush1.bf16.msra.mxu0 %v1608
    %1924 = vmatprep.subr.bf16.mxu0 %v1613
    %1925 = vmatpush1.bf16.msra.mxu0 %v1612
    %1926 = vmatprep.subr.bf16.mxu0 %v1617
    %1927 = vmatpush1.bf16.msra.mxu0 %v1616
    %1928 = vmatprep.subr.bf16.mxu0 %v1621
    %1929 = vmatpush1.bf16.msra.mxu0 %v1620
    %1930 = vmatprep.subr.bf16.mxu0 %v1625
    %1931 = vmatpush1.bf16.msra.mxu0 %v1624
    %1932 = vmatprep.mubr.bf16.mxu0 %v216
    %1933 = vmatmul.mubr.bf16.gmra.mrb[0].mxu0 %v215
    %v1934 = vpop.f32.mrb[0].mxu0
    %v1935 = vadd.f32 %v1176, %v1934
    %v1936 = vpop.f32.mrb[0].mxu0
    %v1937 = vadd.f32 %v1177, %v1936
    %v1938 = vpop.f32.mrb[0].mxu0
    %v1939 = vpop.f32.mrb[0].mxu0
    %1940 = vdwg.mxu0
    %1941 = vmatprep.subr.bf16.mxu0 %v1629
    %1942 = vmatpush1.bf16.msra.mxu0 %v1628
    %1943 = vmatprep.subr.bf16.mxu0 %v1633
    %1944 = vmatpush1.bf16.msra.mxu0 %v1632
    %1945 = vmatprep.subr.bf16.mxu0 %v1637
    %1946 = vmatpush1.bf16.msra.mxu0 %v1636
    %1947 = vmatprep.subr.bf16.mxu0 %v1641
    %1948 = vmatpush1.bf16.msra.mxu0 %v1640
    %1949 = vmatprep.subr.bf16.mxu0 %v1645
    %1950 = vmatpush1.bf16.msra.mxu0 %v1644
    %1951 = vmatprep.subr.bf16.mxu0 %v1649
    %1952 = vmatpush1.bf16.msra.mxu0 %v1648
    %1953 = vmatprep.subr.bf16.mxu0 %v1653
    %1954 = vmatpush1.bf16.msra.mxu0 %v1652
    %1955 = vmatprep.subr.bf16.mxu0 %v1657
    %1956 = vmatpush1.bf16.msra.mxu0 %v1656
    %1957 = vmatprep.subr.bf16.mxu0 %v1661
    %1958 = vmatpush1.bf16.msra.mxu0 %v1660
    %1959 = vmatprep.subr.bf16.mxu0 %v1665
    %1960 = vmatpush1.bf16.msra.mxu0 %v1664
    %1961 = vmatprep.subr.bf16.mxu0 %v1669
    %1962 = vmatpush1.bf16.msra.mxu0 %v1668
    %1963 = vmatprep.subr.bf16.mxu0 %v1673
    %1964 = vmatpush1.bf16.msra.mxu0 %v1672
    %1965 = vmatprep.subr.bf16.mxu0 %v1677
    %1966 = vmatpush1.bf16.msra.mxu0 %v1676
    %1967 = vmatprep.subr.bf16.mxu0 %v1681
    %1968 = vmatpush1.bf16.msra.mxu0 %v1680
    %1969 = vmatprep.subr.bf16.mxu0 %v1685
    %1970 = vmatpush1.bf16.msra.mxu0 %v1684
    %1971 = vmatprep.subr.bf16.mxu0 %v1689
    %1972 = vmatpush1.bf16.msra.mxu0 %v1688
    %1973 = vmatprep.mubr.bf16.mxu0 %v218
    %1974 = vmatmul.mubr.bf16.gmra.mrb[0].mxu0 %v217
    %v1975 = vpop.f32.mrb[0].mxu0
    %v1976 = vadd.f32 %v1935, %v1975
    %v1977 = vpop.f32.mrb[0].mxu0
    %v1978 = vadd.f32 %v1937, %v1977
    %v1979 = vpop.f32.mrb[0].mxu0
    %v1980 = vpop.f32.mrb[0].mxu0
    %1981 = vdwg.mxu0
    %v1982 = vmul.f32 %v1894, 0.5
    %v1983 = vmul.f32 %v1896, 0.5
    %v1984 = vmul.f32 %v1976, 0.5
    %v1985 = vmul.f32 %v1978, 0.5
    %v1986 = vtanh.pop %v1982
    %v1987 = vtanh.pop %v1983
    %v1988 = vtanh.pop %v1984
    %v1989 = vtanh.pop %v1985
    %v1990 = vmul.f32 %v1986, 0.5
    %v1991 = vmul.f32 %v1987, 0.5
    %v1992 = vmul.f32 %v1988, 0.5
    %v1993 = vmul.f32 %v1989, 0.5
    %v1994 = vadd.f32 %v1990, 0.5
    %v1995 = vadd.f32 %v1991, 0.5
    %v1996 = vadd.f32 %v1992, 0.5
    %v1997 = vadd.f32 %v1993, 0.5
    %v1998 = vmul.f32 %v1994, %v71
    %v1999 = vmul.f32 %v1995, %v72
    %v2000 = vmul.f32 %v1996, %v73
    %v2001 = vmul.f32 %v1997, %v74
    %s2002 = scalar_lea.vmem [#allocation7], 2048
    %v2003 = vld [vmem:[%s2002] sm:$0xff]
    %v2004 = vld [vmem:[%s2002 + $0x8] sm:$0xff]
    %v2005 = vld [vmem:[%s2002 + $0x10] sm:$0xff]
    %v2006 = vld [vmem:[%s2002 + $0x18] sm:$0xff]
    %v2007 = vld [vmem:[%s2002 + $0x20] sm:$0xff]
    %v2008 = vld [vmem:[%s2002 + $0x28] sm:$0xff]
    %v2009 = vld [vmem:[%s2002 + $0x30] sm:$0xff]
    %v2010 = vld [vmem:[%s2002 + $0x38] sm:$0xff]
    %v2011 = vld [vmem:[%s2002 + $0x40] sm:$0xff]
    %v2012 = vld [vmem:[%s2002 + $0x48] sm:$0xff]
    %v2013 = vld [vmem:[%s2002 + $0x50] sm:$0xff]
    %v2014 = vld [vmem:[%s2002 + $0x58] sm:$0xff]
    %v2015 = vld [vmem:[%s2002 + $0x60] sm:$0xff]
    %v2016 = vld [vmem:[%s2002 + $0x68] sm:$0xff]
    %v2017 = vld [vmem:[%s2002 + $0x70] sm:$0xff]
    %v2018 = vld [vmem:[%s2002 + $0x78] sm:$0xff]
    %v2019 = vld [vmem:[%s2002 + $0x80] sm:$0xff]
    %v2020 = vld [vmem:[%s2002 + $0x88] sm:$0xff]
    %v2021 = vld [vmem:[%s2002 + $0x90] sm:$0xff]
    %v2022 = vld [vmem:[%s2002 + $0x98] sm:$0xff]
    %v2023 = vld [vmem:[%s2002 + $0xa0] sm:$0xff]
    %v2024 = vld [vmem:[%s2002 + $0xa8] sm:$0xff]
    %v2025 = vld [vmem:[%s2002 + $0xb0] sm:$0xff]
    %v2026 = vld [vmem:[%s2002 + $0xb8] sm:$0xff]
    %v2027 = vld [vmem:[%s2002 + $0xc0] sm:$0xff]
    %v2028 = vld [vmem:[%s2002 + $0xc8] sm:$0xff]
    %v2029 = vld [vmem:[%s2002 + $0xd0] sm:$0xff]
    %v2030 = vld [vmem:[%s2002 + $0xd8] sm:$0xff]
    %v2031 = vld [vmem:[%s2002 + $0xe0] sm:$0xff]
    %v2032 = vld [vmem:[%s2002 + $0xe8] sm:$0xff]
    %v2033 = vld [vmem:[%s2002 + $0xf0] sm:$0xff]
    %v2034 = vld [vmem:[%s2002 + $0xf8] sm:$0xff]
    %v2035 = vld [vmem:[%s2002 + $0x100] sm:$0xff]
    %v2036 = vld [vmem:[%s2002 + $0x108] sm:$0xff]
    %v2037 = vld [vmem:[%s2002 + $0x110] sm:$0xff]
    %v2038 = vld [vmem:[%s2002 + $0x118] sm:$0xff]
    %v2039 = vld [vmem:[%s2002 + $0x120] sm:$0xff]
    %v2040 = vld [vmem:[%s2002 + $0x128] sm:$0xff]
    %v2041 = vld [vmem:[%s2002 + $0x130] sm:$0xff]
    %v2042 = vld [vmem:[%s2002 + $0x138] sm:$0xff]
    %v2043 = vld [vmem:[%s2002 + $0x140] sm:$0xff]
    %v2044 = vld [vmem:[%s2002 + $0x148] sm:$0xff]
    %v2045 = vld [vmem:[%s2002 + $0x150] sm:$0xff]
    %v2046 = vld [vmem:[%s2002 + $0x158] sm:$0xff]
    %v2047 = vld [vmem:[%s2002 + $0x160] sm:$0xff]
    %v2048 = vld [vmem:[%s2002 + $0x168] sm:$0xff]
    %v2049 = vld [vmem:[%s2002 + $0x170] sm:$0xff]
    %v2050 = vld [vmem:[%s2002 + $0x178] sm:$0xff]
    %v2051 = vld [vmem:[%s2002 + $0x180] sm:$0xff]
    %v2052 = vld [vmem:[%s2002 + $0x188] sm:$0xff]
    %v2053 = vld [vmem:[%s2002 + $0x190] sm:$0xff]
    %v2054 = vld [vmem:[%s2002 + $0x198] sm:$0xff]
    %v2055 = vld [vmem:[%s2002 + $0x1a0] sm:$0xff]
    %v2056 = vld [vmem:[%s2002 + $0x1a8] sm:$0xff]
    %v2057 = vld [vmem:[%s2002 + $0x1b0] sm:$0xff]
    %v2058 = vld [vmem:[%s2002 + $0x1b8] sm:$0xff]
    %v2059 = vld [vmem:[%s2002 + $0x1c0] sm:$0xff]
    %v2060 = vld [vmem:[%s2002 + $0x1c8] sm:$0xff]
    %v2061 = vld [vmem:[%s2002 + $0x1d0] sm:$0xff]
    %v2062 = vld [vmem:[%s2002 + $0x1d8] sm:$0xff]
    %v2063 = vld [vmem:[%s2002 + $0x1e0] sm:$0xff]
    %v2064 = vld [vmem:[%s2002 + $0x1e8] sm:$0xff]
    %v2065 = vld [vmem:[%s2002 + $0x1f0] sm:$0xff]
    %v2066 = vld [vmem:[%s2002 + $0x1f8] sm:$0xff]
    %v2067 = vld [vmem:[%s2002 + $0x200] sm:$0xff]
    %v2068 = vld [vmem:[%s2002 + $0x208] sm:$0xff]
    %v2069 = vld [vmem:[%s2002 + $0x210] sm:$0xff]
    %v2070 = vld [vmem:[%s2002 + $0x218] sm:$0xff]
    %v2071 = vld [vmem:[%s2002 + $0x220] sm:$0xff]
    %v2072 = vld [vmem:[%s2002 + $0x228] sm:$0xff]
    %v2073 = vld [vmem:[%s2002 + $0x230] sm:$0xff]
    %v2074 = vld [vmem:[%s2002 + $0x238] sm:$0xff]
    %v2075 = vld [vmem:[%s2002 + $0x240] sm:$0xff]
    %v2076 = vld [vmem:[%s2002 + $0x248] sm:$0xff]
    %v2077 = vld [vmem:[%s2002 + $0x250] sm:$0xff]
    %v2078 = vld [vmem:[%s2002 + $0x258] sm:$0xff]
    %v2079 = vld [vmem:[%s2002 + $0x260] sm:$0xff]
    %v2080 = vld [vmem:[%s2002 + $0x268] sm:$0xff]
    %v2081 = vld [vmem:[%s2002 + $0x270] sm:$0xff]
    %v2082 = vld [vmem:[%s2002 + $0x278] sm:$0xff]
    %v2083 = vld [vmem:[%s2002 + $0x280] sm:$0xff]
    %v2084 = vld [vmem:[%s2002 + $0x288] sm:$0xff]
    %v2085 = vld [vmem:[%s2002 + $0x290] sm:$0xff]
    %v2086 = vld [vmem:[%s2002 + $0x298] sm:$0xff]
    %v2087 = vld [vmem:[%s2002 + $0x2a0] sm:$0xff]
    %v2088 = vld [vmem:[%s2002 + $0x2a8] sm:$0xff]
    %v2089 = vld [vmem:[%s2002 + $0x2b0] sm:$0xff]
    %v2090 = vld [vmem:[%s2002 + $0x2b8] sm:$0xff]
    %v2091 = vld [vmem:[%s2002 + $0x2c0] sm:$0xff]
    %v2092 = vld [vmem:[%s2002 + $0x2c8] sm:$0xff]
    %v2093 = vld [vmem:[%s2002 + $0x2d0] sm:$0xff]
    %v2094 = vld [vmem:[%s2002 + $0x2d8] sm:$0xff]
    %v2095 = vld [vmem:[%s2002 + $0x2e0] sm:$0xff]
    %v2096 = vld [vmem:[%s2002 + $0x2e8] sm:$0xff]
    %v2097 = vld [vmem:[%s2002 + $0x2f0] sm:$0xff]
    %v2098 = vld [vmem:[%s2002 + $0x2f8] sm:$0xff]
    %v2099 = vld [vmem:[%s2002 + $0x300] sm:$0xff]
    %v2100 = vld [vmem:[%s2002 + $0x308] sm:$0xff]
    %v2101 = vld [vmem:[%s2002 + $0x310] sm:$0xff]
    %v2102 = vld [vmem:[%s2002 + $0x318] sm:$0xff]
    %v2103 = vld [vmem:[%s2002 + $0x320] sm:$0xff]
    %v2104 = vld [vmem:[%s2002 + $0x328] sm:$0xff]
    %v2105 = vld [vmem:[%s2002 + $0x330] sm:$0xff]
    %v2106 = vld [vmem:[%s2002 + $0x338] sm:$0xff]
    %v2107 = vld [vmem:[%s2002 + $0x340] sm:$0xff]
    %v2108 = vld [vmem:[%s2002 + $0x348] sm:$0xff]
    %v2109 = vld [vmem:[%s2002 + $0x350] sm:$0xff]
    %v2110 = vld [vmem:[%s2002 + $0x358] sm:$0xff]
    %v2111 = vld [vmem:[%s2002 + $0x360] sm:$0xff]
    %v2112 = vld [vmem:[%s2002 + $0x368] sm:$0xff]
    %v2113 = vld [vmem:[%s2002 + $0x370] sm:$0xff]
    %v2114 = vld [vmem:[%s2002 + $0x378] sm:$0xff]
    %v2115 = vld [vmem:[%s2002 + $0x380] sm:$0xff]
    %v2116 = vld [vmem:[%s2002 + $0x388] sm:$0xff]
    %v2117 = vld [vmem:[%s2002 + $0x390] sm:$0xff]
    %v2118 = vld [vmem:[%s2002 + $0x398] sm:$0xff]
    %v2119 = vld [vmem:[%s2002 + $0x3a0] sm:$0xff]
    %v2120 = vld [vmem:[%s2002 + $0x3a8] sm:$0xff]
    %v2121 = vld [vmem:[%s2002 + $0x3b0] sm:$0xff]
    %v2122 = vld [vmem:[%s2002 + $0x3b8] sm:$0xff]
    %v2123 = vld [vmem:[%s2002 + $0x3c0] sm:$0xff]
    %v2124 = vld [vmem:[%s2002 + $0x3c8] sm:$0xff]
    %v2125 = vld [vmem:[%s2002 + $0x3d0] sm:$0xff]
    %v2126 = vld [vmem:[%s2002 + $0x3d8] sm:$0xff]
    %v2127 = vld [vmem:[%s2002 + $0x3e0] sm:$0xff]
    %v2128 = vld [vmem:[%s2002 + $0x3e8] sm:$0xff]
    %v2129 = vld [vmem:[%s2002 + $0x3f0] sm:$0xff]
    %v2130 = vld [vmem:[%s2002 + $0x3f8] sm:$0xff]
    %v2131 = vld [vmem:[#allocation5 + $0x20] sm:$0xff]
    %v2132 = vld [vmem:[#allocation5 + $0x28] sm:$0xff]
    %v2133 = vunpack.c.l.bf16 %v2131
    %v2134 = vunpack.c.h.bf16 %v2131
    %v2135 = vunpack.c.l.bf16 %v2132
    %v2136 = vunpack.c.h.bf16 %v2132
    %v2265 = vunpack.c.l.b16 %v2003
    %v2266 = vunpack.c.h.b16 %v2003
    %v2267 = vunpack.c.l.b16 %v2004
    %v2268 = vunpack.c.h.b16 %v2004
    %v2269 = vunpack.c.l.b16 %v2005
    %v2270 = vunpack.c.h.b16 %v2005
    %v2271 = vunpack.c.l.b16 %v2006
    %v2272 = vunpack.c.h.b16 %v2006
    %v2273 = vunpack.c.l.b16 %v2007
    %v2274 = vunpack.c.h.b16 %v2007
    %v2275 = vunpack.c.l.b16 %v2008
    %v2276 = vunpack.c.h.b16 %v2008
    %v2277 = vunpack.c.l.b16 %v2009
    %v2278 = vunpack.c.h.b16 %v2009
    %v2279 = vunpack.c.l.b16 %v2010
    %v2280 = vunpack.c.h.b16 %v2010
    %v2281 = vunpack.c.l.b16 %v2011
    %v2282 = vunpack.c.h.b16 %v2011
    %v2283 = vunpack.c.l.b16 %v2012
    %v2284 = vunpack.c.h.b16 %v2012
    %v2285 = vunpack.c.l.b16 %v2013
    %v2286 = vunpack.c.h.b16 %v2013
    %v2287 = vunpack.c.l.b16 %v2014
    %v2288 = vunpack.c.h.b16 %v2014
    %v2289 = vunpack.c.l.b16 %v2015
    %v2290 = vunpack.c.h.b16 %v2015
    %v2291 = vunpack.c.l.b16 %v2016
    %v2292 = vunpack.c.h.b16 %v2016
    %v2293 = vunpack.c.l.b16 %v2017
    %v2294 = vunpack.c.h.b16 %v2017
    %v2295 = vunpack.c.l.b16 %v2018
    %v2296 = vunpack.c.h.b16 %v2018
    %v2297 = vunpack.c.l.b16 %v2019
    %v2298 = vunpack.c.h.b16 %v2019
    %v2299 = vunpack.c.l.b16 %v2020
    %v2300 = vunpack.c.h.b16 %v2020
    %v2301 = vunpack.c.l.b16 %v2021
    %v2302 = vunpack.c.h.b16 %v2021
    %v2303 = vunpack.c.l.b16 %v2022
    %v2304 = vunpack.c.h.b16 %v2022
    %v2305 = vunpack.c.l.b16 %v2023
    %v2306 = vunpack.c.h.b16 %v2023
    %v2307 = vunpack.c.l.b16 %v2024
    %v2308 = vunpack.c.h.b16 %v2024
    %v2309 = vunpack.c.l.b16 %v2025
    %v2310 = vunpack.c.h.b16 %v2025
    %v2311 = vunpack.c.l.b16 %v2026
    %v2312 = vunpack.c.h.b16 %v2026
    %v2313 = vunpack.c.l.b16 %v2027
    %v2314 = vunpack.c.h.b16 %v2027
    %v2315 = vunpack.c.l.b16 %v2028
    %v2316 = vunpack.c.h.b16 %v2028
    %v2317 = vunpack.c.l.b16 %v2029
    %v2318 = vunpack.c.h.b16 %v2029
    %v2319 = vunpack.c.l.b16 %v2030
    %v2320 = vunpack.c.h.b16 %v2030
    %v2321 = vunpack.c.l.b16 %v2031
    %v2322 = vunpack.c.h.b16 %v2031
    %v2323 = vunpack.c.l.b16 %v2032
    %v2324 = vunpack.c.h.b16 %v2032
    %v2325 = vunpack.c.l.b16 %v2033
    %v2326 = vunpack.c.h.b16 %v2033
    %v2327 = vunpack.c.l.b16 %v2034
    %v2328 = vunpack.c.h.b16 %v2034
    %v2329 = vunpack.c.l.b16 %v2035
    %v2330 = vunpack.c.h.b16 %v2035
    %v2331 = vunpack.c.l.b16 %v2036
    %v2332 = vunpack.c.h.b16 %v2036
    %v2333 = vunpack.c.l.b16 %v2037
    %v2334 = vunpack.c.h.b16 %v2037
    %v2335 = vunpack.c.l.b16 %v2038
    %v2336 = vunpack.c.h.b16 %v2038
    %v2337 = vunpack.c.l.b16 %v2039
    %v2338 = vunpack.c.h.b16 %v2039
    %v2339 = vunpack.c.l.b16 %v2040
    %v2340 = vunpack.c.h.b16 %v2040
    %v2341 = vunpack.c.l.b16 %v2041
    %v2342 = vunpack.c.h.b16 %v2041
    %v2343 = vunpack.c.l.b16 %v2042
    %v2344 = vunpack.c.h.b16 %v2042
    %v2345 = vunpack.c.l.b16 %v2043
    %v2346 = vunpack.c.h.b16 %v2043
    %v2347 = vunpack.c.l.b16 %v2044
    %v2348 = vunpack.c.h.b16 %v2044
    %v2349 = vunpack.c.l.b16 %v2045
    %v2350 = vunpack.c.h.b16 %v2045
    %v2351 = vunpack.c.l.b16 %v2046
    %v2352 = vunpack.c.h.b16 %v2046
    %v2353 = vunpack.c.l.b16 %v2047
    %v2354 = vunpack.c.h.b16 %v2047
    %v2355 = vunpack.c.l.b16 %v2048
    %v2356 = vunpack.c.h.b16 %v2048
    %v2357 = vunpack.c.l.b16 %v2049
    %v2358 = vunpack.c.h.b16 %v2049
    %v2359 = vunpack.c.l.b16 %v2050
    %v2360 = vunpack.c.h.b16 %v2050
    %v2361 = vunpack.c.l.b16 %v2051
    %v2362 = vunpack.c.h.b16 %v2051
    %v2363 = vunpack.c.l.b16 %v2052
    %v2364 = vunpack.c.h.b16 %v2052
    %v2365 = vunpack.c.l.b16 %v2053
    %v2366 = vunpack.c.h.b16 %v2053
    %v2367 = vunpack.c.l.b16 %v2054
    %v2368 = vunpack.c.h.b16 %v2054
    %v2369 = vunpack.c.l.b16 %v2055
    %v2370 = vunpack.c.h.b16 %v2055
    %v2371 = vunpack.c.l.b16 %v2056
    %v2372 = vunpack.c.h.b16 %v2056
    %v2373 = vunpack.c.l.b16 %v2057
    %v2374 = vunpack.c.h.b16 %v2057
    %v2375 = vunpack.c.l.b16 %v2058
    %v2376 = vunpack.c.h.b16 %v2058
    %v2377 = vunpack.c.l.b16 %v2059
    %v2378 = vunpack.c.h.b16 %v2059
    %v2379 = vunpack.c.l.b16 %v2060
    %v2380 = vunpack.c.h.b16 %v2060
    %v2381 = vunpack.c.l.b16 %v2061
    %v2382 = vunpack.c.h.b16 %v2061
    %v2383 = vunpack.c.l.b16 %v2062
    %v2384 = vunpack.c.h.b16 %v2062
    %v2385 = vunpack.c.l.b16 %v2063
    %v2386 = vunpack.c.h.b16 %v2063
    %v2387 = vunpack.c.l.b16 %v2064
    %v2388 = vunpack.c.h.b16 %v2064
    %v2389 = vunpack.c.l.b16 %v2065
    %v2390 = vunpack.c.h.b16 %v2065
    %v2391 = vunpack.c.l.b16 %v2066
    %v2392 = vunpack.c.h.b16 %v2066
    %v2393 = vunpack.c.l.b16 %v2067
    %v2394 = vunpack.c.h.b16 %v2067
    %v2395 = vunpack.c.l.b16 %v2068
    %v2396 = vunpack.c.h.b16 %v2068
    %v2397 = vunpack.c.l.b16 %v2069
    %v2398 = vunpack.c.h.b16 %v2069
    %v2399 = vunpack.c.l.b16 %v2070
    %v2400 = vunpack.c.h.b16 %v2070
    %v2401 = vunpack.c.l.b16 %v2071
    %v2402 = vunpack.c.h.b16 %v2071
    %v2403 = vunpack.c.l.b16 %v2072
    %v2404 = vunpack.c.h.b16 %v2072
    %v2405 = vunpack.c.l.b16 %v2073
    %v2406 = vunpack.c.h.b16 %v2073
    %v2407 = vunpack.c.l.b16 %v2074
    %v2408 = vunpack.c.h.b16 %v2074
    %v2409 = vunpack.c.l.b16 %v2075
    %v2410 = vunpack.c.h.b16 %v2075
    %v2411 = vunpack.c.l.b16 %v2076
    %v2412 = vunpack.c.h.b16 %v2076
    %v2413 = vunpack.c.l.b16 %v2077
    %v2414 = vunpack.c.h.b16 %v2077
    %v2415 = vunpack.c.l.b16 %v2078
    %v2416 = vunpack.c.h.b16 %v2078
    %v2417 = vunpack.c.l.b16 %v2079
    %v2418 = vunpack.c.h.b16 %v2079
    %v2419 = vunpack.c.l.b16 %v2080
    %v2420 = vunpack.c.h.b16 %v2080
    %v2421 = vunpack.c.l.b16 %v2081
    %v2422 = vunpack.c.h.b16 %v2081
    %v2423 = vunpack.c.l.b16 %v2082
    %v2424 = vunpack.c.h.b16 %v2082
    %v2425 = vunpack.c.l.b16 %v2083
    %v2426 = vunpack.c.h.b16 %v2083
    %v2427 = vunpack.c.l.b16 %v2084
    %v2428 = vunpack.c.h.b16 %v2084
    %v2429 = vunpack.c.l.b16 %v2085
    %v2430 = vunpack.c.h.b16 %v2085
    %v2431 = vunpack.c.l.b16 %v2086
    %v2432 = vunpack.c.h.b16 %v2086
    %v2433 = vunpack.c.l.b16 %v2087
    %v2434 = vunpack.c.h.b16 %v2087
    %v2435 = vunpack.c.l.b16 %v2088
    %v2436 = vunpack.c.h.b16 %v2088
    %v2437 = vunpack.c.l.b16 %v2089
    %v2438 = vunpack.c.h.b16 %v2089
    %v2439 = vunpack.c.l.b16 %v2090
    %v2440 = vunpack.c.h.b16 %v2090
    %v2441 = vunpack.c.l.b16 %v2091
    %v2442 = vunpack.c.h.b16 %v2091
    %v2443 = vunpack.c.l.b16 %v2092
    %v2444 = vunpack.c.h.b16 %v2092
    %v2445 = vunpack.c.l.b16 %v2093
    %v2446 = vunpack.c.h.b16 %v2093
    %v2447 = vunpack.c.l.b16 %v2094
    %v2448 = vunpack.c.h.b16 %v2094
    %v2449 = vunpack.c.l.b16 %v2095
    %v2450 = vunpack.c.h.b16 %v2095
    %v2451 = vunpack.c.l.b16 %v2096
    %v2452 = vunpack.c.h.b16 %v2096
    %v2453 = vunpack.c.l.b16 %v2097
    %v2454 = vunpack.c.h.b16 %v2097
    %v2455 = vunpack.c.l.b16 %v2098
    %v2456 = vunpack.c.h.b16 %v2098
    %v2457 = vunpack.c.l.b16 %v2099
    %v2458 = vunpack.c.h.b16 %v2099
    %v2459 = vunpack.c.l.b16 %v2100
    %v2460 = vunpack.c.h.b16 %v2100
    %v2461 = vunpack.c.l.b16 %v2101
    %v2462 = vunpack.c.h.b16 %v2101
    %v2463 = vunpack.c.l.b16 %v2102
    %v2464 = vunpack.c.h.b16 %v2102
    %v2465 = vunpack.c.l.b16 %v2103
    %v2466 = vunpack.c.h.b16 %v2103
    %v2467 = vunpack.c.l.b16 %v2104
    %v2468 = vunpack.c.h.b16 %v2104
    %v2469 = vunpack.c.l.b16 %v2105
    %v2470 = vunpack.c.h.b16 %v2105
    %v2471 = vunpack.c.l.b16 %v2106
    %v2472 = vunpack.c.h.b16 %v2106
    %v2473 = vunpack.c.l.b16 %v2107
    %v2474 = vunpack.c.h.b16 %v2107
    %v2475 = vunpack.c.l.b16 %v2108
    %v2476 = vunpack.c.h.b16 %v2108
    %v2477 = vunpack.c.l.b16 %v2109
    %v2478 = vunpack.c.h.b16 %v2109
    %v2479 = vunpack.c.l.b16 %v2110
    %v2480 = vunpack.c.h.b16 %v2110
    %v2481 = vunpack.c.l.b16 %v2111
    %v2482 = vunpack.c.h.b16 %v2111
    %v2483 = vunpack.c.l.b16 %v2112
    %v2484 = vunpack.c.h.b16 %v2112
    %v2485 = vunpack.c.l.b16 %v2113
    %v2486 = vunpack.c.h.b16 %v2113
    %v2487 = vunpack.c.l.b16 %v2114
    %v2488 = vunpack.c.h.b16 %v2114
    %v2489 = vunpack.c.l.b16 %v2115
    %v2490 = vunpack.c.h.b16 %v2115
    %v2491 = vunpack.c.l.b16 %v2116
    %v2492 = vunpack.c.h.b16 %v2116
    %v2493 = vunpack.c.l.b16 %v2117
    %v2494 = vunpack.c.h.b16 %v2117
    %v2495 = vunpack.c.l.b16 %v2118
    %v2496 = vunpack.c.h.b16 %v2118
    %v2497 = vunpack.c.l.b16 %v2119
    %v2498 = vunpack.c.h.b16 %v2119
    %v2499 = vunpack.c.l.b16 %v2120
    %v2500 = vunpack.c.h.b16 %v2120
    %v2501 = vunpack.c.l.b16 %v2121
    %v2502 = vunpack.c.h.b16 %v2121
    %v2503 = vunpack.c.l.b16 %v2122
    %v2504 = vunpack.c.h.b16 %v2122
    %v2505 = vunpack.c.l.b16 %v2123
    %v2506 = vunpack.c.h.b16 %v2123
    %v2507 = vunpack.c.l.b16 %v2124
    %v2508 = vunpack.c.h.b16 %v2124
    %v2509 = vunpack.c.l.b16 %v2125
    %v2510 = vunpack.c.h.b16 %v2125
    %v2511 = vunpack.c.l.b16 %v2126
    %v2512 = vunpack.c.h.b16 %v2126
    %v2513 = vunpack.c.l.b16 %v2127
    %v2514 = vunpack.c.h.b16 %v2127
    %v2515 = vunpack.c.l.b16 %v2128
    %v2516 = vunpack.c.h.b16 %v2128
    %v2517 = vunpack.c.l.b16 %v2129
    %v2518 = vunpack.c.h.b16 %v2129
    %v2519 = vunpack.c.l.b16 %v2130
    %v2520 = vunpack.c.h.b16 %v2130
    %v2521 = vpack.c.b16 %v2269, %v2265
    %v2522 = vpack.c.b16 %v2270, %v2266
    %v2523 = vpack.c.b16 %v2271, %v2267
    %v2524 = vpack.c.b16 %v2272, %v2268
    %v2525 = vpack.c.b16 %v2277, %v2273
    %v2526 = vpack.c.b16 %v2278, %v2274
    %v2527 = vpack.c.b16 %v2279, %v2275
    %v2528 = vpack.c.b16 %v2280, %v2276
    %v2529 = vpack.c.b16 %v2285, %v2281
    %v2530 = vpack.c.b16 %v2286, %v2282
    %v2531 = vpack.c.b16 %v2287, %v2283
    %v2532 = vpack.c.b16 %v2288, %v2284
    %v2533 = vpack.c.b16 %v2293, %v2289
    %v2534 = vpack.c.b16 %v2294, %v2290
    %v2535 = vpack.c.b16 %v2295, %v2291
    %v2536 = vpack.c.b16 %v2296, %v2292
    %v2537 = vpack.c.b16 %v2301, %v2297
    %v2538 = vpack.c.b16 %v2302, %v2298
    %v2539 = vpack.c.b16 %v2303, %v2299
    %v2540 = vpack.c.b16 %v2304, %v2300
    %v2541 = vpack.c.b16 %v2309, %v2305
    %v2542 = vpack.c.b16 %v2310, %v2306
    %v2543 = vpack.c.b16 %v2311, %v2307
    %v2544 = vpack.c.b16 %v2312, %v2308
    %v2545 = vpack.c.b16 %v2317, %v2313
    %v2546 = vpack.c.b16 %v2318, %v2314
    %v2547 = vpack.c.b16 %v2319, %v2315
    %v2548 = vpack.c.b16 %v2320, %v2316
    %v2549 = vpack.c.b16 %v2325, %v2321
    %v2550 = vpack.c.b16 %v2326, %v2322
    %v2551 = vpack.c.b16 %v2327, %v2323
    %v2552 = vpack.c.b16 %v2328, %v2324
    %v2553 = vpack.c.b16 %v2333, %v2329
    %v2554 = vpack.c.b16 %v2334, %v2330
    %v2555 = vpack.c.b16 %v2335, %v2331
    %v2556 = vpack.c.b16 %v2336, %v2332
    %v2557 = vpack.c.b16 %v2341, %v2337
    %v2558 = vpack.c.b16 %v2342, %v2338
    %v2559 = vpack.c.b16 %v2343, %v2339
    %v2560 = vpack.c.b16 %v2344, %v2340
    %v2561 = vpack.c.b16 %v2349, %v2345
    %v2562 = vpack.c.b16 %v2350, %v2346
    %v2563 = vpack.c.b16 %v2351, %v2347
    %v2564 = vpack.c.b16 %v2352, %v2348
    %v2565 = vpack.c.b16 %v2357, %v2353
    %v2566 = vpack.c.b16 %v2358, %v2354
    %v2567 = vpack.c.b16 %v2359, %v2355
    %v2568 = vpack.c.b16 %v2360, %v2356
    %v2569 = vpack.c.b16 %v2365, %v2361
    %v2570 = vpack.c.b16 %v2366, %v2362
    %v2571 = vpack.c.b16 %v2367, %v2363
    %v2572 = vpack.c.b16 %v2368, %v2364
    %v2573 = vpack.c.b16 %v2373, %v2369
    %v2574 = vpack.c.b16 %v2374, %v2370
    %v2575 = vpack.c.b16 %v2375, %v2371
    %v2576 = vpack.c.b16 %v2376, %v2372
    %v2577 = vpack.c.b16 %v2381, %v2377
    %v2578 = vpack.c.b16 %v2382, %v2378
    %v2579 = vpack.c.b16 %v2383, %v2379
    %v2580 = vpack.c.b16 %v2384, %v2380
    %v2581 = vpack.c.b16 %v2389, %v2385
    %v2582 = vpack.c.b16 %v2390, %v2386
    %v2583 = vpack.c.b16 %v2391, %v2387
    %v2584 = vpack.c.b16 %v2392, %v2388
    %v2585 = vpack.c.b16 %v2397, %v2393
    %v2586 = vpack.c.b16 %v2398, %v2394
    %v2587 = vpack.c.b16 %v2399, %v2395
    %v2588 = vpack.c.b16 %v2400, %v2396
    %v2589 = vpack.c.b16 %v2405, %v2401
    %v2590 = vpack.c.b16 %v2406, %v2402
    %v2591 = vpack.c.b16 %v2407, %v2403
    %v2592 = vpack.c.b16 %v2408, %v2404
    %v2593 = vpack.c.b16 %v2413, %v2409
    %v2594 = vpack.c.b16 %v2414, %v2410
    %v2595 = vpack.c.b16 %v2415, %v2411
    %v2596 = vpack.c.b16 %v2416, %v2412
    %v2597 = vpack.c.b16 %v2421, %v2417
    %v2598 = vpack.c.b16 %v2422, %v2418
    %v2599 = vpack.c.b16 %v2423, %v2419
    %v2600 = vpack.c.b16 %v2424, %v2420
    %v2601 = vpack.c.b16 %v2429, %v2425
    %v2602 = vpack.c.b16 %v2430, %v2426
    %v2603 = vpack.c.b16 %v2431, %v2427
    %v2604 = vpack.c.b16 %v2432, %v2428
    %v2605 = vpack.c.b16 %v2437, %v2433
    %v2606 = vpack.c.b16 %v2438, %v2434
    %v2607 = vpack.c.b16 %v2439, %v2435
    %v2608 = vpack.c.b16 %v2440, %v2436
    %v2609 = vpack.c.b16 %v2445, %v2441
    %v2610 = vpack.c.b16 %v2446, %v2442
    %v2611 = vpack.c.b16 %v2447, %v2443
    %v2612 = vpack.c.b16 %v2448, %v2444
    %v2613 = vpack.c.b16 %v2453, %v2449
    %v2614 = vpack.c.b16 %v2454, %v2450
    %v2615 = vpack.c.b16 %v2455, %v2451
    %v2616 = vpack.c.b16 %v2456, %v2452
    %v2617 = vpack.c.b16 %v2461, %v2457
    %v2618 = vpack.c.b16 %v2462, %v2458
    %v2619 = vpack.c.b16 %v2463, %v2459
    %v2620 = vpack.c.b16 %v2464, %v2460
    %v2621 = vpack.c.b16 %v2469, %v2465
    %v2622 = vpack.c.b16 %v2470, %v2466
    %v2623 = vpack.c.b16 %v2471, %v2467
    %v2624 = vpack.c.b16 %v2472, %v2468
    %v2625 = vpack.c.b16 %v2477, %v2473
    %v2626 = vpack.c.b16 %v2478, %v2474
    %v2627 = vpack.c.b16 %v2479, %v2475
    %v2628 = vpack.c.b16 %v2480, %v2476
    %v2629 = vpack.c.b16 %v2485, %v2481
    %v2630 = vpack.c.b16 %v2486, %v2482
    %v2631 = vpack.c.b16 %v2487, %v2483
    %v2632 = vpack.c.b16 %v2488, %v2484
    %v2633 = vpack.c.b16 %v2493, %v2489
    %v2634 = vpack.c.b16 %v2494, %v2490
    %v2635 = vpack.c.b16 %v2495, %v2491
    %v2636 = vpack.c.b16 %v2496, %v2492
    %v2637 = vpack.c.b16 %v2501, %v2497
    %v2638 = vpack.c.b16 %v2502, %v2498
    %v2639 = vpack.c.b16 %v2503, %v2499
    %v2640 = vpack.c.b16 %v2504, %v2500
    %v2641 = vpack.c.b16 %v2509, %v2505
    %v2642 = vpack.c.b16 %v2510, %v2506
    %v2643 = vpack.c.b16 %v2511, %v2507
    %v2644 = vpack.c.b16 %v2512, %v2508
    %v2645 = vpack.c.b16 %v2517, %v2513
    %v2646 = vpack.c.b16 %v2518, %v2514
    %v2647 = vpack.c.b16 %v2519, %v2515
    %v2648 = vpack.c.b16 %v2520, %v2516
    %2777 = vmatprep.subr.bf16.mxu0 %v2522
    %2778 = vmatpush1.bf16.msra.mxu0 %v2521
    %2779 = vmatprep.subr.bf16.mxu0 %v2526
    %2780 = vmatpush1.bf16.msra.mxu0 %v2525
    %2781 = vmatprep.subr.bf16.mxu0 %v2530
    %2782 = vmatpush1.bf16.msra.mxu0 %v2529
    %2783 = vmatprep.subr.bf16.mxu0 %v2534
    %2784 = vmatpush1.bf16.msra.mxu0 %v2533
    %2785 = vmatprep.subr.bf16.mxu0 %v2538
    %2786 = vmatpush1.bf16.msra.mxu0 %v2537
    %2787 = vmatprep.subr.bf16.mxu0 %v2542
    %2788 = vmatpush1.bf16.msra.mxu0 %v2541
    %2789 = vmatprep.subr.bf16.mxu0 %v2546
    %2790 = vmatpush1.bf16.msra.mxu0 %v2545
    %2791 = vmatprep.subr.bf16.mxu0 %v2550
    %2792 = vmatpush1.bf16.msra.mxu0 %v2549
    %2793 = vmatprep.subr.bf16.mxu0 %v2554
    %2794 = vmatpush1.bf16.msra.mxu0 %v2553
    %2795 = vmatprep.subr.bf16.mxu0 %v2558
    %2796 = vmatpush1.bf16.msra.mxu0 %v2557
    %2797 = vmatprep.subr.bf16.mxu0 %v2562
    %2798 = vmatpush1.bf16.msra.mxu0 %v2561
    %2799 = vmatprep.subr.bf16.mxu0 %v2566
    %2800 = vmatpush1.bf16.msra.mxu0 %v2565
    %2801 = vmatprep.subr.bf16.mxu0 %v2570
    %2802 = vmatpush1.bf16.msra.mxu0 %v2569
    %2803 = vmatprep.subr.bf16.mxu0 %v2574
    %2804 = vmatpush1.bf16.msra.mxu0 %v2573
    %2805 = vmatprep.subr.bf16.mxu0 %v2578
    %2806 = vmatpush1.bf16.msra.mxu0 %v2577
    %2807 = vmatprep.subr.bf16.mxu0 %v2582
    %2808 = vmatpush1.bf16.msra.mxu0 %v2581
    %2809 = vmatprep.mubr.bf16.mxu0 %v216
    %2810 = vmatmul.mubr.bf16.gmra.mrb[0].mxu0 %v215
    %v2811 = vpop.f32.mrb[0].mxu0
    %v2812 = vadd.f32 %v2133, %v2811
    %v2813 = vpop.f32.mrb[0].mxu0
    %v2814 = vadd.f32 %v2134, %v2813
    %v2815 = vpop.f32.mrb[0].mxu0
    %v2816 = vpop.f32.mrb[0].mxu0
    %2817 = vdwg.mxu0
    %2818 = vmatprep.subr.bf16.mxu0 %v2586
    %2819 = vmatpush1.bf16.msra.mxu0 %v2585
    %2820 = vmatprep.subr.bf16.mxu0 %v2590
    %2821 = vmatpush1.bf16.msra.mxu0 %v2589
    %2822 = vmatprep.subr.bf16.mxu0 %v2594
    %2823 = vmatpush1.bf16.msra.mxu0 %v2593
    %2824 = vmatprep.subr.bf16.mxu0 %v2598
    %2825 = vmatpush1.bf16.msra.mxu0 %v2597
    %2826 = vmatprep.subr.bf16.mxu0 %v2602
    %2827 = vmatpush1.bf16.msra.mxu0 %v2601
    %2828 = vmatprep.subr.bf16.mxu0 %v2606
    %2829 = vmatpush1.bf16.msra.mxu0 %v2605
    %2830 = vmatprep.subr.bf16.mxu0 %v2610
    %2831 = vmatpush1.bf16.msra.mxu0 %v2609
    %2832 = vmatprep.subr.bf16.mxu0 %v2614
    %2833 = vmatpush1.bf16.msra.mxu0 %v2613
    %2834 = vmatprep.subr.bf16.mxu0 %v2618
    %2835 = vmatpush1.bf16.msra.mxu0 %v2617
    %2836 = vmatprep.subr.bf16.mxu0 %v2622
    %2837 = vmatpush1.bf16.msra.mxu0 %v2621
    %2838 = vmatprep.subr.bf16.mxu0 %v2626
    %2839 = vmatpush1.bf16.msra.mxu0 %v2625
    %2840 = vmatprep.subr.bf16.mxu0 %v2630
    %2841 = vmatpush1.bf16.msra.mxu0 %v2629
    %2842 = vmatprep.subr.bf16.mxu0 %v2634
    %2843 = vmatpush1.bf16.msra.mxu0 %v2633
    %2844 = vmatprep.subr.bf16.mxu0 %v2638
    %2845 = vmatpush1.bf16.msra.mxu0 %v2637
    %2846 = vmatprep.subr.bf16.mxu0 %v2642
    %2847 = vmatpush1.bf16.msra.mxu0 %v2641
    %2848 = vmatprep.subr.bf16.mxu0 %v2646
    %2849 = vmatpush1.bf16.msra.mxu0 %v2645
    %2850 = vmatprep.mubr.bf16.mxu0 %v218
    %2851 = vmatmul.mubr.bf16.gmra.mrb[0].mxu0 %v217
    %v2852 = vpop.f32.mrb[0].mxu0
    %v2853 = vadd.f32 %v2812, %v2852
    %v2854 = vpop.f32.mrb[0].mxu0
    %v2855 = vadd.f32 %v2814, %v2854
    %v2856 = vpop.f32.mrb[0].mxu0
    %v2857 = vpop.f32.mrb[0].mxu0
    %2858 = vdwg.mxu0
    %2859 = vmatprep.subr.bf16.mxu0 %v2524
    %2860 = vmatpush1.bf16.msra.mxu0 %v2523
    %2861 = vmatprep.subr.bf16.mxu0 %v2528
    %2862 = vmatpush1.bf16.msra.mxu0 %v2527
    %2863 = vmatprep.subr.bf16.mxu0 %v2532
    %2864 = vmatpush1.bf16.msra.mxu0 %v2531
    %2865 = vmatprep.subr.bf16.mxu0 %v2536
    %2866 = vmatpush1.bf16.msra.mxu0 %v2535
    %2867 = vmatprep.subr.bf16.mxu0 %v2540
    %2868 = vmatpush1.bf16.msra.mxu0 %v2539
    %2869 = vmatprep.subr.bf16.mxu0 %v2544
    %2870 = vmatpush1.bf16.msra.mxu0 %v2543
    %2871 = vmatprep.subr.bf16.mxu0 %v2548
    %2872 = vmatpush1.bf16.msra.mxu0 %v2547
    %2873 = vmatprep.subr.bf16.mxu0 %v2552
    %2874 = vmatpush1.bf16.msra.mxu0 %v2551
    %2875 = vmatprep.subr.bf16.mxu0 %v2556
    %2876 = vmatpush1.bf16.msra.mxu0 %v2555
    %2877 = vmatprep.subr.bf16.mxu0 %v2560
    %2878 = vmatpush1.bf16.msra.mxu0 %v2559
    %2879 = vmatprep.subr.bf16.mxu0 %v2564
    %2880 = vmatpush1.bf16.msra.mxu0 %v2563
    %2881 = vmatprep.subr.bf16.mxu0 %v2568
    %2882 = vmatpush1.bf16.msra.mxu0 %v2567
    %2883 = vmatprep.subr.bf16.mxu0 %v2572
    %2884 = vmatpush1.bf16.msra.mxu0 %v2571
    %2885 = vmatprep.subr.bf16.mxu0 %v2576
    %2886 = vmatpush1.bf16.msra.mxu0 %v2575
    %2887 = vmatprep.subr.bf16.mxu0 %v2580
    %2888 = vmatpush1.bf16.msra.mxu0 %v2579
    %2889 = vmatprep.subr.bf16.mxu0 %v2584
    %2890 = vmatpush1.bf16.msra.mxu0 %v2583
    %2891 = vmatprep.mubr.bf16.mxu0 %v216
    %2892 = vmatmul.mubr.bf16.gmra.mrb[0].mxu0 %v215
    %v2893 = vpop.f32.mrb[0].mxu0
    %v2894 = vadd.f32 %v2135, %v2893
    %v2895 = vpop.f32.mrb[0].mxu0
    %v2896 = vadd.f32 %v2136, %v2895
    %v2897 = vpop.f32.mrb[0].mxu0
    %v2898 = vpop.f32.mrb[0].mxu0
    %2899 = vdwg.mxu0
    %2900 = vmatprep.subr.bf16.mxu0 %v2588
    %2901 = vmatpush1.bf16.msra.mxu0 %v2587
    %2902 = vmatprep.subr.bf16.mxu0 %v2592
    %2903 = vmatpush1.bf16.msra.mxu0 %v2591
    %2904 = vmatprep.subr.bf16.mxu0 %v2596
    %2905 = vmatpush1.bf16.msra.mxu0 %v2595
    %2906 = vmatprep.subr.bf16.mxu0 %v2600
    %2907 = vmatpush1.bf16.msra.mxu0 %v2599
    %2908 = vmatprep.subr.bf16.mxu0 %v2604
    %2909 = vmatpush1.bf16.msra.mxu0 %v2603
    %2910 = vmatprep.subr.bf16.mxu0 %v2608
    %2911 = vmatpush1.bf16.msra.mxu0 %v2607
    %2912 = vmatprep.subr.bf16.mxu0 %v2612
    %2913 = vmatpush1.bf16.msra.mxu0 %v2611
    %2914 = vmatprep.subr.bf16.mxu0 %v2616
    %2915 = vmatpush1.bf16.msra.mxu0 %v2615
    %2916 = vmatprep.subr.bf16.mxu0 %v2620
    %2917 = vmatpush1.bf16.msra.mxu0 %v2619
    %2918 = vmatprep.subr.bf16.mxu0 %v2624
    %2919 = vmatpush1.bf16.msra.mxu0 %v2623
    %2920 = vmatprep.subr.bf16.mxu0 %v2628
    %2921 = vmatpush1.bf16.msra.mxu0 %v2627
    %2922 = vmatprep.subr.bf16.mxu0 %v2632
    %2923 = vmatpush1.bf16.msra.mxu0 %v2631
    %2924 = vmatprep.subr.bf16.mxu0 %v2636
    %2925 = vmatpush1.bf16.msra.mxu0 %v2635
    %2926 = vmatprep.subr.bf16.mxu0 %v2640
    %2927 = vmatpush1.bf16.msra.mxu0 %v2639
    %2928 = vmatprep.subr.bf16.mxu0 %v2644
    %2929 = vmatpush1.bf16.msra.mxu0 %v2643
    %2930 = vmatprep.subr.bf16.mxu0 %v2648
    %2931 = vmatpush1.bf16.msra.mxu0 %v2647
    %2932 = vmatprep.mubr.bf16.mxu0 %v218
    %2933 = vmatmul.mubr.bf16.gmra.mrb[0].mxu0 %v217
    %v2934 = vpop.f32.mrb[0].mxu0
    %v2935 = vadd.f32 %v2894, %v2934
    %v2936 = vpop.f32.mrb[0].mxu0
    %v2937 = vadd.f32 %v2896, %v2936
    %v2938 = vpop.f32.mrb[0].mxu0
    %v2939 = vpop.f32.mrb[0].mxu0
    %2940 = vdwg.mxu0
    %v2941 = vtanh.pop %v2853
    %v2942 = vtanh.pop %v2855
    %v2943 = vtanh.pop %v2935
    %v2944 = vtanh.pop %v2937
    %v2945 = vmul.f32 %v1039, %v2941
    %v2946 = vmul.f32 %v1040, %v2942
    %v2947 = vmul.f32 %v1041, %v2943
    %v2948 = vmul.f32 %v1042, %v2944
    %v2949 = vadd.f32 %v1998, %v2945
    %v2950 = vadd.f32 %v1999, %v2946
    %v2951 = vadd.f32 %v2000, %v2947
    %v2952 = vadd.f32 %v2001, %v2948
    %s2953 = scalar_lea.vmem [#allocation7], 3072
    %v2954 = vld [vmem:[%s2953] sm:$0xff]
    %v2955 = vld [vmem:[%s2953 + $0x8] sm:$0xff]
    %v2956 = vld [vmem:[%s2953 + $0x10] sm:$0xff]
    %v2957 = vld [vmem:[%s2953 + $0x18] sm:$0xff]
    %v2958 = vld [vmem:[%s2953 + $0x20] sm:$0xff]
    %v2959 = vld [vmem:[%s2953 + $0x28] sm:$0xff]
    %v2960 = vld [vmem:[%s2953 + $0x30] sm:$0xff]
    %v2961 = vld [vmem:[%s2953 + $0x38] sm:$0xff]
    %v2962 = vld [vmem:[%s2953 + $0x40] sm:$0xff]
    %v2963 = vld [vmem:[%s2953 + $0x48] sm:$0xff]
    %v2964 = vld [vmem:[%s2953 + $0x50] sm:$0xff]
    %v2965 = vld [vmem:[%s2953 + $0x58] sm:$0xff]
    %v2966 = vld [vmem:[%s2953 + $0x60] sm:$0xff]
    %v2967 = vld [vmem:[%s2953 + $0x68] sm:$0xff]
    %v2968 = vld [vmem:[%s2953 + $0x70] sm:$0xff]
    %v2969 = vld [vmem:[%s2953 + $0x78] sm:$0xff]
    %v2970 = vld [vmem:[%s2953 + $0x80] sm:$0xff]
    %v2971 = vld [vmem:[%s2953 + $0x88] sm:$0xff]
    %v2972 = vld [vmem:[%s2953 + $0x90] sm:$0xff]
    %v2973 = vld [vmem:[%s2953 + $0x98] sm:$0xff]
    %v2974 = vld [vmem:[%s2953 + $0xa0] sm:$0xff]
    %v2975 = vld [vmem:[%s2953 + $0xa8] sm:$0xff]
    %v2976 = vld [vmem:[%s2953 + $0xb0] sm:$0xff]
    %v2977 = vld [vmem:[%s2953 + $0xb8] sm:$0xff]
    %v2978 = vld [vmem:[%s2953 + $0xc0] sm:$0xff]
    %v2979 = vld [vmem:[%s2953 + $0xc8] sm:$0xff]
    %v2980 = vld [vmem:[%s2953 + $0xd0] sm:$0xff]
    %v2981 = vld [vmem:[%s2953 + $0xd8] sm:$0xff]
    %v2982 = vld [vmem:[%s2953 + $0xe0] sm:$0xff]
    %v2983 = vld [vmem:[%s2953 + $0xe8] sm:$0xff]
    %v2984 = vld [vmem:[%s2953 + $0xf0] sm:$0xff]
    %v2985 = vld [vmem:[%s2953 + $0xf8] sm:$0xff]
    %v2986 = vld [vmem:[%s2953 + $0x100] sm:$0xff]
    %v2987 = vld [vmem:[%s2953 + $0x108] sm:$0xff]
    %v2988 = vld [vmem:[%s2953 + $0x110] sm:$0xff]
    %v2989 = vld [vmem:[%s2953 + $0x118] sm:$0xff]
    %v2990 = vld [vmem:[%s2953 + $0x120] sm:$0xff]
    %v2991 = vld [vmem:[%s2953 + $0x128] sm:$0xff]
    %v2992 = vld [vmem:[%s2953 + $0x130] sm:$0xff]
    %v2993 = vld [vmem:[%s2953 + $0x138] sm:$0xff]
    %v2994 = vld [vmem:[%s2953 + $0x140] sm:$0xff]
    %v2995 = vld [vmem:[%s2953 + $0x148] sm:$0xff]
    %v2996 = vld [vmem:[%s2953 + $0x150] sm:$0xff]
    %v2997 = vld [vmem:[%s2953 + $0x158] sm:$0xff]
    %v2998 = vld [vmem:[%s2953 + $0x160] sm:$0xff]
    %v2999 = vld [vmem:[%s2953 + $0x168] sm:$0xff]
    %v3000 = vld [vmem:[%s2953 + $0x170] sm:$0xff]
    %v3001 = vld [vmem:[%s2953 + $0x178] sm:$0xff]
    %v3002 = vld [vmem:[%s2953 + $0x180] sm:$0xff]
    %v3003 = vld [vmem:[%s2953 + $0x188] sm:$0xff]
    %v3004 = vld [vmem:[%s2953 + $0x190] sm:$0xff]
    %v3005 = vld [vmem:[%s2953 + $0x198] sm:$0xff]
    %v3006 = vld [vmem:[%s2953 + $0x1a0] sm:$0xff]
    %v3007 = vld [vmem:[%s2953 + $0x1a8] sm:$0xff]
    %v3008 = vld [vmem:[%s2953 + $0x1b0] sm:$0xff]
    %v3009 = vld [vmem:[%s2953 + $0x1b8] sm:$0xff]
    %v3010 = vld [vmem:[%s2953 + $0x1c0] sm:$0xff]
    %v3011 = vld [vmem:[%s2953 + $0x1c8] sm:$0xff]
    %v3012 = vld [vmem:[%s2953 + $0x1d0] sm:$0xff]
    %v3013 = vld [vmem:[%s2953 + $0x1d8] sm:$0xff]
    %v3014 = vld [vmem:[%s2953 + $0x1e0] sm:$0xff]
    %v3015 = vld [vmem:[%s2953 + $0x1e8] sm:$0xff]
    %v3016 = vld [vmem:[%s2953 + $0x1f0] sm:$0xff]
    %v3017 = vld [vmem:[%s2953 + $0x1f8] sm:$0xff]
    %v3018 = vld [vmem:[%s2953 + $0x200] sm:$0xff]
    %v3019 = vld [vmem:[%s2953 + $0x208] sm:$0xff]
    %v3020 = vld [vmem:[%s2953 + $0x210] sm:$0xff]
    %v3021 = vld [vmem:[%s2953 + $0x218] sm:$0xff]
    %v3022 = vld [vmem:[%s2953 + $0x220] sm:$0xff]
    %v3023 = vld [vmem:[%s2953 + $0x228] sm:$0xff]
    %v3024 = vld [vmem:[%s2953 + $0x230] sm:$0xff]
    %v3025 = vld [vmem:[%s2953 + $0x238] sm:$0xff]
    %v3026 = vld [vmem:[%s2953 + $0x240] sm:$0xff]
    %v3027 = vld [vmem:[%s2953 + $0x248] sm:$0xff]
    %v3028 = vld [vmem:[%s2953 + $0x250] sm:$0xff]
    %v3029 = vld [vmem:[%s2953 + $0x258] sm:$0xff]
    %v3030 = vld [vmem:[%s2953 + $0x260] sm:$0xff]
    %v3031 = vld [vmem:[%s2953 + $0x268] sm:$0xff]
    %v3032 = vld [vmem:[%s2953 + $0x270] sm:$0xff]
    %v3033 = vld [vmem:[%s2953 + $0x278] sm:$0xff]
    %v3034 = vld [vmem:[%s2953 + $0x280] sm:$0xff]
    %v3035 = vld [vmem:[%s2953 + $0x288] sm:$0xff]
    %v3036 = vld [vmem:[%s2953 + $0x290] sm:$0xff]
    %v3037 = vld [vmem:[%s2953 + $0x298] sm:$0xff]
    %v3038 = vld [vmem:[%s2953 + $0x2a0] sm:$0xff]
    %v3039 = vld [vmem:[%s2953 + $0x2a8] sm:$0xff]
    %v3040 = vld [vmem:[%s2953 + $0x2b0] sm:$0xff]
    %v3041 = vld [vmem:[%s2953 + $0x2b8] sm:$0xff]
    %v3042 = vld [vmem:[%s2953 + $0x2c0] sm:$0xff]
    %v3043 = vld [vmem:[%s2953 + $0x2c8] sm:$0xff]
    %v3044 = vld [vmem:[%s2953 + $0x2d0] sm:$0xff]
    %v3045 = vld [vmem:[%s2953 + $0x2d8] sm:$0xff]
    %v3046 = vld [vmem:[%s2953 + $0x2e0] sm:$0xff]
    %v3047 = vld [vmem:[%s2953 + $0x2e8] sm:$0xff]
    %v3048 = vld [vmem:[%s2953 + $0x2f0] sm:$0xff]
    %v3049 = vld [vmem:[%s2953 + $0x2f8] sm:$0xff]
    %v3050 = vld [vmem:[%s2953 + $0x300] sm:$0xff]
    %v3051 = vld [vmem:[%s2953 + $0x308] sm:$0xff]
    %v3052 = vld [vmem:[%s2953 + $0x310] sm:$0xff]
    %v3053 = vld [vmem:[%s2953 + $0x318] sm:$0xff]
    %v3054 = vld [vmem:[%s2953 + $0x320] sm:$0xff]
    %v3055 = vld [vmem:[%s2953 + $0x328] sm:$0xff]
    %v3056 = vld [vmem:[%s2953 + $0x330] sm:$0xff]
    %v3057 = vld [vmem:[%s2953 + $0x338] sm:$0xff]
    %v3058 = vld [vmem:[%s2953 + $0x340] sm:$0xff]
    %v3059 = vld [vmem:[%s2953 + $0x348] sm:$0xff]
    %v3060 = vld [vmem:[%s2953 + $0x350] sm:$0xff]
    %v3061 = vld [vmem:[%s2953 + $0x358] sm:$0xff]
    %v3062 = vld [vmem:[%s2953 + $0x360] sm:$0xff]
    %v3063 = vld [vmem:[%s2953 + $0x368] sm:$0xff]
    %v3064 = vld [vmem:[%s2953 + $0x370] sm:$0xff]
    %v3065 = vld [vmem:[%s2953 + $0x378] sm:$0xff]
    %v3066 = vld [vmem:[%s2953 + $0x380] sm:$0xff]
    %v3067 = vld [vmem:[%s2953 + $0x388] sm:$0xff]
    %v3068 = vld [vmem:[%s2953 + $0x390] sm:$0xff]
    %v3069 = vld [vmem:[%s2953 + $0x398] sm:$0xff]
    %v3070 = vld [vmem:[%s2953 + $0x3a0] sm:$0xff]
    %v3071 = vld [vmem:[%s2953 + $0x3a8] sm:$0xff]
    %v3072 = vld [vmem:[%s2953 + $0x3b0] sm:$0xff]
    %v3073 = vld [vmem:[%s2953 + $0x3b8] sm:$0xff]
    %v3074 = vld [vmem:[%s2953 + $0x3c0] sm:$0xff]
    %v3075 = vld [vmem:[%s2953 + $0x3c8] sm:$0xff]
    %v3076 = vld [vmem:[%s2953 + $0x3d0] sm:$0xff]
    %v3077 = vld [vmem:[%s2953 + $0x3d8] sm:$0xff]
    %v3078 = vld [vmem:[%s2953 + $0x3e0] sm:$0xff]
    %v3079 = vld [vmem:[%s2953 + $0x3e8] sm:$0xff]
    %v3080 = vld [vmem:[%s2953 + $0x3f0] sm:$0xff]
    %v3081 = vld [vmem:[%s2953 + $0x3f8] sm:$0xff]
    %v3082 = vld [vmem:[#allocation5 + $0x30] sm:$0xff]
    %v3083 = vld [vmem:[#allocation5 + $0x38] sm:$0xff]
    %v3084 = vunpack.c.l.bf16 %v3082
    %v3085 = vunpack.c.h.bf16 %v3082
    %v3086 = vunpack.c.l.bf16 %v3083
    %v3087 = vunpack.c.h.bf16 %v3083
    %v3216 = vunpack.c.l.b16 %v2954
    %v3217 = vunpack.c.h.b16 %v2954
    %v3218 = vunpack.c.l.b16 %v2955
    %v3219 = vunpack.c.h.b16 %v2955
    %v3220 = vunpack.c.l.b16 %v2956
    %v3221 = vunpack.c.h.b16 %v2956
    %v3222 = vunpack.c.l.b16 %v2957
    %v3223 = vunpack.c.h.b16 %v2957
    %v3224 = vunpack.c.l.b16 %v2958
    %v3225 = vunpack.c.h.b16 %v2958
    %v3226 = vunpack.c.l.b16 %v2959
    %v3227 = vunpack.c.h.b16 %v2959
    %v3228 = vunpack.c.l.b16 %v2960
    %v3229 = vunpack.c.h.b16 %v2960
    %v3230 = vunpack.c.l.b16 %v2961
    %v3231 = vunpack.c.h.b16 %v2961
    %v3232 = vunpack.c.l.b16 %v2962
    %v3233 = vunpack.c.h.b16 %v2962
    %v3234 = vunpack.c.l.b16 %v2963
    %v3235 = vunpack.c.h.b16 %v2963
    %v3236 = vunpack.c.l.b16 %v2964
    %v3237 = vunpack.c.h.b16 %v2964
    %v3238 = vunpack.c.l.b16 %v2965
    %v3239 = vunpack.c.h.b16 %v2965
    %v3240 = vunpack.c.l.b16 %v2966
    %v3241 = vunpack.c.h.b16 %v2966
    %v3242 = vunpack.c.l.b16 %v2967
    %v3243 = vunpack.c.h.b16 %v2967
    %v3244 = vunpack.c.l.b16 %v2968
    %v3245 = vunpack.c.h.b16 %v2968
    %v3246 = vunpack.c.l.b16 %v2969
    %v3247 = vunpack.c.h.b16 %v2969
    %v3248 = vunpack.c.l.b16 %v2970
    %v3249 = vunpack.c.h.b16 %v2970
    %v3250 = vunpack.c.l.b16 %v2971
    %v3251 = vunpack.c.h.b16 %v2971
    %v3252 = vunpack.c.l.b16 %v2972
    %v3253 = vunpack.c.h.b16 %v2972
    %v3254 = vunpack.c.l.b16 %v2973
    %v3255 = vunpack.c.h.b16 %v2973
    %v3256 = vunpack.c.l.b16 %v2974
    %v3257 = vunpack.c.h.b16 %v2974
    %v3258 = vunpack.c.l.b16 %v2975
    %v3259 = vunpack.c.h.b16 %v2975
    %v3260 = vunpack.c.l.b16 %v2976
    %v3261 = vunpack.c.h.b16 %v2976
    %v3262 = vunpack.c.l.b16 %v2977
    %v3263 = vunpack.c.h.b16 %v2977
    %v3264 = vunpack.c.l.b16 %v2978
    %v3265 = vunpack.c.h.b16 %v2978
    %v3266 = vunpack.c.l.b16 %v2979
    %v3267 = vunpack.c.h.b16 %v2979
    %v3268 = vunpack.c.l.b16 %v2980
    %v3269 = vunpack.c.h.b16 %v2980
    %v3270 = vunpack.c.l.b16 %v2981
    %v3271 = vunpack.c.h.b16 %v2981
    %v3272 = vunpack.c.l.b16 %v2982
    %v3273 = vunpack.c.h.b16 %v2982
    %v3274 = vunpack.c.l.b16 %v2983
    %v3275 = vunpack.c.h.b16 %v2983
    %v3276 = vunpack.c.l.b16 %v2984
    %v3277 = vunpack.c.h.b16 %v2984
    %v3278 = vunpack.c.l.b16 %v2985
    %v3279 = vunpack.c.h.b16 %v2985
    %v3280 = vunpack.c.l.b16 %v2986
    %v3281 = vunpack.c.h.b16 %v2986
    %v3282 = vunpack.c.l.b16 %v2987
    %v3283 = vunpack.c.h.b16 %v2987
    %v3284 = vunpack.c.l.b16 %v2988
    %v3285 = vunpack.c.h.b16 %v2988
    %v3286 = vunpack.c.l.b16 %v2989
    %v3287 = vunpack.c.h.b16 %v2989
    %v3288 = vunpack.c.l.b16 %v2990
    %v3289 = vunpack.c.h.b16 %v2990
    %v3290 = vunpack.c.l.b16 %v2991
    %v3291 = vunpack.c.h.b16 %v2991
    %v3292 = vunpack.c.l.b16 %v2992
    %v3293 = vunpack.c.h.b16 %v2992
    %v3294 = vunpack.c.l.b16 %v2993
    %v3295 = vunpack.c.h.b16 %v2993
    %v3296 = vunpack.c.l.b16 %v2994
    %v3297 = vunpack.c.h.b16 %v2994
    %v3298 = vunpack.c.l.b16 %v2995
    %v3299 = vunpack.c.h.b16 %v2995
    %v3300 = vunpack.c.l.b16 %v2996
    %v3301 = vunpack.c.h.b16 %v2996
    %v3302 = vunpack.c.l.b16 %v2997
    %v3303 = vunpack.c.h.b16 %v2997
    %v3304 = vunpack.c.l.b16 %v2998
    %v3305 = vunpack.c.h.b16 %v2998
    %v3306 = vunpack.c.l.b16 %v2999
    %v3307 = vunpack.c.h.b16 %v2999
    %v3308 = vunpack.c.l.b16 %v3000
    %v3309 = vunpack.c.h.b16 %v3000
    %v3310 = vunpack.c.l.b16 %v3001
    %v3311 = vunpack.c.h.b16 %v3001
    %v3312 = vunpack.c.l.b16 %v3002
    %v3313 = vunpack.c.h.b16 %v3002
    %v3314 = vunpack.c.l.b16 %v3003
    %v3315 = vunpack.c.h.b16 %v3003
    %v3316 = vunpack.c.l.b16 %v3004
    %v3317 = vunpack.c.h.b16 %v3004
    %v3318 = vunpack.c.l.b16 %v3005
    %v3319 = vunpack.c.h.b16 %v3005
    %v3320 = vunpack.c.l.b16 %v3006
    %v3321 = vunpack.c.h.b16 %v3006
    %v3322 = vunpack.c.l.b16 %v3007
    %v3323 = vunpack.c.h.b16 %v3007
    %v3324 = vunpack.c.l.b16 %v3008
    %v3325 = vunpack.c.h.b16 %v3008
    %v3326 = vunpack.c.l.b16 %v3009
    %v3327 = vunpack.c.h.b16 %v3009
    %v3328 = vunpack.c.l.b16 %v3010
    %v3329 = vunpack.c.h.b16 %v3010
    %v3330 = vunpack.c.l.b16 %v3011
    %v3331 = vunpack.c.h.b16 %v3011
    %v3332 = vunpack.c.l.b16 %v3012
    %v3333 = vunpack.c.h.b16 %v3012
    %v3334 = vunpack.c.l.b16 %v3013
    %v3335 = vunpack.c.h.b16 %v3013
    %v3336 = vunpack.c.l.b16 %v3014
    %v3337 = vunpack.c.h.b16 %v3014
    %v3338 = vunpack.c.l.b16 %v3015
    %v3339 = vunpack.c.h.b16 %v3015
    %v3340 = vunpack.c.l.b16 %v3016
    %v3341 = vunpack.c.h.b16 %v3016
    %v3342 = vunpack.c.l.b16 %v3017
    %v3343 = vunpack.c.h.b16 %v3017
    %v3344 = vunpack.c.l.b16 %v3018
    %v3345 = vunpack.c.h.b16 %v3018
    %v3346 = vunpack.c.l.b16 %v3019
    %v3347 = vunpack.c.h.b16 %v3019
    %v3348 = vunpack.c.l.b16 %v3020
    %v3349 = vunpack.c.h.b16 %v3020
    %v3350 = vunpack.c.l.b16 %v3021
    %v3351 = vunpack.c.h.b16 %v3021
    %v3352 = vunpack.c.l.b16 %v3022
    %v3353 = vunpack.c.h.b16 %v3022
    %v3354 = vunpack.c.l.b16 %v3023
    %v3355 = vunpack.c.h.b16 %v3023
    %v3356 = vunpack.c.l.b16 %v3024
    %v3357 = vunpack.c.h.b16 %v3024
    %v3358 = vunpack.c.l.b16 %v3025
    %v3359 = vunpack.c.h.b16 %v3025
    %v3360 = vunpack.c.l.b16 %v3026
    %v3361 = vunpack.c.h.b16 %v3026
    %v3362 = vunpack.c.l.b16 %v3027
    %v3363 = vunpack.c.h.b16 %v3027
    %v3364 = vunpack.c.l.b16 %v3028
    %v3365 = vunpack.c.h.b16 %v3028
    %v3366 = vunpack.c.l.b16 %v3029
    %v3367 = vunpack.c.h.b16 %v3029
    %v3368 = vunpack.c.l.b16 %v3030
    %v3369 = vunpack.c.h.b16 %v3030
    %v3370 = vunpack.c.l.b16 %v3031
    %v3371 = vunpack.c.h.b16 %v3031
    %v3372 = vunpack.c.l.b16 %v3032
    %v3373 = vunpack.c.h.b16 %v3032
    %v3374 = vunpack.c.l.b16 %v3033
    %v3375 = vunpack.c.h.b16 %v3033
    %v3376 = vunpack.c.l.b16 %v3034
    %v3377 = vunpack.c.h.b16 %v3034
    %v3378 = vunpack.c.l.b16 %v3035
    %v3379 = vunpack.c.h.b16 %v3035
    %v3380 = vunpack.c.l.b16 %v3036
    %v3381 = vunpack.c.h.b16 %v3036
    %v3382 = vunpack.c.l.b16 %v3037
    %v3383 = vunpack.c.h.b16 %v3037
    %v3384 = vunpack.c.l.b16 %v3038
    %v3385 = vunpack.c.h.b16 %v3038
    %v3386 = vunpack.c.l.b16 %v3039
    %v3387 = vunpack.c.h.b16 %v3039
    %v3388 = vunpack.c.l.b16 %v3040
    %v3389 = vunpack.c.h.b16 %v3040
    %v3390 = vunpack.c.l.b16 %v3041
    %v3391 = vunpack.c.h.b16 %v3041
    %v3392 = vunpack.c.l.b16 %v3042
    %v3393 = vunpack.c.h.b16 %v3042
    %v3394 = vunpack.c.l.b16 %v3043
    %v3395 = vunpack.c.h.b16 %v3043
    %v3396 = vunpack.c.l.b16 %v3044
    %v3397 = vunpack.c.h.b16 %v3044
    %v3398 = vunpack.c.l.b16 %v3045
    %v3399 = vunpack.c.h.b16 %v3045
    %v3400 = vunpack.c.l.b16 %v3046
    %v3401 = vunpack.c.h.b16 %v3046
    %v3402 = vunpack.c.l.b16 %v3047
    %v3403 = vunpack.c.h.b16 %v3047
    %v3404 = vunpack.c.l.b16 %v3048
    %v3405 = vunpack.c.h.b16 %v3048
    %v3406 = vunpack.c.l.b16 %v3049
    %v3407 = vunpack.c.h.b16 %v3049
    %v3408 = vunpack.c.l.b16 %v3050
    %v3409 = vunpack.c.h.b16 %v3050
    %v3410 = vunpack.c.l.b16 %v3051
    %v3411 = vunpack.c.h.b16 %v3051
    %v3412 = vunpack.c.l.b16 %v3052
    %v3413 = vunpack.c.h.b16 %v3052
    %v3414 = vunpack.c.l.b16 %v3053
    %v3415 = vunpack.c.h.b16 %v3053
    %v3416 = vunpack.c.l.b16 %v3054
    %v3417 = vunpack.c.h.b16 %v3054
    %v3418 = vunpack.c.l.b16 %v3055
    %v3419 = vunpack.c.h.b16 %v3055
    %v3420 = vunpack.c.l.b16 %v3056
    %v3421 = vunpack.c.h.b16 %v3056
    %v3422 = vunpack.c.l.b16 %v3057
    %v3423 = vunpack.c.h.b16 %v3057
    %v3424 = vunpack.c.l.b16 %v3058
    %v3425 = vunpack.c.h.b16 %v3058
    %v3426 = vunpack.c.l.b16 %v3059
    %v3427 = vunpack.c.h.b16 %v3059
    %v3428 = vunpack.c.l.b16 %v3060
    %v3429 = vunpack.c.h.b16 %v3060
    %v3430 = vunpack.c.l.b16 %v3061
    %v3431 = vunpack.c.h.b16 %v3061
    %v3432 = vunpack.c.l.b16 %v3062
    %v3433 = vunpack.c.h.b16 %v3062
    %v3434 = vunpack.c.l.b16 %v3063
    %v3435 = vunpack.c.h.b16 %v3063
    %v3436 = vunpack.c.l.b16 %v3064
    %v3437 = vunpack.c.h.b16 %v3064
    %v3438 = vunpack.c.l.b16 %v3065
    %v3439 = vunpack.c.h.b16 %v3065
    %v3440 = vunpack.c.l.b16 %v3066
    %v3441 = vunpack.c.h.b16 %v3066
    %v3442 = vunpack.c.l.b16 %v3067
    %v3443 = vunpack.c.h.b16 %v3067
    %v3444 = vunpack.c.l.b16 %v3068
    %v3445 = vunpack.c.h.b16 %v3068
    %v3446 = vunpack.c.l.b16 %v3069
    %v3447 = vunpack.c.h.b16 %v3069
    %v3448 = vunpack.c.l.b16 %v3070
    %v3449 = vunpack.c.h.b16 %v3070
    %v3450 = vunpack.c.l.b16 %v3071
    %v3451 = vunpack.c.h.b16 %v3071
    %v3452 = vunpack.c.l.b16 %v3072
    %v3453 = vunpack.c.h.b16 %v3072
    %v3454 = vunpack.c.l.b16 %v3073
    %v3455 = vunpack.c.h.b16 %v3073
    %v3456 = vunpack.c.l.b16 %v3074
    %v3457 = vunpack.c.h.b16 %v3074
    %v3458 = vunpack.c.l.b16 %v3075
    %v3459 = vunpack.c.h.b16 %v3075
    %v3460 = vunpack.c.l.b16 %v3076
    %v3461 = vunpack.c.h.b16 %v3076
    %v3462 = vunpack.c.l.b16 %v3077
    %v3463 = vunpack.c.h.b16 %v3077
    %v3464 = vunpack.c.l.b16 %v3078
    %v3465 = vunpack.c.h.b16 %v3078
    %v3466 = vunpack.c.l.b16 %v3079
    %v3467 = vunpack.c.h.b16 %v3079
    %v3468 = vunpack.c.l.b16 %v3080
    %v3469 = vunpack.c.h.b16 %v3080
    %v3470 = vunpack.c.l.b16 %v3081
    %v3471 = vunpack.c.h.b16 %v3081
    %v3472 = vpack.c.b16 %v3220, %v3216
    %v3473 = vpack.c.b16 %v3221, %v3217
    %v3474 = vpack.c.b16 %v3222, %v3218
    %v3475 = vpack.c.b16 %v3223, %v3219
    %v3476 = vpack.c.b16 %v3228, %v3224
    %v3477 = vpack.c.b16 %v3229, %v3225
    %v3478 = vpack.c.b16 %v3230, %v3226
    %v3479 = vpack.c.b16 %v3231, %v3227
    %v3480 = vpack.c.b16 %v3236, %v3232
    %v3481 = vpack.c.b16 %v3237, %v3233
    %v3482 = vpack.c.b16 %v3238, %v3234
    %v3483 = vpack.c.b16 %v3239, %v3235
    %v3484 = vpack.c.b16 %v3244, %v3240
    %v3485 = vpack.c.b16 %v3245, %v3241
    %v3486 = vpack.c.b16 %v3246, %v3242
    %v3487 = vpack.c.b16 %v3247, %v3243
    %v3488 = vpack.c.b16 %v3252, %v3248
    %v3489 = vpack.c.b16 %v3253, %v3249
    %v3490 = vpack.c.b16 %v3254, %v3250
    %v3491 = vpack.c.b16 %v3255, %v3251
    %v3492 = vpack.c.b16 %v3260, %v3256
    %v3493 = vpack.c.b16 %v3261, %v3257
    %v3494 = vpack.c.b16 %v3262, %v3258
    %v3495 = vpack.c.b16 %v3263, %v3259
    %v3496 = vpack.c.b16 %v3268, %v3264
    %v3497 = vpack.c.b16 %v3269, %v3265
    %v3498 = vpack.c.b16 %v3270, %v3266
    %v3499 = vpack.c.b16 %v3271, %v3267
    %v3500 = vpack.c.b16 %v3276, %v3272
    %v3501 = vpack.c.b16 %v3277, %v3273
    %v3502 = vpack.c.b16 %v3278, %v3274
    %v3503 = vpack.c.b16 %v3279, %v3275
    %v3504 = vpack.c.b16 %v3284, %v3280
    %v3505 = vpack.c.b16 %v3285, %v3281
    %v3506 = vpack.c.b16 %v3286, %v3282
    %v3507 = vpack.c.b16 %v3287, %v3283
    %v3508 = vpack.c.b16 %v3292, %v3288
    %v3509 = vpack.c.b16 %v3293, %v3289
    %v3510 = vpack.c.b16 %v3294, %v3290
    %v3511 = vpack.c.b16 %v3295, %v3291
    %v3512 = vpack.c.b16 %v3300, %v3296
    %v3513 = vpack.c.b16 %v3301, %v3297
    %v3514 = vpack.c.b16 %v3302, %v3298
    %v3515 = vpack.c.b16 %v3303, %v3299
    %v3516 = vpack.c.b16 %v3308, %v3304
    %v3517 = vpack.c.b16 %v3309, %v3305
    %v3518 = vpack.c.b16 %v3310, %v3306
    %v3519 = vpack.c.b16 %v3311, %v3307
    %v3520 = vpack.c.b16 %v3316, %v3312
    %v3521 = vpack.c.b16 %v3317, %v3313
    %v3522 = vpack.c.b16 %v3318, %v3314
    %v3523 = vpack.c.b16 %v3319, %v3315
    %v3524 = vpack.c.b16 %v3324, %v3320
    %v3525 = vpack.c.b16 %v3325, %v3321
    %v3526 = vpack.c.b16 %v3326, %v3322
    %v3527 = vpack.c.b16 %v3327, %v3323
    %v3528 = vpack.c.b16 %v3332, %v3328
    %v3529 = vpack.c.b16 %v3333, %v3329
    %v3530 = vpack.c.b16 %v3334, %v3330
    %v3531 = vpack.c.b16 %v3335, %v3331
    %v3532 = vpack.c.b16 %v3340, %v3336
    %v3533 = vpack.c.b16 %v3341, %v3337
    %v3534 = vpack.c.b16 %v3342, %v3338
    %v3535 = vpack.c.b16 %v3343, %v3339
    %v3536 = vpack.c.b16 %v3348, %v3344
    %v3537 = vpack.c.b16 %v3349, %v3345
    %v3538 = vpack.c.b16 %v3350, %v3346
    %v3539 = vpack.c.b16 %v3351, %v3347
    %v3540 = vpack.c.b16 %v3356, %v3352
    %v3541 = vpack.c.b16 %v3357, %v3353
    %v3542 = vpack.c.b16 %v3358, %v3354
    %v3543 = vpack.c.b16 %v3359, %v3355
    %v3544 = vpack.c.b16 %v3364, %v3360
    %v3545 = vpack.c.b16 %v3365, %v3361
    %v3546 = vpack.c.b16 %v3366, %v3362
    %v3547 = vpack.c.b16 %v3367, %v3363
    %v3548 = vpack.c.b16 %v3372, %v3368
    %v3549 = vpack.c.b16 %v3373, %v3369
    %v3550 = vpack.c.b16 %v3374, %v3370
    %v3551 = vpack.c.b16 %v3375, %v3371
    %v3552 = vpack.c.b16 %v3380, %v3376
    %v3553 = vpack.c.b16 %v3381, %v3377
    %v3554 = vpack.c.b16 %v3382, %v3378
    %v3555 = vpack.c.b16 %v3383, %v3379
    %v3556 = vpack.c.b16 %v3388, %v3384
    %v3557 = vpack.c.b16 %v3389, %v3385
    %v3558 = vpack.c.b16 %v3390, %v3386
    %v3559 = vpack.c.b16 %v3391, %v3387
    %v3560 = vpack.c.b16 %v3396, %v3392
    %v3561 = vpack.c.b16 %v3397, %v3393
    %v3562 = vpack.c.b16 %v3398, %v3394
    %v3563 = vpack.c.b16 %v3399, %v3395
    %v3564 = vpack.c.b16 %v3404, %v3400
    %v3565 = vpack.c.b16 %v3405, %v3401
    %v3566 = vpack.c.b16 %v3406, %v3402
    %v3567 = vpack.c.b16 %v3407, %v3403
    %v3568 = vpack.c.b16 %v3412, %v3408
    %v3569 = vpack.c.b16 %v3413, %v3409
    %v3570 = vpack.c.b16 %v3414, %v3410
    %v3571 = vpack.c.b16 %v3415, %v3411
    %v3572 = vpack.c.b16 %v3420, %v3416
    %v3573 = vpack.c.b16 %v3421, %v3417
    %v3574 = vpack.c.b16 %v3422, %v3418
    %v3575 = vpack.c.b16 %v3423, %v3419
    %v3576 = vpack.c.b16 %v3428, %v3424
    %v3577 = vpack.c.b16 %v3429, %v3425
    %v3578 = vpack.c.b16 %v3430, %v3426
    %v3579 = vpack.c.b16 %v3431, %v3427
    %v3580 = vpack.c.b16 %v3436, %v3432
    %v3581 = vpack.c.b16 %v3437, %v3433
    %v3582 = vpack.c.b16 %v3438, %v3434
    %v3583 = vpack.c.b16 %v3439, %v3435
    %v3584 = vpack.c.b16 %v3444, %v3440
    %v3585 = vpack.c.b16 %v3445, %v3441
    %v3586 = vpack.c.b16 %v3446, %v3442
    %v3587 = vpack.c.b16 %v3447, %v3443
    %v3588 = vpack.c.b16 %v3452, %v3448
    %v3589 = vpack.c.b16 %v3453, %v3449
    %v3590 = vpack.c.b16 %v3454, %v3450
    %v3591 = vpack.c.b16 %v3455, %v3451
    %v3592 = vpack.c.b16 %v3460, %v3456
    %v3593 = vpack.c.b16 %v3461, %v3457
    %v3594 = vpack.c.b16 %v3462, %v3458
    %v3595 = vpack.c.b16 %v3463, %v3459
    %v3596 = vpack.c.b16 %v3468, %v3464
    %v3597 = vpack.c.b16 %v3469, %v3465
    %v3598 = vpack.c.b16 %v3470, %v3466
    %v3599 = vpack.c.b16 %v3471, %v3467
    %3728 = vmatprep.subr.bf16.mxu0 %v3473
    %3729 = vmatpush1.bf16.msra.mxu0 %v3472
    %3730 = vmatprep.subr.bf16.mxu0 %v3477
    %3731 = vmatpush1.bf16.msra.mxu0 %v3476
    %3732 = vmatprep.subr.bf16.mxu0 %v3481
    %3733 = vmatpush1.bf16.msra.mxu0 %v3480
    %3734 = vmatprep.subr.bf16.mxu0 %v3485
    %3735 = vmatpush1.bf16.msra.mxu0 %v3484
    %3736 = vmatprep.subr.bf16.mxu0 %v3489
    %3737 = vmatpush1.bf16.msra.mxu0 %v3488
    %3738 = vmatprep.subr.bf16.mxu0 %v3493
    %3739 = vmatpush1.bf16.msra.mxu0 %v3492
    %3740 = vmatprep.subr.bf16.mxu0 %v3497
    %3741 = vmatpush1.bf16.msra.mxu0 %v3496
    %3742 = vmatprep.subr.bf16.mxu0 %v3501
    %3743 = vmatpush1.bf16.msra.mxu0 %v3500
    %3744 = vmatprep.subr.bf16.mxu0 %v3505
    %3745 = vmatpush1.bf16.msra.mxu0 %v3504
    %3746 = vmatprep.subr.bf16.mxu0 %v3509
    %3747 = vmatpush1.bf16.msra.mxu0 %v3508
    %3748 = vmatprep.subr.bf16.mxu0 %v3513
    %3749 = vmatpush1.bf16.msra.mxu0 %v3512
    %3750 = vmatprep.subr.bf16.mxu0 %v3517
    %3751 = vmatpush1.bf16.msra.mxu0 %v3516
    %3752 = vmatprep.subr.bf16.mxu0 %v3521
    %3753 = vmatpush1.bf16.msra.mxu0 %v3520
    %3754 = vmatprep.subr.bf16.mxu0 %v3525
    %3755 = vmatpush1.bf16.msra.mxu0 %v3524
    %3756 = vmatprep.subr.bf16.mxu0 %v3529
    %3757 = vmatpush1.bf16.msra.mxu0 %v3528
    %3758 = vmatprep.subr.bf16.mxu0 %v3533
    %3759 = vmatpush1.bf16.msra.mxu0 %v3532
    %3760 = vmatprep.mubr.bf16.mxu0 %v216
    %3761 = vmatmul.mubr.bf16.gmra.mrb[0].mxu0 %v215
    %v3762 = vpop.f32.mrb[0].mxu0
    %v3763 = vadd.f32 %v3084, %v3762
    %v3764 = vpop.f32.mrb[0].mxu0
    %v3765 = vadd.f32 %v3085, %v3764
    %v3766 = vpop.f32.mrb[0].mxu0
    %v3767 = vpop.f32.mrb[0].mxu0
    %3768 = vdwg.mxu0
    %3769 = vmatprep.subr.bf16.mxu0 %v3537
    %3770 = vmatpush1.bf16.msra.mxu0 %v3536
    %3771 = vmatprep.subr.bf16.mxu0 %v3541
    %3772 = vmatpush1.bf16.msra.mxu0 %v3540
    %3773 = vmatprep.subr.bf16.mxu0 %v3545
    %3774 = vmatpush1.bf16.msra.mxu0 %v3544
    %3775 = vmatprep.subr.bf16.mxu0 %v3549
    %3776 = vmatpush1.bf16.msra.mxu0 %v3548
    %3777 = vmatprep.subr.bf16.mxu0 %v3553
    %3778 = vmatpush1.bf16.msra.mxu0 %v3552
    %3779 = vmatprep.subr.bf16.mxu0 %v3557
    %3780 = vmatpush1.bf16.msra.mxu0 %v3556
    %3781 = vmatprep.subr.bf16.mxu0 %v3561
    %3782 = vmatpush1.bf16.msra.mxu0 %v3560
    %3783 = vmatprep.subr.bf16.mxu0 %v3565
    %3784 = vmatpush1.bf16.msra.mxu0 %v3564
    %3785 = vmatprep.subr.bf16.mxu0 %v3569
    %3786 = vmatpush1.bf16.msra.mxu0 %v3568
    %3787 = vmatprep.subr.bf16.mxu0 %v3573
    %3788 = vmatpush1.bf16.msra.mxu0 %v3572
    %3789 = vmatprep.subr.bf16.mxu0 %v3577
    %3790 = vmatpush1.bf16.msra.mxu0 %v3576
    %3791 = vmatprep.subr.bf16.mxu0 %v3581
    %3792 = vmatpush1.bf16.msra.mxu0 %v3580
    %3793 = vmatprep.subr.bf16.mxu0 %v3585
    %3794 = vmatpush1.bf16.msra.mxu0 %v3584
    %3795 = vmatprep.subr.bf16.mxu0 %v3589
    %3796 = vmatpush1.bf16.msra.mxu0 %v3588
    %3797 = vmatprep.subr.bf16.mxu0 %v3593
    %3798 = vmatpush1.bf16.msra.mxu0 %v3592
    %3799 = vmatprep.subr.bf16.mxu0 %v3597
    %3800 = vmatpush1.bf16.msra.mxu0 %v3596
    %3801 = vmatprep.mubr.bf16.mxu0 %v218
    %3802 = vmatmul.mubr.bf16.gmra.mrb[0].mxu0 %v217
    %v3803 = vpop.f32.mrb[0].mxu0
    %v3804 = vadd.f32 %v3763, %v3803
    %v3805 = vpop.f32.mrb[0].mxu0
    %v3806 = vadd.f32 %v3765, %v3805
    %v3807 = vpop.f32.mrb[0].mxu0
    %v3808 = vpop.f32.mrb[0].mxu0
    %3809 = vdwg.mxu0
    %3810 = vmatprep.subr.bf16.mxu0 %v3475
    %3811 = vmatpush1.bf16.msra.mxu0 %v3474
    %3812 = vmatprep.subr.bf16.mxu0 %v3479
    %3813 = vmatpush1.bf16.msra.mxu0 %v3478
    %3814 = vmatprep.subr.bf16.mxu0 %v3483
    %3815 = vmatpush1.bf16.msra.mxu0 %v3482
    %3816 = vmatprep.subr.bf16.mxu0 %v3487
    %3817 = vmatpush1.bf16.msra.mxu0 %v3486
    %3818 = vmatprep.subr.bf16.mxu0 %v3491
    %3819 = vmatpush1.bf16.msra.mxu0 %v3490
    %3820 = vmatprep.subr.bf16.mxu0 %v3495
    %3821 = vmatpush1.bf16.msra.mxu0 %v3494
    %3822 = vmatprep.subr.bf16.mxu0 %v3499
    %3823 = vmatpush1.bf16.msra.mxu0 %v3498
    %3824 = vmatprep.subr.bf16.mxu0 %v3503
    %3825 = vmatpush1.bf16.msra.mxu0 %v3502
    %3826 = vmatprep.subr.bf16.mxu0 %v3507
    %3827 = vmatpush1.bf16.msra.mxu0 %v3506
    %3828 = vmatprep.subr.bf16.mxu0 %v3511
    %3829 = vmatpush1.bf16.msra.mxu0 %v3510
    %3830 = vmatprep.subr.bf16.mxu0 %v3515
    %3831 = vmatpush1.bf16.msra.mxu0 %v3514
    %3832 = vmatprep.subr.bf16.mxu0 %v3519
    %3833 = vmatpush1.bf16.msra.mxu0 %v3518
    %3834 = vmatprep.subr.bf16.mxu0 %v3523
    %3835 = vmatpush1.bf16.msra.mxu0 %v3522
    %3836 = vmatprep.subr.bf16.mxu0 %v3527
    %3837 = vmatpush1.bf16.msra.mxu0 %v3526
    %3838 = vmatprep.subr.bf16.mxu0 %v3531
    %3839 = vmatpush1.bf16.msra.mxu0 %v3530
    %3840 = vmatprep.subr.bf16.mxu0 %v3535
    %3841 = vmatpush1.bf16.msra.mxu0 %v3534
    %3842 = vmatprep.mubr.bf16.mxu0 %v216
    %3843 = vmatmul.mubr.bf16.gmra.mrb[0].mxu0 %v215
    %v3844 = vpop.f32.mrb[0].mxu0
    %v3845 = vadd.f32 %v3086, %v3844
    %v3846 = vpop.f32.mrb[0].mxu0
    %v3847 = vadd.f32 %v3087, %v3846
    %v3848 = vpop.f32.mrb[0].mxu0
    %v3849 = vpop.f32.mrb[0].mxu0
    %3850 = vdwg.mxu0
    %3851 = vmatprep.subr.bf16.mxu0 %v3539
    %3852 = vmatpush1.bf16.msra.mxu0 %v3538
    %3853 = vmatprep.subr.bf16.mxu0 %v3543
    %3854 = vmatpush1.bf16.msra.mxu0 %v3542
    %3855 = vmatprep.subr.bf16.mxu0 %v3547
    %3856 = vmatpush1.bf16.msra.mxu0 %v3546
    %3857 = vmatprep.subr.bf16.mxu0 %v3551
    %3858 = vmatpush1.bf16.msra.mxu0 %v3550
    %3859 = vmatprep.subr.bf16.mxu0 %v3555
    %3860 = vmatpush1.bf16.msra.mxu0 %v3554
    %3861 = vmatprep.subr.bf16.mxu0 %v3559
    %3862 = vmatpush1.bf16.msra.mxu0 %v3558
    %3863 = vmatprep.subr.bf16.mxu0 %v3563
    %3864 = vmatpush1.bf16.msra.mxu0 %v3562
    %3865 = vmatprep.subr.bf16.mxu0 %v3567
    %3866 = vmatpush1.bf16.msra.mxu0 %v3566
    %3867 = vmatprep.subr.bf16.mxu0 %v3571
    %3868 = vmatpush1.bf16.msra.mxu0 %v3570
    %3869 = vmatprep.subr.bf16.mxu0 %v3575
    %3870 = vmatpush1.bf16.msra.mxu0 %v3574
    %3871 = vmatprep.subr.bf16.mxu0 %v3579
    %3872 = vmatpush1.bf16.msra.mxu0 %v3578
    %3873 = vmatprep.subr.bf16.mxu0 %v3583
    %3874 = vmatpush1.bf16.msra.mxu0 %v3582
    %3875 = vmatprep.subr.bf16.mxu0 %v3587
    %3876 = vmatpush1.bf16.msra.mxu0 %v3586
    %3877 = vmatprep.subr.bf16.mxu0 %v3591
    %3878 = vmatpush1.bf16.msra.mxu0 %v3590
    %3879 = vmatprep.subr.bf16.mxu0 %v3595
    %3880 = vmatpush1.bf16.msra.mxu0 %v3594
    %3881 = vmatprep.subr.bf16.mxu0 %v3599
    %3882 = vmatpush1.bf16.msra.mxu0 %v3598
    %3883 = vmatprep.mubr.bf16.mxu0 %v218
    %3884 = vmatmul.mubr.bf16.gmra.mrb[0].mxu0 %v217
    %v3885 = vpop.f32.mrb[0].mxu0
    %v3886 = vadd.f32 %v3845, %v3885
    %v3887 = vpop.f32.mrb[0].mxu0
    %v3888 = vadd.f32 %v3847, %v3887
    %v3889 = vpop.f32.mrb[0].mxu0
    %v3890 = vpop.f32.mrb[0].mxu0
    %3891 = vdwg.mxu0
    %v3892 = vmul.f32 %v3804, 0.5
    %v3893 = vmul.f32 %v3806, 0.5
    %v3894 = vmul.f32 %v3886, 0.5
    %v3895 = vmul.f32 %v3888, 0.5
    %v3896 = vtanh.pop %v3892
    %v3897 = vtanh.pop %v3893
    %v3898 = vtanh.pop %v3894
    %v3899 = vtanh.pop %v3895
    %v3900 = vmul.f32 %v3896, 0.5
    %v3901 = vmul.f32 %v3897, 0.5
    %v3902 = vmul.f32 %v3898, 0.5
    %v3903 = vmul.f32 %v3899, 0.5
    %v3904 = vadd.f32 %v3900, 0.5
    %v3905 = vadd.f32 %v3901, 0.5
    %v3906 = vadd.f32 %v3902, 0.5
    %v3907 = vadd.f32 %v3903, 0.5
    %v3908 = vtanh.pop %v2949
    %v3909 = vtanh.pop %v2950
    %v3910 = vtanh.pop %v2951
    %v3911 = vtanh.pop %v2952
    %v3912 = vmul.f32 %v3904, %v3908
    %v3913 = vmul.f32 %v3905, %v3909
    %v3914 = vmul.f32 %v3906, %v3910
    %v3915 = vmul.f32 %v3907, %v3911
    %v3916 = vpack.c.bf16 %v3912, %v3912
    %v3917 = vpack.c.bf16 %v3913, %v3913
    %v3918 = vpack.c.bf16 %v3914, %v3914
    %v3919 = vpack.c.bf16 %v3915, %v3915
    %s3920 = scalar_lea.vmem [#allocation5], 64
    %v3921 = vld [vmem:[%s3920] sm:$0xff]
    %v3922 = vld [vmem:[%s3920 + $0x8] sm:$0xff]
    %v3923 = vunpack.c.l.bf16 %v3921
    %v3924 = vunpack.c.h.bf16 %v3921
    %v3925 = vunpack.c.l.bf16 %v3922
    %v3926 = vunpack.c.h.bf16 %v3922
    %3927 = vmatprep.subr.bf16.mxu0 %v608
    %3928 = vmatpush1.bf16.msra.mxu0 %v607
    %3929 = vmatprep.subr.bf16.mxu0 %v612
    %3930 = vmatpush1.bf16.msra.mxu0 %v611
    %3931 = vmatprep.subr.bf16.mxu0 %v616
    %3932 = vmatpush1.bf16.msra.mxu0 %v615
    %3933 = vmatprep.subr.bf16.mxu0 %v620
    %3934 = vmatpush1.bf16.msra.mxu0 %v619
    %3935 = vmatprep.subr.bf16.mxu0 %v624
    %3936 = vmatpush1.bf16.msra.mxu0 %v623
    %3937 = vmatprep.subr.bf16.mxu0 %v628
    %3938 = vmatpush1.bf16.msra.mxu0 %v627
    %3939 = vmatprep.subr.bf16.mxu0 %v632
    %3940 = vmatpush1.bf16.msra.mxu0 %v631
    %3941 = vmatprep.subr.bf16.mxu0 %v636
    %3942 = vmatpush1.bf16.msra.mxu0 %v635
    %3943 = vmatprep.subr.bf16.mxu0 %v640
    %3944 = vmatpush1.bf16.msra.mxu0 %v639
    %3945 = vmatprep.subr.bf16.mxu0 %v644
    %3946 = vmatpush1.bf16.msra.mxu0 %v643
    %3947 = vmatprep.subr.bf16.mxu0 %v648
    %3948 = vmatpush1.bf16.msra.mxu0 %v647
    %3949 = vmatprep.subr.bf16.mxu0 %v652
    %3950 = vmatpush1.bf16.msra.mxu0 %v651
    %3951 = vmatprep.subr.bf16.mxu0 %v656
    %3952 = vmatpush1.bf16.msra.mxu0 %v655
    %3953 = vmatprep.subr.bf16.mxu0 %v660
    %3954 = vmatpush1.bf16.msra.mxu0 %v659
    %3955 = vmatprep.subr.bf16.mxu0 %v664
    %3956 = vmatpush1.bf16.msra.mxu0 %v663
    %3957 = vmatprep.subr.bf16.mxu0 %v668
    %3958 = vmatpush1.bf16.msra.mxu0 %v667
    %3959 = vmatprep.mubr.bf16.mxu0 %v3917
    %3960 = vmatmul.mubr.bf16.gmra.mrb[0].mxu0 %v3916
    %v3961 = vpop.f32.mrb[0].mxu0
    %v3962 = vadd.f32 %v3923, %v3961
    %v3963 = vpop.f32.mrb[0].mxu0
    %v3964 = vadd.f32 %v3924, %v3963
    %v3965 = vpop.f32.mrb[0].mxu0
    %v3966 = vpop.f32.mrb[0].mxu0
    %3967 = vdwg.mxu0
    %3968 = vmatprep.subr.bf16.mxu0 %v672
    %3969 = vmatpush1.bf16.msra.mxu0 %v671
    %3970 = vmatprep.subr.bf16.mxu0 %v676
    %3971 = vmatpush1.bf16.msra.mxu0 %v675
    %3972 = vmatprep.subr.bf16.mxu0 %v680
    %3973 = vmatpush1.bf16.msra.mxu0 %v679
    %3974 = vmatprep.subr.bf16.mxu0 %v684
    %3975 = vmatpush1.bf16.msra.mxu0 %v683
    %3976 = vmatprep.subr.bf16.mxu0 %v688
    %3977 = vmatpush1.bf16.msra.mxu0 %v687
    %3978 = vmatprep.subr.bf16.mxu0 %v692
    %3979 = vmatpush1.bf16.msra.mxu0 %v691
    %3980 = vmatprep.subr.bf16.mxu0 %v696
    %3981 = vmatpush1.bf16.msra.mxu0 %v695
    %3982 = vmatprep.subr.bf16.mxu0 %v700
    %3983 = vmatpush1.bf16.msra.mxu0 %v699
    %3984 = vmatprep.subr.bf16.mxu0 %v704
    %3985 = vmatpush1.bf16.msra.mxu0 %v703
    %3986 = vmatprep.subr.bf16.mxu0 %v708
    %3987 = vmatpush1.bf16.msra.mxu0 %v707
    %3988 = vmatprep.subr.bf16.mxu0 %v712
    %3989 = vmatpush1.bf16.msra.mxu0 %v711
    %3990 = vmatprep.subr.bf16.mxu0 %v716
    %3991 = vmatpush1.bf16.msra.mxu0 %v715
    %3992 = vmatprep.subr.bf16.mxu0 %v720
    %3993 = vmatpush1.bf16.msra.mxu0 %v719
    %3994 = vmatprep.subr.bf16.mxu0 %v724
    %3995 = vmatpush1.bf16.msra.mxu0 %v723
    %3996 = vmatprep.subr.bf16.mxu0 %v728
    %3997 = vmatpush1.bf16.msra.mxu0 %v727
    %3998 = vmatprep.subr.bf16.mxu0 %v732
    %3999 = vmatpush1.bf16.msra.mxu0 %v731
    %4000 = vmatprep.mubr.bf16.mxu0 %v3919
    %4001 = vmatmul.mubr.bf16.gmra.mrb[0].mxu0 %v3918
    %v4002 = vpop.f32.mrb[0].mxu0
    %v4003 = vadd.f32 %v3962, %v4002
    %v4004 = vpop.f32.mrb[0].mxu0
    %v4005 = vadd.f32 %v3964, %v4004
    %v4006 = vpop.f32.mrb[0].mxu0
    %v4007 = vpop.f32.mrb[0].mxu0
    %4008 = vdwg.mxu0
    %4009 = vmatprep.subr.bf16.mxu0 %v610
    %4010 = vmatpush1.bf16.msra.mxu0 %v609
    %4011 = vmatprep.subr.bf16.mxu0 %v614
    %4012 = vmatpush1.bf16.msra.mxu0 %v613
    %4013 = vmatprep.subr.bf16.mxu0 %v618
    %4014 = vmatpush1.bf16.msra.mxu0 %v617
    %4015 = vmatprep.subr.bf16.mxu0 %v622
    %4016 = vmatpush1.bf16.msra.mxu0 %v621
    %4017 = vmatprep.subr.bf16.mxu0 %v626
    %4018 = vmatpush1.bf16.msra.mxu0 %v625
    %4019 = vmatprep.subr.bf16.mxu0 %v630
    %4020 = vmatpush1.bf16.msra.mxu0 %v629
    %4021 = vmatprep.subr.bf16.mxu0 %v634
    %4022 = vmatpush1.bf16.msra.mxu0 %v633
    %4023 = vmatprep.subr.bf16.mxu0 %v638
    %4024 = vmatpush1.bf16.msra.mxu0 %v637
    %4025 = vmatprep.subr.bf16.mxu0 %v642
    %4026 = vmatpush1.bf16.msra.mxu0 %v641
    %4027 = vmatprep.subr.bf16.mxu0 %v646
    %4028 = vmatpush1.bf16.msra.mxu0 %v645
    %4029 = vmatprep.subr.bf16.mxu0 %v650
    %4030 = vmatpush1.bf16.msra.mxu0 %v649
    %4031 = vmatprep.subr.bf16.mxu0 %v654
    %4032 = vmatpush1.bf16.msra.mxu0 %v653
    %4033 = vmatprep.subr.bf16.mxu0 %v658
    %4034 = vmatpush1.bf16.msra.mxu0 %v657
    %4035 = vmatprep.subr.bf16.mxu0 %v662
    %4036 = vmatpush1.bf16.msra.mxu0 %v661
    %4037 = vmatprep.subr.bf16.mxu0 %v666
    %4038 = vmatpush1.bf16.msra.mxu0 %v665
    %4039 = vmatprep.subr.bf16.mxu0 %v670
    %4040 = vmatpush1.bf16.msra.mxu0 %v669
    %4041 = vmatprep.mubr.bf16.mxu0 %v3917
    %4042 = vmatmul.mubr.bf16.gmra.mrb[0].mxu0 %v3916
    %v4043 = vpop.f32.mrb[0].mxu0
    %v4044 = vadd.f32 %v3925, %v4043
    %v4045 = vpop.f32.mrb[0].mxu0
    %v4046 = vadd.f32 %v3926, %v4045
    %v4047 = vpop.f32.mrb[0].mxu0
    %v4048 = vpop.f32.mrb[0].mxu0
    %4049 = vdwg.mxu0
    %4050 = vmatprep.subr.bf16.mxu0 %v674
    %4051 = vmatpush1.bf16.msra.mxu0 %v673
    %4052 = vmatprep.subr.bf16.mxu0 %v678
    %4053 = vmatpush1.bf16.msra.mxu0 %v677
    %4054 = vmatprep.subr.bf16.mxu0 %v682
    %4055 = vmatpush1.bf16.msra.mxu0 %v681
    %4056 = vmatprep.subr.bf16.mxu0 %v686
    %4057 = vmatpush1.bf16.msra.mxu0 %v685
    %4058 = vmatprep.subr.bf16.mxu0 %v690
    %4059 = vmatpush1.bf16.msra.mxu0 %v689
    %4060 = vmatprep.subr.bf16.mxu0 %v694
    %4061 = vmatpush1.bf16.msra.mxu0 %v693
    %4062 = vmatprep.subr.bf16.mxu0 %v698
    %4063 = vmatpush1.bf16.msra.mxu0 %v697
    %4064 = vmatprep.subr.bf16.mxu0 %v702
    %4065 = vmatpush1.bf16.msra.mxu0 %v701
    %4066 = vmatprep.subr.bf16.mxu0 %v706
    %4067 = vmatpush1.bf16.msra.mxu0 %v705
    %4068 = vmatprep.subr.bf16.mxu0 %v710
    %4069 = vmatpush1.bf16.msra.mxu0 %v709
    %4070 = vmatprep.subr.bf16.mxu0 %v714
    %4071 = vmatpush1.bf16.msra.mxu0 %v713
    %4072 = vmatprep.subr.bf16.mxu0 %v718
    %4073 = vmatpush1.bf16.msra.mxu0 %v717
    %4074 = vmatprep.subr.bf16.mxu0 %v722
    %4075 = vmatpush1.bf16.msra.mxu0 %v721
    %4076 = vmatprep.subr.bf16.mxu0 %v726
    %4077 = vmatpush1.bf16.msra.mxu0 %v725
    %4078 = vmatprep.subr.bf16.mxu0 %v730
    %4079 = vmatpush1.bf16.msra.mxu0 %v729
    %4080 = vmatprep.subr.bf16.mxu0 %v734
    %4081 = vmatpush1.bf16.msra.mxu0 %v733
    %4082 = vmatprep.mubr.bf16.mxu0 %v3919
    %4083 = vmatmul.mubr.bf16.gmra.mrb[0].mxu0 %v3918
    %v4084 = vpop.f32.mrb[0].mxu0
    %v4085 = vadd.f32 %v4044, %v4084
    %v4086 = vpop.f32.mrb[0].mxu0
    %v4087 = vadd.f32 %v4046, %v4086
    %v4088 = vpop.f32.mrb[0].mxu0
    %v4089 = vpop.f32.mrb[0].mxu0
    %4090 = vdwg.mxu0
    %v4091 = vmul.f32 %v4003, 0.5
    %v4092 = vmul.f32 %v4005, 0.5
    %v4093 = vmul.f32 %v4085, 0.5
    %v4094 = vmul.f32 %v4087, 0.5
    %v4095 = vtanh.pop %v4091
    %v4096 = vtanh.pop %v4092
    %v4097 = vtanh.pop %v4093
    %v4098 = vtanh.pop %v4094
    %v4099 = vmul.f32 %v4095, 0.5
    %v4100 = vmul.f32 %v4096, 0.5
    %v4101 = vmul.f32 %v4097, 0.5
    %v4102 = vmul.f32 %v4098, 0.5
    %v4103 = vadd.f32 %v4099, 0.5
    %v4104 = vadd.f32 %v4100, 0.5
    %v4105 = vadd.f32 %v4101, 0.5
    %v4106 = vadd.f32 %v4102, 0.5
    %v4107 = vld [vmem:[%s3920 + $0x10] sm:$0xff]
    %v4108 = vld [vmem:[%s3920 + $0x18] sm:$0xff]
    %v4109 = vunpack.c.l.bf16 %v4107
    %v4110 = vunpack.c.h.bf16 %v4107
    %v4111 = vunpack.c.l.bf16 %v4108
    %v4112 = vunpack.c.h.bf16 %v4108
    %4113 = vmatprep.subr.bf16.mxu0 %v1563
    %4114 = vmatpush1.bf16.msra.mxu0 %v1562
    %4115 = vmatprep.subr.bf16.mxu0 %v1567
    %4116 = vmatpush1.bf16.msra.mxu0 %v1566
    %4117 = vmatprep.subr.bf16.mxu0 %v1571
    %4118 = vmatpush1.bf16.msra.mxu0 %v1570
    %4119 = vmatprep.subr.bf16.mxu0 %v1575
    %4120 = vmatpush1.bf16.msra.mxu0 %v1574
    %4121 = vmatprep.subr.bf16.mxu0 %v1579
    %4122 = vmatpush1.bf16.msra.mxu0 %v1578
    %4123 = vmatprep.subr.bf16.mxu0 %v1583
    %4124 = vmatpush1.bf16.msra.mxu0 %v1582
    %4125 = vmatprep.subr.bf16.mxu0 %v1587
    %4126 = vmatpush1.bf16.msra.mxu0 %v1586
    %4127 = vmatprep.subr.bf16.mxu0 %v1591
    %4128 = vmatpush1.bf16.msra.mxu0 %v1590
    %4129 = vmatprep.subr.bf16.mxu0 %v1595
    %4130 = vmatpush1.bf16.msra.mxu0 %v1594
    %4131 = vmatprep.subr.bf16.mxu0 %v1599
    %4132 = vmatpush1.bf16.msra.mxu0 %v1598
    %4133 = vmatprep.subr.bf16.mxu0 %v1603
    %4134 = vmatpush1.bf16.msra.mxu0 %v1602
    %4135 = vmatprep.subr.bf16.mxu0 %v1607
    %4136 = vmatpush1.bf16.msra.mxu0 %v1606
    %4137 = vmatprep.subr.bf16.mxu0 %v1611
    %4138 = vmatpush1.bf16.msra.mxu0 %v1610
    %4139 = vmatprep.subr.bf16.mxu0 %v1615
    %4140 = vmatpush1.bf16.msra.mxu0 %v1614
    %4141 = vmatprep.subr.bf16.mxu0 %v1619
    %4142 = vmatpush1.bf16.msra.mxu0 %v1618
    %4143 = vmatprep.subr.bf16.mxu0 %v1623
    %4144 = vmatpush1.bf16.msra.mxu0 %v1622
    %4145 = vmatprep.mubr.bf16.mxu0 %v3917
    %4146 = vmatmul.mubr.bf16.gmra.mrb[0].mxu0 %v3916
    %v4147 = vpop.f32.mrb[0].mxu0
    %v4148 = vadd.f32 %v4109, %v4147
    %v4149 = vpop.f32.mrb[0].mxu0
    %v4150 = vadd.f32 %v4110, %v4149
    %v4151 = vpop.f32.mrb[0].mxu0
    %v4152 = vpop.f32.mrb[0].mxu0
    %4153 = vdwg.mxu0
    %4154 = vmatprep.subr.bf16.mxu0 %v1627
    %4155 = vmatpush1.bf16.msra.mxu0 %v1626
    %4156 = vmatprep.subr.bf16.mxu0 %v1631
    %4157 = vmatpush1.bf16.msra.mxu0 %v1630
    %4158 = vmatprep.subr.bf16.mxu0 %v1635
    %4159 = vmatpush1.bf16.msra.mxu0 %v1634
    %4160 = vmatprep.subr.bf16.mxu0 %v1639
    %4161 = vmatpush1.bf16.msra.mxu0 %v1638
    %4162 = vmatprep.subr.bf16.mxu0 %v1643
    %4163 = vmatpush1.bf16.msra.mxu0 %v1642
    %4164 = vmatprep.subr.bf16.mxu0 %v1647
    %4165 = vmatpush1.bf16.msra.mxu0 %v1646
    %4166 = vmatprep.subr.bf16.mxu0 %v1651
    %4167 = vmatpush1.bf16.msra.mxu0 %v1650
    %4168 = vmatprep.subr.bf16.mxu0 %v1655
    %4169 = vmatpush1.bf16.msra.mxu0 %v1654
    %4170 = vmatprep.subr.bf16.mxu0 %v1659
    %4171 = vmatpush1.bf16.msra.mxu0 %v1658
    %4172 = vmatprep.subr.bf16.mxu0 %v1663
    %4173 = vmatpush1.bf16.msra.mxu0 %v1662
    %4174 = vmatprep.subr.bf16.mxu0 %v1667
    %4175 = vmatpush1.bf16.msra.mxu0 %v1666
    %4176 = vmatprep.subr.bf16.mxu0 %v1671
    %4177 = vmatpush1.bf16.msra.mxu0 %v1670
    %4178 = vmatprep.subr.bf16.mxu0 %v1675
    %4179 = vmatpush1.bf16.msra.mxu0 %v1674
    %4180 = vmatprep.subr.bf16.mxu0 %v1679
    %4181 = vmatpush1.bf16.msra.mxu0 %v1678
    %4182 = vmatprep.subr.bf16.mxu0 %v1683
    %4183 = vmatpush1.bf16.msra.mxu0 %v1682
    %4184 = vmatprep.subr.bf16.mxu0 %v1687
    %4185 = vmatpush1.bf16.msra.mxu0 %v1686
    %4186 = vmatprep.mubr.bf16.mxu0 %v3919
    %4187 = vmatmul.mubr.bf16.gmra.mrb[0].mxu0 %v3918
    %v4188 = vpop.f32.mrb[0].mxu0
    %v4189 = vadd.f32 %v4148, %v4188
    %v4190 = vpop.f32.mrb[0].mxu0
    %v4191 = vadd.f32 %v4150, %v4190
    %v4192 = vpop.f32.mrb[0].mxu0
    %v4193 = vpop.f32.mrb[0].mxu0
    %4194 = vdwg.mxu0
    %4195 = vmatprep.subr.bf16.mxu0 %v1565
    %4196 = vmatpush1.bf16.msra.mxu0 %v1564
    %4197 = vmatprep.subr.bf16.mxu0 %v1569
    %4198 = vmatpush1.bf16.msra.mxu0 %v1568
    %4199 = vmatprep.subr.bf16.mxu0 %v1573
    %4200 = vmatpush1.bf16.msra.mxu0 %v1572
    %4201 = vmatprep.subr.bf16.mxu0 %v1577
    %4202 = vmatpush1.bf16.msra.mxu0 %v1576
    %4203 = vmatprep.subr.bf16.mxu0 %v1581
    %4204 = vmatpush1.bf16.msra.mxu0 %v1580
    %4205 = vmatprep.subr.bf16.mxu0 %v1585
    %4206 = vmatpush1.bf16.msra.mxu0 %v1584
    %4207 = vmatprep.subr.bf16.mxu0 %v1589
    %4208 = vmatpush1.bf16.msra.mxu0 %v1588
    %4209 = vmatprep.subr.bf16.mxu0 %v1593
    %4210 = vmatpush1.bf16.msra.mxu0 %v1592
    %4211 = vmatprep.subr.bf16.mxu0 %v1597
    %4212 = vmatpush1.bf16.msra.mxu0 %v1596
    %4213 = vmatprep.subr.bf16.mxu0 %v1601
    %4214 = vmatpush1.bf16.msra.mxu0 %v1600
    %4215 = vmatprep.subr.bf16.mxu0 %v1605
    %4216 = vmatpush1.bf16.msra.mxu0 %v1604
    %4217 = vmatprep.subr.bf16.mxu0 %v1609
    %4218 = vmatpush1.bf16.msra.mxu0 %v1608
    %4219 = vmatprep.subr.bf16.mxu0 %v1613
    %4220 = vmatpush1.bf16.msra.mxu0 %v1612
    %4221 = vmatprep.subr.bf16.mxu0 %v1617
    %4222 = vmatpush1.bf16.msra.mxu0 %v1616
    %4223 = vmatprep.subr.bf16.mxu0 %v1621
    %4224 = vmatpush1.bf16.msra.mxu0 %v1620
    %4225 = vmatprep.subr.bf16.mxu0 %v1625
    %4226 = vmatpush1.bf16.msra.mxu0 %v1624
    %4227 = vmatprep.mubr.bf16.mxu0 %v3917
    %4228 = vmatmul.mubr.bf16.gmra.mrb[0].mxu0 %v3916
    %v4229 = vpop.f32.mrb[0].mxu0
    %v4230 = vadd.f32 %v4111, %v4229
    %v4231 = vpop.f32.mrb[0].mxu0
    %v4232 = vadd.f32 %v4112, %v4231
    %v4233 = vpop.f32.mrb[0].mxu0
    %v4234 = vpop.f32.mrb[0].mxu0
    %4235 = vdwg.mxu0
    %4236 = vmatprep.subr.bf16.mxu0 %v1629
    %4237 = vmatpush1.bf16.msra.mxu0 %v1628
    %4238 = vmatprep.subr.bf16.mxu0 %v1633
    %4239 = vmatpush1.bf16.msra.mxu0 %v1632
    %4240 = vmatprep.subr.bf16.mxu0 %v1637
    %4241 = vmatpush1.bf16.msra.mxu0 %v1636
    %4242 = vmatprep.subr.bf16.mxu0 %v1641
    %4243 = vmatpush1.bf16.msra.mxu0 %v1640
    %4244 = vmatprep.subr.bf16.mxu0 %v1645
    %4245 = vmatpush1.bf16.msra.mxu0 %v1644
    %4246 = vmatprep.subr.bf16.mxu0 %v1649
    %4247 = vmatpush1.bf16.msra.mxu0 %v1648
    %4248 = vmatprep.subr.bf16.mxu0 %v1653
    %4249 = vmatpush1.bf16.msra.mxu0 %v1652
    %4250 = vmatprep.subr.bf16.mxu0 %v1657
    %4251 = vmatpush1.bf16.msra.mxu0 %v1656
    %4252 = vmatprep.subr.bf16.mxu0 %v1661
    %4253 = vmatpush1.bf16.msra.mxu0 %v1660
    %4254 = vmatprep.subr.bf16.mxu0 %v1665
    %4255 = vmatpush1.bf16.msra.mxu0 %v1664
    %4256 = vmatprep.subr.bf16.mxu0 %v1669
    %4257 = vmatpush1.bf16.msra.mxu0 %v1668
    %4258 = vmatprep.subr.bf16.mxu0 %v1673
    %4259 = vmatpush1.bf16.msra.mxu0 %v1672
    %4260 = vmatprep.subr.bf16.mxu0 %v1677
    %4261 = vmatpush1.bf16.msra.mxu0 %v1676
    %4262 = vmatprep.subr.bf16.mxu0 %v1681
    %4263 = vmatpush1.bf16.msra.mxu0 %v1680
    %4264 = vmatprep.subr.bf16.mxu0 %v1685
    %4265 = vmatpush1.bf16.msra.mxu0 %v1684
    %4266 = vmatprep.subr.bf16.mxu0 %v1689
    %4267 = vmatpush1.bf16.msra.mxu0 %v1688
    %4268 = vmatprep.mubr.bf16.mxu0 %v3919
    %4269 = vmatmul.mubr.bf16.gmra.mrb[0].mxu0 %v3918
    %v4270 = vpop.f32.mrb[0].mxu0
    %v4271 = vadd.f32 %v4230, %v4270
    %v4272 = vpop.f32.mrb[0].mxu0
    %v4273 = vadd.f32 %v4232, %v4272
    %v4274 = vpop.f32.mrb[0].mxu0
    %v4275 = vpop.f32.mrb[0].mxu0
    %4276 = vdwg.mxu0
    %v4277 = vmul.f32 %v4189, 0.5
    %v4278 = vmul.f32 %v4191, 0.5
    %v4279 = vmul.f32 %v4271, 0.5
    %v4280 = vmul.f32 %v4273, 0.5
    %v4281 = vtanh.pop %v4277
    %v4282 = vtanh.pop %v4278
    %v4283 = vtanh.pop %v4279
    %v4284 = vtanh.pop %v4280
    %v4285 = vmul.f32 %v4281, 0.5
    %v4286 = vmul.f32 %v4282, 0.5
    %v4287 = vmul.f32 %v4283, 0.5
    %v4288 = vmul.f32 %v4284, 0.5
    %v4289 = vadd.f32 %v4285, 0.5
    %v4290 = vadd.f32 %v4286, 0.5
    %v4291 = vadd.f32 %v4287, 0.5
    %v4292 = vadd.f32 %v4288, 0.5
    %v4293 = vmul.f32 %v4289, %v2949
    %v4294 = vmul.f32 %v4290, %v2950
    %v4295 = vmul.f32 %v4291, %v2951
    %v4296 = vmul.f32 %v4292, %v2952
    %v4297 = vld [vmem:[%s3920 + $0x20] sm:$0xff]
    %v4298 = vld [vmem:[%s3920 + $0x28] sm:$0xff]
    %v4299 = vunpack.c.l.bf16 %v4297
    %v4300 = vunpack.c.h.bf16 %v4297
    %v4301 = vunpack.c.l.bf16 %v4298
    %v4302 = vunpack.c.h.bf16 %v4298
    %4303 = vmatprep.subr.bf16.mxu0 %v2522
    %4304 = vmatpush1.bf16.msra.mxu0 %v2521
    %4305 = vmatprep.subr.bf16.mxu0 %v2526
    %4306 = vmatpush1.bf16.msra.mxu0 %v2525
    %4307 = vmatprep.subr.bf16.mxu0 %v2530
    %4308 = vmatpush1.bf16.msra.mxu0 %v2529
    %4309 = vmatprep.subr.bf16.mxu0 %v2534
    %4310 = vmatpush1.bf16.msra.mxu0 %v2533
    %4311 = vmatprep.subr.bf16.mxu0 %v2538
    %4312 = vmatpush1.bf16.msra.mxu0 %v2537
    %4313 = vmatprep.subr.bf16.mxu0 %v2542
    %4314 = vmatpush1.bf16.msra.mxu0 %v2541
    %4315 = vmatprep.subr.bf16.mxu0 %v2546
    %4316 = vmatpush1.bf16.msra.mxu0 %v2545
    %4317 = vmatprep.subr.bf16.mxu0 %v2550
    %4318 = vmatpush1.bf16.msra.mxu0 %v2549
    %4319 = vmatprep.subr.bf16.mxu0 %v2554
    %4320 = vmatpush1.bf16.msra.mxu0 %v2553
    %4321 = vmatprep.subr.bf16.mxu0 %v2558
    %4322 = vmatpush1.bf16.msra.mxu0 %v2557
    %4323 = vmatprep.subr.bf16.mxu0 %v2562
    %4324 = vmatpush1.bf16.msra.mxu0 %v2561
    %4325 = vmatprep.subr.bf16.mxu0 %v2566
    %4326 = vmatpush1.bf16.msra.mxu0 %v2565
    %4327 = vmatprep.subr.bf16.mxu0 %v2570
    %4328 = vmatpush1.bf16.msra.mxu0 %v2569
    %4329 = vmatprep.subr.bf16.mxu0 %v2574
    %4330 = vmatpush1.bf16.msra.mxu0 %v2573
    %4331 = vmatprep.subr.bf16.mxu0 %v2578
    %4332 = vmatpush1.bf16.msra.mxu0 %v2577
    %4333 = vmatprep.subr.bf16.mxu0 %v2582
    %4334 = vmatpush1.bf16.msra.mxu0 %v2581
    %4335 = vmatprep.mubr.bf16.mxu0 %v3917
    %4336 = vmatmul.mubr.bf16.gmra.mrb[0].mxu0 %v3916
    %v4337 = vpop.f32.mrb[0].mxu0
    %v4338 = vadd.f32 %v4299, %v4337
    %v4339 = vpop.f32.mrb[0].mxu0
    %v4340 = vadd.f32 %v4300, %v4339
    %v4341 = vpop.f32.mrb[0].mxu0
    %v4342 = vpop.f32.mrb[0].mxu0
    %4343 = vdwg.mxu0
    %4344 = vmatprep.subr.bf16.mxu0 %v2586
    %4345 = vmatpush1.bf16.msra.mxu0 %v2585
    %4346 = vmatprep.subr.bf16.mxu0 %v2590
    %4347 = vmatpush1.bf16.msra.mxu0 %v2589
    %4348 = vmatprep.subr.bf16.mxu0 %v2594
    %4349 = vmatpush1.bf16.msra.mxu0 %v2593
    %4350 = vmatprep.subr.bf16.mxu0 %v2598
    %4351 = vmatpush1.bf16.msra.mxu0 %v2597
    %4352 = vmatprep.subr.bf16.mxu0 %v2602
    %4353 = vmatpush1.bf16.msra.mxu0 %v2601
    %4354 = vmatprep.subr.bf16.mxu0 %v2606
    %4355 = vmatpush1.bf16.msra.mxu0 %v2605
    %4356 = vmatprep.subr.bf16.mxu0 %v2610
    %4357 = vmatpush1.bf16.msra.mxu0 %v2609
    %4358 = vmatprep.subr.bf16.mxu0 %v2614
    %4359 = vmatpush1.bf16.msra.mxu0 %v2613
    %4360 = vmatprep.subr.bf16.mxu0 %v2618
    %4361 = vmatpush1.bf16.msra.mxu0 %v2617
    %4362 = vmatprep.subr.bf16.mxu0 %v2622
    %4363 = vmatpush1.bf16.msra.mxu0 %v2621
    %4364 = vmatprep.subr.bf16.mxu0 %v2626
    %4365 = vmatpush1.bf16.msra.mxu0 %v2625
    %4366 = vmatprep.subr.bf16.mxu0 %v2630
    %4367 = vmatpush1.bf16.msra.mxu0 %v2629
    %4368 = vmatprep.subr.bf16.mxu0 %v2634
    %4369 = vmatpush1.bf16.msra.mxu0 %v2633
    %4370 = vmatprep.subr.bf16.mxu0 %v2638
    %4371 = vmatpush1.bf16.msra.mxu0 %v2637
    %4372 = vmatprep.subr.bf16.mxu0 %v2642
    %4373 = vmatpush1.bf16.msra.mxu0 %v2641
    %4374 = vmatprep.subr.bf16.mxu0 %v2646
    %4375 = vmatpush1.bf16.msra.mxu0 %v2645
    %4376 = vmatprep.mubr.bf16.mxu0 %v3919
    %4377 = vmatmul.mubr.bf16.gmra.mrb[0].mxu0 %v3918
    %v4378 = vpop.f32.mrb[0].mxu0
    %v4379 = vadd.f32 %v4338, %v4378
    %v4380 = vpop.f32.mrb[0].mxu0
    %v4381 = vadd.f32 %v4340, %v4380
    %v4382 = vpop.f32.mrb[0].mxu0
    %v4383 = vpop.f32.mrb[0].mxu0
    %4384 = vdwg.mxu0
    %4385 = vmatprep.subr.bf16.mxu0 %v2524
    %4386 = vmatpush1.bf16.msra.mxu0 %v2523
    %4387 = vmatprep.subr.bf16.mxu0 %v2528
    %4388 = vmatpush1.bf16.msra.mxu0 %v2527
    %4389 = vmatprep.subr.bf16.mxu0 %v2532
    %4390 = vmatpush1.bf16.msra.mxu0 %v2531
    %4391 = vmatprep.subr.bf16.mxu0 %v2536
    %4392 = vmatpush1.bf16.msra.mxu0 %v2535
    %4393 = vmatprep.subr.bf16.mxu0 %v2540
    %4394 = vmatpush1.bf16.msra.mxu0 %v2539
    %4395 = vmatprep.subr.bf16.mxu0 %v2544
    %4396 = vmatpush1.bf16.msra.mxu0 %v2543
    %4397 = vmatprep.subr.bf16.mxu0 %v2548
    %4398 = vmatpush1.bf16.msra.mxu0 %v2547
    %4399 = vmatprep.subr.bf16.mxu0 %v2552
    %4400 = vmatpush1.bf16.msra.mxu0 %v2551
    %4401 = vmatprep.subr.bf16.mxu0 %v2556
    %4402 = vmatpush1.bf16.msra.mxu0 %v2555
    %4403 = vmatprep.subr.bf16.mxu0 %v2560
    %4404 = vmatpush1.bf16.msra.mxu0 %v2559
    %4405 = vmatprep.subr.bf16.mxu0 %v2564
    %4406 = vmatpush1.bf16.msra.mxu0 %v2563
    %4407 = vmatprep.subr.bf16.mxu0 %v2568
    %4408 = vmatpush1.bf16.msra.mxu0 %v2567
    %4409 = vmatprep.subr.bf16.mxu0 %v2572
    %4410 = vmatpush1.bf16.msra.mxu0 %v2571
    %4411 = vmatprep.subr.bf16.mxu0 %v2576
    %4412 = vmatpush1.bf16.msra.mxu0 %v2575
    %4413 = vmatprep.subr.bf16.mxu0 %v2580
    %4414 = vmatpush1.bf16.msra.mxu0 %v2579
    %4415 = vmatprep.subr.bf16.mxu0 %v2584
    %4416 = vmatpush1.bf16.msra.mxu0 %v2583
    %4417 = vmatprep.mubr.bf16.mxu0 %v3917
    %4418 = vmatmul.mubr.bf16.gmra.mrb[0].mxu0 %v3916
    %v4419 = vpop.f32.mrb[0].mxu0
    %v4420 = vadd.f32 %v4301, %v4419
    %v4421 = vpop.f32.mrb[0].mxu0
    %v4422 = vadd.f32 %v4302, %v4421
    %v4423 = vpop.f32.mrb[0].mxu0
    %v4424 = vpop.f32.mrb[0].mxu0
    %4425 = vdwg.mxu0
    %4426 = vmatprep.subr.bf16.mxu0 %v2588
    %4427 = vmatpush1.bf16.msra.mxu0 %v2587
    %4428 = vmatprep.subr.bf16.mxu0 %v2592
    %4429 = vmatpush1.bf16.msra.mxu0 %v2591
    %4430 = vmatprep.subr.bf16.mxu0 %v2596
    %4431 = vmatpush1.bf16.msra.mxu0 %v2595
    %4432 = vmatprep.subr.bf16.mxu0 %v2600
    %4433 = vmatpush1.bf16.msra.mxu0 %v2599
    %4434 = vmatprep.subr.bf16.mxu0 %v2604
    %4435 = vmatpush1.bf16.msra.mxu0 %v2603
    %4436 = vmatprep.subr.bf16.mxu0 %v2608
    %4437 = vmatpush1.bf16.msra.mxu0 %v2607
    %4438 = vmatprep.subr.bf16.mxu0 %v2612
    %4439 = vmatpush1.bf16.msra.mxu0 %v2611
    %4440 = vmatprep.subr.bf16.mxu0 %v2616
    %4441 = vmatpush1.bf16.msra.mxu0 %v2615
    %4442 = vmatprep.subr.bf16.mxu0 %v2620
    %4443 = vmatpush1.bf16.msra.mxu0 %v2619
    %4444 = vmatprep.subr.bf16.mxu0 %v2624
    %4445 = vmatpush1.bf16.msra.mxu0 %v2623
    %4446 = vmatprep.subr.bf16.mxu0 %v2628
    %4447 = vmatpush1.bf16.msra.mxu0 %v2627
    %4448 = vmatprep.subr.bf16.mxu0 %v2632
    %4449 = vmatpush1.bf16.msra.mxu0 %v2631
    %4450 = vmatprep.subr.bf16.mxu0 %v2636
    %4451 = vmatpush1.bf16.msra.mxu0 %v2635
    %4452 = vmatprep.subr.bf16.mxu0 %v2640
    %4453 = vmatpush1.bf16.msra.mxu0 %v2639
    %4454 = vmatprep.subr.bf16.mxu0 %v2644
    %4455 = vmatpush1.bf16.msra.mxu0 %v2643
    %4456 = vmatprep.subr.bf16.mxu0 %v2648
    %4457 = vmatpush1.bf16.msra.mxu0 %v2647
    %4458 = vmatprep.mubr.bf16.mxu0 %v3919
    %4459 = vmatmul.mubr.bf16.gmra.mrb[0].mxu0 %v3918
    %v4460 = vpop.f32.mrb[0].mxu0
    %v4461 = vadd.f32 %v4420, %v4460
    %v4462 = vpop.f32.mrb[0].mxu0
    %v4463 = vadd.f32 %v4422, %v4462
    %v4464 = vpop.f32.mrb[0].mxu0
    %v4465 = vpop.f32.mrb[0].mxu0
    %4466 = vdwg.mxu0
    %v4467 = vtanh.pop %v4379
    %v4468 = vtanh.pop %v4381
    %v4469 = vtanh.pop %v4461
    %v4470 = vtanh.pop %v4463
    %v4471 = vmul.f32 %v4103, %v4467
    %v4472 = vmul.f32 %v4104, %v4468
    %v4473 = vmul.f32 %v4105, %v4469
    %v4474 = vmul.f32 %v4106, %v4470
    %v4475 = vadd.f32 %v4293, %v4471
    %v4476 = vadd.f32 %v4294, %v4472
    %v4477 = vadd.f32 %v4295, %v4473
    %v4478 = vadd.f32 %v4296, %v4474
    %v4479 = vld [vmem:[%s3920 + $0x30] sm:$0xff]
    %v4480 = vld [vmem:[%s3920 + $0x38] sm:$0xff]
    %v4481 = vunpack.c.l.bf16 %v4479
    %v4482 = vunpack.c.h.bf16 %v4479
    %v4483 = vunpack.c.l.bf16 %v4480
    %v4484 = vunpack.c.h.bf16 %v4480
    %4485 = vmatprep.subr.bf16.mxu0 %v3473
    %4486 = vmatpush1.bf16.msra.mxu0 %v3472
    %4487 = vmatprep.subr.bf16.mxu0 %v3477
    %4488 = vmatpush1.bf16.msra.mxu0 %v3476
    %4489 = vmatprep.subr.bf16.mxu0 %v3481
    %4490 = vmatpush1.bf16.msra.mxu0 %v3480
    %4491 = vmatprep.subr.bf16.mxu0 %v3485
    %4492 = vmatpush1.bf16.msra.mxu0 %v3484
    %4493 = vmatprep.subr.bf16.mxu0 %v3489
    %4494 = vmatpush1.bf16.msra.mxu0 %v3488
    %4495 = vmatprep.subr.bf16.mxu0 %v3493
    %4496 = vmatpush1.bf16.msra.mxu0 %v3492
    %4497 = vmatprep.subr.bf16.mxu0 %v3497
    %4498 = vmatpush1.bf16.msra.mxu0 %v3496
    %4499 = vmatprep.subr.bf16.mxu0 %v3501
    %4500 = vmatpush1.bf16.msra.mxu0 %v3500
    %4501 = vmatprep.subr.bf16.mxu0 %v3505
    %4502 = vmatpush1.bf16.msra.mxu0 %v3504
    %4503 = vmatprep.subr.bf16.mxu0 %v3509
    %4504 = vmatpush1.bf16.msra.mxu0 %v3508
    %4505 = vmatprep.subr.bf16.mxu0 %v3513
    %4506 = vmatpush1.bf16.msra.mxu0 %v3512
    %4507 = vmatprep.subr.bf16.mxu0 %v3517
    %4508 = vmatpush1.bf16.msra.mxu0 %v3516
    %4509 = vmatprep.subr.bf16.mxu0 %v3521
    %4510 = vmatpush1.bf16.msra.mxu0 %v3520
    %4511 = vmatprep.subr.bf16.mxu0 %v3525
    %4512 = vmatpush1.bf16.msra.mxu0 %v3524
    %4513 = vmatprep.subr.bf16.mxu0 %v3529
    %4514 = vmatpush1.bf16.msra.mxu0 %v3528
    %4515 = vmatprep.subr.bf16.mxu0 %v3533
    %4516 = vmatpush1.bf16.msra.mxu0 %v3532
    %4517 = vmatprep.mubr.bf16.mxu0 %v3917
    %4518 = vmatmul.mubr.bf16.gmra.mrb[0].mxu0 %v3916
    %v4519 = vpop.f32.mrb[0].mxu0
    %v4520 = vadd.f32 %v4481, %v4519
    %v4521 = vpop.f32.mrb[0].mxu0
    %v4522 = vadd.f32 %v4482, %v4521
    %v4523 = vpop.f32.mrb[0].mxu0
    %v4524 = vpop.f32.mrb[0].mxu0
    %4525 = vdwg.mxu0
    %4526 = vmatprep.subr.bf16.mxu0 %v3537
    %4527 = vmatpush1.bf16.msra.mxu0 %v3536
    %4528 = vmatprep.subr.bf16.mxu0 %v3541
    %4529 = vmatpush1.bf16.msra.mxu0 %v3540
    %4530 = vmatprep.subr.bf16.mxu0 %v3545
    %4531 = vmatpush1.bf16.msra.mxu0 %v3544
    %4532 = vmatprep.subr.bf16.mxu0 %v3549
    %4533 = vmatpush1.bf16.msra.mxu0 %v3548
    %4534 = vmatprep.subr.bf16.mxu0 %v3553
    %4535 = vmatpush1.bf16.msra.mxu0 %v3552
    %4536 = vmatprep.subr.bf16.mxu0 %v3557
    %4537 = vmatpush1.bf16.msra.mxu0 %v3556
    %4538 = vmatprep.subr.bf16.mxu0 %v3561
    %4539 = vmatpush1.bf16.msra.mxu0 %v3560
    %4540 = vmatprep.subr.bf16.mxu0 %v3565
    %4541 = vmatpush1.bf16.msra.mxu0 %v3564
    %4542 = vmatprep.subr.bf16.mxu0 %v3569
    %4543 = vmatpush1.bf16.msra.mxu0 %v3568
    %4544 = vmatprep.subr.bf16.mxu0 %v3573
    %4545 = vmatpush1.bf16.msra.mxu0 %v3572
    %4546 = vmatprep.subr.bf16.mxu0 %v3577
    %4547 = vmatpush1.bf16.msra.mxu0 %v3576
    %4548 = vmatprep.subr.bf16.mxu0 %v3581
    %4549 = vmatpush1.bf16.msra.mxu0 %v3580
    %4550 = vmatprep.subr.bf16.mxu0 %v3585
    %4551 = vmatpush1.bf16.msra.mxu0 %v3584
    %4552 = vmatprep.subr.bf16.mxu0 %v3589
    %4553 = vmatpush1.bf16.msra.mxu0 %v3588
    %4554 = vmatprep.subr.bf16.mxu0 %v3593
    %4555 = vmatpush1.bf16.msra.mxu0 %v3592
    %4556 = vmatprep.subr.bf16.mxu0 %v3597
    %4557 = vmatpush1.bf16.msra.mxu0 %v3596
    %4558 = vmatprep.mubr.bf16.mxu0 %v3919
    %4559 = vmatmul.mubr.bf16.gmra.mrb[0].mxu0 %v3918
    %v4560 = vpop.f32.mrb[0].mxu0
    %v4561 = vadd.f32 %v4520, %v4560
    %v4562 = vpop.f32.mrb[0].mxu0
    %v4563 = vadd.f32 %v4522, %v4562
    %v4564 = vpop.f32.mrb[0].mxu0
    %v4565 = vpop.f32.mrb[0].mxu0
    %4566 = vdwg.mxu0
    %4567 = vmatprep.subr.bf16.mxu0 %v3475
    %4568 = vmatpush1.bf16.msra.mxu0 %v3474
    %4569 = vmatprep.subr.bf16.mxu0 %v3479
    %4570 = vmatpush1.bf16.msra.mxu0 %v3478
    %4571 = vmatprep.subr.bf16.mxu0 %v3483
    %4572 = vmatpush1.bf16.msra.mxu0 %v3482
    %4573 = vmatprep.subr.bf16.mxu0 %v3487
    %4574 = vmatpush1.bf16.msra.mxu0 %v3486
    %4575 = vmatprep.subr.bf16.mxu0 %v3491
    %4576 = vmatpush1.bf16.msra.mxu0 %v3490
    %4577 = vmatprep.subr.bf16.mxu0 %v3495
    %4578 = vmatpush1.bf16.msra.mxu0 %v3494
    %4579 = vmatprep.subr.bf16.mxu0 %v3499
    %4580 = vmatpush1.bf16.msra.mxu0 %v3498
    %4581 = vmatprep.subr.bf16.mxu0 %v3503
    %4582 = vmatpush1.bf16.msra.mxu0 %v3502
    %4583 = vmatprep.subr.bf16.mxu0 %v3507
    %4584 = vmatpush1.bf16.msra.mxu0 %v3506
    %4585 = vmatprep.subr.bf16.mxu0 %v3511
    %4586 = vmatpush1.bf16.msra.mxu0 %v3510
    %4587 = vmatprep.subr.bf16.mxu0 %v3515
    %4588 = vmatpush1.bf16.msra.mxu0 %v3514
    %4589 = vmatprep.subr.bf16.mxu0 %v3519
    %4590 = vmatpush1.bf16.msra.mxu0 %v3518
    %4591 = vmatprep.subr.bf16.mxu0 %v3523
    %4592 = vmatpush1.bf16.msra.mxu0 %v3522
    %4593 = vmatprep.subr.bf16.mxu0 %v3527
    %4594 = vmatpush1.bf16.msra.mxu0 %v3526
    %4595 = vmatprep.subr.bf16.mxu0 %v3531
    %4596 = vmatpush1.bf16.msra.mxu0 %v3530
    %4597 = vmatprep.subr.bf16.mxu0 %v3535
    %4598 = vmatpush1.bf16.msra.mxu0 %v3534
    %4599 = vmatprep.mubr.bf16.mxu0 %v3917
    %4600 = vmatmul.mubr.bf16.gmra.mrb[0].mxu0 %v3916
    %v4601 = vpop.f32.mrb[0].mxu0
    %v4602 = vadd.f32 %v4483, %v4601
    %v4603 = vpop.f32.mrb[0].mxu0
    %v4604 = vadd.f32 %v4484, %v4603
    %v4605 = vpop.f32.mrb[0].mxu0
    %v4606 = vpop.f32.mrb[0].mxu0
    %4607 = vdwg.mxu0
    %4608 = vmatprep.subr.bf16.mxu0 %v3539
    %4609 = vmatpush1.bf16.msra.mxu0 %v3538
    %4610 = vmatprep.subr.bf16.mxu0 %v3543
    %4611 = vmatpush1.bf16.msra.mxu0 %v3542
    %4612 = vmatprep.subr.bf16.mxu0 %v3547
    %4613 = vmatpush1.bf16.msra.mxu0 %v3546
    %4614 = vmatprep.subr.bf16.mxu0 %v3551
    %4615 = vmatpush1.bf16.msra.mxu0 %v3550
    %4616 = vmatprep.subr.bf16.mxu0 %v3555
    %4617 = vmatpush1.bf16.msra.mxu0 %v3554
    %4618 = vmatprep.subr.bf16.mxu0 %v3559
    %4619 = vmatpush1.bf16.msra.mxu0 %v3558
    %4620 = vmatprep.subr.bf16.mxu0 %v3563
    %4621 = vmatpush1.bf16.msra.mxu0 %v3562
    %4622 = vmatprep.subr.bf16.mxu0 %v3567
    %4623 = vmatpush1.bf16.msra.mxu0 %v3566
    %4624 = vmatprep.subr.bf16.mxu0 %v3571
    %4625 = vmatpush1.bf16.msra.mxu0 %v3570
    %4626 = vmatprep.subr.bf16.mxu0 %v3575
    %4627 = vmatpush1.bf16.msra.mxu0 %v3574
    %4628 = vmatprep.subr.bf16.mxu0 %v3579
    %4629 = vmatpush1.bf16.msra.mxu0 %v3578
    %4630 = vmatprep.subr.bf16.mxu0 %v3583
    %4631 = vmatpush1.bf16.msra.mxu0 %v3582
    %4632 = vmatprep.subr.bf16.mxu0 %v3587
    %4633 = vmatpush1.bf16.msra.mxu0 %v3586
    %4634 = vmatprep.subr.bf16.mxu0 %v3591
    %4635 = vmatpush1.bf16.msra.mxu0 %v3590
    %4636 = vmatprep.subr.bf16.mxu0 %v3595
    %4637 = vmatpush1.bf16.msra.mxu0 %v3594
    %4638 = vmatprep.subr.bf16.mxu0 %v3599
    %4639 = vmatpush1.bf16.msra.mxu0 %v3598
    %4640 = vmatprep.mubr.bf16.mxu0 %v3919
    %4641 = vmatmul.mubr.bf16.gmra.mrb[0].mxu0 %v3918
    %v4642 = vpop.f32.mrb[0].mxu0
    %v4643 = vadd.f32 %v4602, %v4642
    %v4644 = vpop.f32.mrb[0].mxu0
    %v4645 = vadd.f32 %v4604, %v4644
    %v4646 = vpop.f32.mrb[0].mxu0
    %v4647 = vpop.f32.mrb[0].mxu0
    %4648 = vdwg.mxu0
    %v4649 = vmul.f32 %v4561, 0.5
    %v4650 = vmul.f32 %v4563, 0.5
    %v4651 = vmul.f32 %v4643, 0.5
    %v4652 = vmul.f32 %v4645, 0.5
    %v4653 = vtanh.pop %v4649
    %v4654 = vtanh.pop %v4650
    %v4655 = vtanh.pop %v4651
    %v4656 = vtanh.pop %v4652
    %v4657 = vmul.f32 %v4653, 0.5
    %v4658 = vmul.f32 %v4654, 0.5
    %v4659 = vmul.f32 %v4655, 0.5
    %v4660 = vmul.f32 %v4656, 0.5
    %v4661 = vadd.f32 %v4657, 0.5
    %v4662 = vadd.f32 %v4658, 0.5
    %v4663 = vadd.f32 %v4659, 0.5
    %v4664 = vadd.f32 %v4660, 0.5
    %v4665 = vtanh.pop %v4475
    %v4666 = vtanh.pop %v4476
    %v4667 = vtanh.pop %v4477
    %v4668 = vtanh.pop %v4478
    %v4669 = vmul.f32 %v4661, %v4665
    %v4670 = vmul.f32 %v4662, %v4666
    %v4671 = vmul.f32 %v4663, %v4667
    %v4672 = vmul.f32 %v4664, %v4668
    %v4673 = vpack.c.bf16 %v4669, %v4669
    %v4674 = vpack.c.bf16 %v4670, %v4670
    %v4675 = vpack.c.bf16 %v4671, %v4671
    %v4676 = vpack.c.bf16 %v4672, %v4672
    %s4677 = scalar_lea.vmem [#allocation5], 128
    %v4678 = vld [vmem:[%s4677] sm:$0xff]
    %v4679 = vld [vmem:[%s4677 + $0x8] sm:$0xff]
    %v4680 = vunpack.c.l.bf16 %v4678
    %v4681 = vunpack.c.h.bf16 %v4678
    %v4682 = vunpack.c.l.bf16 %v4679
    %v4683 = vunpack.c.h.bf16 %v4679
    %4684 = vmatprep.subr.bf16.mxu0 %v608
    %4685 = vmatpush1.bf16.msra.mxu0 %v607
    %4686 = vmatprep.subr.bf16.mxu0 %v612
    %4687 = vmatpush1.bf16.msra.mxu0 %v611
    %4688 = vmatprep.subr.bf16.mxu0 %v616
    %4689 = vmatpush1.bf16.msra.mxu0 %v615
    %4690 = vmatprep.subr.bf16.mxu0 %v620
    %4691 = vmatpush1.bf16.msra.mxu0 %v619
    %4692 = vmatprep.subr.bf16.mxu0 %v624
    %4693 = vmatpush1.bf16.msra.mxu0 %v623
    %4694 = vmatprep.subr.bf16.mxu0 %v628
    %4695 = vmatpush1.bf16.msra.mxu0 %v627
    %4696 = vmatprep.subr.bf16.mxu0 %v632
    %4697 = vmatpush1.bf16.msra.mxu0 %v631
    %4698 = vmatprep.subr.bf16.mxu0 %v636
    %4699 = vmatpush1.bf16.msra.mxu0 %v635
    %4700 = vmatprep.subr.bf16.mxu0 %v640
    %4701 = vmatpush1.bf16.msra.mxu0 %v639
    %4702 = vmatprep.subr.bf16.mxu0 %v644
    %4703 = vmatpush1.bf16.msra.mxu0 %v643
    %4704 = vmatprep.subr.bf16.mxu0 %v648
    %4705 = vmatpush1.bf16.msra.mxu0 %v647
    %4706 = vmatprep.subr.bf16.mxu0 %v652
    %4707 = vmatpush1.bf16.msra.mxu0 %v651
    %4708 = vmatprep.subr.bf16.mxu0 %v656
    %4709 = vmatpush1.bf16.msra.mxu0 %v655
    %4710 = vmatprep.subr.bf16.mxu0 %v660
    %4711 = vmatpush1.bf16.msra.mxu0 %v659
    %4712 = vmatprep.subr.bf16.mxu0 %v664
    %4713 = vmatpush1.bf16.msra.mxu0 %v663
    %4714 = vmatprep.subr.bf16.mxu0 %v668
    %4715 = vmatpush1.bf16.msra.mxu0 %v667
    %4716 = vmatprep.mubr.bf16.mxu0 %v4674
    %4717 = vmatmul.mubr.bf16.gmra.mrb[0].mxu0 %v4673
    %v4718 = vpop.f32.mrb[0].mxu0
    %v4719 = vadd.f32 %v4680, %v4718
    %v4720 = vpop.f32.mrb[0].mxu0
    %v4721 = vadd.f32 %v4681, %v4720
    %v4722 = vpop.f32.mrb[0].mxu0
    %v4723 = vpop.f32.mrb[0].mxu0
    %4724 = vdwg.mxu0
    %4725 = vmatprep.subr.bf16.mxu0 %v672
    %4726 = vmatpush1.bf16.msra.mxu0 %v671
    %4727 = vmatprep.subr.bf16.mxu0 %v676
    %4728 = vmatpush1.bf16.msra.mxu0 %v675
    %4729 = vmatprep.subr.bf16.mxu0 %v680
    %4730 = vmatpush1.bf16.msra.mxu0 %v679
    %4731 = vmatprep.subr.bf16.mxu0 %v684
    %4732 = vmatpush1.bf16.msra.mxu0 %v683
    %4733 = vmatprep.subr.bf16.mxu0 %v688
    %4734 = vmatpush1.bf16.msra.mxu0 %v687
    %4735 = vmatprep.subr.bf16.mxu0 %v692
    %4736 = vmatpush1.bf16.msra.mxu0 %v691
    %4737 = vmatprep.subr.bf16.mxu0 %v696
    %4738 = vmatpush1.bf16.msra.mxu0 %v695
    %4739 = vmatprep.subr.bf16.mxu0 %v700
    %4740 = vmatpush1.bf16.msra.mxu0 %v699
    %4741 = vmatprep.subr.bf16.mxu0 %v704
    %4742 = vmatpush1.bf16.msra.mxu0 %v703
    %4743 = vmatprep.subr.bf16.mxu0 %v708
    %4744 = vmatpush1.bf16.msra.mxu0 %v707
    %4745 = vmatprep.subr.bf16.mxu0 %v712
    %4746 = vmatpush1.bf16.msra.mxu0 %v711
    %4747 = vmatprep.subr.bf16.mxu0 %v716
    %4748 = vmatpush1.bf16.msra.mxu0 %v715
    %4749 = vmatprep.subr.bf16.mxu0 %v720
    %4750 = vmatpush1.bf16.msra.mxu0 %v719
    %4751 = vmatprep.subr.bf16.mxu0 %v724
    %4752 = vmatpush1.bf16.msra.mxu0 %v723
    %4753 = vmatprep.subr.bf16.mxu0 %v728
    %4754 = vmatpush1.bf16.msra.mxu0 %v727
    %4755 = vmatprep.subr.bf16.mxu0 %v732
    %4756 = vmatpush1.bf16.msra.mxu0 %v731
    %4757 = vmatprep.mubr.bf16.mxu0 %v4676
    %4758 = vmatmul.mubr.bf16.gmra.mrb[0].mxu0 %v4675
    %v4759 = vpop.f32.mrb[0].mxu0
    %v4760 = vadd.f32 %v4719, %v4759
    %v4761 = vpop.f32.mrb[0].mxu0
    %v4762 = vadd.f32 %v4721, %v4761
    %v4763 = vpop.f32.mrb[0].mxu0
    %v4764 = vpop.f32.mrb[0].mxu0
    %4765 = vdwg.mxu0
    %4766 = vmatprep.subr.bf16.mxu0 %v610
    %4767 = vmatpush1.bf16.msra.mxu0 %v609
    %4768 = vmatprep.subr.bf16.mxu0 %v614
    %4769 = vmatpush1.bf16.msra.mxu0 %v613
    %4770 = vmatprep.subr.bf16.mxu0 %v618
    %4771 = vmatpush1.bf16.msra.mxu0 %v617
    %4772 = vmatprep.subr.bf16.mxu0 %v622
    %4773 = vmatpush1.bf16.msra.mxu0 %v621
    %4774 = vmatprep.subr.bf16.mxu0 %v626
    %4775 = vmatpush1.bf16.msra.mxu0 %v625
    %4776 = vmatprep.subr.bf16.mxu0 %v630
    %4777 = vmatpush1.bf16.msra.mxu0 %v629
    %4778 = vmatprep.subr.bf16.mxu0 %v634
    %4779 = vmatpush1.bf16.msra.mxu0 %v633
    %4780 = vmatprep.subr.bf16.mxu0 %v638
    %4781 = vmatpush1.bf16.msra.mxu0 %v637
    %4782 = vmatprep.subr.bf16.mxu0 %v642
    %4783 = vmatpush1.bf16.msra.mxu0 %v641
    %4784 = vmatprep.subr.bf16.mxu0 %v646
    %4785 = vmatpush1.bf16.msra.mxu0 %v645
    %4786 = vmatprep.subr.bf16.mxu0 %v650
    %4787 = vmatpush1.bf16.msra.mxu0 %v649
    %4788 = vmatprep.subr.bf16.mxu0 %v654
    %4789 = vmatpush1.bf16.msra.mxu0 %v653
    %4790 = vmatprep.subr.bf16.mxu0 %v658
    %4791 = vmatpush1.bf16.msra.mxu0 %v657
    %4792 = vmatprep.subr.bf16.mxu0 %v662
    %4793 = vmatpush1.bf16.msra.mxu0 %v661
    %4794 = vmatprep.subr.bf16.mxu0 %v666
    %4795 = vmatpush1.bf16.msra.mxu0 %v665
    %4796 = vmatprep.subr.bf16.mxu0 %v670
    %4797 = vmatpush1.bf16.msra.mxu0 %v669
    %4798 = vmatprep.mubr.bf16.mxu0 %v4674
    %4799 = vmatmul.mubr.bf16.gmra.mrb[0].mxu0 %v4673
    %v4800 = vpop.f32.mrb[0].mxu0
    %v4801 = vadd.f32 %v4682, %v4800
    %v4802 = vpop.f32.mrb[0].mxu0
    %v4803 = vadd.f32 %v4683, %v4802
    %v4804 = vpop.f32.mrb[0].mxu0
    %v4805 = vpop.f32.mrb[0].mxu0
    %4806 = vdwg.mxu0
    %4807 = vmatprep.subr.bf16.mxu0 %v674
    %4808 = vmatpush1.bf16.msra.mxu0 %v673
    %4809 = vmatprep.subr.bf16.mxu0 %v678
    %4810 = vmatpush1.bf16.msra.mxu0 %v677
    %4811 = vmatprep.subr.bf16.mxu0 %v682
    %4812 = vmatpush1.bf16.msra.mxu0 %v681
    %4813 = vmatprep.subr.bf16.mxu0 %v686
    %4814 = vmatpush1.bf16.msra.mxu0 %v685
    %4815 = vmatprep.subr.bf16.mxu0 %v690
    %4816 = vmatpush1.bf16.msra.mxu0 %v689
    %4817 = vmatprep.subr.bf16.mxu0 %v694
    %4818 = vmatpush1.bf16.msra.mxu0 %v693
    %4819 = vmatprep.subr.bf16.mxu0 %v698
    %4820 = vmatpush1.bf16.msra.mxu0 %v697
    %4821 = vmatprep.subr.bf16.mxu0 %v702
    %4822 = vmatpush1.bf16.msra.mxu0 %v701
    %4823 = vmatprep.subr.bf16.mxu0 %v706
    %4824 = vmatpush1.bf16.msra.mxu0 %v705
    %4825 = vmatprep.subr.bf16.mxu0 %v710
    %4826 = vmatpush1.bf16.msra.mxu0 %v709
    %4827 = vmatprep.subr.bf16.mxu0 %v714
    %4828 = vmatpush1.bf16.msra.mxu0 %v713
    %4829 = vmatprep.subr.bf16.mxu0 %v718
    %4830 = vmatpush1.bf16.msra.mxu0 %v717
    %4831 = vmatprep.subr.bf16.mxu0 %v722
    %4832 = vmatpush1.bf16.msra.mxu0 %v721
    %4833 = vmatprep.subr.bf16.mxu0 %v726
    %4834 = vmatpush1.bf16.msra.mxu0 %v725
    %4835 = vmatprep.subr.bf16.mxu0 %v730
    %4836 = vmatpush1.bf16.msra.mxu0 %v729
    %4837 = vmatprep.subr.bf16.mxu0 %v734
    %4838 = vmatpush1.bf16.msra.mxu0 %v733
    %4839 = vmatprep.mubr.bf16.mxu0 %v4676
    %4840 = vmatmul.mubr.bf16.gmra.mrb[0].mxu0 %v4675
    %v4841 = vpop.f32.mrb[0].mxu0
    %v4842 = vadd.f32 %v4801, %v4841
    %v4843 = vpop.f32.mrb[0].mxu0
    %v4844 = vadd.f32 %v4803, %v4843
    %v4845 = vpop.f32.mrb[0].mxu0
    %v4846 = vpop.f32.mrb[0].mxu0
    %4847 = vdwg.mxu0
    %v4848 = vmul.f32 %v4760, 0.5
    %v4849 = vmul.f32 %v4762, 0.5
    %v4850 = vmul.f32 %v4842, 0.5
    %v4851 = vmul.f32 %v4844, 0.5
    %v4852 = vtanh.pop %v4848
    %v4853 = vtanh.pop %v4849
    %v4854 = vtanh.pop %v4850
    %v4855 = vtanh.pop %v4851
    %v4856 = vmul.f32 %v4852, 0.5
    %v4857 = vmul.f32 %v4853, 0.5
    %v4858 = vmul.f32 %v4854, 0.5
    %v4859 = vmul.f32 %v4855, 0.5
    %v4860 = vadd.f32 %v4856, 0.5
    %v4861 = vadd.f32 %v4857, 0.5
    %v4862 = vadd.f32 %v4858, 0.5
    %v4863 = vadd.f32 %v4859, 0.5
    %v4864 = vld [vmem:[%s4677 + $0x10] sm:$0xff]
    %v4865 = vld [vmem:[%s4677 + $0x18] sm:$0xff]
    %v4866 = vunpack.c.l.bf16 %v4864
    %v4867 = vunpack.c.h.bf16 %v4864
    %v4868 = vunpack.c.l.bf16 %v4865
    %v4869 = vunpack.c.h.bf16 %v4865
    %4870 = vmatprep.subr.bf16.mxu0 %v1563
    %4871 = vmatpush1.bf16.msra.mxu0 %v1562
    %4872 = vmatprep.subr.bf16.mxu0 %v1567
    %4873 = vmatpush1.bf16.msra.mxu0 %v1566
    %4874 = vmatprep.subr.bf16.mxu0 %v1571
    %4875 = vmatpush1.bf16.msra.mxu0 %v1570
    %4876 = vmatprep.subr.bf16.mxu0 %v1575
    %4877 = vmatpush1.bf16.msra.mxu0 %v1574
    %4878 = vmatprep.subr.bf16.mxu0 %v1579
    %4879 = vmatpush1.bf16.msra.mxu0 %v1578
    %4880 = vmatprep.subr.bf16.mxu0 %v1583
    %4881 = vmatpush1.bf16.msra.mxu0 %v1582
    %4882 = vmatprep.subr.bf16.mxu0 %v1587
    %4883 = vmatpush1.bf16.msra.mxu0 %v1586
    %4884 = vmatprep.subr.bf16.mxu0 %v1591
    %4885 = vmatpush1.bf16.msra.mxu0 %v1590
    %4886 = vmatprep.subr.bf16.mxu0 %v1595
    %4887 = vmatpush1.bf16.msra.mxu0 %v1594
    %4888 = vmatprep.subr.bf16.mxu0 %v1599
    %4889 = vmatpush1.bf16.msra.mxu0 %v1598
    %4890 = vmatprep.subr.bf16.mxu0 %v1603
    %4891 = vmatpush1.bf16.msra.mxu0 %v1602
    %4892 = vmatprep.subr.bf16.mxu0 %v1607
    %4893 = vmatpush1.bf16.msra.mxu0 %v1606
    %4894 = vmatprep.subr.bf16.mxu0 %v1611
    %4895 = vmatpush1.bf16.msra.mxu0 %v1610
    %4896 = vmatprep.subr.bf16.mxu0 %v1615
    %4897 = vmatpush1.bf16.msra.mxu0 %v1614
    %4898 = vmatprep.subr.bf16.mxu0 %v1619
    %4899 = vmatpush1.bf16.msra.mxu0 %v1618
    %4900 = vmatprep.subr.bf16.mxu0 %v1623
    %4901 = vmatpush1.bf16.msra.mxu0 %v1622
    %4902 = vmatprep.mubr.bf16.mxu0 %v4674
    %4903 = vmatmul.mubr.bf16.gmra.mrb[0].mxu0 %v4673
    %v4904 = vpop.f32.mrb[0].mxu0
    %v4905 = vadd.f32 %v4866, %v4904
    %v4906 = vpop.f32.mrb[0].mxu0
    %v4907 = vadd.f32 %v4867, %v4906
    %v4908 = vpop.f32.mrb[0].mxu0
    %v4909 = vpop.f32.mrb[0].mxu0
    %4910 = vdwg.mxu0
    %4911 = vmatprep.subr.bf16.mxu0 %v1627
    %4912 = vmatpush1.bf16.msra.mxu0 %v1626
    %4913 = vmatprep.subr.bf16.mxu0 %v1631
    %4914 = vmatpush1.bf16.msra.mxu0 %v1630
    %4915 = vmatprep.subr.bf16.mxu0 %v1635
    %4916 = vmatpush1.bf16.msra.mxu0 %v1634
    %4917 = vmatprep.subr.bf16.mxu0 %v1639
    %4918 = vmatpush1.bf16.msra.mxu0 %v1638
    %4919 = vmatprep.subr.bf16.mxu0 %v1643
    %4920 = vmatpush1.bf16.msra.mxu0 %v1642
    %4921 = vmatprep.subr.bf16.mxu0 %v1647
    %4922 = vmatpush1.bf16.msra.mxu0 %v1646
    %4923 = vmatprep.subr.bf16.mxu0 %v1651
    %4924 = vmatpush1.bf16.msra.mxu0 %v1650
    %4925 = vmatprep.subr.bf16.mxu0 %v1655
    %4926 = vmatpush1.bf16.msra.mxu0 %v1654
    %4927 = vmatprep.subr.bf16.mxu0 %v1659
    %4928 = vmatpush1.bf16.msra.mxu0 %v1658
    %4929 = vmatprep.subr.bf16.mxu0 %v1663
    %4930 = vmatpush1.bf16.msra.mxu0 %v1662
    %4931 = vmatprep.subr.bf16.mxu0 %v1667
    %4932 = vmatpush1.bf16.msra.mxu0 %v1666
    %4933 = vmatprep.subr.bf16.mxu0 %v1671
    %4934 = vmatpush1.bf16.msra.mxu0 %v1670
    %4935 = vmatprep.subr.bf16.mxu0 %v1675
    %4936 = vmatpush1.bf16.msra.mxu0 %v1674
    %4937 = vmatprep.subr.bf16.mxu0 %v1679
    %4938 = vmatpush1.bf16.msra.mxu0 %v1678
    %4939 = vmatprep.subr.bf16.mxu0 %v1683
    %4940 = vmatpush1.bf16.msra.mxu0 %v1682
    %4941 = vmatprep.subr.bf16.mxu0 %v1687
    %4942 = vmatpush1.bf16.msra.mxu0 %v1686
    %4943 = vmatprep.mubr.bf16.mxu0 %v4676
    %4944 = vmatmul.mubr.bf16.gmra.mrb[0].mxu0 %v4675
    %v4945 = vpop.f32.mrb[0].mxu0
    %v4946 = vadd.f32 %v4905, %v4945
    %v4947 = vpop.f32.mrb[0].mxu0
    %v4948 = vadd.f32 %v4907, %v4947
    %v4949 = vpop.f32.mrb[0].mxu0
    %v4950 = vpop.f32.mrb[0].mxu0
    %4951 = vdwg.mxu0
    %4952 = vmatprep.subr.bf16.mxu0 %v1565
    %4953 = vmatpush1.bf16.msra.mxu0 %v1564
    %4954 = vmatprep.subr.bf16.mxu0 %v1569
    %4955 = vmatpush1.bf16.msra.mxu0 %v1568
    %4956 = vmatprep.subr.bf16.mxu0 %v1573
    %4957 = vmatpush1.bf16.msra.mxu0 %v1572
    %4958 = vmatprep.subr.bf16.mxu0 %v1577
    %4959 = vmatpush1.bf16.msra.mxu0 %v1576
    %4960 = vmatprep.subr.bf16.mxu0 %v1581
    %4961 = vmatpush1.bf16.msra.mxu0 %v1580
    %4962 = vmatprep.subr.bf16.mxu0 %v1585
    %4963 = vmatpush1.bf16.msra.mxu0 %v1584
    %4964 = vmatprep.subr.bf16.mxu0 %v1589
    %4965 = vmatpush1.bf16.msra.mxu0 %v1588
    %4966 = vmatprep.subr.bf16.mxu0 %v1593
    %4967 = vmatpush1.bf16.msra.mxu0 %v1592
    %4968 = vmatprep.subr.bf16.mxu0 %v1597
    %4969 = vmatpush1.bf16.msra.mxu0 %v1596
    %4970 = vmatprep.subr.bf16.mxu0 %v1601
    %4971 = vmatpush1.bf16.msra.mxu0 %v1600
    %4972 = vmatprep.subr.bf16.mxu0 %v1605
    %4973 = vmatpush1.bf16.msra.mxu0 %v1604
    %4974 = vmatprep.subr.bf16.mxu0 %v1609
    %4975 = vmatpush1.bf16.msra.mxu0 %v1608
    %4976 = vmatprep.subr.bf16.mxu0 %v1613
    %4977 = vmatpush1.bf16.msra.mxu0 %v1612
    %4978 = vmatprep.subr.bf16.mxu0 %v1617
    %4979 = vmatpush1.bf16.msra.mxu0 %v1616
    %4980 = vmatprep.subr.bf16.mxu0 %v1621
    %4981 = vmatpush1.bf16.msra.mxu0 %v1620
    %4982 = vmatprep.subr.bf16.mxu0 %v1625
    %4983 = vmatpush1.bf16.msra.mxu0 %v1624
    %4984 = vmatprep.mubr.bf16.mxu0 %v4674
    %4985 = vmatmul.mubr.bf16.gmra.mrb[0].mxu0 %v4673
    %v4986 = vpop.f32.mrb[0].mxu0
    %v4987 = vadd.f32 %v4868, %v4986
    %v4988 = vpop.f32.mrb[0].mxu0
    %v4989 = vadd.f32 %v4869, %v4988
    %v4990 = vpop.f32.mrb[0].mxu0
    %v4991 = vpop.f32.mrb[0].mxu0
    %4992 = vdwg.mxu0
    %4993 = vmatprep.subr.bf16.mxu0 %v1629
    %4994 = vmatpush1.bf16.msra.mxu0 %v1628
    %4995 = vmatprep.subr.bf16.mxu0 %v1633
    %4996 = vmatpush1.bf16.msra.mxu0 %v1632
    %4997 = vmatprep.subr.bf16.mxu0 %v1637
    %4998 = vmatpush1.bf16.msra.mxu0 %v1636
    %4999 = vmatprep.subr.bf16.mxu0 %v1641
    %5000 = vmatpush1.bf16.msra.mxu0 %v1640
    %5001 = vmatprep.subr.bf16.mxu0 %v1645
    %5002 = vmatpush1.bf16.msra.mxu0 %v1644
    %5003 = vmatprep.subr.bf16.mxu0 %v1649
    %5004 = vmatpush1.bf16.msra.mxu0 %v1648
    %5005 = vmatprep.subr.bf16.mxu0 %v1653
    %5006 = vmatpush1.bf16.msra.mxu0 %v1652
    %5007 = vmatprep.subr.bf16.mxu0 %v1657
    %5008 = vmatpush1.bf16.msra.mxu0 %v1656
    %5009 = vmatprep.subr.bf16.mxu0 %v1661
    %5010 = vmatpush1.bf16.msra.mxu0 %v1660
    %5011 = vmatprep.subr.bf16.mxu0 %v1665
    %5012 = vmatpush1.bf16.msra.mxu0 %v1664
    %5013 = vmatprep.subr.bf16.mxu0 %v1669
    %5014 = vmatpush1.bf16.msra.mxu0 %v1668
    %5015 = vmatprep.subr.bf16.mxu0 %v1673
    %5016 = vmatpush1.bf16.msra.mxu0 %v1672
    %5017 = vmatprep.subr.bf16.mxu0 %v1677
    %5018 = vmatpush1.bf16.msra.mxu0 %v1676
    %5019 = vmatprep.subr.bf16.mxu0 %v1681
    %5020 = vmatpush1.bf16.msra.mxu0 %v1680
    %5021 = vmatprep.subr.bf16.mxu0 %v1685
    %5022 = vmatpush1.bf16.msra.mxu0 %v1684
    %5023 = vmatprep.subr.bf16.mxu0 %v1689
    %5024 = vmatpush1.bf16.msra.mxu0 %v1688
    %5025 = vmatprep.mubr.bf16.mxu0 %v4676
    %5026 = vmatmul.mubr.bf16.gmra.mrb[0].mxu0 %v4675
    %v5027 = vpop.f32.mrb[0].mxu0
    %v5028 = vadd.f32 %v4987, %v5027
    %v5029 = vpop.f32.mrb[0].mxu0
    %v5030 = vadd.f32 %v4989, %v5029
    %v5031 = vpop.f32.mrb[0].mxu0
    %v5032 = vpop.f32.mrb[0].mxu0
    %5033 = vdwg.mxu0
    %v5034 = vmul.f32 %v4946, 0.5
    %v5035 = vmul.f32 %v4948, 0.5
    %v5036 = vmul.f32 %v5028, 0.5
    %v5037 = vmul.f32 %v5030, 0.5
    %v5038 = vtanh.pop %v5034
    %v5039 = vtanh.pop %v5035
    %v5040 = vtanh.pop %v5036
    %v5041 = vtanh.pop %v5037
    %v5042 = vmul.f32 %v5038, 0.5
    %v5043 = vmul.f32 %v5039, 0.5
    %v5044 = vmul.f32 %v5040, 0.5
    %v5045 = vmul.f32 %v5041, 0.5
    %v5046 = vadd.f32 %v5042, 0.5
    %v5047 = vadd.f32 %v5043, 0.5
    %v5048 = vadd.f32 %v5044, 0.5
    %v5049 = vadd.f32 %v5045, 0.5
    %v5050 = vmul.f32 %v5046, %v4475
    %v5051 = vmul.f32 %v5047, %v4476
    %v5052 = vmul.f32 %v5048, %v4477
    %v5053 = vmul.f32 %v5049, %v4478
    %v5054 = vld [vmem:[%s4677 + $0x20] sm:$0xff]
    %v5055 = vld [vmem:[%s4677 + $0x28] sm:$0xff]
    %v5056 = vunpack.c.l.bf16 %v5054
    %v5057 = vunpack.c.h.bf16 %v5054
    %v5058 = vunpack.c.l.bf16 %v5055
    %v5059 = vunpack.c.h.bf16 %v5055
    %5060 = vmatprep.subr.bf16.mxu0 %v2522
    %5061 = vmatpush1.bf16.msra.mxu0 %v2521
    %5062 = vmatprep.subr.bf16.mxu0 %v2526
    %5063 = vmatpush1.bf16.msra.mxu0 %v2525
    %5064 = vmatprep.subr.bf16.mxu0 %v2530
    %5065 = vmatpush1.bf16.msra.mxu0 %v2529
    %5066 = vmatprep.subr.bf16.mxu0 %v2534
    %5067 = vmatpush1.bf16.msra.mxu0 %v2533
    %5068 = vmatprep.subr.bf16.mxu0 %v2538
    %5069 = vmatpush1.bf16.msra.mxu0 %v2537
    %5070 = vmatprep.subr.bf16.mxu0 %v2542
    %5071 = vmatpush1.bf16.msra.mxu0 %v2541
    %5072 = vmatprep.subr.bf16.mxu0 %v2546
    %5073 = vmatpush1.bf16.msra.mxu0 %v2545
    %5074 = vmatprep.subr.bf16.mxu0 %v2550
    %5075 = vmatpush1.bf16.msra.mxu0 %v2549
    %5076 = vmatprep.subr.bf16.mxu0 %v2554
    %5077 = vmatpush1.bf16.msra.mxu0 %v2553
    %5078 = vmatprep.subr.bf16.mxu0 %v2558
    %5079 = vmatpush1.bf16.msra.mxu0 %v2557
    %5080 = vmatprep.subr.bf16.mxu0 %v2562
    %5081 = vmatpush1.bf16.msra.mxu0 %v2561
    %5082 = vmatprep.subr.bf16.mxu0 %v2566
    %5083 = vmatpush1.bf16.msra.mxu0 %v2565
    %5084 = vmatprep.subr.bf16.mxu0 %v2570
    %5085 = vmatpush1.bf16.msra.mxu0 %v2569
    %5086 = vmatprep.subr.bf16.mxu0 %v2574
    %5087 = vmatpush1.bf16.msra.mxu0 %v2573
    %5088 = vmatprep.subr.bf16.mxu0 %v2578
    %5089 = vmatpush1.bf16.msra.mxu0 %v2577
    %5090 = vmatprep.subr.bf16.mxu0 %v2582
    %5091 = vmatpush1.bf16.msra.mxu0 %v2581
    %5092 = vmatprep.mubr.bf16.mxu0 %v4674
    %5093 = vmatmul.mubr.bf16.gmra.mrb[0].mxu0 %v4673
    %v5094 = vpop.f32.mrb[0].mxu0
    %v5095 = vadd.f32 %v5056, %v5094
    %v5096 = vpop.f32.mrb[0].mxu0
    %v5097 = vadd.f32 %v5057, %v5096
    %v5098 = vpop.f32.mrb[0].mxu0
    %v5099 = vpop.f32.mrb[0].mxu0
    %5100 = vdwg.mxu0
    %5101 = vmatprep.subr.bf16.mxu0 %v2586
    %5102 = vmatpush1.bf16.msra.mxu0 %v2585
    %5103 = vmatprep.subr.bf16.mxu0 %v2590
    %5104 = vmatpush1.bf16.msra.mxu0 %v2589
    %5105 = vmatprep.subr.bf16.mxu0 %v2594
    %5106 = vmatpush1.bf16.msra.mxu0 %v2593
    %5107 = vmatprep.subr.bf16.mxu0 %v2598
    %5108 = vmatpush1.bf16.msra.mxu0 %v2597
    %5109 = vmatprep.subr.bf16.mxu0 %v2602
    %5110 = vmatpush1.bf16.msra.mxu0 %v2601
    %5111 = vmatprep.subr.bf16.mxu0 %v2606
    %5112 = vmatpush1.bf16.msra.mxu0 %v2605
    %5113 = vmatprep.subr.bf16.mxu0 %v2610
    %5114 = vmatpush1.bf16.msra.mxu0 %v2609
    %5115 = vmatprep.subr.bf16.mxu0 %v2614
    %5116 = vmatpush1.bf16.msra.mxu0 %v2613
    %5117 = vmatprep.subr.bf16.mxu0 %v2618
    %5118 = vmatpush1.bf16.msra.mxu0 %v2617
    %5119 = vmatprep.subr.bf16.mxu0 %v2622
    %5120 = vmatpush1.bf16.msra.mxu0 %v2621
    %5121 = vmatprep.subr.bf16.mxu0 %v2626
    %5122 = vmatpush1.bf16.msra.mxu0 %v2625
    %5123 = vmatprep.subr.bf16.mxu0 %v2630
    %5124 = vmatpush1.bf16.msra.mxu0 %v2629
    %5125 = vmatprep.subr.bf16.mxu0 %v2634
    %5126 = vmatpush1.bf16.msra.mxu0 %v2633
    %5127 = vmatprep.subr.bf16.mxu0 %v2638
    %5128 = vmatpush1.bf16.msra.mxu0 %v2637
    %5129 = vmatprep.subr.bf16.mxu0 %v2642
    %5130 = vmatpush1.bf16.msra.mxu0 %v2641
    %5131 = vmatprep.subr.bf16.mxu0 %v2646
    %5132 = vmatpush1.bf16.msra.mxu0 %v2645
    %5133 = vmatprep.mubr.bf16.mxu0 %v4676
    %5134 = vmatmul.mubr.bf16.gmra.mrb[0].mxu0 %v4675
    %v5135 = vpop.f32.mrb[0].mxu0
    %v5136 = vadd.f32 %v5095, %v5135
    %v5137 = vpop.f32.mrb[0].mxu0
    %v5138 = vadd.f32 %v5097, %v5137
    %v5139 = vpop.f32.mrb[0].mxu0
    %v5140 = vpop.f32.mrb[0].mxu0
    %5141 = vdwg.mxu0
    %5142 = vmatprep.subr.bf16.mxu0 %v2524
    %5143 = vmatpush1.bf16.msra.mxu0 %v2523
    %5144 = vmatprep.subr.bf16.mxu0 %v2528
    %5145 = vmatpush1.bf16.msra.mxu0 %v2527
    %5146 = vmatprep.subr.bf16.mxu0 %v2532
    %5147 = vmatpush1.bf16.msra.mxu0 %v2531
    %5148 = vmatprep.subr.bf16.mxu0 %v2536
    %5149 = vmatpush1.bf16.msra.mxu0 %v2535
    %5150 = vmatprep.subr.bf16.mxu0 %v2540
    %5151 = vmatpush1.bf16.msra.mxu0 %v2539
    %5152 = vmatprep.subr.bf16.mxu0 %v2544
    %5153 = vmatpush1.bf16.msra.mxu0 %v2543
    %5154 = vmatprep.subr.bf16.mxu0 %v2548
    %5155 = vmatpush1.bf16.msra.mxu0 %v2547
    %5156 = vmatprep.subr.bf16.mxu0 %v2552
    %5157 = vmatpush1.bf16.msra.mxu0 %v2551
    %5158 = vmatprep.subr.bf16.mxu0 %v2556
    %5159 = vmatpush1.bf16.msra.mxu0 %v2555
    %5160 = vmatprep.subr.bf16.mxu0 %v2560
    %5161 = vmatpush1.bf16.msra.mxu0 %v2559
    %5162 = vmatprep.subr.bf16.mxu0 %v2564
    %5163 = vmatpush1.bf16.msra.mxu0 %v2563
    %5164 = vmatprep.subr.bf16.mxu0 %v2568
    %5165 = vmatpush1.bf16.msra.mxu0 %v2567
    %5166 = vmatprep.subr.bf16.mxu0 %v2572
    %5167 = vmatpush1.bf16.msra.mxu0 %v2571
    %5168 = vmatprep.subr.bf16.mxu0 %v2576
    %5169 = vmatpush1.bf16.msra.mxu0 %v2575
    %5170 = vmatprep.subr.bf16.mxu0 %v2580
    %5171 = vmatpush1.bf16.msra.mxu0 %v2579
    %5172 = vmatprep.subr.bf16.mxu0 %v2584
    %5173 = vmatpush1.bf16.msra.mxu0 %v2583
    %5174 = vmatprep.mubr.bf16.mxu0 %v4674
    %5175 = vmatmul.mubr.bf16.gmra.mrb[0].mxu0 %v4673
    %v5176 = vpop.f32.mrb[0].mxu0
    %v5177 = vadd.f32 %v5058, %v5176
    %v5178 = vpop.f32.mrb[0].mxu0
    %v5179 = vadd.f32 %v5059, %v5178
    %v5180 = vpop.f32.mrb[0].mxu0
    %v5181 = vpop.f32.mrb[0].mxu0
    %5182 = vdwg.mxu0
    %5183 = vmatprep.subr.bf16.mxu0 %v2588
    %5184 = vmatpush1.bf16.msra.mxu0 %v2587
    %5185 = vmatprep.subr.bf16.mxu0 %v2592
    %5186 = vmatpush1.bf16.msra.mxu0 %v2591
    %5187 = vmatprep.subr.bf16.mxu0 %v2596
    %5188 = vmatpush1.bf16.msra.mxu0 %v2595
    %5189 = vmatprep.subr.bf16.mxu0 %v2600
    %5190 = vmatpush1.bf16.msra.mxu0 %v2599
    %5191 = vmatprep.subr.bf16.mxu0 %v2604
    %5192 = vmatpush1.bf16.msra.mxu0 %v2603
    %5193 = vmatprep.subr.bf16.mxu0 %v2608
    %5194 = vmatpush1.bf16.msra.mxu0 %v2607
    %5195 = vmatprep.subr.bf16.mxu0 %v2612
    %5196 = vmatpush1.bf16.msra.mxu0 %v2611
    %5197 = vmatprep.subr.bf16.mxu0 %v2616
    %5198 = vmatpush1.bf16.msra.mxu0 %v2615
    %5199 = vmatprep.subr.bf16.mxu0 %v2620
    %5200 = vmatpush1.bf16.msra.mxu0 %v2619
    %5201 = vmatprep.subr.bf16.mxu0 %v2624
    %5202 = vmatpush1.bf16.msra.mxu0 %v2623
    %5203 = vmatprep.subr.bf16.mxu0 %v2628
    %5204 = vmatpush1.bf16.msra.mxu0 %v2627
    %5205 = vmatprep.subr.bf16.mxu0 %v2632
    %5206 = vmatpush1.bf16.msra.mxu0 %v2631
    %5207 = vmatprep.subr.bf16.mxu0 %v2636
    %5208 = vmatpush1.bf16.msra.mxu0 %v2635
    %5209 = vmatprep.subr.bf16.mxu0 %v2640
    %5210 = vmatpush1.bf16.msra.mxu0 %v2639
    %5211 = vmatprep.subr.bf16.mxu0 %v2644
    %5212 = vmatpush1.bf16.msra.mxu0 %v2643
    %5213 = vmatprep.subr.bf16.mxu0 %v2648
    %5214 = vmatpush1.bf16.msra.mxu0 %v2647
    %5215 = vmatprep.mubr.bf16.mxu0 %v4676
    %5216 = vmatmul.mubr.bf16.gmra.mrb[0].mxu0 %v4675
    %v5217 = vpop.f32.mrb[0].mxu0
    %v5218 = vadd.f32 %v5177, %v5217
    %v5219 = vpop.f32.mrb[0].mxu0
    %v5220 = vadd.f32 %v5179, %v5219
    %v5221 = vpop.f32.mrb[0].mxu0
    %v5222 = vpop.f32.mrb[0].mxu0
    %5223 = vdwg.mxu0
    %v5224 = vtanh.pop %v5136
    %v5225 = vtanh.pop %v5138
    %v5226 = vtanh.pop %v5218
    %v5227 = vtanh.pop %v5220
    %v5228 = vmul.f32 %v4860, %v5224
    %v5229 = vmul.f32 %v4861, %v5225
    %v5230 = vmul.f32 %v4862, %v5226
    %v5231 = vmul.f32 %v4863, %v5227
    %v5232 = vadd.f32 %v5050, %v5228
    %v5233 = vadd.f32 %v5051, %v5229
    %v5234 = vadd.f32 %v5052, %v5230
    %v5235 = vadd.f32 %v5053, %v5231
    %v5236 = vld [vmem:[%s4677 + $0x30] sm:$0xff]
    %v5237 = vld [vmem:[%s4677 + $0x38] sm:$0xff]
    %v5238 = vunpack.c.l.bf16 %v5236
    %v5239 = vunpack.c.h.bf16 %v5236
    %v5240 = vunpack.c.l.bf16 %v5237
    %v5241 = vunpack.c.h.bf16 %v5237
    %5242 = vmatprep.subr.bf16.mxu0 %v3473
    %5243 = vmatpush1.bf16.msra.mxu0 %v3472
    %5244 = vmatprep.subr.bf16.mxu0 %v3477
    %5245 = vmatpush1.bf16.msra.mxu0 %v3476
    %5246 = vmatprep.subr.bf16.mxu0 %v3481
    %5247 = vmatpush1.bf16.msra.mxu0 %v3480
    %5248 = vmatprep.subr.bf16.mxu0 %v3485
    %5249 = vmatpush1.bf16.msra.mxu0 %v3484
    %5250 = vmatprep.subr.bf16.mxu0 %v3489
    %5251 = vmatpush1.bf16.msra.mxu0 %v3488
    %5252 = vmatprep.subr.bf16.mxu0 %v3493
    %5253 = vmatpush1.bf16.msra.mxu0 %v3492
    %5254 = vmatprep.subr.bf16.mxu0 %v3497
    %5255 = vmatpush1.bf16.msra.mxu0 %v3496
    %5256 = vmatprep.subr.bf16.mxu0 %v3501
    %5257 = vmatpush1.bf16.msra.mxu0 %v3500
    %5258 = vmatprep.subr.bf16.mxu0 %v3505
    %5259 = vmatpush1.bf16.msra.mxu0 %v3504
    %5260 = vmatprep.subr.bf16.mxu0 %v3509
    %5261 = vmatpush1.bf16.msra.mxu0 %v3508
    %5262 = vmatprep.subr.bf16.mxu0 %v3513
    %5263 = vmatpush1.bf16.msra.mxu0 %v3512
    %5264 = vmatprep.subr.bf16.mxu0 %v3517
    %5265 = vmatpush1.bf16.msra.mxu0 %v3516
    %5266 = vmatprep.subr.bf16.mxu0 %v3521
    %5267 = vmatpush1.bf16.msra.mxu0 %v3520
    %5268 = vmatprep.subr.bf16.mxu0 %v3525
    %5269 = vmatpush1.bf16.msra.mxu0 %v3524
    %5270 = vmatprep.subr.bf16.mxu0 %v3529
    %5271 = vmatpush1.bf16.msra.mxu0 %v3528
    %5272 = vmatprep.subr.bf16.mxu0 %v3533
    %5273 = vmatpush1.bf16.msra.mxu0 %v3532
    %5274 = vmatprep.mubr.bf16.mxu0 %v4674
    %5275 = vmatmul.mubr.bf16.gmra.mrb[0].mxu0 %v4673
    %v5276 = vpop.f32.mrb[0].mxu0
    %v5277 = vadd.f32 %v5238, %v5276
    %v5278 = vpop.f32.mrb[0].mxu0
    %v5279 = vadd.f32 %v5239, %v5278
    %v5280 = vpop.f32.mrb[0].mxu0
    %v5281 = vpop.f32.mrb[0].mxu0
    %5282 = vdwg.mxu0
    %5283 = vmatprep.subr.bf16.mxu0 %v3537
    %5284 = vmatpush1.bf16.msra.mxu0 %v3536
    %5285 = vmatprep.subr.bf16.mxu0 %v3541
    %5286 = vmatpush1.bf16.msra.mxu0 %v3540
    %5287 = vmatprep.subr.bf16.mxu0 %v3545
    %5288 = vmatpush1.bf16.msra.mxu0 %v3544
    %5289 = vmatprep.subr.bf16.mxu0 %v3549
    %5290 = vmatpush1.bf16.msra.mxu0 %v3548
    %5291 = vmatprep.subr.bf16.mxu0 %v3553
    %5292 = vmatpush1.bf16.msra.mxu0 %v3552
    %5293 = vmatprep.subr.bf16.mxu0 %v3557
    %5294 = vmatpush1.bf16.msra.mxu0 %v3556
    %5295 = vmatprep.subr.bf16.mxu0 %v3561
    %5296 = vmatpush1.bf16.msra.mxu0 %v3560
    %5297 = vmatprep.subr.bf16.mxu0 %v3565
    %5298 = vmatpush1.bf16.msra.mxu0 %v3564
    %5299 = vmatprep.subr.bf16.mxu0 %v3569
    %5300 = vmatpush1.bf16.msra.mxu0 %v3568
    %5301 = vmatprep.subr.bf16.mxu0 %v3573
    %5302 = vmatpush1.bf16.msra.mxu0 %v3572
    %5303 = vmatprep.subr.bf16.mxu0 %v3577
    %5304 = vmatpush1.bf16.msra.mxu0 %v3576
    %5305 = vmatprep.subr.bf16.mxu0 %v3581
    %5306 = vmatpush1.bf16.msra.mxu0 %v3580
    %5307 = vmatprep.subr.bf16.mxu0 %v3585
    %5308 = vmatpush1.bf16.msra.mxu0 %v3584
    %5309 = vmatprep.subr.bf16.mxu0 %v3589
    %5310 = vmatpush1.bf16.msra.mxu0 %v3588
    %5311 = vmatprep.subr.bf16.mxu0 %v3593
    %5312 = vmatpush1.bf16.msra.mxu0 %v3592
    %5313 = vmatprep.subr.bf16.mxu0 %v3597
    %5314 = vmatpush1.bf16.msra.mxu0 %v3596
    %5315 = vmatprep.mubr.bf16.mxu0 %v4676
    %5316 = vmatmul.mubr.bf16.gmra.mrb[0].mxu0 %v4675
    %v5317 = vpop.f32.mrb[0].mxu0
    %v5318 = vadd.f32 %v5277, %v5317
    %v5319 = vpop.f32.mrb[0].mxu0
    %v5320 = vadd.f32 %v5279, %v5319
    %v5321 = vpop.f32.mrb[0].mxu0
    %v5322 = vpop.f32.mrb[0].mxu0
    %5323 = vdwg.mxu0
    %5324 = vmatprep.subr.bf16.mxu0 %v3475
    %5325 = vmatpush1.bf16.msra.mxu0 %v3474
    %5326 = vmatprep.subr.bf16.mxu0 %v3479
    %5327 = vmatpush1.bf16.msra.mxu0 %v3478
    %5328 = vmatprep.subr.bf16.mxu0 %v3483
    %5329 = vmatpush1.bf16.msra.mxu0 %v3482
    %5330 = vmatprep.subr.bf16.mxu0 %v3487
    %5331 = vmatpush1.bf16.msra.mxu0 %v3486
    %5332 = vmatprep.subr.bf16.mxu0 %v3491
    %5333 = vmatpush1.bf16.msra.mxu0 %v3490
    %5334 = vmatprep.subr.bf16.mxu0 %v3495
    %5335 = vmatpush1.bf16.msra.mxu0 %v3494
    %5336 = vmatprep.subr.bf16.mxu0 %v3499
    %5337 = vmatpush1.bf16.msra.mxu0 %v3498
    %5338 = vmatprep.subr.bf16.mxu0 %v3503
    %5339 = vmatpush1.bf16.msra.mxu0 %v3502
    %5340 = vmatprep.subr.bf16.mxu0 %v3507
    %5341 = vmatpush1.bf16.msra.mxu0 %v3506
    %5342 = vmatprep.subr.bf16.mxu0 %v3511
    %5343 = vmatpush1.bf16.msra.mxu0 %v3510
    %5344 = vmatprep.subr.bf16.mxu0 %v3515
    %5345 = vmatpush1.bf16.msra.mxu0 %v3514
    %5346 = vmatprep.subr.bf16.mxu0 %v3519
    %5347 = vmatpush1.bf16.msra.mxu0 %v3518
    %5348 = vmatprep.subr.bf16.mxu0 %v3523
    %5349 = vmatpush1.bf16.msra.mxu0 %v3522
    %5350 = vmatprep.subr.bf16.mxu0 %v3527
    %5351 = vmatpush1.bf16.msra.mxu0 %v3526
    %5352 = vmatprep.subr.bf16.mxu0 %v3531
    %5353 = vmatpush1.bf16.msra.mxu0 %v3530
    %5354 = vmatprep.subr.bf16.mxu0 %v3535
    %5355 = vmatpush1.bf16.msra.mxu0 %v3534
    %5356 = vmatprep.mubr.bf16.mxu0 %v4674
    %5357 = vmatmul.mubr.bf16.gmra.mrb[0].mxu0 %v4673
    %v5358 = vpop.f32.mrb[0].mxu0
    %v5359 = vadd.f32 %v5240, %v5358
    %v5360 = vpop.f32.mrb[0].mxu0
    %v5361 = vadd.f32 %v5241, %v5360
    %v5362 = vpop.f32.mrb[0].mxu0
    %v5363 = vpop.f32.mrb[0].mxu0
    %5364 = vdwg.mxu0
    %5365 = vmatprep.subr.bf16.mxu0 %v3539
    %5366 = vmatpush1.bf16.msra.mxu0 %v3538
    %5367 = vmatprep.subr.bf16.mxu0 %v3543
    %5368 = vmatpush1.bf16.msra.mxu0 %v3542
    %5369 = vmatprep.subr.bf16.mxu0 %v3547
    %5370 = vmatpush1.bf16.msra.mxu0 %v3546
    %5371 = vmatprep.subr.bf16.mxu0 %v3551
    %5372 = vmatpush1.bf16.msra.mxu0 %v3550
    %5373 = vmatprep.subr.bf16.mxu0 %v3555
    %5374 = vmatpush1.bf16.msra.mxu0 %v3554
    %5375 = vmatprep.subr.bf16.mxu0 %v3559
    %5376 = vmatpush1.bf16.msra.mxu0 %v3558
    %5377 = vmatprep.subr.bf16.mxu0 %v3563
    %5378 = vmatpush1.bf16.msra.mxu0 %v3562
    %5379 = vmatprep.subr.bf16.mxu0 %v3567
    %5380 = vmatpush1.bf16.msra.mxu0 %v3566
    %5381 = vmatprep.subr.bf16.mxu0 %v3571
    %5382 = vmatpush1.bf16.msra.mxu0 %v3570
    %5383 = vmatprep.subr.bf16.mxu0 %v3575
    %5384 = vmatpush1.bf16.msra.mxu0 %v3574
    %5385 = vmatprep.subr.bf16.mxu0 %v3579
    %5386 = vmatpush1.bf16.msra.mxu0 %v3578
    %5387 = vmatprep.subr.bf16.mxu0 %v3583
    %5388 = vmatpush1.bf16.msra.mxu0 %v3582
    %5389 = vmatprep.subr.bf16.mxu0 %v3587
    %5390 = vmatpush1.bf16.msra.mxu0 %v3586
    %5391 = vmatprep.subr.bf16.mxu0 %v3591
    %5392 = vmatpush1.bf16.msra.mxu0 %v3590
    %5393 = vmatprep.subr.bf16.mxu0 %v3595
    %5394 = vmatpush1.bf16.msra.mxu0 %v3594
    %5395 = vmatprep.subr.bf16.mxu0 %v3599
    %5396 = vmatpush1.bf16.msra.mxu0 %v3598
    %5397 = vmatprep.mubr.bf16.mxu0 %v4676
    %5398 = vmatmul.mubr.bf16.gmra.mrb[0].mxu0 %v4675
    %v5399 = vpop.f32.mrb[0].mxu0
    %v5400 = vadd.f32 %v5359, %v5399
    %v5401 = vpop.f32.mrb[0].mxu0
    %v5402 = vadd.f32 %v5361, %v5401
    %v5403 = vpop.f32.mrb[0].mxu0
    %v5404 = vpop.f32.mrb[0].mxu0
    %5405 = vdwg.mxu0
    %v5406 = vmul.f32 %v5318, 0.5
    %v5407 = vmul.f32 %v5320, 0.5
    %v5408 = vmul.f32 %v5400, 0.5
    %v5409 = vmul.f32 %v5402, 0.5
    %v5410 = vtanh.pop %v5406
    %v5411 = vtanh.pop %v5407
    %v5412 = vtanh.pop %v5408
    %v5413 = vtanh.pop %v5409
    %v5414 = vmul.f32 %v5410, 0.5
    %v5415 = vmul.f32 %v5411, 0.5
    %v5416 = vmul.f32 %v5412, 0.5
    %v5417 = vmul.f32 %v5413, 0.5
    %v5418 = vadd.f32 %v5414, 0.5
    %v5419 = vadd.f32 %v5415, 0.5
    %v5420 = vadd.f32 %v5416, 0.5
    %v5421 = vadd.f32 %v5417, 0.5
    %v5422 = vtanh.pop %v5232
    %v5423 = vtanh.pop %v5233
    %v5424 = vtanh.pop %v5234
    %v5425 = vtanh.pop %v5235
    %v5426 = vmul.f32 %v5418, %v5422
    %v5427 = vmul.f32 %v5419, %v5423
    %v5428 = vmul.f32 %v5420, %v5424
    %v5429 = vmul.f32 %v5421, %v5425
    %v5430 = vpack.c.bf16 %v5426, %v5426
    %v5431 = vpack.c.bf16 %v5427, %v5427
    %v5432 = vpack.c.bf16 %v5428, %v5428
    %v5433 = vpack.c.bf16 %v5429, %v5429
    %s5434 = scalar_lea.vmem [#allocation5], 192
    %v5435 = vld [vmem:[%s5434] sm:$0xff]
    %v5436 = vld [vmem:[%s5434 + $0x8] sm:$0xff]
    %v5437 = vunpack.c.l.bf16 %v5435
    %v5438 = vunpack.c.h.bf16 %v5435
    %v5439 = vunpack.c.l.bf16 %v5436
    %v5440 = vunpack.c.h.bf16 %v5436
    %5441 = vmatprep.subr.bf16.mxu0 %v608
    %5442 = vmatpush1.bf16.msra.mxu0 %v607
    %5443 = vmatprep.subr.bf16.mxu0 %v612
    %5444 = vmatpush1.bf16.msra.mxu0 %v611
    %5445 = vmatprep.subr.bf16.mxu0 %v616
    %5446 = vmatpush1.bf16.msra.mxu0 %v615
    %5447 = vmatprep.subr.bf16.mxu0 %v620
    %5448 = vmatpush1.bf16.msra.mxu0 %v619
    %5449 = vmatprep.subr.bf16.mxu0 %v624
    %5450 = vmatpush1.bf16.msra.mxu0 %v623
    %5451 = vmatprep.subr.bf16.mxu0 %v628
    %5452 = vmatpush1.bf16.msra.mxu0 %v627
    %5453 = vmatprep.subr.bf16.mxu0 %v632
    %5454 = vmatpush1.bf16.msra.mxu0 %v631
    %5455 = vmatprep.subr.bf16.mxu0 %v636
    %5456 = vmatpush1.bf16.msra.mxu0 %v635
    %5457 = vmatprep.subr.bf16.mxu0 %v640
    %5458 = vmatpush1.bf16.msra.mxu0 %v639
    %5459 = vmatprep.subr.bf16.mxu0 %v644
    %5460 = vmatpush1.bf16.msra.mxu0 %v643
    %5461 = vmatprep.subr.bf16.mxu0 %v648
    %5462 = vmatpush1.bf16.msra.mxu0 %v647
    %5463 = vmatprep.subr.bf16.mxu0 %v652
    %5464 = vmatpush1.bf16.msra.mxu0 %v651
    %5465 = vmatprep.subr.bf16.mxu0 %v656
    %5466 = vmatpush1.bf16.msra.mxu0 %v655
    %5467 = vmatprep.subr.bf16.mxu0 %v660
    %5468 = vmatpush1.bf16.msra.mxu0 %v659
    %5469 = vmatprep.subr.bf16.mxu0 %v664
    %5470 = vmatpush1.bf16.msra.mxu0 %v663
    %5471 = vmatprep.subr.bf16.mxu0 %v668
    %5472 = vmatpush1.bf16.msra.mxu0 %v667
    %5473 = vmatprep.mubr.bf16.mxu0 %v5431
    %5474 = vmatmul.mubr.bf16.gmra.mrb[0].mxu0 %v5430
    %v5475 = vpop.f32.mrb[0].mxu0
    %v5476 = vadd.f32 %v5437, %v5475
    %v5477 = vpop.f32.mrb[0].mxu0
    %v5478 = vadd.f32 %v5438, %v5477
    %v5479 = vpop.f32.mrb[0].mxu0
    %v5480 = vpop.f32.mrb[0].mxu0
    %5481 = vdwg.mxu0
    %5482 = vmatprep.subr.bf16.mxu0 %v672
    %5483 = vmatpush1.bf16.msra.mxu0 %v671
    %5484 = vmatprep.subr.bf16.mxu0 %v676
    %5485 = vmatpush1.bf16.msra.mxu0 %v675
    %5486 = vmatprep.subr.bf16.mxu0 %v680
    %5487 = vmatpush1.bf16.msra.mxu0 %v679
    %5488 = vmatprep.subr.bf16.mxu0 %v684
    %5489 = vmatpush1.bf16.msra.mxu0 %v683
    %5490 = vmatprep.subr.bf16.mxu0 %v688
    %5491 = vmatpush1.bf16.msra.mxu0 %v687
    %5492 = vmatprep.subr.bf16.mxu0 %v692
    %5493 = vmatpush1.bf16.msra.mxu0 %v691
    %5494 = vmatprep.subr.bf16.mxu0 %v696
    %5495 = vmatpush1.bf16.msra.mxu0 %v695
    %5496 = vmatprep.subr.bf16.mxu0 %v700
    %5497 = vmatpush1.bf16.msra.mxu0 %v699
    %5498 = vmatprep.subr.bf16.mxu0 %v704
    %5499 = vmatpush1.bf16.msra.mxu0 %v703
    %5500 = vmatprep.subr.bf16.mxu0 %v708
    %5501 = vmatpush1.bf16.msra.mxu0 %v707
    %5502 = vmatprep.subr.bf16.mxu0 %v712
    %5503 = vmatpush1.bf16.msra.mxu0 %v711
    %5504 = vmatprep.subr.bf16.mxu0 %v716
    %5505 = vmatpush1.bf16.msra.mxu0 %v715
    %5506 = vmatprep.subr.bf16.mxu0 %v720
    %5507 = vmatpush1.bf16.msra.mxu0 %v719
    %5508 = vmatprep.subr.bf16.mxu0 %v724
    %5509 = vmatpush1.bf16.msra.mxu0 %v723
    %5510 = vmatprep.subr.bf16.mxu0 %v728
    %5511 = vmatpush1.bf16.msra.mxu0 %v727
    %5512 = vmatprep.subr.bf16.mxu0 %v732
    %5513 = vmatpush1.bf16.msra.mxu0 %v731
    %5514 = vmatprep.mubr.bf16.mxu0 %v5433
    %5515 = vmatmul.mubr.bf16.gmra.mrb[0].mxu0 %v5432
    %v5516 = vpop.f32.mrb[0].mxu0
    %v5517 = vadd.f32 %v5476, %v5516
    %v5518 = vpop.f32.mrb[0].mxu0
    %v5519 = vadd.f32 %v5478, %v5518
    %v5520 = vpop.f32.mrb[0].mxu0
    %v5521 = vpop.f32.mrb[0].mxu0
    %5522 = vdwg.mxu0
    %5523 = vmatprep.subr.bf16.mxu0 %v610
    %5524 = vmatpush1.bf16.msra.mxu0 %v609
    %5525 = vmatprep.subr.bf16.mxu0 %v614
    %5526 = vmatpush1.bf16.msra.mxu0 %v613
    %5527 = vmatprep.subr.bf16.mxu0 %v618
    %5528 = vmatpush1.bf16.msra.mxu0 %v617
    %5529 = vmatprep.subr.bf16.mxu0 %v622
    %5530 = vmatpush1.bf16.msra.mxu0 %v621
    %5531 = vmatprep.subr.bf16.mxu0 %v626
    %5532 = vmatpush1.bf16.msra.mxu0 %v625
    %5533 = vmatprep.subr.bf16.mxu0 %v630
    %5534 = vmatpush1.bf16.msra.mxu0 %v629
    %5535 = vmatprep.subr.bf16.mxu0 %v634
    %5536 = vmatpush1.bf16.msra.mxu0 %v633
    %5537 = vmatprep.subr.bf16.mxu0 %v638
    %5538 = vmatpush1.bf16.msra.mxu0 %v637
    %5539 = vmatprep.subr.bf16.mxu0 %v642
    %5540 = vmatpush1.bf16.msra.mxu0 %v641
    %5541 = vmatprep.subr.bf16.mxu0 %v646
    %5542 = vmatpush1.bf16.msra.mxu0 %v645
    %5543 = vmatprep.subr.bf16.mxu0 %v650
    %5544 = vmatpush1.bf16.msra.mxu0 %v649
    %5545 = vmatprep.subr.bf16.mxu0 %v654
    %5546 = vmatpush1.bf16.msra.mxu0 %v653
    %5547 = vmatprep.subr.bf16.mxu0 %v658
    %5548 = vmatpush1.bf16.msra.mxu0 %v657
    %5549 = vmatprep.subr.bf16.mxu0 %v662
    %5550 = vmatpush1.bf16.msra.mxu0 %v661
    %5551 = vmatprep.subr.bf16.mxu0 %v666
    %5552 = vmatpush1.bf16.msra.mxu0 %v665
    %5553 = vmatprep.subr.bf16.mxu0 %v670
    %5554 = vmatpush1.bf16.msra.mxu0 %v669
    %5555 = vmatprep.mubr.bf16.mxu0 %v5431
    %5556 = vmatmul.mubr.bf16.gmra.mrb[0].mxu0 %v5430
    %v5557 = vpop.f32.mrb[0].mxu0
    %v5558 = vadd.f32 %v5439, %v5557
    %v5559 = vpop.f32.mrb[0].mxu0
    %v5560 = vadd.f32 %v5440, %v5559
    %v5561 = vpop.f32.mrb[0].mxu0
    %v5562 = vpop.f32.mrb[0].mxu0
    %5563 = vdwg.mxu0
    %5564 = vmatprep.subr.bf16.mxu0 %v674
    %5565 = vmatpush1.bf16.msra.mxu0 %v673
    %5566 = vmatprep.subr.bf16.mxu0 %v678
    %5567 = vmatpush1.bf16.msra.mxu0 %v677
    %5568 = vmatprep.subr.bf16.mxu0 %v682
    %5569 = vmatpush1.bf16.msra.mxu0 %v681
    %5570 = vmatprep.subr.bf16.mxu0 %v686
    %5571 = vmatpush1.bf16.msra.mxu0 %v685
    %5572 = vmatprep.subr.bf16.mxu0 %v690
    %5573 = vmatpush1.bf16.msra.mxu0 %v689
    %5574 = vmatprep.subr.bf16.mxu0 %v694
    %5575 = vmatpush1.bf16.msra.mxu0 %v693
    %5576 = vmatprep.subr.bf16.mxu0 %v698
    %5577 = vmatpush1.bf16.msra.mxu0 %v697
    %5578 = vmatprep.subr.bf16.mxu0 %v702
    %5579 = vmatpush1.bf16.msra.mxu0 %v701
    %5580 = vmatprep.subr.bf16.mxu0 %v706
    %5581 = vmatpush1.bf16.msra.mxu0 %v705
    %5582 = vmatprep.subr.bf16.mxu0 %v710
    %5583 = vmatpush1.bf16.msra.mxu0 %v709
    %5584 = vmatprep.subr.bf16.mxu0 %v714
    %5585 = vmatpush1.bf16.msra.mxu0 %v713
    %5586 = vmatprep.subr.bf16.mxu0 %v718
    %5587 = vmatpush1.bf16.msra.mxu0 %v717
    %5588 = vmatprep.subr.bf16.mxu0 %v722
    %5589 = vmatpush1.bf16.msra.mxu0 %v721
    %5590 = vmatprep.subr.bf16.mxu0 %v726
    %5591 = vmatpush1.bf16.msra.mxu0 %v725
    %5592 = vmatprep.subr.bf16.mxu0 %v730
    %5593 = vmatpush1.bf16.msra.mxu0 %v729
    %5594 = vmatprep.subr.bf16.mxu0 %v734
    %5595 = vmatpush1.bf16.msra.mxu0 %v733
    %5596 = vmatprep.mubr.bf16.mxu0 %v5433
    %5597 = vmatmul.mubr.bf16.gmra.mrb[0].mxu0 %v5432
    %v5598 = vpop.f32.mrb[0].mxu0
    %v5599 = vadd.f32 %v5558, %v5598
    %v5600 = vpop.f32.mrb[0].mxu0
    %v5601 = vadd.f32 %v5560, %v5600
    %v5602 = vpop.f32.mrb[0].mxu0
    %v5603 = vpop.f32.mrb[0].mxu0
    %5604 = vdwg.mxu0
    %v5605 = vmul.f32 %v5517, 0.5
    %v5606 = vmul.f32 %v5519, 0.5
    %v5607 = vmul.f32 %v5599, 0.5
    %v5608 = vmul.f32 %v5601, 0.5
    %v5609 = vtanh.pop %v5605
    %v5610 = vtanh.pop %v5606
    %v5611 = vtanh.pop %v5607
    %v5612 = vtanh.pop %v5608
    %v5613 = vmul.f32 %v5609, 0.5
    %v5614 = vmul.f32 %v5610, 0.5
    %v5615 = vmul.f32 %v5611, 0.5
    %v5616 = vmul.f32 %v5612, 0.5
    %v5617 = vadd.f32 %v5613, 0.5
    %v5618 = vadd.f32 %v5614, 0.5
    %v5619 = vadd.f32 %v5615, 0.5
    %v5620 = vadd.f32 %v5616, 0.5
    %v5621 = vld [vmem:[%s5434 + $0x10] sm:$0xff]
    %v5622 = vld [vmem:[%s5434 + $0x18] sm:$0xff]
    %v5623 = vunpack.c.l.bf16 %v5621
    %v5624 = vunpack.c.h.bf16 %v5621
    %v5625 = vunpack.c.l.bf16 %v5622
    %v5626 = vunpack.c.h.bf16 %v5622
    %5627 = vmatprep.subr.bf16.mxu0 %v1563
    %5628 = vmatpush1.bf16.msra.mxu0 %v1562
    %5629 = vmatprep.subr.bf16.mxu0 %v1567
    %5630 = vmatpush1.bf16.msra.mxu0 %v1566
    %5631 = vmatprep.subr.bf16.mxu0 %v1571
    %5632 = vmatpush1.bf16.msra.mxu0 %v1570
    %5633 = vmatprep.subr.bf16.mxu0 %v1575
    %5634 = vmatpush1.bf16.msra.mxu0 %v1574
    %5635 = vmatprep.subr.bf16.mxu0 %v1579
    %5636 = vmatpush1.bf16.msra.mxu0 %v1578
    %5637 = vmatprep.subr.bf16.mxu0 %v1583
    %5638 = vmatpush1.bf16.msra.mxu0 %v1582
    %5639 = vmatprep.subr.bf16.mxu0 %v1587
    %5640 = vmatpush1.bf16.msra.mxu0 %v1586
    %5641 = vmatprep.subr.bf16.mxu0 %v1591
    %5642 = vmatpush1.bf16.msra.mxu0 %v1590
    %5643 = vmatprep.subr.bf16.mxu0 %v1595
    %5644 = vmatpush1.bf16.msra.mxu0 %v1594
    %5645 = vmatprep.subr.bf16.mxu0 %v1599
    %5646 = vmatpush1.bf16.msra.mxu0 %v1598
    %5647 = vmatprep.subr.bf16.mxu0 %v1603
    %5648 = vmatpush1.bf16.msra.mxu0 %v1602
    %5649 = vmatprep.subr.bf16.mxu0 %v1607
    %5650 = vmatpush1.bf16.msra.mxu0 %v1606
    %5651 = vmatprep.subr.bf16.mxu0 %v1611
    %5652 = vmatpush1.bf16.msra.mxu0 %v1610
    %5653 = vmatprep.subr.bf16.mxu0 %v1615
    %5654 = vmatpush1.bf16.msra.mxu0 %v1614
    %5655 = vmatprep.subr.bf16.mxu0 %v1619
    %5656 = vmatpush1.bf16.msra.mxu0 %v1618
    %5657 = vmatprep.subr.bf16.mxu0 %v1623
    %5658 = vmatpush1.bf16.msra.mxu0 %v1622
    %5659 = vmatprep.mubr.bf16.mxu0 %v5431
    %5660 = vmatmul.mubr.bf16.gmra.mrb[0].mxu0 %v5430
    %v5661 = vpop.f32.mrb[0].mxu0
    %v5662 = vadd.f32 %v5623, %v5661
    %v5663 = vpop.f32.mrb[0].mxu0
    %v5664 = vadd.f32 %v5624, %v5663
    %v5665 = vpop.f32.mrb[0].mxu0
    %v5666 = vpop.f32.mrb[0].mxu0
    %5667 = vdwg.mxu0
    %5668 = vmatprep.subr.bf16.mxu0 %v1627
    %5669 = vmatpush1.bf16.msra.mxu0 %v1626
    %5670 = vmatprep.subr.bf16.mxu0 %v1631
    %5671 = vmatpush1.bf16.msra.mxu0 %v1630
    %5672 = vmatprep.subr.bf16.mxu0 %v1635
    %5673 = vmatpush1.bf16.msra.mxu0 %v1634
    %5674 = vmatprep.subr.bf16.mxu0 %v1639
    %5675 = vmatpush1.bf16.msra.mxu0 %v1638
    %5676 = vmatprep.subr.bf16.mxu0 %v1643
    %5677 = vmatpush1.bf16.msra.mxu0 %v1642
    %5678 = vmatprep.subr.bf16.mxu0 %v1647
    %5679 = vmatpush1.bf16.msra.mxu0 %v1646
    %5680 = vmatprep.subr.bf16.mxu0 %v1651
    %5681 = vmatpush1.bf16.msra.mxu0 %v1650
    %5682 = vmatprep.subr.bf16.mxu0 %v1655
    %5683 = vmatpush1.bf16.msra.mxu0 %v1654
    %5684 = vmatprep.subr.bf16.mxu0 %v1659
    %5685 = vmatpush1.bf16.msra.mxu0 %v1658
    %5686 = vmatprep.subr.bf16.mxu0 %v1663
    %5687 = vmatpush1.bf16.msra.mxu0 %v1662
    %5688 = vmatprep.subr.bf16.mxu0 %v1667
    %5689 = vmatpush1.bf16.msra.mxu0 %v1666
    %5690 = vmatprep.subr.bf16.mxu0 %v1671
    %5691 = vmatpush1.bf16.msra.mxu0 %v1670
    %5692 = vmatprep.subr.bf16.mxu0 %v1675
    %5693 = vmatpush1.bf16.msra.mxu0 %v1674
    %5694 = vmatprep.subr.bf16.mxu0 %v1679
    %5695 = vmatpush1.bf16.msra.mxu0 %v1678
    %5696 = vmatprep.subr.bf16.mxu0 %v1683
    %5697 = vmatpush1.bf16.msra.mxu0 %v1682
    %5698 = vmatprep.subr.bf16.mxu0 %v1687
    %5699 = vmatpush1.bf16.msra.mxu0 %v1686
    %5700 = vmatprep.mubr.bf16.mxu0 %v5433
    %5701 = vmatmul.mubr.bf16.gmra.mrb[0].mxu0 %v5432
    %v5702 = vpop.f32.mrb[0].mxu0
    %v5703 = vadd.f32 %v5662, %v5702
    %v5704 = vpop.f32.mrb[0].mxu0
    %v5705 = vadd.f32 %v5664, %v5704
    %v5706 = vpop.f32.mrb[0].mxu0
    %v5707 = vpop.f32.mrb[0].mxu0
    %5708 = vdwg.mxu0
    %5709 = vmatprep.subr.bf16.mxu0 %v1565
    %5710 = vmatpush1.bf16.msra.mxu0 %v1564
    %5711 = vmatprep.subr.bf16.mxu0 %v1569
    %5712 = vmatpush1.bf16.msra.mxu0 %v1568
    %5713 = vmatprep.subr.bf16.mxu0 %v1573
    %5714 = vmatpush1.bf16.msra.mxu0 %v1572
    %5715 = vmatprep.subr.bf16.mxu0 %v1577
    %5716 = vmatpush1.bf16.msra.mxu0 %v1576
    %5717 = vmatprep.subr.bf16.mxu0 %v1581
    %5718 = vmatpush1.bf16.msra.mxu0 %v1580
    %5719 = vmatprep.subr.bf16.mxu0 %v1585
    %5720 = vmatpush1.bf16.msra.mxu0 %v1584
    %5721 = vmatprep.subr.bf16.mxu0 %v1589
    %5722 = vmatpush1.bf16.msra.mxu0 %v1588
    %5723 = vmatprep.subr.bf16.mxu0 %v1593
    %5724 = vmatpush1.bf16.msra.mxu0 %v1592
    %5725 = vmatprep.subr.bf16.mxu0 %v1597
    %5726 = vmatpush1.bf16.msra.mxu0 %v1596
    %5727 = vmatprep.subr.bf16.mxu0 %v1601
    %5728 = vmatpush1.bf16.msra.mxu0 %v1600
    %5729 = vmatprep.subr.bf16.mxu0 %v1605
    %5730 = vmatpush1.bf16.msra.mxu0 %v1604
    %5731 = vmatprep.subr.bf16.mxu0 %v1609
    %5732 = vmatpush1.bf16.msra.mxu0 %v1608
    %5733 = vmatprep.subr.bf16.mxu0 %v1613
    %5734 = vmatpush1.bf16.msra.mxu0 %v1612
    %5735 = vmatprep.subr.bf16.mxu0 %v1617
    %5736 = vmatpush1.bf16.msra.mxu0 %v1616
    %5737 = vmatprep.subr.bf16.mxu0 %v1621
    %5738 = vmatpush1.bf16.msra.mxu0 %v1620
    %5739 = vmatprep.subr.bf16.mxu0 %v1625
    %5740 = vmatpush1.bf16.msra.mxu0 %v1624
    %5741 = vmatprep.mubr.bf16.mxu0 %v5431
    %5742 = vmatmul.mubr.bf16.gmra.mrb[0].mxu0 %v5430
    %v5743 = vpop.f32.mrb[0].mxu0
    %v5744 = vadd.f32 %v5625, %v5743
    %v5745 = vpop.f32.mrb[0].mxu0
    %v5746 = vadd.f32 %v5626, %v5745
    %v5747 = vpop.f32.mrb[0].mxu0
    %v5748 = vpop.f32.mrb[0].mxu0
    %5749 = vdwg.mxu0
    %5750 = vmatprep.subr.bf16.mxu0 %v1629
    %5751 = vmatpush1.bf16.msra.mxu0 %v1628
    %5752 = vmatprep.subr.bf16.mxu0 %v1633
    %5753 = vmatpush1.bf16.msra.mxu0 %v1632
    %5754 = vmatprep.subr.bf16.mxu0 %v1637
    %5755 = vmatpush1.bf16.msra.mxu0 %v1636
    %5756 = vmatprep.subr.bf16.mxu0 %v1641
    %5757 = vmatpush1.bf16.msra.mxu0 %v1640
    %5758 = vmatprep.subr.bf16.mxu0 %v1645
    %5759 = vmatpush1.bf16.msra.mxu0 %v1644
    %5760 = vmatprep.subr.bf16.mxu0 %v1649
    %5761 = vmatpush1.bf16.msra.mxu0 %v1648
    %5762 = vmatprep.subr.bf16.mxu0 %v1653
    %5763 = vmatpush1.bf16.msra.mxu0 %v1652
    %5764 = vmatprep.subr.bf16.mxu0 %v1657
    %5765 = vmatpush1.bf16.msra.mxu0 %v1656
    %5766 = vmatprep.subr.bf16.mxu0 %v1661
    %5767 = vmatpush1.bf16.msra.mxu0 %v1660
    %5768 = vmatprep.subr.bf16.mxu0 %v1665
    %5769 = vmatpush1.bf16.msra.mxu0 %v1664
    %5770 = vmatprep.subr.bf16.mxu0 %v1669
    %5771 = vmatpush1.bf16.msra.mxu0 %v1668
    %5772 = vmatprep.subr.bf16.mxu0 %v1673
    %5773 = vmatpush1.bf16.msra.mxu0 %v1672
    %5774 = vmatprep.subr.bf16.mxu0 %v1677
    %5775 = vmatpush1.bf16.msra.mxu0 %v1676
    %5776 = vmatprep.subr.bf16.mxu0 %v1681
    %5777 = vmatpush1.bf16.msra.mxu0 %v1680
    %5778 = vmatprep.subr.bf16.mxu0 %v1685
    %5779 = vmatpush1.bf16.msra.mxu0 %v1684
    %5780 = vmatprep.subr.bf16.mxu0 %v1689
    %5781 = vmatpush1.bf16.msra.mxu0 %v1688
    %5782 = vmatprep.mubr.bf16.mxu0 %v5433
    %5783 = vmatmul.mubr.bf16.gmra.mrb[0].mxu0 %v5432
    %v5784 = vpop.f32.mrb[0].mxu0
    %v5785 = vadd.f32 %v5744, %v5784
    %v5786 = vpop.f32.mrb[0].mxu0
    %v5787 = vadd.f32 %v5746, %v5786
    %v5788 = vpop.f32.mrb[0].mxu0
    %v5789 = vpop.f32.mrb[0].mxu0
    %5790 = vdwg.mxu0
    %v5791 = vmul.f32 %v5703, 0.5
    %v5792 = vmul.f32 %v5705, 0.5
    %v5793 = vmul.f32 %v5785, 0.5
    %v5794 = vmul.f32 %v5787, 0.5
    %v5795 = vtanh.pop %v5791
    %v5796 = vtanh.pop %v5792
    %v5797 = vtanh.pop %v5793
    %v5798 = vtanh.pop %v5794
    %v5799 = vmul.f32 %v5795, 0.5
    %v5800 = vmul.f32 %v5796, 0.5
    %v5801 = vmul.f32 %v5797, 0.5
    %v5802 = vmul.f32 %v5798, 0.5
    %v5803 = vadd.f32 %v5799, 0.5
    %v5804 = vadd.f32 %v5800, 0.5
    %v5805 = vadd.f32 %v5801, 0.5
    %v5806 = vadd.f32 %v5802, 0.5
    %v5807 = vmul.f32 %v5803, %v5232
    %v5808 = vmul.f32 %v5804, %v5233
    %v5809 = vmul.f32 %v5805, %v5234
    %v5810 = vmul.f32 %v5806, %v5235
    %v5811 = vld [vmem:[%s5434 + $0x20] sm:$0xff]
    %v5812 = vld [vmem:[%s5434 + $0x28] sm:$0xff]
    %v5813 = vunpack.c.l.bf16 %v5811
    %v5814 = vunpack.c.h.bf16 %v5811
    %v5815 = vunpack.c.l.bf16 %v5812
    %v5816 = vunpack.c.h.bf16 %v5812
    %5817 = vmatprep.subr.bf16.mxu0 %v2522
    %5818 = vmatpush1.bf16.msra.mxu0 %v2521
    %5819 = vmatprep.subr.bf16.mxu0 %v2526
    %5820 = vmatpush1.bf16.msra.mxu0 %v2525
    %5821 = vmatprep.subr.bf16.mxu0 %v2530
    %5822 = vmatpush1.bf16.msra.mxu0 %v2529
    %5823 = vmatprep.subr.bf16.mxu0 %v2534
    %5824 = vmatpush1.bf16.msra.mxu0 %v2533
    %5825 = vmatprep.subr.bf16.mxu0 %v2538
    %5826 = vmatpush1.bf16.msra.mxu0 %v2537
    %5827 = vmatprep.subr.bf16.mxu0 %v2542
    %5828 = vmatpush1.bf16.msra.mxu0 %v2541
    %5829 = vmatprep.subr.bf16.mxu0 %v2546
    %5830 = vmatpush1.bf16.msra.mxu0 %v2545
    %5831 = vmatprep.subr.bf16.mxu0 %v2550
    %5832 = vmatpush1.bf16.msra.mxu0 %v2549
    %5833 = vmatprep.subr.bf16.mxu0 %v2554
    %5834 = vmatpush1.bf16.msra.mxu0 %v2553
    %5835 = vmatprep.subr.bf16.mxu0 %v2558
    %5836 = vmatpush1.bf16.msra.mxu0 %v2557
    %5837 = vmatprep.subr.bf16.mxu0 %v2562
    %5838 = vmatpush1.bf16.msra.mxu0 %v2561
    %5839 = vmatprep.subr.bf16.mxu0 %v2566
    %5840 = vmatpush1.bf16.msra.mxu0 %v2565
    %5841 = vmatprep.subr.bf16.mxu0 %v2570
    %5842 = vmatpush1.bf16.msra.mxu0 %v2569
    %5843 = vmatprep.subr.bf16.mxu0 %v2574
    %5844 = vmatpush1.bf16.msra.mxu0 %v2573
    %5845 = vmatprep.subr.bf16.mxu0 %v2578
    %5846 = vmatpush1.bf16.msra.mxu0 %v2577
    %5847 = vmatprep.subr.bf16.mxu0 %v2582
    %5848 = vmatpush1.bf16.msra.mxu0 %v2581
    %5849 = vmatprep.mubr.bf16.mxu0 %v5431
    %5850 = vmatmul.mubr.bf16.gmra.mrb[0].mxu0 %v5430
    %v5851 = vpop.f32.mrb[0].mxu0
    %v5852 = vadd.f32 %v5813, %v5851
    %v5853 = vpop.f32.mrb[0].mxu0
    %v5854 = vadd.f32 %v5814, %v5853
    %v5855 = vpop.f32.mrb[0].mxu0
    %v5856 = vpop.f32.mrb[0].mxu0
    %5857 = vdwg.mxu0
    %5858 = vmatprep.subr.bf16.mxu0 %v2586
    %5859 = vmatpush1.bf16.msra.mxu0 %v2585
    %5860 = vmatprep.subr.bf16.mxu0 %v2590
    %5861 = vmatpush1.bf16.msra.mxu0 %v2589
    %5862 = vmatprep.subr.bf16.mxu0 %v2594
    %5863 = vmatpush1.bf16.msra.mxu0 %v2593
    %5864 = vmatprep.subr.bf16.mxu0 %v2598
    %5865 = vmatpush1.bf16.msra.mxu0 %v2597
    %5866 = vmatprep.subr.bf16.mxu0 %v2602
    %5867 = vmatpush1.bf16.msra.mxu0 %v2601
    %5868 = vmatprep.subr.bf16.mxu0 %v2606
    %5869 = vmatpush1.bf16.msra.mxu0 %v2605
    %5870 = vmatprep.subr.bf16.mxu0 %v2610
    %5871 = vmatpush1.bf16.msra.mxu0 %v2609
    %5872 = vmatprep.subr.bf16.mxu0 %v2614
    %5873 = vmatpush1.bf16.msra.mxu0 %v2613
    %5874 = vmatprep.subr.bf16.mxu0 %v2618
    %5875 = vmatpush1.bf16.msra.mxu0 %v2617
    %5876 = vmatprep.subr.bf16.mxu0 %v2622
    %5877 = vmatpush1.bf16.msra.mxu0 %v2621
    %5878 = vmatprep.subr.bf16.mxu0 %v2626
    %5879 = vmatpush1.bf16.msra.mxu0 %v2625
    %5880 = vmatprep.subr.bf16.mxu0 %v2630
    %5881 = vmatpush1.bf16.msra.mxu0 %v2629
    %5882 = vmatprep.subr.bf16.mxu0 %v2634
    %5883 = vmatpush1.bf16.msra.mxu0 %v2633
    %5884 = vmatprep.subr.bf16.mxu0 %v2638
    %5885 = vmatpush1.bf16.msra.mxu0 %v2637
    %5886 = vmatprep.subr.bf16.mxu0 %v2642
    %5887 = vmatpush1.bf16.msra.mxu0 %v2641
    %5888 = vmatprep.subr.bf16.mxu0 %v2646
    %5889 = vmatpush1.bf16.msra.mxu0 %v2645
    %5890 = vmatprep.mubr.bf16.mxu0 %v5433
    %5891 = vmatmul.mubr.bf16.gmra.mrb[0].mxu0 %v5432
    %v5892 = vpop.f32.mrb[0].mxu0
    %v5893 = vadd.f32 %v5852, %v5892
    %v5894 = vpop.f32.mrb[0].mxu0
    %v5895 = vadd.f32 %v5854, %v5894
    %v5896 = vpop.f32.mrb[0].mxu0
    %v5897 = vpop.f32.mrb[0].mxu0
    %5898 = vdwg.mxu0
    %5899 = vmatprep.subr.bf16.mxu0 %v2524
    %5900 = vmatpush1.bf16.msra.mxu0 %v2523
    %5901 = vmatprep.subr.bf16.mxu0 %v2528
    %5902 = vmatpush1.bf16.msra.mxu0 %v2527
    %5903 = vmatprep.subr.bf16.mxu0 %v2532
    %5904 = vmatpush1.bf16.msra.mxu0 %v2531
    %5905 = vmatprep.subr.bf16.mxu0 %v2536
    %5906 = vmatpush1.bf16.msra.mxu0 %v2535
    %5907 = vmatprep.subr.bf16.mxu0 %v2540
    %5908 = vmatpush1.bf16.msra.mxu0 %v2539
    %5909 = vmatprep.subr.bf16.mxu0 %v2544
    %5910 = vmatpush1.bf16.msra.mxu0 %v2543
    %5911 = vmatprep.subr.bf16.mxu0 %v2548
    %5912 = vmatpush1.bf16.msra.mxu0 %v2547
    %5913 = vmatprep.subr.bf16.mxu0 %v2552
    %5914 = vmatpush1.bf16.msra.mxu0 %v2551
    %5915 = vmatprep.subr.bf16.mxu0 %v2556
    %5916 = vmatpush1.bf16.msra.mxu0 %v2555
    %5917 = vmatprep.subr.bf16.mxu0 %v2560
    %5918 = vmatpush1.bf16.msra.mxu0 %v2559
    %5919 = vmatprep.subr.bf16.mxu0 %v2564
    %5920 = vmatpush1.bf16.msra.mxu0 %v2563
    %5921 = vmatprep.subr.bf16.mxu0 %v2568
    %5922 = vmatpush1.bf16.msra.mxu0 %v2567
    %5923 = vmatprep.subr.bf16.mxu0 %v2572
    %5924 = vmatpush1.bf16.msra.mxu0 %v2571
    %5925 = vmatprep.subr.bf16.mxu0 %v2576
    %5926 = vmatpush1.bf16.msra.mxu0 %v2575
    %5927 = vmatprep.subr.bf16.mxu0 %v2580
    %5928 = vmatpush1.bf16.msra.mxu0 %v2579
    %5929 = vmatprep.subr.bf16.mxu0 %v2584
    %5930 = vmatpush1.bf16.msra.mxu0 %v2583
    %5931 = vmatprep.mubr.bf16.mxu0 %v5431
    %5932 = vmatmul.mubr.bf16.gmra.mrb[0].mxu0 %v5430
    %v5933 = vpop.f32.mrb[0].mxu0
    %v5934 = vadd.f32 %v5815, %v5933
    %v5935 = vpop.f32.mrb[0].mxu0
    %v5936 = vadd.f32 %v5816, %v5935
    %v5937 = vpop.f32.mrb[0].mxu0
    %v5938 = vpop.f32.mrb[0].mxu0
    %5939 = vdwg.mxu0
    %5940 = vmatprep.subr.bf16.mxu0 %v2588
    %5941 = vmatpush1.bf16.msra.mxu0 %v2587
    %5942 = vmatprep.subr.bf16.mxu0 %v2592
    %5943 = vmatpush1.bf16.msra.mxu0 %v2591
    %5944 = vmatprep.subr.bf16.mxu0 %v2596
    %5945 = vmatpush1.bf16.msra.mxu0 %v2595
    %5946 = vmatprep.subr.bf16.mxu0 %v2600
    %5947 = vmatpush1.bf16.msra.mxu0 %v2599
    %5948 = vmatprep.subr.bf16.mxu0 %v2604
    %5949 = vmatpush1.bf16.msra.mxu0 %v2603
    %5950 = vmatprep.subr.bf16.mxu0 %v2608
    %5951 = vmatpush1.bf16.msra.mxu0 %v2607
    %5952 = vmatprep.subr.bf16.mxu0 %v2612
    %5953 = vmatpush1.bf16.msra.mxu0 %v2611
    %5954 = vmatprep.subr.bf16.mxu0 %v2616
    %5955 = vmatpush1.bf16.msra.mxu0 %v2615
    %5956 = vmatprep.subr.bf16.mxu0 %v2620
    %5957 = vmatpush1.bf16.msra.mxu0 %v2619
    %5958 = vmatprep.subr.bf16.mxu0 %v2624
    %5959 = vmatpush1.bf16.msra.mxu0 %v2623
    %5960 = vmatprep.subr.bf16.mxu0 %v2628
    %5961 = vmatpush1.bf16.msra.mxu0 %v2627
    %5962 = vmatprep.subr.bf16.mxu0 %v2632
    %5963 = vmatpush1.bf16.msra.mxu0 %v2631
    %5964 = vmatprep.subr.bf16.mxu0 %v2636
    %5965 = vmatpush1.bf16.msra.mxu0 %v2635
    %5966 = vmatprep.subr.bf16.mxu0 %v2640
    %5967 = vmatpush1.bf16.msra.mxu0 %v2639
    %5968 = vmatprep.subr.bf16.mxu0 %v2644
    %5969 = vmatpush1.bf16.msra.mxu0 %v2643
    %5970 = vmatprep.subr.bf16.mxu0 %v2648
    %5971 = vmatpush1.bf16.msra.mxu0 %v2647
    %5972 = vmatprep.mubr.bf16.mxu0 %v5433
    %5973 = vmatmul.mubr.bf16.gmra.mrb[0].mxu0 %v5432
    %v5974 = vpop.f32.mrb[0].mxu0
    %v5975 = vadd.f32 %v5934, %v5974
    %v5976 = vpop.f32.mrb[0].mxu0
    %v5977 = vadd.f32 %v5936, %v5976
    %v5978 = vpop.f32.mrb[0].mxu0
    %v5979 = vpop.f32.mrb[0].mxu0
    %5980 = vdwg.mxu0
    %v5981 = vtanh.pop %v5893
    %v5982 = vtanh.pop %v5895
    %v5983 = vtanh.pop %v5975
    %v5984 = vtanh.pop %v5977
    %v5985 = vmul.f32 %v5617, %v5981
    %v5986 = vmul.f32 %v5618, %v5982
    %v5987 = vmul.f32 %v5619, %v5983
    %v5988 = vmul.f32 %v5620, %v5984
    %v5989 = vadd.f32 %v5807, %v5985
    %v5990 = vadd.f32 %v5808, %v5986
    %v5991 = vadd.f32 %v5809, %v5987
    %v5992 = vadd.f32 %v5810, %v5988
    %v5993 = vld [vmem:[%s5434 + $0x30] sm:$0xff]
    %v5994 = vld [vmem:[%s5434 + $0x38] sm:$0xff]
    %v5995 = vunpack.c.l.bf16 %v5993
    %v5996 = vunpack.c.h.bf16 %v5993
    %v5997 = vunpack.c.l.bf16 %v5994
    %v5998 = vunpack.c.h.bf16 %v5994
    %5999 = vmatprep.subr.bf16.mxu0 %v3473
    %6000 = vmatpush1.bf16.msra.mxu0 %v3472
    %6001 = vmatprep.subr.bf16.mxu0 %v3477
    %6002 = vmatpush1.bf16.msra.mxu0 %v3476
    %6003 = vmatprep.subr.bf16.mxu0 %v3481
    %6004 = vmatpush1.bf16.msra.mxu0 %v3480
    %6005 = vmatprep.subr.bf16.mxu0 %v3485
    %6006 = vmatpush1.bf16.msra.mxu0 %v3484
    %6007 = vmatprep.subr.bf16.mxu0 %v3489
    %6008 = vmatpush1.bf16.msra.mxu0 %v3488
    %6009 = vmatprep.subr.bf16.mxu0 %v3493
    %6010 = vmatpush1.bf16.msra.mxu0 %v3492
    %6011 = vmatprep.subr.bf16.mxu0 %v3497
    %6012 = vmatpush1.bf16.msra.mxu0 %v3496
    %6013 = vmatprep.subr.bf16.mxu0 %v3501
    %6014 = vmatpush1.bf16.msra.mxu0 %v3500
    %6015 = vmatprep.subr.bf16.mxu0 %v3505
    %6016 = vmatpush1.bf16.msra.mxu0 %v3504
    %6017 = vmatprep.subr.bf16.mxu0 %v3509
    %6018 = vmatpush1.bf16.msra.mxu0 %v3508
    %6019 = vmatprep.subr.bf16.mxu0 %v3513
    %6020 = vmatpush1.bf16.msra.mxu0 %v3512
    %6021 = vmatprep.subr.bf16.mxu0 %v3517
    %6022 = vmatpush1.bf16.msra.mxu0 %v3516
    %6023 = vmatprep.subr.bf16.mxu0 %v3521
    %6024 = vmatpush1.bf16.msra.mxu0 %v3520
    %6025 = vmatprep.subr.bf16.mxu0 %v3525
    %6026 = vmatpush1.bf16.msra.mxu0 %v3524
    %6027 = vmatprep.subr.bf16.mxu0 %v3529
    %6028 = vmatpush1.bf16.msra.mxu0 %v3528
    %6029 = vmatprep.subr.bf16.mxu0 %v3533
    %6030 = vmatpush1.bf16.msra.mxu0 %v3532
    %6031 = vmatprep.mubr.bf16.mxu0 %v5431
    %6032 = vmatmul.mubr.bf16.gmra.mrb[0].mxu0 %v5430
    %v6033 = vpop.f32.mrb[0].mxu0
    %v6034 = vadd.f32 %v5995, %v6033
    %v6035 = vpop.f32.mrb[0].mxu0
    %v6036 = vadd.f32 %v5996, %v6035
    %v6037 = vpop.f32.mrb[0].mxu0
    %v6038 = vpop.f32.mrb[0].mxu0
    %6039 = vdwg.mxu0
    %6040 = vmatprep.subr.bf16.mxu0 %v3537
    %6041 = vmatpush1.bf16.msra.mxu0 %v3536
    %6042 = vmatprep.subr.bf16.mxu0 %v3541
    %6043 = vmatpush1.bf16.msra.mxu0 %v3540
    %6044 = vmatprep.subr.bf16.mxu0 %v3545
    %6045 = vmatpush1.bf16.msra.mxu0 %v3544
    %6046 = vmatprep.subr.bf16.mxu0 %v3549
    %6047 = vmatpush1.bf16.msra.mxu0 %v3548
    %6048 = vmatprep.subr.bf16.mxu0 %v3553
    %6049 = vmatpush1.bf16.msra.mxu0 %v3552
    %6050 = vmatprep.subr.bf16.mxu0 %v3557
    %6051 = vmatpush1.bf16.msra.mxu0 %v3556
    %6052 = vmatprep.subr.bf16.mxu0 %v3561
    %6053 = vmatpush1.bf16.msra.mxu0 %v3560
    %6054 = vmatprep.subr.bf16.mxu0 %v3565
    %6055 = vmatpush1.bf16.msra.mxu0 %v3564
    %6056 = vmatprep.subr.bf16.mxu0 %v3569
    %6057 = vmatpush1.bf16.msra.mxu0 %v3568
    %6058 = vmatprep.subr.bf16.mxu0 %v3573
    %6059 = vmatpush1.bf16.msra.mxu0 %v3572
    %6060 = vmatprep.subr.bf16.mxu0 %v3577
    %6061 = vmatpush1.bf16.msra.mxu0 %v3576
    %6062 = vmatprep.subr.bf16.mxu0 %v3581
    %6063 = vmatpush1.bf16.msra.mxu0 %v3580
    %6064 = vmatprep.subr.bf16.mxu0 %v3585
    %6065 = vmatpush1.bf16.msra.mxu0 %v3584
    %6066 = vmatprep.subr.bf16.mxu0 %v3589
    %6067 = vmatpush1.bf16.msra.mxu0 %v3588
    %6068 = vmatprep.subr.bf16.mxu0 %v3593
    %6069 = vmatpush1.bf16.msra.mxu0 %v3592
    %6070 = vmatprep.subr.bf16.mxu0 %v3597
    %6071 = vmatpush1.bf16.msra.mxu0 %v3596
    %6072 = vmatprep.mubr.bf16.mxu0 %v5433
    %6073 = vmatmul.mubr.bf16.gmra.mrb[0].mxu0 %v5432
    %v6074 = vpop.f32.mrb[0].mxu0
    %v6075 = vadd.f32 %v6034, %v6074
    %v6076 = vpop.f32.mrb[0].mxu0
    %v6077 = vadd.f32 %v6036, %v6076
    %v6078 = vpop.f32.mrb[0].mxu0
    %v6079 = vpop.f32.mrb[0].mxu0
    %6080 = vdwg.mxu0
    %6081 = vmatprep.subr.bf16.mxu0 %v3475
    %6082 = vmatpush1.bf16.msra.mxu0 %v3474
    %6083 = vmatprep.subr.bf16.mxu0 %v3479
    %6084 = vmatpush1.bf16.msra.mxu0 %v3478
    %6085 = vmatprep.subr.bf16.mxu0 %v3483
    %6086 = vmatpush1.bf16.msra.mxu0 %v3482
    %6087 = vmatprep.subr.bf16.mxu0 %v3487
    %6088 = vmatpush1.bf16.msra.mxu0 %v3486
    %6089 = vmatprep.subr.bf16.mxu0 %v3491
    %6090 = vmatpush1.bf16.msra.mxu0 %v3490
    %6091 = vmatprep.subr.bf16.mxu0 %v3495
    %6092 = vmatpush1.bf16.msra.mxu0 %v3494
    %6093 = vmatprep.subr.bf16.mxu0 %v3499
    %6094 = vmatpush1.bf16.msra.mxu0 %v3498
    %6095 = vmatprep.subr.bf16.mxu0 %v3503
    %6096 = vmatpush1.bf16.msra.mxu0 %v3502
    %6097 = vmatprep.subr.bf16.mxu0 %v3507
    %6098 = vmatpush1.bf16.msra.mxu0 %v3506
    %6099 = vmatprep.subr.bf16.mxu0 %v3511
    %6100 = vmatpush1.bf16.msra.mxu0 %v3510
    %6101 = vmatprep.subr.bf16.mxu0 %v3515
    %6102 = vmatpush1.bf16.msra.mxu0 %v3514
    %6103 = vmatprep.subr.bf16.mxu0 %v3519
    %6104 = vmatpush1.bf16.msra.mxu0 %v3518
    %6105 = vmatprep.subr.bf16.mxu0 %v3523
    %6106 = vmatpush1.bf16.msra.mxu0 %v3522
    %6107 = vmatprep.subr.bf16.mxu0 %v3527
    %6108 = vmatpush1.bf16.msra.mxu0 %v3526
    %6109 = vmatprep.subr.bf16.mxu0 %v3531
    %6110 = vmatpush1.bf16.msra.mxu0 %v3530
    %6111 = vmatprep.subr.bf16.mxu0 %v3535
    %6112 = vmatpush1.bf16.msra.mxu0 %v3534
    %6113 = vmatprep.mubr.bf16.mxu0 %v5431
    %6114 = vmatmul.mubr.bf16.gmra.mrb[0].mxu0 %v5430
    %v6115 = vpop.f32.mrb[0].mxu0
    %v6116 = vadd.f32 %v5997, %v6115
    %v6117 = vpop.f32.mrb[0].mxu0
    %v6118 = vadd.f32 %v5998, %v6117
    %v6119 = vpop.f32.mrb[0].mxu0
    %v6120 = vpop.f32.mrb[0].mxu0
    %6121 = vdwg.mxu0
    %6122 = vmatprep.subr.bf16.mxu0 %v3539
    %6123 = vmatpush1.bf16.msra.mxu0 %v3538
    %6124 = vmatprep.subr.bf16.mxu0 %v3543
    %6125 = vmatpush1.bf16.msra.mxu0 %v3542
    %6126 = vmatprep.subr.bf16.mxu0 %v3547
    %6127 = vmatpush1.bf16.msra.mxu0 %v3546
    %6128 = vmatprep.subr.bf16.mxu0 %v3551
    %6129 = vmatpush1.bf16.msra.mxu0 %v3550
    %6130 = vmatprep.subr.bf16.mxu0 %v3555
    %6131 = vmatpush1.bf16.msra.mxu0 %v3554
    %6132 = vmatprep.subr.bf16.mxu0 %v3559
    %6133 = vmatpush1.bf16.msra.mxu0 %v3558
    %6134 = vmatprep.subr.bf16.mxu0 %v3563
    %6135 = vmatpush1.bf16.msra.mxu0 %v3562
    %6136 = vmatprep.subr.bf16.mxu0 %v3567
    %6137 = vmatpush1.bf16.msra.mxu0 %v3566
    %6138 = vmatprep.subr.bf16.mxu0 %v3571
    %6139 = vmatpush1.bf16.msra.mxu0 %v3570
    %6140 = vmatprep.subr.bf16.mxu0 %v3575
    %6141 = vmatpush1.bf16.msra.mxu0 %v3574
    %6142 = vmatprep.subr.bf16.mxu0 %v3579
    %6143 = vmatpush1.bf16.msra.mxu0 %v3578
    %6144 = vmatprep.subr.bf16.mxu0 %v3583
    %6145 = vmatpush1.bf16.msra.mxu0 %v3582
    %6146 = vmatprep.subr.bf16.mxu0 %v3587
    %6147 = vmatpush1.bf16.msra.mxu0 %v3586
    %6148 = vmatprep.subr.bf16.mxu0 %v3591
    %6149 = vmatpush1.bf16.msra.mxu0 %v3590
    %6150 = vmatprep.subr.bf16.mxu0 %v3595
    %6151 = vmatpush1.bf16.msra.mxu0 %v3594
    %6152 = vmatprep.subr.bf16.mxu0 %v3599
    %6153 = vmatpush1.bf16.msra.mxu0 %v3598
    %6154 = vmatprep.mubr.bf16.mxu0 %v5433
    %6155 = vmatmul.mubr.bf16.gmra.mrb[0].mxu0 %v5432
    %v6156 = vpop.f32.mrb[0].mxu0
    %v6157 = vadd.f32 %v6116, %v6156
    %v6158 = vpop.f32.mrb[0].mxu0
    %v6159 = vadd.f32 %v6118, %v6158
    %v6160 = vpop.f32.mrb[0].mxu0
    %v6161 = vpop.f32.mrb[0].mxu0
    %6162 = vdwg.mxu0
    %v6163 = vmul.f32 %v6075, 0.5
    %v6164 = vmul.f32 %v6077, 0.5
    %v6165 = vmul.f32 %v6157, 0.5
    %v6166 = vmul.f32 %v6159, 0.5
    %v6167 = vtanh.pop %v6163
    %v6168 = vtanh.pop %v6164
    %v6169 = vtanh.pop %v6165
    %v6170 = vtanh.pop %v6166
    %v6171 = vmul.f32 %v6167, 0.5
    %v6172 = vmul.f32 %v6168, 0.5
    %v6173 = vmul.f32 %v6169, 0.5
    %v6174 = vmul.f32 %v6170, 0.5
    %v6175 = vadd.f32 %v6171, 0.5
    %v6176 = vadd.f32 %v6172, 0.5
    %v6177 = vadd.f32 %v6173, 0.5
    %v6178 = vadd.f32 %v6174, 0.5
    %v6179 = vtanh.pop %v5989
    %v6180 = vtanh.pop %v5990
    %v6181 = vtanh.pop %v5991
    %v6182 = vtanh.pop %v5992
    %v6183 = vmul.f32 %v6175, %v6179
    %v6184 = vmul.f32 %v6176, %v6180
    %v6185 = vmul.f32 %v6177, %v6181
    %v6186 = vmul.f32 %v6178, %v6182
    %v6187 = vpack.c.bf16 %v6183, %v6183
    %v6188 = vpack.c.bf16 %v6184, %v6184
    %v6189 = vpack.c.bf16 %v6185, %v6185
    %v6190 = vpack.c.bf16 %v6186, %v6186
    %s6191 = scalar_lea.vmem [#allocation5], 256
    %v6192 = vld [vmem:[%s6191] sm:$0xff]
    %v6193 = vld [vmem:[%s6191 + $0x8] sm:$0xff]
    %v6194 = vunpack.c.l.bf16 %v6192
    %v6195 = vunpack.c.h.bf16 %v6192
    %v6196 = vunpack.c.l.bf16 %v6193
    %v6197 = vunpack.c.h.bf16 %v6193
    %6198 = vmatprep.subr.bf16.mxu0 %v608
    %6199 = vmatpush1.bf16.msra.mxu0 %v607
    %6200 = vmatprep.subr.bf16.mxu0 %v612
    %6201 = vmatpush1.bf16.msra.mxu0 %v611
    %6202 = vmatprep.subr.bf16.mxu0 %v616
    %6203 = vmatpush1.bf16.msra.mxu0 %v615
    %6204 = vmatprep.subr.bf16.mxu0 %v620
    %6205 = vmatpush1.bf16.msra.mxu0 %v619
    %6206 = vmatprep.subr.bf16.mxu0 %v624
    %6207 = vmatpush1.bf16.msra.mxu0 %v623
    %6208 = vmatprep.subr.bf16.mxu0 %v628
    %6209 = vmatpush1.bf16.msra.mxu0 %v627
    %6210 = vmatprep.subr.bf16.mxu0 %v632
    %6211 = vmatpush1.bf16.msra.mxu0 %v631
    %6212 = vmatprep.subr.bf16.mxu0 %v636
    %6213 = vmatpush1.bf16.msra.mxu0 %v635
    %6214 = vmatprep.subr.bf16.mxu0 %v640
    %6215 = vmatpush1.bf16.msra.mxu0 %v639
    %6216 = vmatprep.subr.bf16.mxu0 %v644
    %6217 = vmatpush1.bf16.msra.mxu0 %v643
    %6218 = vmatprep.subr.bf16.mxu0 %v648
    %6219 = vmatpush1.bf16.msra.mxu0 %v647
    %6220 = vmatprep.subr.bf16.mxu0 %v652
    %6221 = vmatpush1.bf16.msra.mxu0 %v651
    %6222 = vmatprep.subr.bf16.mxu0 %v656
    %6223 = vmatpush1.bf16.msra.mxu0 %v655
    %6224 = vmatprep.subr.bf16.mxu0 %v660
    %6225 = vmatpush1.bf16.msra.mxu0 %v659
    %6226 = vmatprep.subr.bf16.mxu0 %v664
    %6227 = vmatpush1.bf16.msra.mxu0 %v663
    %6228 = vmatprep.subr.bf16.mxu0 %v668
    %6229 = vmatpush1.bf16.msra.mxu0 %v667
    %6230 = vmatprep.mubr.bf16.mxu0 %v6188
    %6231 = vmatmul.mubr.bf16.gmra.mrb[0].mxu0 %v6187
    %v6232 = vpop.f32.mrb[0].mxu0
    %v6233 = vadd.f32 %v6194, %v6232
    %v6234 = vpop.f32.mrb[0].mxu0
    %v6235 = vadd.f32 %v6195, %v6234
    %v6236 = vpop.f32.mrb[0].mxu0
    %v6237 = vpop.f32.mrb[0].mxu0
    %6238 = vdwg.mxu0
    %6239 = vmatprep.subr.bf16.mxu0 %v672
    %6240 = vmatpush1.bf16.msra.mxu0 %v671
    %6241 = vmatprep.subr.bf16.mxu0 %v676
    %6242 = vmatpush1.bf16.msra.mxu0 %v675
    %6243 = vmatprep.subr.bf16.mxu0 %v680
    %6244 = vmatpush1.bf16.msra.mxu0 %v679
    %6245 = vmatprep.subr.bf16.mxu0 %v684
    %6246 = vmatpush1.bf16.msra.mxu0 %v683
    %6247 = vmatprep.subr.bf16.mxu0 %v688
    %6248 = vmatpush1.bf16.msra.mxu0 %v687
    %6249 = vmatprep.subr.bf16.mxu0 %v692
    %6250 = vmatpush1.bf16.msra.mxu0 %v691
    %6251 = vmatprep.subr.bf16.mxu0 %v696
    %6252 = vmatpush1.bf16.msra.mxu0 %v695
    %6253 = vmatprep.subr.bf16.mxu0 %v700
    %6254 = vmatpush1.bf16.msra.mxu0 %v699
    %6255 = vmatprep.subr.bf16.mxu0 %v704
    %6256 = vmatpush1.bf16.msra.mxu0 %v703
    %6257 = vmatprep.subr.bf16.mxu0 %v708
    %6258 = vmatpush1.bf16.msra.mxu0 %v707
    %6259 = vmatprep.subr.bf16.mxu0 %v712
    %6260 = vmatpush1.bf16.msra.mxu0 %v711
    %6261 = vmatprep.subr.bf16.mxu0 %v716
    %6262 = vmatpush1.bf16.msra.mxu0 %v715
    %6263 = vmatprep.subr.bf16.mxu0 %v720
    %6264 = vmatpush1.bf16.msra.mxu0 %v719
    %6265 = vmatprep.subr.bf16.mxu0 %v724
    %6266 = vmatpush1.bf16.msra.mxu0 %v723
    %6267 = vmatprep.subr.bf16.mxu0 %v728
    %6268 = vmatpush1.bf16.msra.mxu0 %v727
    %6269 = vmatprep.subr.bf16.mxu0 %v732
    %6270 = vmatpush1.bf16.msra.mxu0 %v731
    %6271 = vmatprep.mubr.bf16.mxu0 %v6190
    %6272 = vmatmul.mubr.bf16.gmra.mrb[0].mxu0 %v6189
    %v6273 = vpop.f32.mrb[0].mxu0
    %v6274 = vadd.f32 %v6233, %v6273
    %v6275 = vpop.f32.mrb[0].mxu0
    %v6276 = vadd.f32 %v6235, %v6275
    %v6277 = vpop.f32.mrb[0].mxu0
    %v6278 = vpop.f32.mrb[0].mxu0
    %6279 = vdwg.mxu0
    %6280 = vmatprep.subr.bf16.mxu0 %v610
    %6281 = vmatpush1.bf16.msra.mxu0 %v609
    %6282 = vmatprep.subr.bf16.mxu0 %v614
    %6283 = vmatpush1.bf16.msra.mxu0 %v613
    %6284 = vmatprep.subr.bf16.mxu0 %v618
    %6285 = vmatpush1.bf16.msra.mxu0 %v617
    %6286 = vmatprep.subr.bf16.mxu0 %v622
    %6287 = vmatpush1.bf16.msra.mxu0 %v621
    %6288 = vmatprep.subr.bf16.mxu0 %v626
    %6289 = vmatpush1.bf16.msra.mxu0 %v625
    %6290 = vmatprep.subr.bf16.mxu0 %v630
    %6291 = vmatpush1.bf16.msra.mxu0 %v629
    %6292 = vmatprep.subr.bf16.mxu0 %v634
    %6293 = vmatpush1.bf16.msra.mxu0 %v633
    %6294 = vmatprep.subr.bf16.mxu0 %v638
    %6295 = vmatpush1.bf16.msra.mxu0 %v637
    %6296 = vmatprep.subr.bf16.mxu0 %v642
    %6297 = vmatpush1.bf16.msra.mxu0 %v641
    %6298 = vmatprep.subr.bf16.mxu0 %v646
    %6299 = vmatpush1.bf16.msra.mxu0 %v645
    %6300 = vmatprep.subr.bf16.mxu0 %v650
    %6301 = vmatpush1.bf16.msra.mxu0 %v649
    %6302 = vmatprep.subr.bf16.mxu0 %v654
    %6303 = vmatpush1.bf16.msra.mxu0 %v653
    %6304 = vmatprep.subr.bf16.mxu0 %v658
    %6305 = vmatpush1.bf16.msra.mxu0 %v657
    %6306 = vmatprep.subr.bf16.mxu0 %v662
    %6307 = vmatpush1.bf16.msra.mxu0 %v661
    %6308 = vmatprep.subr.bf16.mxu0 %v666
    %6309 = vmatpush1.bf16.msra.mxu0 %v665
    %6310 = vmatprep.subr.bf16.mxu0 %v670
    %6311 = vmatpush1.bf16.msra.mxu0 %v669
    %6312 = vmatprep.mubr.bf16.mxu0 %v6188
    %6313 = vmatmul.mubr.bf16.gmra.mrb[0].mxu0 %v6187
    %v6314 = vpop.f32.mrb[0].mxu0
    %v6315 = vadd.f32 %v6196, %v6314
    %v6316 = vpop.f32.mrb[0].mxu0
    %v6317 = vadd.f32 %v6197, %v6316
    %v6318 = vpop.f32.mrb[0].mxu0
    %v6319 = vpop.f32.mrb[0].mxu0
    %6320 = vdwg.mxu0
    %6321 = vmatprep.subr.bf16.mxu0 %v674
    %6322 = vmatpush1.bf16.msra.mxu0 %v673
    %6323 = vmatprep.subr.bf16.mxu0 %v678
    %6324 = vmatpush1.bf16.msra.mxu0 %v677
    %6325 = vmatprep.subr.bf16.mxu0 %v682
    %6326 = vmatpush1.bf16.msra.mxu0 %v681
    %6327 = vmatprep.subr.bf16.mxu0 %v686
    %6328 = vmatpush1.bf16.msra.mxu0 %v685
    %6329 = vmatprep.subr.bf16.mxu0 %v690
    %6330 = vmatpush1.bf16.msra.mxu0 %v689
    %6331 = vmatprep.subr.bf16.mxu0 %v694
    %6332 = vmatpush1.bf16.msra.mxu0 %v693
    %6333 = vmatprep.subr.bf16.mxu0 %v698
    %6334 = vmatpush1.bf16.msra.mxu0 %v697
    %6335 = vmatprep.subr.bf16.mxu0 %v702
    %6336 = vmatpush1.bf16.msra.mxu0 %v701
    %6337 = vmatprep.subr.bf16.mxu0 %v706
    %6338 = vmatpush1.bf16.msra.mxu0 %v705
    %6339 = vmatprep.subr.bf16.mxu0 %v710
    %6340 = vmatpush1.bf16.msra.mxu0 %v709
    %6341 = vmatprep.subr.bf16.mxu0 %v714
    %6342 = vmatpush1.bf16.msra.mxu0 %v713
    %6343 = vmatprep.subr.bf16.mxu0 %v718
    %6344 = vmatpush1.bf16.msra.mxu0 %v717
    %6345 = vmatprep.subr.bf16.mxu0 %v722
    %6346 = vmatpush1.bf16.msra.mxu0 %v721
    %6347 = vmatprep.subr.bf16.mxu0 %v726
    %6348 = vmatpush1.bf16.msra.mxu0 %v725
    %6349 = vmatprep.subr.bf16.mxu0 %v730
    %6350 = vmatpush1.bf16.msra.mxu0 %v729
    %6351 = vmatprep.subr.bf16.mxu0 %v734
    %6352 = vmatpush1.bf16.msra.mxu0 %v733
    %6353 = vmatprep.mubr.bf16.mxu0 %v6190
    %6354 = vmatmul.mubr.bf16.gmra.mrb[0].mxu0 %v6189
    %v6355 = vpop.f32.mrb[0].mxu0
    %v6356 = vadd.f32 %v6315, %v6355
    %v6357 = vpop.f32.mrb[0].mxu0
    %v6358 = vadd.f32 %v6317, %v6357
    %v6359 = vpop.f32.mrb[0].mxu0
    %v6360 = vpop.f32.mrb[0].mxu0
    %6361 = vdwg.mxu0
    %v6362 = vmul.f32 %v6274, 0.5
    %v6363 = vmul.f32 %v6276, 0.5
    %v6364 = vmul.f32 %v6356, 0.5
    %v6365 = vmul.f32 %v6358, 0.5
    %v6366 = vtanh.pop %v6362
    %v6367 = vtanh.pop %v6363
    %v6368 = vtanh.pop %v6364
    %v6369 = vtanh.pop %v6365
    %v6370 = vmul.f32 %v6366, 0.5
    %v6371 = vmul.f32 %v6367, 0.5
    %v6372 = vmul.f32 %v6368, 0.5
    %v6373 = vmul.f32 %v6369, 0.5
    %v6374 = vadd.f32 %v6370, 0.5
    %v6375 = vadd.f32 %v6371, 0.5
    %v6376 = vadd.f32 %v6372, 0.5
    %v6377 = vadd.f32 %v6373, 0.5
    %v6378 = vld [vmem:[%s6191 + $0x10] sm:$0xff]
    %v6379 = vld [vmem:[%s6191 + $0x18] sm:$0xff]
    %v6380 = vunpack.c.l.bf16 %v6378
    %v6381 = vunpack.c.h.bf16 %v6378
    %v6382 = vunpack.c.l.bf16 %v6379
    %v6383 = vunpack.c.h.bf16 %v6379
    %6384 = vmatprep.subr.bf16.mxu0 %v1563
    %6385 = vmatpush1.bf16.msra.mxu0 %v1562
    %6386 = vmatprep.subr.bf16.mxu0 %v1567
    %6387 = vmatpush1.bf16.msra.mxu0 %v1566
    %6388 = vmatprep.subr.bf16.mxu0 %v1571
    %6389 = vmatpush1.bf16.msra.mxu0 %v1570
    %6390 = vmatprep.subr.bf16.mxu0 %v1575
    %6391 = vmatpush1.bf16.msra.mxu0 %v1574
    %6392 = vmatprep.subr.bf16.mxu0 %v1579
    %6393 = vmatpush1.bf16.msra.mxu0 %v1578
    %6394 = vmatprep.subr.bf16.mxu0 %v1583
    %6395 = vmatpush1.bf16.msra.mxu0 %v1582
    %6396 = vmatprep.subr.bf16.mxu0 %v1587
    %6397 = vmatpush1.bf16.msra.mxu0 %v1586
    %6398 = vmatprep.subr.bf16.mxu0 %v1591
    %6399 = vmatpush1.bf16.msra.mxu0 %v1590
    %6400 = vmatprep.subr.bf16.mxu0 %v1595
    %6401 = vmatpush1.bf16.msra.mxu0 %v1594
    %6402 = vmatprep.subr.bf16.mxu0 %v1599
    %6403 = vmatpush1.bf16.msra.mxu0 %v1598
    %6404 = vmatprep.subr.bf16.mxu0 %v1603
    %6405 = vmatpush1.bf16.msra.mxu0 %v1602
    %6406 = vmatprep.subr.bf16.mxu0 %v1607
    %6407 = vmatpush1.bf16.msra.mxu0 %v1606
    %6408 = vmatprep.subr.bf16.mxu0 %v1611
    %6409 = vmatpush1.bf16.msra.mxu0 %v1610
    %6410 = vmatprep.subr.bf16.mxu0 %v1615
    %6411 = vmatpush1.bf16.msra.mxu0 %v1614
    %6412 = vmatprep.subr.bf16.mxu0 %v1619
    %6413 = vmatpush1.bf16.msra.mxu0 %v1618
    %6414 = vmatprep.subr.bf16.mxu0 %v1623
    %6415 = vmatpush1.bf16.msra.mxu0 %v1622
    %6416 = vmatprep.mubr.bf16.mxu0 %v6188
    %6417 = vmatmul.mubr.bf16.gmra.mrb[0].mxu0 %v6187
    %v6418 = vpop.f32.mrb[0].mxu0
    %v6419 = vadd.f32 %v6380, %v6418
    %v6420 = vpop.f32.mrb[0].mxu0
    %v6421 = vadd.f32 %v6381, %v6420
    %v6422 = vpop.f32.mrb[0].mxu0
    %v6423 = vpop.f32.mrb[0].mxu0
    %6424 = vdwg.mxu0
    %6425 = vmatprep.subr.bf16.mxu0 %v1627
    %6426 = vmatpush1.bf16.msra.mxu0 %v1626
    %6427 = vmatprep.subr.bf16.mxu0 %v1631
    %6428 = vmatpush1.bf16.msra.mxu0 %v1630
    %6429 = vmatprep.subr.bf16.mxu0 %v1635
    %6430 = vmatpush1.bf16.msra.mxu0 %v1634
    %6431 = vmatprep.subr.bf16.mxu0 %v1639
    %6432 = vmatpush1.bf16.msra.mxu0 %v1638
    %6433 = vmatprep.subr.bf16.mxu0 %v1643
    %6434 = vmatpush1.bf16.msra.mxu0 %v1642
    %6435 = vmatprep.subr.bf16.mxu0 %v1647
    %6436 = vmatpush1.bf16.msra.mxu0 %v1646
    %6437 = vmatprep.subr.bf16.mxu0 %v1651
    %6438 = vmatpush1.bf16.msra.mxu0 %v1650
    %6439 = vmatprep.subr.bf16.mxu0 %v1655
    %6440 = vmatpush1.bf16.msra.mxu0 %v1654
    %6441 = vmatprep.subr.bf16.mxu0 %v1659
    %6442 = vmatpush1.bf16.msra.mxu0 %v1658
    %6443 = vmatprep.subr.bf16.mxu0 %v1663
    %6444 = vmatpush1.bf16.msra.mxu0 %v1662
    %6445 = vmatprep.subr.bf16.mxu0 %v1667
    %6446 = vmatpush1.bf16.msra.mxu0 %v1666
    %6447 = vmatprep.subr.bf16.mxu0 %v1671
    %6448 = vmatpush1.bf16.msra.mxu0 %v1670
    %6449 = vmatprep.subr.bf16.mxu0 %v1675
    %6450 = vmatpush1.bf16.msra.mxu0 %v1674
    %6451 = vmatprep.subr.bf16.mxu0 %v1679
    %6452 = vmatpush1.bf16.msra.mxu0 %v1678
    %6453 = vmatprep.subr.bf16.mxu0 %v1683
    %6454 = vmatpush1.bf16.msra.mxu0 %v1682
    %6455 = vmatprep.subr.bf16.mxu0 %v1687
    %6456 = vmatpush1.bf16.msra.mxu0 %v1686
    %6457 = vmatprep.mubr.bf16.mxu0 %v6190
    %6458 = vmatmul.mubr.bf16.gmra.mrb[0].mxu0 %v6189
    %v6459 = vpop.f32.mrb[0].mxu0
    %v6460 = vadd.f32 %v6419, %v6459
    %v6461 = vpop.f32.mrb[0].mxu0
    %v6462 = vadd.f32 %v6421, %v6461
    %v6463 = vpop.f32.mrb[0].mxu0
    %v6464 = vpop.f32.mrb[0].mxu0
    %6465 = vdwg.mxu0
    %6466 = vmatprep.subr.bf16.mxu0 %v1565
    %6467 = vmatpush1.bf16.msra.mxu0 %v1564
    %6468 = vmatprep.subr.bf16.mxu0 %v1569
    %6469 = vmatpush1.bf16.msra.mxu0 %v1568
    %6470 = vmatprep.subr.bf16.mxu0 %v1573
    %6471 = vmatpush1.bf16.msra.mxu0 %v1572
    %6472 = vmatprep.subr.bf16.mxu0 %v1577
    %6473 = vmatpush1.bf16.msra.mxu0 %v1576
    %6474 = vmatprep.subr.bf16.mxu0 %v1581
    %6475 = vmatpush1.bf16.msra.mxu0 %v1580
    %6476 = vmatprep.subr.bf16.mxu0 %v1585
    %6477 = vmatpush1.bf16.msra.mxu0 %v1584
    %6478 = vmatprep.subr.bf16.mxu0 %v1589
    %6479 = vmatpush1.bf16.msra.mxu0 %v1588
    %6480 = vmatprep.subr.bf16.mxu0 %v1593
    %6481 = vmatpush1.bf16.msra.mxu0 %v1592
    %6482 = vmatprep.subr.bf16.mxu0 %v1597
    %6483 = vmatpush1.bf16.msra.mxu0 %v1596
    %6484 = vmatprep.subr.bf16.mxu0 %v1601
    %6485 = vmatpush1.bf16.msra.mxu0 %v1600
    %6486 = vmatprep.subr.bf16.mxu0 %v1605
    %6487 = vmatpush1.bf16.msra.mxu0 %v1604
    %6488 = vmatprep.subr.bf16.mxu0 %v1609
    %6489 = vmatpush1.bf16.msra.mxu0 %v1608
    %6490 = vmatprep.subr.bf16.mxu0 %v1613
    %6491 = vmatpush1.bf16.msra.mxu0 %v1612
    %6492 = vmatprep.subr.bf16.mxu0 %v1617
    %6493 = vmatpush1.bf16.msra.mxu0 %v1616
    %6494 = vmatprep.subr.bf16.mxu0 %v1621
    %6495 = vmatpush1.bf16.msra.mxu0 %v1620
    %6496 = vmatprep.subr.bf16.mxu0 %v1625
    %6497 = vmatpush1.bf16.msra.mxu0 %v1624
    %6498 = vmatprep.mubr.bf16.mxu0 %v6188
    %6499 = vmatmul.mubr.bf16.gmra.mrb[0].mxu0 %v6187
    %v6500 = vpop.f32.mrb[0].mxu0
    %v6501 = vadd.f32 %v6382, %v6500
    %v6502 = vpop.f32.mrb[0].mxu0
    %v6503 = vadd.f32 %v6383, %v6502
    %v6504 = vpop.f32.mrb[0].mxu0
    %v6505 = vpop.f32.mrb[0].mxu0
    %6506 = vdwg.mxu0
    %6507 = vmatprep.subr.bf16.mxu0 %v1629
    %6508 = vmatpush1.bf16.msra.mxu0 %v1628
    %6509 = vmatprep.subr.bf16.mxu0 %v1633
    %6510 = vmatpush1.bf16.msra.mxu0 %v1632
    %6511 = vmatprep.subr.bf16.mxu0 %v1637
    %6512 = vmatpush1.bf16.msra.mxu0 %v1636
    %6513 = vmatprep.subr.bf16.mxu0 %v1641
    %6514 = vmatpush1.bf16.msra.mxu0 %v1640
    %6515 = vmatprep.subr.bf16.mxu0 %v1645
    %6516 = vmatpush1.bf16.msra.mxu0 %v1644
    %6517 = vmatprep.subr.bf16.mxu0 %v1649
    %6518 = vmatpush1.bf16.msra.mxu0 %v1648
    %6519 = vmatprep.subr.bf16.mxu0 %v1653
    %6520 = vmatpush1.bf16.msra.mxu0 %v1652
    %6521 = vmatprep.subr.bf16.mxu0 %v1657
    %6522 = vmatpush1.bf16.msra.mxu0 %v1656
    %6523 = vmatprep.subr.bf16.mxu0 %v1661
    %6524 = vmatpush1.bf16.msra.mxu0 %v1660
    %6525 = vmatprep.subr.bf16.mxu0 %v1665
    %6526 = vmatpush1.bf16.msra.mxu0 %v1664
    %6527 = vmatprep.subr.bf16.mxu0 %v1669
    %6528 = vmatpush1.bf16.msra.mxu0 %v1668
    %6529 = vmatprep.subr.bf16.mxu0 %v1673
    %6530 = vmatpush1.bf16.msra.mxu0 %v1672
    %6531 = vmatprep.subr.bf16.mxu0 %v1677
    %6532 = vmatpush1.bf16.msra.mxu0 %v1676
    %6533 = vmatprep.subr.bf16.mxu0 %v1681
    %6534 = vmatpush1.bf16.msra.mxu0 %v1680
    %6535 = vmatprep.subr.bf16.mxu0 %v1685
    %6536 = vmatpush1.bf16.msra.mxu0 %v1684
    %6537 = vmatprep.subr.bf16.mxu0 %v1689
    %6538 = vmatpush1.bf16.msra.mxu0 %v1688
    %6539 = vmatprep.mubr.bf16.mxu0 %v6190
    %6540 = vmatmul.mubr.bf16.gmra.mrb[0].mxu0 %v6189
    %v6541 = vpop.f32.mrb[0].mxu0
    %v6542 = vadd.f32 %v6501, %v6541
    %v6543 = vpop.f32.mrb[0].mxu0
    %v6544 = vadd.f32 %v6503, %v6543
    %v6545 = vpop.f32.mrb[0].mxu0
    %v6546 = vpop.f32.mrb[0].mxu0
    %6547 = vdwg.mxu0
    %v6548 = vmul.f32 %v6460, 0.5
    %v6549 = vmul.f32 %v6462, 0.5
    %v6550 = vmul.f32 %v6542, 0.5
    %v6551 = vmul.f32 %v6544, 0.5
    %v6552 = vtanh.pop %v6548
    %v6553 = vtanh.pop %v6549
    %v6554 = vtanh.pop %v6550
    %v6555 = vtanh.pop %v6551
    %v6556 = vmul.f32 %v6552, 0.5
    %v6557 = vmul.f32 %v6553, 0.5
    %v6558 = vmul.f32 %v6554, 0.5
    %v6559 = vmul.f32 %v6555, 0.5
    %v6560 = vadd.f32 %v6556, 0.5
    %v6561 = vadd.f32 %v6557, 0.5
    %v6562 = vadd.f32 %v6558, 0.5
    %v6563 = vadd.f32 %v6559, 0.5
    %v6564 = vmul.f32 %v6560, %v5989
    %v6565 = vmul.f32 %v6561, %v5990
    %v6566 = vmul.f32 %v6562, %v5991
    %v6567 = vmul.f32 %v6563, %v5992
    %v6568 = vld [vmem:[%s6191 + $0x20] sm:$0xff]
    %v6569 = vld [vmem:[%s6191 + $0x28] sm:$0xff]
    %v6570 = vunpack.c.l.bf16 %v6568
    %v6571 = vunpack.c.h.bf16 %v6568
    %v6572 = vunpack.c.l.bf16 %v6569
    %v6573 = vunpack.c.h.bf16 %v6569
    %6574 = vmatprep.subr.bf16.mxu0 %v2522
    %6575 = vmatpush1.bf16.msra.mxu0 %v2521
    %6576 = vmatprep.subr.bf16.mxu0 %v2526
    %6577 = vmatpush1.bf16.msra.mxu0 %v2525
    %6578 = vmatprep.subr.bf16.mxu0 %v2530
    %6579 = vmatpush1.bf16.msra.mxu0 %v2529
    %6580 = vmatprep.subr.bf16.mxu0 %v2534
    %6581 = vmatpush1.bf16.msra.mxu0 %v2533
    %6582 = vmatprep.subr.bf16.mxu0 %v2538
    %6583 = vmatpush1.bf16.msra.mxu0 %v2537
    %6584 = vmatprep.subr.bf16.mxu0 %v2542
    %6585 = vmatpush1.bf16.msra.mxu0 %v2541
    %6586 = vmatprep.subr.bf16.mxu0 %v2546
    %6587 = vmatpush1.bf16.msra.mxu0 %v2545
    %6588 = vmatprep.subr.bf16.mxu0 %v2550
    %6589 = vmatpush1.bf16.msra.mxu0 %v2549
    %6590 = vmatprep.subr.bf16.mxu0 %v2554
    %6591 = vmatpush1.bf16.msra.mxu0 %v2553
    %6592 = vmatprep.subr.bf16.mxu0 %v2558
    %6593 = vmatpush1.bf16.msra.mxu0 %v2557
    %6594 = vmatprep.subr.bf16.mxu0 %v2562
    %6595 = vmatpush1.bf16.msra.mxu0 %v2561
    %6596 = vmatprep.subr.bf16.mxu0 %v2566
    %6597 = vmatpush1.bf16.msra.mxu0 %v2565
    %6598 = vmatprep.subr.bf16.mxu0 %v2570
    %6599 = vmatpush1.bf16.msra.mxu0 %v2569
    %6600 = vmatprep.subr.bf16.mxu0 %v2574
    %6601 = vmatpush1.bf16.msra.mxu0 %v2573
    %6602 = vmatprep.subr.bf16.mxu0 %v2578
    %6603 = vmatpush1.bf16.msra.mxu0 %v2577
    %6604 = vmatprep.subr.bf16.mxu0 %v2582
    %6605 = vmatpush1.bf16.msra.mxu0 %v2581
    %6606 = vmatprep.mubr.bf16.mxu0 %v6188
    %6607 = vmatmul.mubr.bf16.gmra.mrb[0].mxu0 %v6187
    %v6608 = vpop.f32.mrb[0].mxu0
    %v6609 = vadd.f32 %v6570, %v6608
    %v6610 = vpop.f32.mrb[0].mxu0
    %v6611 = vadd.f32 %v6571, %v6610
    %v6612 = vpop.f32.mrb[0].mxu0
    %v6613 = vpop.f32.mrb[0].mxu0
    %6614 = vdwg.mxu0
    %6615 = vmatprep.subr.bf16.mxu0 %v2586
    %6616 = vmatpush1.bf16.msra.mxu0 %v2585
    %6617 = vmatprep.subr.bf16.mxu0 %v2590
    %6618 = vmatpush1.bf16.msra.mxu0 %v2589
    %6619 = vmatprep.subr.bf16.mxu0 %v2594
    %6620 = vmatpush1.bf16.msra.mxu0 %v2593
    %6621 = vmatprep.subr.bf16.mxu0 %v2598
    %6622 = vmatpush1.bf16.msra.mxu0 %v2597
    %6623 = vmatprep.subr.bf16.mxu0 %v2602
    %6624 = vmatpush1.bf16.msra.mxu0 %v2601
    %6625 = vmatprep.subr.bf16.mxu0 %v2606
    %6626 = vmatpush1.bf16.msra.mxu0 %v2605
    %6627 = vmatprep.subr.bf16.mxu0 %v2610
    %6628 = vmatpush1.bf16.msra.mxu0 %v2609
    %6629 = vmatprep.subr.bf16.mxu0 %v2614
    %6630 = vmatpush1.bf16.msra.mxu0 %v2613
    %6631 = vmatprep.subr.bf16.mxu0 %v2618
    %6632 = vmatpush1.bf16.msra.mxu0 %v2617
    %6633 = vmatprep.subr.bf16.mxu0 %v2622
    %6634 = vmatpush1.bf16.msra.mxu0 %v2621
    %6635 = vmatprep.subr.bf16.mxu0 %v2626
    %6636 = vmatpush1.bf16.msra.mxu0 %v2625
    %6637 = vmatprep.subr.bf16.mxu0 %v2630
    %6638 = vmatpush1.bf16.msra.mxu0 %v2629
    %6639 = vmatprep.subr.bf16.mxu0 %v2634
    %6640 = vmatpush1.bf16.msra.mxu0 %v2633
    %6641 = vmatprep.subr.bf16.mxu0 %v2638
    %6642 = vmatpush1.bf16.msra.mxu0 %v2637
    %6643 = vmatprep.subr.bf16.mxu0 %v2642
    %6644 = vmatpush1.bf16.msra.mxu0 %v2641
    %6645 = vmatprep.subr.bf16.mxu0 %v2646
    %6646 = vmatpush1.bf16.msra.mxu0 %v2645
    %6647 = vmatprep.mubr.bf16.mxu0 %v6190
    %6648 = vmatmul.mubr.bf16.gmra.mrb[0].mxu0 %v6189
    %v6649 = vpop.f32.mrb[0].mxu0
    %v6650 = vadd.f32 %v6609, %v6649
    %v6651 = vpop.f32.mrb[0].mxu0
    %v6652 = vadd.f32 %v6611, %v6651
    %v6653 = vpop.f32.mrb[0].mxu0
    %v6654 = vpop.f32.mrb[0].mxu0
    %6655 = vdwg.mxu0
    %6656 = vmatprep.subr.bf16.mxu0 %v2524
    %6657 = vmatpush1.bf16.msra.mxu0 %v2523
    %6658 = vmatprep.subr.bf16.mxu0 %v2528
    %6659 = vmatpush1.bf16.msra.mxu0 %v2527
    %6660 = vmatprep.subr.bf16.mxu0 %v2532
    %6661 = vmatpush1.bf16.msra.mxu0 %v2531
    %6662 = vmatprep.subr.bf16.mxu0 %v2536
    %6663 = vmatpush1.bf16.msra.mxu0 %v2535
    %6664 = vmatprep.subr.bf16.mxu0 %v2540
    %6665 = vmatpush1.bf16.msra.mxu0 %v2539
    %6666 = vmatprep.subr.bf16.mxu0 %v2544
    %6667 = vmatpush1.bf16.msra.mxu0 %v2543
    %6668 = vmatprep.subr.bf16.mxu0 %v2548
    %6669 = vmatpush1.bf16.msra.mxu0 %v2547
    %6670 = vmatprep.subr.bf16.mxu0 %v2552
    %6671 = vmatpush1.bf16.msra.mxu0 %v2551
    %6672 = vmatprep.subr.bf16.mxu0 %v2556
    %6673 = vmatpush1.bf16.msra.mxu0 %v2555
    %6674 = vmatprep.subr.bf16.mxu0 %v2560
    %6675 = vmatpush1.bf16.msra.mxu0 %v2559
    %6676 = vmatprep.subr.bf16.mxu0 %v2564
    %6677 = vmatpush1.bf16.msra.mxu0 %v2563
    %6678 = vmatprep.subr.bf16.mxu0 %v2568
    %6679 = vmatpush1.bf16.msra.mxu0 %v2567
    %6680 = vmatprep.subr.bf16.mxu0 %v2572
    %6681 = vmatpush1.bf16.msra.mxu0 %v2571
    %6682 = vmatprep.subr.bf16.mxu0 %v2576
    %6683 = vmatpush1.bf16.msra.mxu0 %v2575
    %6684 = vmatprep.subr.bf16.mxu0 %v2580
    %6685 = vmatpush1.bf16.msra.mxu0 %v2579
    %6686 = vmatprep.subr.bf16.mxu0 %v2584
    %6687 = vmatpush1.bf16.msra.mxu0 %v2583
    %6688 = vmatprep.mubr.bf16.mxu0 %v6188
    %6689 = vmatmul.mubr.bf16.gmra.mrb[0].mxu0 %v6187
    %v6690 = vpop.f32.mrb[0].mxu0
    %v6691 = vadd.f32 %v6572, %v6690
    %v6692 = vpop.f32.mrb[0].mxu0
    %v6693 = vadd.f32 %v6573, %v6692
    %v6694 = vpop.f32.mrb[0].mxu0
    %v6695 = vpop.f32.mrb[0].mxu0
    %6696 = vdwg.mxu0
    %6697 = vmatprep.subr.bf16.mxu0 %v2588
    %6698 = vmatpush1.bf16.msra.mxu0 %v2587
    %6699 = vmatprep.subr.bf16.mxu0 %v2592
    %6700 = vmatpush1.bf16.msra.mxu0 %v2591
    %6701 = vmatprep.subr.bf16.mxu0 %v2596
    %6702 = vmatpush1.bf16.msra.mxu0 %v2595
    %6703 = vmatprep.subr.bf16.mxu0 %v2600
    %6704 = vmatpush1.bf16.msra.mxu0 %v2599
    %6705 = vmatprep.subr.bf16.mxu0 %v2604
    %6706 = vmatpush1.bf16.msra.mxu0 %v2603
    %6707 = vmatprep.subr.bf16.mxu0 %v2608
    %6708 = vmatpush1.bf16.msra.mxu0 %v2607
    %6709 = vmatprep.subr.bf16.mxu0 %v2612
    %6710 = vmatpush1.bf16.msra.mxu0 %v2611
    %6711 = vmatprep.subr.bf16.mxu0 %v2616
    %6712 = vmatpush1.bf16.msra.mxu0 %v2615
    %6713 = vmatprep.subr.bf16.mxu0 %v2620
    %6714 = vmatpush1.bf16.msra.mxu0 %v2619
    %6715 = vmatprep.subr.bf16.mxu0 %v2624
    %6716 = vmatpush1.bf16.msra.mxu0 %v2623
    %6717 = vmatprep.subr.bf16.mxu0 %v2628
    %6718 = vmatpush1.bf16.msra.mxu0 %v2627
    %6719 = vmatprep.subr.bf16.mxu0 %v2632
    %6720 = vmatpush1.bf16.msra.mxu0 %v2631
    %6721 = vmatprep.subr.bf16.mxu0 %v2636
    %6722 = vmatpush1.bf16.msra.mxu0 %v2635
    %6723 = vmatprep.subr.bf16.mxu0 %v2640
    %6724 = vmatpush1.bf16.msra.mxu0 %v2639
    %6725 = vmatprep.subr.bf16.mxu0 %v2644
    %6726 = vmatpush1.bf16.msra.mxu0 %v2643
    %6727 = vmatprep.subr.bf16.mxu0 %v2648
    %6728 = vmatpush1.bf16.msra.mxu0 %v2647
    %6729 = vmatprep.mubr.bf16.mxu0 %v6190
    %6730 = vmatmul.mubr.bf16.gmra.mrb[0].mxu0 %v6189
    %v6731 = vpop.f32.mrb[0].mxu0
    %v6732 = vadd.f32 %v6691, %v6731
    %v6733 = vpop.f32.mrb[0].mxu0
    %v6734 = vadd.f32 %v6693, %v6733
    %v6735 = vpop.f32.mrb[0].mxu0
    %v6736 = vpop.f32.mrb[0].mxu0
    %6737 = vdwg.mxu0
    %v6738 = vtanh.pop %v6650
    %v6739 = vtanh.pop %v6652
    %v6740 = vtanh.pop %v6732
    %v6741 = vtanh.pop %v6734
    %v6742 = vmul.f32 %v6374, %v6738
    %v6743 = vmul.f32 %v6375, %v6739
    %v6744 = vmul.f32 %v6376, %v6740
    %v6745 = vmul.f32 %v6377, %v6741
    %v6746 = vadd.f32 %v6564, %v6742
    %v6747 = vadd.f32 %v6565, %v6743
    %v6748 = vadd.f32 %v6566, %v6744
    %v6749 = vadd.f32 %v6567, %v6745
    %v6750 = vld [vmem:[%s6191 + $0x30] sm:$0xff]
    %v6751 = vld [vmem:[%s6191 + $0x38] sm:$0xff]
    %v6752 = vunpack.c.l.bf16 %v6750
    %v6753 = vunpack.c.h.bf16 %v6750
    %v6754 = vunpack.c.l.bf16 %v6751
    %v6755 = vunpack.c.h.bf16 %v6751
    %6756 = vmatprep.subr.bf16.mxu0 %v3473
    %6757 = vmatpush1.bf16.msra.mxu0 %v3472
    %6758 = vmatprep.subr.bf16.mxu0 %v3477
    %6759 = vmatpush1.bf16.msra.mxu0 %v3476
    %6760 = vmatprep.subr.bf16.mxu0 %v3481
    %6761 = vmatpush1.bf16.msra.mxu0 %v3480
    %6762 = vmatprep.subr.bf16.mxu0 %v3485
    %6763 = vmatpush1.bf16.msra.mxu0 %v3484
    %6764 = vmatprep.subr.bf16.mxu0 %v3489
    %6765 = vmatpush1.bf16.msra.mxu0 %v3488
    %6766 = vmatprep.subr.bf16.mxu0 %v3493
    %6767 = vmatpush1.bf16.msra.mxu0 %v3492
    %6768 = vmatprep.subr.bf16.mxu0 %v3497
    %6769 = vmatpush1.bf16.msra.mxu0 %v3496
    %6770 = vmatprep.subr.bf16.mxu0 %v3501
    %6771 = vmatpush1.bf16.msra.mxu0 %v3500
    %6772 = vmatprep.subr.bf16.mxu0 %v3505
    %6773 = vmatpush1.bf16.msra.mxu0 %v3504
    %6774 = vmatprep.subr.bf16.mxu0 %v3509
    %6775 = vmatpush1.bf16.msra.mxu0 %v3508
    %6776 = vmatprep.subr.bf16.mxu0 %v3513
    %6777 = vmatpush1.bf16.msra.mxu0 %v3512
    %6778 = vmatprep.subr.bf16.mxu0 %v3517
    %6779 = vmatpush1.bf16.msra.mxu0 %v3516
    %6780 = vmatprep.subr.bf16.mxu0 %v3521
    %6781 = vmatpush1.bf16.msra.mxu0 %v3520
    %6782 = vmatprep.subr.bf16.mxu0 %v3525
    %6783 = vmatpush1.bf16.msra.mxu0 %v3524
    %6784 = vmatprep.subr.bf16.mxu0 %v3529
    %6785 = vmatpush1.bf16.msra.mxu0 %v3528
    %6786 = vmatprep.subr.bf16.mxu0 %v3533
    %6787 = vmatpush1.bf16.msra.mxu0 %v3532
    %6788 = vmatprep.mubr.bf16.mxu0 %v6188
    %6789 = vmatmul.mubr.bf16.gmra.mrb[0].mxu0 %v6187
    %v6790 = vpop.f32.mrb[0].mxu0
    %v6791 = vadd.f32 %v6752, %v6790
    %v6792 = vpop.f32.mrb[0].mxu0
    %v6793 = vadd.f32 %v6753, %v6792
    %v6794 = vpop.f32.mrb[0].mxu0
    %v6795 = vpop.f32.mrb[0].mxu0
    %6796 = vdwg.mxu0
    %6797 = vmatprep.subr.bf16.mxu0 %v3537
    %6798 = vmatpush1.bf16.msra.mxu0 %v3536
    %6799 = vmatprep.subr.bf16.mxu0 %v3541
    %6800 = vmatpush1.bf16.msra.mxu0 %v3540
    %6801 = vmatprep.subr.bf16.mxu0 %v3545
    %6802 = vmatpush1.bf16.msra.mxu0 %v3544
    %6803 = vmatprep.subr.bf16.mxu0 %v3549
    %6804 = vmatpush1.bf16.msra.mxu0 %v3548
    %6805 = vmatprep.subr.bf16.mxu0 %v3553
    %6806 = vmatpush1.bf16.msra.mxu0 %v3552
    %6807 = vmatprep.subr.bf16.mxu0 %v3557
    %6808 = vmatpush1.bf16.msra.mxu0 %v3556
    %6809 = vmatprep.subr.bf16.mxu0 %v3561
    %6810 = vmatpush1.bf16.msra.mxu0 %v3560
    %6811 = vmatprep.subr.bf16.mxu0 %v3565
    %6812 = vmatpush1.bf16.msra.mxu0 %v3564
    %6813 = vmatprep.subr.bf16.mxu0 %v3569
    %6814 = vmatpush1.bf16.msra.mxu0 %v3568
    %6815 = vmatprep.subr.bf16.mxu0 %v3573
    %6816 = vmatpush1.bf16.msra.mxu0 %v3572
    %6817 = vmatprep.subr.bf16.mxu0 %v3577
    %6818 = vmatpush1.bf16.msra.mxu0 %v3576
    %6819 = vmatprep.subr.bf16.mxu0 %v3581
    %6820 = vmatpush1.bf16.msra.mxu0 %v3580
    %6821 = vmatprep.subr.bf16.mxu0 %v3585
    %6822 = vmatpush1.bf16.msra.mxu0 %v3584
    %6823 = vmatprep.subr.bf16.mxu0 %v3589
    %6824 = vmatpush1.bf16.msra.mxu0 %v3588
    %6825 = vmatprep.subr.bf16.mxu0 %v3593
    %6826 = vmatpush1.bf16.msra.mxu0 %v3592
    %6827 = vmatprep.subr.bf16.mxu0 %v3597
    %6828 = vmatpush1.bf16.msra.mxu0 %v3596
    %6829 = vmatprep.mubr.bf16.mxu0 %v6190
    %6830 = vmatmul.mubr.bf16.gmra.mrb[0].mxu0 %v6189
    %v6831 = vpop.f32.mrb[0].mxu0
    %v6832 = vadd.f32 %v6791, %v6831
    %v6833 = vpop.f32.mrb[0].mxu0
    %v6834 = vadd.f32 %v6793, %v6833
    %v6835 = vpop.f32.mrb[0].mxu0
    %v6836 = vpop.f32.mrb[0].mxu0
    %6837 = vdwg.mxu0
    %6838 = vmatprep.subr.bf16.mxu0 %v3475
    %6839 = vmatpush1.bf16.msra.mxu0 %v3474
    %6840 = vmatprep.subr.bf16.mxu0 %v3479
    %6841 = vmatpush1.bf16.msra.mxu0 %v3478
    %6842 = vmatprep.subr.bf16.mxu0 %v3483
    %6843 = vmatpush1.bf16.msra.mxu0 %v3482
    %6844 = vmatprep.subr.bf16.mxu0 %v3487
    %6845 = vmatpush1.bf16.msra.mxu0 %v3486
    %6846 = vmatprep.subr.bf16.mxu0 %v3491
    %6847 = vmatpush1.bf16.msra.mxu0 %v3490
    %6848 = vmatprep.subr.bf16.mxu0 %v3495
    %6849 = vmatpush1.bf16.msra.mxu0 %v3494
    %6850 = vmatprep.subr.bf16.mxu0 %v3499
    %6851 = vmatpush1.bf16.msra.mxu0 %v3498
    %6852 = vmatprep.subr.bf16.mxu0 %v3503
    %6853 = vmatpush1.bf16.msra.mxu0 %v3502
    %6854 = vmatprep.subr.bf16.mxu0 %v3507
    %6855 = vmatpush1.bf16.msra.mxu0 %v3506
    %6856 = vmatprep.subr.bf16.mxu0 %v3511
    %6857 = vmatpush1.bf16.msra.mxu0 %v3510
    %6858 = vmatprep.subr.bf16.mxu0 %v3515
    %6859 = vmatpush1.bf16.msra.mxu0 %v3514
    %6860 = vmatprep.subr.bf16.mxu0 %v3519
    %6861 = vmatpush1.bf16.msra.mxu0 %v3518
    %6862 = vmatprep.subr.bf16.mxu0 %v3523
    %6863 = vmatpush1.bf16.msra.mxu0 %v3522
    %6864 = vmatprep.subr.bf16.mxu0 %v3527
    %6865 = vmatpush1.bf16.msra.mxu0 %v3526
    %6866 = vmatprep.subr.bf16.mxu0 %v3531
    %6867 = vmatpush1.bf16.msra.mxu0 %v3530
    %6868 = vmatprep.subr.bf16.mxu0 %v3535
    %6869 = vmatpush1.bf16.msra.mxu0 %v3534
    %6870 = vmatprep.mubr.bf16.mxu0 %v6188
    %6871 = vmatmul.mubr.bf16.gmra.mrb[0].mxu0 %v6187
    %v6872 = vpop.f32.mrb[0].mxu0
    %v6873 = vadd.f32 %v6754, %v6872
    %v6874 = vpop.f32.mrb[0].mxu0
    %v6875 = vadd.f32 %v6755, %v6874
    %v6876 = vpop.f32.mrb[0].mxu0
    %v6877 = vpop.f32.mrb[0].mxu0
    %6878 = vdwg.mxu0
    %6879 = vmatprep.subr.bf16.mxu0 %v3539
    %6880 = vmatpush1.bf16.msra.mxu0 %v3538
    %6881 = vmatprep.subr.bf16.mxu0 %v3543
    %6882 = vmatpush1.bf16.msra.mxu0 %v3542
    %6883 = vmatprep.subr.bf16.mxu0 %v3547
    %6884 = vmatpush1.bf16.msra.mxu0 %v3546
    %6885 = vmatprep.subr.bf16.mxu0 %v3551
    %6886 = vmatpush1.bf16.msra.mxu0 %v3550
    %6887 = vmatprep.subr.bf16.mxu0 %v3555
    %6888 = vmatpush1.bf16.msra.mxu0 %v3554
    %6889 = vmatprep.subr.bf16.mxu0 %v3559
    %6890 = vmatpush1.bf16.msra.mxu0 %v3558
    %6891 = vmatprep.subr.bf16.mxu0 %v3563
    %6892 = vmatpush1.bf16.msra.mxu0 %v3562
    %6893 = vmatprep.subr.bf16.mxu0 %v3567
    %6894 = vmatpush1.bf16.msra.mxu0 %v3566
    %6895 = vmatprep.subr.bf16.mxu0 %v3571
    %6896 = vmatpush1.bf16.msra.mxu0 %v3570
    %6897 = vmatprep.subr.bf16.mxu0 %v3575
    %6898 = vmatpush1.bf16.msra.mxu0 %v3574
    %6899 = vmatprep.subr.bf16.mxu0 %v3579
    %6900 = vmatpush1.bf16.msra.mxu0 %v3578
    %6901 = vmatprep.subr.bf16.mxu0 %v3583
    %6902 = vmatpush1.bf16.msra.mxu0 %v3582
    %6903 = vmatprep.subr.bf16.mxu0 %v3587
    %6904 = vmatpush1.bf16.msra.mxu0 %v3586
    %6905 = vmatprep.subr.bf16.mxu0 %v3591
    %6906 = vmatpush1.bf16.msra.mxu0 %v3590
    %6907 = vmatprep.subr.bf16.mxu0 %v3595
    %6908 = vmatpush1.bf16.msra.mxu0 %v3594
    %6909 = vmatprep.subr.bf16.mxu0 %v3599
    %6910 = vmatpush1.bf16.msra.mxu0 %v3598
    %6911 = vmatprep.mubr.bf16.mxu0 %v6190
    %6912 = vmatmul.mubr.bf16.gmra.mrb[0].mxu0 %v6189
    %v6913 = vpop.f32.mrb[0].mxu0
    %v6914 = vadd.f32 %v6873, %v6913
    %v6915 = vpop.f32.mrb[0].mxu0
    %v6916 = vadd.f32 %v6875, %v6915
    %v6917 = vpop.f32.mrb[0].mxu0
    %v6918 = vpop.f32.mrb[0].mxu0
    %6919 = vdwg.mxu0
    %v6920 = vmul.f32 %v6832, 0.5
    %v6921 = vmul.f32 %v6834, 0.5
    %v6922 = vmul.f32 %v6914, 0.5
    %v6923 = vmul.f32 %v6916, 0.5
    %v6924 = vtanh.pop %v6920
    %v6925 = vtanh.pop %v6921
    %v6926 = vtanh.pop %v6922
    %v6927 = vtanh.pop %v6923
    %v6928 = vmul.f32 %v6924, 0.5
    %v6929 = vmul.f32 %v6925, 0.5
    %v6930 = vmul.f32 %v6926, 0.5
    %v6931 = vmul.f32 %v6927, 0.5
    %v6932 = vadd.f32 %v6928, 0.5
    %v6933 = vadd.f32 %v6929, 0.5
    %v6934 = vadd.f32 %v6930, 0.5
    %v6935 = vadd.f32 %v6931, 0.5
    %v6936 = vtanh.pop %v6746
    %v6937 = vtanh.pop %v6747
    %v6938 = vtanh.pop %v6748
    %v6939 = vtanh.pop %v6749
    %v6940 = vmul.f32 %v6932, %v6936
    %v6941 = vmul.f32 %v6933, %v6937
    %v6942 = vmul.f32 %v6934, %v6938
    %v6943 = vmul.f32 %v6935, %v6939
    %v6944 = vpack.c.bf16 %v6940, %v6940
    %v6945 = vpack.c.bf16 %v6941, %v6941
    %v6946 = vpack.c.bf16 %v6942, %v6942
    %v6947 = vpack.c.bf16 %v6943, %v6943
    %s6948 = scalar_lea.vmem [#allocation5], 320
    %v6949 = vld [vmem:[%s6948] sm:$0xff]
    %v6950 = vld [vmem:[%s6948 + $0x8] sm:$0xff]
    %v6951 = vunpack.c.l.bf16 %v6949
    %v6952 = vunpack.c.h.bf16 %v6949
    %v6953 = vunpack.c.l.bf16 %v6950
    %v6954 = vunpack.c.h.bf16 %v6950
    %6955 = vmatprep.subr.bf16.mxu0 %v608
    %6956 = vmatpush1.bf16.msra.mxu0 %v607
    %6957 = vmatprep.subr.bf16.mxu0 %v612
    %6958 = vmatpush1.bf16.msra.mxu0 %v611
    %6959 = vmatprep.subr.bf16.mxu0 %v616
    %6960 = vmatpush1.bf16.msra.mxu0 %v615
    %6961 = vmatprep.subr.bf16.mxu0 %v620
    %6962 = vmatpush1.bf16.msra.mxu0 %v619
    %6963 = vmatprep.subr.bf16.mxu0 %v624
    %6964 = vmatpush1.bf16.msra.mxu0 %v623
    %6965 = vmatprep.subr.bf16.mxu0 %v628
    %6966 = vmatpush1.bf16.msra.mxu0 %v627
    %6967 = vmatprep.subr.bf16.mxu0 %v632
    %6968 = vmatpush1.bf16.msra.mxu0 %v631
    %6969 = vmatprep.subr.bf16.mxu0 %v636
    %6970 = vmatpush1.bf16.msra.mxu0 %v635
    %6971 = vmatprep.subr.bf16.mxu0 %v640
    %6972 = vmatpush1.bf16.msra.mxu0 %v639
    %6973 = vmatprep.subr.bf16.mxu0 %v644
    %6974 = vmatpush1.bf16.msra.mxu0 %v643
    %6975 = vmatprep.subr.bf16.mxu0 %v648
    %6976 = vmatpush1.bf16.msra.mxu0 %v647
    %6977 = vmatprep.subr.bf16.mxu0 %v652
    %6978 = vmatpush1.bf16.msra.mxu0 %v651
    %6979 = vmatprep.subr.bf16.mxu0 %v656
    %6980 = vmatpush1.bf16.msra.mxu0 %v655
    %6981 = vmatprep.subr.bf16.mxu0 %v660
    %6982 = vmatpush1.bf16.msra.mxu0 %v659
    %6983 = vmatprep.subr.bf16.mxu0 %v664
    %6984 = vmatpush1.bf16.msra.mxu0 %v663
    %6985 = vmatprep.subr.bf16.mxu0 %v668
    %6986 = vmatpush1.bf16.msra.mxu0 %v667
    %6987 = vmatprep.mubr.bf16.mxu0 %v6945
    %6988 = vmatmul.mubr.bf16.gmra.mrb[0].mxu0 %v6944
    %v6989 = vpop.f32.mrb[0].mxu0
    %v6990 = vadd.f32 %v6951, %v6989
    %v6991 = vpop.f32.mrb[0].mxu0
    %v6992 = vadd.f32 %v6952, %v6991
    %v6993 = vpop.f32.mrb[0].mxu0
    %v6994 = vpop.f32.mrb[0].mxu0
    %6995 = vdwg.mxu0
    %6996 = vmatprep.subr.bf16.mxu0 %v672
    %6997 = vmatpush1.bf16.msra.mxu0 %v671
    %6998 = vmatprep.subr.bf16.mxu0 %v676
    %6999 = vmatpush1.bf16.msra.mxu0 %v675
    %7000 = vmatprep.subr.bf16.mxu0 %v680
    %7001 = vmatpush1.bf16.msra.mxu0 %v679
    %7002 = vmatprep.subr.bf16.mxu0 %v684
    %7003 = vmatpush1.bf16.msra.mxu0 %v683
    %7004 = vmatprep.subr.bf16.mxu0 %v688
    %7005 = vmatpush1.bf16.msra.mxu0 %v687
    %7006 = vmatprep.subr.bf16.mxu0 %v692
    %7007 = vmatpush1.bf16.msra.mxu0 %v691
    %7008 = vmatprep.subr.bf16.mxu0 %v696
    %7009 = vmatpush1.bf16.msra.mxu0 %v695
    %7010 = vmatprep.subr.bf16.mxu0 %v700
    %7011 = vmatpush1.bf16.msra.mxu0 %v699
    %7012 = vmatprep.subr.bf16.mxu0 %v704
    %7013 = vmatpush1.bf16.msra.mxu0 %v703
    %7014 = vmatprep.subr.bf16.mxu0 %v708
    %7015 = vmatpush1.bf16.msra.mxu0 %v707
    %7016 = vmatprep.subr.bf16.mxu0 %v712
    %7017 = vmatpush1.bf16.msra.mxu0 %v711
    %7018 = vmatprep.subr.bf16.mxu0 %v716
    %7019 = vmatpush1.bf16.msra.mxu0 %v715
    %7020 = vmatprep.subr.bf16.mxu0 %v720
    %7021 = vmatpush1.bf16.msra.mxu0 %v719
    %7022 = vmatprep.subr.bf16.mxu0 %v724
    %7023 = vmatpush1.bf16.msra.mxu0 %v723
    %7024 = vmatprep.subr.bf16.mxu0 %v728
    %7025 = vmatpush1.bf16.msra.mxu0 %v727
    %7026 = vmatprep.subr.bf16.mxu0 %v732
    %7027 = vmatpush1.bf16.msra.mxu0 %v731
    %7028 = vmatprep.mubr.bf16.mxu0 %v6947
    %7029 = vmatmul.mubr.bf16.gmra.mrb[0].mxu0 %v6946
    %v7030 = vpop.f32.mrb[0].mxu0
    %v7031 = vadd.f32 %v6990, %v7030
    %v7032 = vpop.f32.mrb[0].mxu0
    %v7033 = vadd.f32 %v6992, %v7032
    %v7034 = vpop.f32.mrb[0].mxu0
    %v7035 = vpop.f32.mrb[0].mxu0
    %7036 = vdwg.mxu0
    %7037 = vmatprep.subr.bf16.mxu0 %v610
    %7038 = vmatpush1.bf16.msra.mxu0 %v609
    %7039 = vmatprep.subr.bf16.mxu0 %v614
    %7040 = vmatpush1.bf16.msra.mxu0 %v613
    %7041 = vmatprep.subr.bf16.mxu0 %v618
    %7042 = vmatpush1.bf16.msra.mxu0 %v617
    %7043 = vmatprep.subr.bf16.mxu0 %v622
    %7044 = vmatpush1.bf16.msra.mxu0 %v621
    %7045 = vmatprep.subr.bf16.mxu0 %v626
    %7046 = vmatpush1.bf16.msra.mxu0 %v625
    %7047 = vmatprep.subr.bf16.mxu0 %v630
    %7048 = vmatpush1.bf16.msra.mxu0 %v629
    %7049 = vmatprep.subr.bf16.mxu0 %v634
    %7050 = vmatpush1.bf16.msra.mxu0 %v633
    %7051 = vmatprep.subr.bf16.mxu0 %v638
    %7052 = vmatpush1.bf16.msra.mxu0 %v637
    %7053 = vmatprep.subr.bf16.mxu0 %v642
    %7054 = vmatpush1.bf16.msra.mxu0 %v641
    %7055 = vmatprep.subr.bf16.mxu0 %v646
    %7056 = vmatpush1.bf16.msra.mxu0 %v645
    %7057 = vmatprep.subr.bf16.mxu0 %v650
    %7058 = vmatpush1.bf16.msra.mxu0 %v649
    %7059 = vmatprep.subr.bf16.mxu0 %v654
    %7060 = vmatpush1.bf16.msra.mxu0 %v653
    %7061 = vmatprep.subr.bf16.mxu0 %v658
    %7062 = vmatpush1.bf16.msra.mxu0 %v657
    %7063 = vmatprep.subr.bf16.mxu0 %v662
    %7064 = vmatpush1.bf16.msra.mxu0 %v661
    %7065 = vmatprep.subr.bf16.mxu0 %v666
    %7066 = vmatpush1.bf16.msra.mxu0 %v665
    %7067 = vmatprep.subr.bf16.mxu0 %v670
    %7068 = vmatpush1.bf16.msra.mxu0 %v669
    %7069 = vmatprep.mubr.bf16.mxu0 %v6945
    %7070 = vmatmul.mubr.bf16.gmra.mrb[0].mxu0 %v6944
    %v7071 = vpop.f32.mrb[0].mxu0
    %v7072 = vadd.f32 %v6953, %v7071
    %v7073 = vpop.f32.mrb[0].mxu0
    %v7074 = vadd.f32 %v6954, %v7073
    %v7075 = vpop.f32.mrb[0].mxu0
    %v7076 = vpop.f32.mrb[0].mxu0
    %7077 = vdwg.mxu0
    %7078 = vmatprep.subr.bf16.mxu0 %v674
    %7079 = vmatpush1.bf16.msra.mxu0 %v673
    %7080 = vmatprep.subr.bf16.mxu0 %v678
    %7081 = vmatpush1.bf16.msra.mxu0 %v677
    %7082 = vmatprep.subr.bf16.mxu0 %v682
    %7083 = vmatpush1.bf16.msra.mxu0 %v681
    %7084 = vmatprep.subr.bf16.mxu0 %v686
    %7085 = vmatpush1.bf16.msra.mxu0 %v685
    %7086 = vmatprep.subr.bf16.mxu0 %v690
    %7087 = vmatpush1.bf16.msra.mxu0 %v689
    %7088 = vmatprep.subr.bf16.mxu0 %v694
    %7089 = vmatpush1.bf16.msra.mxu0 %v693
    %7090 = vmatprep.subr.bf16.mxu0 %v698
    %7091 = vmatpush1.bf16.msra.mxu0 %v697
    %7092 = vmatprep.subr.bf16.mxu0 %v702
    %7093 = vmatpush1.bf16.msra.mxu0 %v701
    %7094 = vmatprep.subr.bf16.mxu0 %v706
    %7095 = vmatpush1.bf16.msra.mxu0 %v705
    %7096 = vmatprep.subr.bf16.mxu0 %v710
    %7097 = vmatpush1.bf16.msra.mxu0 %v709
    %7098 = vmatprep.subr.bf16.mxu0 %v714
    %7099 = vmatpush1.bf16.msra.mxu0 %v713
    %7100 = vmatprep.subr.bf16.mxu0 %v718
    %7101 = vmatpush1.bf16.msra.mxu0 %v717
    %7102 = vmatprep.subr.bf16.mxu0 %v722
    %7103 = vmatpush1.bf16.msra.mxu0 %v721
    %7104 = vmatprep.subr.bf16.mxu0 %v726
    %7105 = vmatpush1.bf16.msra.mxu0 %v725
    %7106 = vmatprep.subr.bf16.mxu0 %v730
    %7107 = vmatpush1.bf16.msra.mxu0 %v729
    %7108 = vmatprep.subr.bf16.mxu0 %v734
    %7109 = vmatpush1.bf16.msra.mxu0 %v733
    %7110 = vmatprep.mubr.bf16.mxu0 %v6947
    %7111 = vmatmul.mubr.bf16.gmra.mrb[0].mxu0 %v6946
    %v7112 = vpop.f32.mrb[0].mxu0
    %v7113 = vadd.f32 %v7072, %v7112
    %v7114 = vpop.f32.mrb[0].mxu0
    %v7115 = vadd.f32 %v7074, %v7114
    %v7116 = vpop.f32.mrb[0].mxu0
    %v7117 = vpop.f32.mrb[0].mxu0
    %7118 = vdwg.mxu0
    %v7119 = vmul.f32 %v7031, 0.5
    %v7120 = vmul.f32 %v7033, 0.5
    %v7121 = vmul.f32 %v7113, 0.5
    %v7122 = vmul.f32 %v7115, 0.5
    %v7123 = vtanh.pop %v7119
    %v7124 = vtanh.pop %v7120
    %v7125 = vtanh.pop %v7121
    %v7126 = vtanh.pop %v7122
    %v7127 = vmul.f32 %v7123, 0.5
    %v7128 = vmul.f32 %v7124, 0.5
    %v7129 = vmul.f32 %v7125, 0.5
    %v7130 = vmul.f32 %v7126, 0.5
    %v7131 = vadd.f32 %v7127, 0.5
    %v7132 = vadd.f32 %v7128, 0.5
    %v7133 = vadd.f32 %v7129, 0.5
    %v7134 = vadd.f32 %v7130, 0.5
    %v7135 = vld [vmem:[%s6948 + $0x10] sm:$0xff]
    %v7136 = vld [vmem:[%s6948 + $0x18] sm:$0xff]
    %v7137 = vunpack.c.l.bf16 %v7135
    %v7138 = vunpack.c.h.bf16 %v7135
    %v7139 = vunpack.c.l.bf16 %v7136
    %v7140 = vunpack.c.h.bf16 %v7136
    %7141 = vmatprep.subr.bf16.mxu0 %v1563
    %7142 = vmatpush1.bf16.msra.mxu0 %v1562
    %7143 = vmatprep.subr.bf16.mxu0 %v1567
    %7144 = vmatpush1.bf16.msra.mxu0 %v1566
    %7145 = vmatprep.subr.bf16.mxu0 %v1571
    %7146 = vmatpush1.bf16.msra.mxu0 %v1570
    %7147 = vmatprep.subr.bf16.mxu0 %v1575
    %7148 = vmatpush1.bf16.msra.mxu0 %v1574
    %7149 = vmatprep.subr.bf16.mxu0 %v1579
    %7150 = vmatpush1.bf16.msra.mxu0 %v1578
    %7151 = vmatprep.subr.bf16.mxu0 %v1583
    %7152 = vmatpush1.bf16.msra.mxu0 %v1582
    %7153 = vmatprep.subr.bf16.mxu0 %v1587
    %7154 = vmatpush1.bf16.msra.mxu0 %v1586
    %7155 = vmatprep.subr.bf16.mxu0 %v1591
    %7156 = vmatpush1.bf16.msra.mxu0 %v1590
    %7157 = vmatprep.subr.bf16.mxu0 %v1595
    %7158 = vmatpush1.bf16.msra.mxu0 %v1594
    %7159 = vmatprep.subr.bf16.mxu0 %v1599
    %7160 = vmatpush1.bf16.msra.mxu0 %v1598
    %7161 = vmatprep.subr.bf16.mxu0 %v1603
    %7162 = vmatpush1.bf16.msra.mxu0 %v1602
    %7163 = vmatprep.subr.bf16.mxu0 %v1607
    %7164 = vmatpush1.bf16.msra.mxu0 %v1606
    %7165 = vmatprep.subr.bf16.mxu0 %v1611
    %7166 = vmatpush1.bf16.msra.mxu0 %v1610
    %7167 = vmatprep.subr.bf16.mxu0 %v1615
    %7168 = vmatpush1.bf16.msra.mxu0 %v1614
    %7169 = vmatprep.subr.bf16.mxu0 %v1619
    %7170 = vmatpush1.bf16.msra.mxu0 %v1618
    %7171 = vmatprep.subr.bf16.mxu0 %v1623
    %7172 = vmatpush1.bf16.msra.mxu0 %v1622
    %7173 = vmatprep.mubr.bf16.mxu0 %v6945
    %7174 = vmatmul.mubr.bf16.gmra.mrb[0].mxu0 %v6944
    %v7175 = vpop.f32.mrb[0].mxu0
    %v7176 = vadd.f32 %v7137, %v7175
    %v7177 = vpop.f32.mrb[0].mxu0
    %v7178 = vadd.f32 %v7138, %v7177
    %v7179 = vpop.f32.mrb[0].mxu0
    %v7180 = vpop.f32.mrb[0].mxu0
    %7181 = vdwg.mxu0
    %7182 = vmatprep.subr.bf16.mxu0 %v1627
    %7183 = vmatpush1.bf16.msra.mxu0 %v1626
    %7184 = vmatprep.subr.bf16.mxu0 %v1631
    %7185 = vmatpush1.bf16.msra.mxu0 %v1630
    %7186 = vmatprep.subr.bf16.mxu0 %v1635
    %7187 = vmatpush1.bf16.msra.mxu0 %v1634
    %7188 = vmatprep.subr.bf16.mxu0 %v1639
    %7189 = vmatpush1.bf16.msra.mxu0 %v1638
    %7190 = vmatprep.subr.bf16.mxu0 %v1643
    %7191 = vmatpush1.bf16.msra.mxu0 %v1642
    %7192 = vmatprep.subr.bf16.mxu0 %v1647
    %7193 = vmatpush1.bf16.msra.mxu0 %v1646
    %7194 = vmatprep.subr.bf16.mxu0 %v1651
    %7195 = vmatpush1.bf16.msra.mxu0 %v1650
    %7196 = vmatprep.subr.bf16.mxu0 %v1655
    %7197 = vmatpush1.bf16.msra.mxu0 %v1654
    %7198 = vmatprep.subr.bf16.mxu0 %v1659
    %7199 = vmatpush1.bf16.msra.mxu0 %v1658
    %7200 = vmatprep.subr.bf16.mxu0 %v1663
    %7201 = vmatpush1.bf16.msra.mxu0 %v1662
    %7202 = vmatprep.subr.bf16.mxu0 %v1667
    %7203 = vmatpush1.bf16.msra.mxu0 %v1666
    %7204 = vmatprep.subr.bf16.mxu0 %v1671
    %7205 = vmatpush1.bf16.msra.mxu0 %v1670
    %7206 = vmatprep.subr.bf16.mxu0 %v1675
    %7207 = vmatpush1.bf16.msra.mxu0 %v1674
    %7208 = vmatprep.subr.bf16.mxu0 %v1679
    %7209 = vmatpush1.bf16.msra.mxu0 %v1678
    %7210 = vmatprep.subr.bf16.mxu0 %v1683
    %7211 = vmatpush1.bf16.msra.mxu0 %v1682
    %7212 = vmatprep.subr.bf16.mxu0 %v1687
    %7213 = vmatpush1.bf16.msra.mxu0 %v1686
    %7214 = vmatprep.mubr.bf16.mxu0 %v6947
    %7215 = vmatmul.mubr.bf16.gmra.mrb[0].mxu0 %v6946
    %v7216 = vpop.f32.mrb[0].mxu0
    %v7217 = vadd.f32 %v7176, %v7216
    %v7218 = vpop.f32.mrb[0].mxu0
    %v7219 = vadd.f32 %v7178, %v7218
    %v7220 = vpop.f32.mrb[0].mxu0
    %v7221 = vpop.f32.mrb[0].mxu0
    %7222 = vdwg.mxu0
    %7223 = vmatprep.subr.bf16.mxu0 %v1565
    %7224 = vmatpush1.bf16.msra.mxu0 %v1564
    %7225 = vmatprep.subr.bf16.mxu0 %v1569
    %7226 = vmatpush1.bf16.msra.mxu0 %v1568
    %7227 = vmatprep.subr.bf16.mxu0 %v1573
    %7228 = vmatpush1.bf16.msra.mxu0 %v1572
    %7229 = vmatprep.subr.bf16.mxu0 %v1577
    %7230 = vmatpush1.bf16.msra.mxu0 %v1576
    %7231 = vmatprep.subr.bf16.mxu0 %v1581
    %7232 = vmatpush1.bf16.msra.mxu0 %v1580
    %7233 = vmatprep.subr.bf16.mxu0 %v1585
    %7234 = vmatpush1.bf16.msra.mxu0 %v1584
    %7235 = vmatprep.subr.bf16.mxu0 %v1589
    %7236 = vmatpush1.bf16.msra.mxu0 %v1588
    %7237 = vmatprep.subr.bf16.mxu0 %v1593
    %7238 = vmatpush1.bf16.msra.mxu0 %v1592
    %7239 = vmatprep.subr.bf16.mxu0 %v1597
    %7240 = vmatpush1.bf16.msra.mxu0 %v1596
    %7241 = vmatprep.subr.bf16.mxu0 %v1601
    %7242 = vmatpush1.bf16.msra.mxu0 %v1600
    %7243 = vmatprep.subr.bf16.mxu0 %v1605
    %7244 = vmatpush1.bf16.msra.mxu0 %v1604
    %7245 = vmatprep.subr.bf16.mxu0 %v1609
    %7246 = vmatpush1.bf16.msra.mxu0 %v1608
    %7247 = vmatprep.subr.bf16.mxu0 %v1613
    %7248 = vmatpush1.bf16.msra.mxu0 %v1612
    %7249 = vmatprep.subr.bf16.mxu0 %v1617
    %7250 = vmatpush1.bf16.msra.mxu0 %v1616
    %7251 = vmatprep.subr.bf16.mxu0 %v1621
    %7252 = vmatpush1.bf16.msra.mxu0 %v1620
    %7253 = vmatprep.subr.bf16.mxu0 %v1625
    %7254 = vmatpush1.bf16.msra.mxu0 %v1624
    %7255 = vmatprep.mubr.bf16.mxu0 %v6945
    %7256 = vmatmul.mubr.bf16.gmra.mrb[0].mxu0 %v6944
    %v7257 = vpop.f32.mrb[0].mxu0
    %v7258 = vadd.f32 %v7139, %v7257
    %v7259 = vpop.f32.mrb[0].mxu0
    %v7260 = vadd.f32 %v7140, %v7259
    %v7261 = vpop.f32.mrb[0].mxu0
    %v7262 = vpop.f32.mrb[0].mxu0
    %7263 = vdwg.mxu0
    %7264 = vmatprep.subr.bf16.mxu0 %v1629
    %7265 = vmatpush1.bf16.msra.mxu0 %v1628
    %7266 = vmatprep.subr.bf16.mxu0 %v1633
    %7267 = vmatpush1.bf16.msra.mxu0 %v1632
    %7268 = vmatprep.subr.bf16.mxu0 %v1637
    %7269 = vmatpush1.bf16.msra.mxu0 %v1636
    %7270 = vmatprep.subr.bf16.mxu0 %v1641
    %7271 = vmatpush1.bf16.msra.mxu0 %v1640
    %7272 = vmatprep.subr.bf16.mxu0 %v1645
    %7273 = vmatpush1.bf16.msra.mxu0 %v1644
    %7274 = vmatprep.subr.bf16.mxu0 %v1649
    %7275 = vmatpush1.bf16.msra.mxu0 %v1648
    %7276 = vmatprep.subr.bf16.mxu0 %v1653
    %7277 = vmatpush1.bf16.msra.mxu0 %v1652
    %7278 = vmatprep.subr.bf16.mxu0 %v1657
    %7279 = vmatpush1.bf16.msra.mxu0 %v1656
    %7280 = vmatprep.subr.bf16.mxu0 %v1661
    %7281 = vmatpush1.bf16.msra.mxu0 %v1660
    %7282 = vmatprep.subr.bf16.mxu0 %v1665
    %7283 = vmatpush1.bf16.msra.mxu0 %v1664
    %7284 = vmatprep.subr.bf16.mxu0 %v1669
    %7285 = vmatpush1.bf16.msra.mxu0 %v1668
    %7286 = vmatprep.subr.bf16.mxu0 %v1673
    %7287 = vmatpush1.bf16.msra.mxu0 %v1672
    %7288 = vmatprep.subr.bf16.mxu0 %v1677
    %7289 = vmatpush1.bf16.msra.mxu0 %v1676
    %7290 = vmatprep.subr.bf16.mxu0 %v1681
    %7291 = vmatpush1.bf16.msra.mxu0 %v1680
    %7292 = vmatprep.subr.bf16.mxu0 %v1685
    %7293 = vmatpush1.bf16.msra.mxu0 %v1684
    %7294 = vmatprep.subr.bf16.mxu0 %v1689
    %7295 = vmatpush1.bf16.msra.mxu0 %v1688
    %7296 = vmatprep.mubr.bf16.mxu0 %v6947
    %7297 = vmatmul.mubr.bf16.gmra.mrb[0].mxu0 %v6946
    %v7298 = vpop.f32.mrb[0].mxu0
    %v7299 = vadd.f32 %v7258, %v7298
    %v7300 = vpop.f32.mrb[0].mxu0
    %v7301 = vadd.f32 %v7260, %v7300
    %v7302 = vpop.f32.mrb[0].mxu0
    %v7303 = vpop.f32.mrb[0].mxu0
    %7304 = vdwg.mxu0
    %v7305 = vmul.f32 %v7217, 0.5
    %v7306 = vmul.f32 %v7219, 0.5
    %v7307 = vmul.f32 %v7299, 0.5
    %v7308 = vmul.f32 %v7301, 0.5
    %v7309 = vtanh.pop %v7305
    %v7310 = vtanh.pop %v7306
    %v7311 = vtanh.pop %v7307
    %v7312 = vtanh.pop %v7308
    %v7313 = vmul.f32 %v7309, 0.5
    %v7314 = vmul.f32 %v7310, 0.5
    %v7315 = vmul.f32 %v7311, 0.5
    %v7316 = vmul.f32 %v7312, 0.5
    %v7317 = vadd.f32 %v7313, 0.5
    %v7318 = vadd.f32 %v7314, 0.5
    %v7319 = vadd.f32 %v7315, 0.5
    %v7320 = vadd.f32 %v7316, 0.5
    %v7321 = vmul.f32 %v7317, %v6746
    %v7322 = vmul.f32 %v7318, %v6747
    %v7323 = vmul.f32 %v7319, %v6748
    %v7324 = vmul.f32 %v7320, %v6749
    %v7325 = vld [vmem:[%s6948 + $0x20] sm:$0xff]
    %v7326 = vld [vmem:[%s6948 + $0x28] sm:$0xff]
    %v7327 = vunpack.c.l.bf16 %v7325
    %v7328 = vunpack.c.h.bf16 %v7325
    %v7329 = vunpack.c.l.bf16 %v7326
    %v7330 = vunpack.c.h.bf16 %v7326
    %7331 = vmatprep.subr.bf16.mxu0 %v2522
    %7332 = vmatpush1.bf16.msra.mxu0 %v2521
    %7333 = vmatprep.subr.bf16.mxu0 %v2526
    %7334 = vmatpush1.bf16.msra.mxu0 %v2525
    %7335 = vmatprep.subr.bf16.mxu0 %v2530
    %7336 = vmatpush1.bf16.msra.mxu0 %v2529
    %7337 = vmatprep.subr.bf16.mxu0 %v2534
    %7338 = vmatpush1.bf16.msra.mxu0 %v2533
    %7339 = vmatprep.subr.bf16.mxu0 %v2538
    %7340 = vmatpush1.bf16.msra.mxu0 %v2537
    %7341 = vmatprep.subr.bf16.mxu0 %v2542
    %7342 = vmatpush1.bf16.msra.mxu0 %v2541
    %7343 = vmatprep.subr.bf16.mxu0 %v2546
    %7344 = vmatpush1.bf16.msra.mxu0 %v2545
    %7345 = vmatprep.subr.bf16.mxu0 %v2550
    %7346 = vmatpush1.bf16.msra.mxu0 %v2549
    %7347 = vmatprep.subr.bf16.mxu0 %v2554
    %7348 = vmatpush1.bf16.msra.mxu0 %v2553
    %7349 = vmatprep.subr.bf16.mxu0 %v2558
    %7350 = vmatpush1.bf16.msra.mxu0 %v2557
    %7351 = vmatprep.subr.bf16.mxu0 %v2562
    %7352 = vmatpush1.bf16.msra.mxu0 %v2561
    %7353 = vmatprep.subr.bf16.mxu0 %v2566
    %7354 = vmatpush1.bf16.msra.mxu0 %v2565
    %7355 = vmatprep.subr.bf16.mxu0 %v2570
    %7356 = vmatpush1.bf16.msra.mxu0 %v2569
    %7357 = vmatprep.subr.bf16.mxu0 %v2574
    %7358 = vmatpush1.bf16.msra.mxu0 %v2573
    %7359 = vmatprep.subr.bf16.mxu0 %v2578
    %7360 = vmatpush1.bf16.msra.mxu0 %v2577
    %7361 = vmatprep.subr.bf16.mxu0 %v2582
    %7362 = vmatpush1.bf16.msra.mxu0 %v2581
    %7363 = vmatprep.mubr.bf16.mxu0 %v6945
    %7364 = vmatmul.mubr.bf16.gmra.mrb[0].mxu0 %v6944
    %v7365 = vpop.f32.mrb[0].mxu0
    %v7366 = vadd.f32 %v7327, %v7365
    %v7367 = vpop.f32.mrb[0].mxu0
    %v7368 = vadd.f32 %v7328, %v7367
    %v7369 = vpop.f32.mrb[0].mxu0
    %v7370 = vpop.f32.mrb[0].mxu0
    %7371 = vdwg.mxu0
    %7372 = vmatprep.subr.bf16.mxu0 %v2586
    %7373 = vmatpush1.bf16.msra.mxu0 %v2585
    %7374 = vmatprep.subr.bf16.mxu0 %v2590
    %7375 = vmatpush1.bf16.msra.mxu0 %v2589
    %7376 = vmatprep.subr.bf16.mxu0 %v2594
    %7377 = vmatpush1.bf16.msra.mxu0 %v2593
    %7378 = vmatprep.subr.bf16.mxu0 %v2598
    %7379 = vmatpush1.bf16.msra.mxu0 %v2597
    %7380 = vmatprep.subr.bf16.mxu0 %v2602
    %7381 = vmatpush1.bf16.msra.mxu0 %v2601
    %7382 = vmatprep.subr.bf16.mxu0 %v2606
    %7383 = vmatpush1.bf16.msra.mxu0 %v2605
    %7384 = vmatprep.subr.bf16.mxu0 %v2610
    %7385 = vmatpush1.bf16.msra.mxu0 %v2609
    %7386 = vmatprep.subr.bf16.mxu0 %v2614
    %7387 = vmatpush1.bf16.msra.mxu0 %v2613
    %7388 = vmatprep.subr.bf16.mxu0 %v2618
    %7389 = vmatpush1.bf16.msra.mxu0 %v2617
    %7390 = vmatprep.subr.bf16.mxu0 %v2622
    %7391 = vmatpush1.bf16.msra.mxu0 %v2621
    %7392 = vmatprep.subr.bf16.mxu0 %v2626
    %7393 = vmatpush1.bf16.msra.mxu0 %v2625
    %7394 = vmatprep.subr.bf16.mxu0 %v2630
    %7395 = vmatpush1.bf16.msra.mxu0 %v2629
    %7396 = vmatprep.subr.bf16.mxu0 %v2634
    %7397 = vmatpush1.bf16.msra.mxu0 %v2633
    %7398 = vmatprep.subr.bf16.mxu0 %v2638
    %7399 = vmatpush1.bf16.msra.mxu0 %v2637
    %7400 = vmatprep.subr.bf16.mxu0 %v2642
    %7401 = vmatpush1.bf16.msra.mxu0 %v2641
    %7402 = vmatprep.subr.bf16.mxu0 %v2646
    %7403 = vmatpush1.bf16.msra.mxu0 %v2645
    %7404 = vmatprep.mubr.bf16.mxu0 %v6947
    %7405 = vmatmul.mubr.bf16.gmra.mrb[0].mxu0 %v6946
    %v7406 = vpop.f32.mrb[0].mxu0
    %v7407 = vadd.f32 %v7366, %v7406
    %v7408 = vpop.f32.mrb[0].mxu0
    %v7409 = vadd.f32 %v7368, %v7408
    %v7410 = vpop.f32.mrb[0].mxu0
    %v7411 = vpop.f32.mrb[0].mxu0
    %7412 = vdwg.mxu0
    %7413 = vmatprep.subr.bf16.mxu0 %v2524
    %7414 = vmatpush1.bf16.msra.mxu0 %v2523
    %7415 = vmatprep.subr.bf16.mxu0 %v2528
    %7416 = vmatpush1.bf16.msra.mxu0 %v2527
    %7417 = vmatprep.subr.bf16.mxu0 %v2532
    %7418 = vmatpush1.bf16.msra.mxu0 %v2531
    %7419 = vmatprep.subr.bf16.mxu0 %v2536
    %7420 = vmatpush1.bf16.msra.mxu0 %v2535
    %7421 = vmatprep.subr.bf16.mxu0 %v2540
    %7422 = vmatpush1.bf16.msra.mxu0 %v2539
    %7423 = vmatprep.subr.bf16.mxu0 %v2544
    %7424 = vmatpush1.bf16.msra.mxu0 %v2543
    %7425 = vmatprep.subr.bf16.mxu0 %v2548
    %7426 = vmatpush1.bf16.msra.mxu0 %v2547
    %7427 = vmatprep.subr.bf16.mxu0 %v2552
    %7428 = vmatpush1.bf16.msra.mxu0 %v2551
    %7429 = vmatprep.subr.bf16.mxu0 %v2556
    %7430 = vmatpush1.bf16.msra.mxu0 %v2555
    %7431 = vmatprep.subr.bf16.mxu0 %v2560
    %7432 = vmatpush1.bf16.msra.mxu0 %v2559
    %7433 = vmatprep.subr.bf16.mxu0 %v2564
    %7434 = vmatpush1.bf16.msra.mxu0 %v2563
    %7435 = vmatprep.subr.bf16.mxu0 %v2568
    %7436 = vmatpush1.bf16.msra.mxu0 %v2567
    %7437 = vmatprep.subr.bf16.mxu0 %v2572
    %7438 = vmatpush1.bf16.msra.mxu0 %v2571
    %7439 = vmatprep.subr.bf16.mxu0 %v2576
    %7440 = vmatpush1.bf16.msra.mxu0 %v2575
    %7441 = vmatprep.subr.bf16.mxu0 %v2580
    %7442 = vmatpush1.bf16.msra.mxu0 %v2579
    %7443 = vmatprep.subr.bf16.mxu0 %v2584
    %7444 = vmatpush1.bf16.msra.mxu0 %v2583
    %7445 = vmatprep.mubr.bf16.mxu0 %v6945
    %7446 = vmatmul.mubr.bf16.gmra.mrb[0].mxu0 %v6944
    %v7447 = vpop.f32.mrb[0].mxu0
    %v7448 = vadd.f32 %v7329, %v7447
    %v7449 = vpop.f32.mrb[0].mxu0
    %v7450 = vadd.f32 %v7330, %v7449
    %v7451 = vpop.f32.mrb[0].mxu0
    %v7452 = vpop.f32.mrb[0].mxu0
    %7453 = vdwg.mxu0
    %7454 = vmatprep.subr.bf16.mxu0 %v2588
    %7455 = vmatpush1.bf16.msra.mxu0 %v2587
    %7456 = vmatprep.subr.bf16.mxu0 %v2592
    %7457 = vmatpush1.bf16.msra.mxu0 %v2591
    %7458 = vmatprep.subr.bf16.mxu0 %v2596
    %7459 = vmatpush1.bf16.msra.mxu0 %v2595
    %7460 = vmatprep.subr.bf16.mxu0 %v2600
    %7461 = vmatpush1.bf16.msra.mxu0 %v2599
    %7462 = vmatprep.subr.bf16.mxu0 %v2604
    %7463 = vmatpush1.bf16.msra.mxu0 %v2603
    %7464 = vmatprep.subr.bf16.mxu0 %v2608
    %7465 = vmatpush1.bf16.msra.mxu0 %v2607
    %7466 = vmatprep.subr.bf16.mxu0 %v2612
    %7467 = vmatpush1.bf16.msra.mxu0 %v2611
    %7468 = vmatprep.subr.bf16.mxu0 %v2616
    %7469 = vmatpush1.bf16.msra.mxu0 %v2615
    %7470 = vmatprep.subr.bf16.mxu0 %v2620
    %7471 = vmatpush1.bf16.msra.mxu0 %v2619
    %7472 = vmatprep.subr.bf16.mxu0 %v2624
    %7473 = vmatpush1.bf16.msra.mxu0 %v2623
    %7474 = vmatprep.subr.bf16.mxu0 %v2628
    %7475 = vmatpush1.bf16.msra.mxu0 %v2627
    %7476 = vmatprep.subr.bf16.mxu0 %v2632
    %7477 = vmatpush1.bf16.msra.mxu0 %v2631
    %7478 = vmatprep.subr.bf16.mxu0 %v2636
    %7479 = vmatpush1.bf16.msra.mxu0 %v2635
    %7480 = vmatprep.subr.bf16.mxu0 %v2640
    %7481 = vmatpush1.bf16.msra.mxu0 %v2639
    %7482 = vmatprep.subr.bf16.mxu0 %v2644
    %7483 = vmatpush1.bf16.msra.mxu0 %v2643
    %7484 = vmatprep.subr.bf16.mxu0 %v2648
    %7485 = vmatpush1.bf16.msra.mxu0 %v2647
    %7486 = vmatprep.mubr.bf16.mxu0 %v6947
    %7487 = vmatmul.mubr.bf16.gmra.mrb[0].mxu0 %v6946
    %v7488 = vpop.f32.mrb[0].mxu0
    %v7489 = vadd.f32 %v7448, %v7488
    %v7490 = vpop.f32.mrb[0].mxu0
    %v7491 = vadd.f32 %v7450, %v7490
    %v7492 = vpop.f32.mrb[0].mxu0
    %v7493 = vpop.f32.mrb[0].mxu0
    %7494 = vdwg.mxu0
    %v7495 = vtanh.pop %v7407
    %v7496 = vtanh.pop %v7409
    %v7497 = vtanh.pop %v7489
    %v7498 = vtanh.pop %v7491
    %v7499 = vmul.f32 %v7131, %v7495
    %v7500 = vmul.f32 %v7132, %v7496
    %v7501 = vmul.f32 %v7133, %v7497
    %v7502 = vmul.f32 %v7134, %v7498
    %v7503 = vadd.f32 %v7321, %v7499
    %v7504 = vadd.f32 %v7322, %v7500
    %v7505 = vadd.f32 %v7323, %v7501
    %v7506 = vadd.f32 %v7324, %v7502
    %v7507 = vld [vmem:[%s6948 + $0x30] sm:$0xff]
    %v7508 = vld [vmem:[%s6948 + $0x38] sm:$0xff]
    %v7509 = vunpack.c.l.bf16 %v7507
    %v7510 = vunpack.c.h.bf16 %v7507
    %v7511 = vunpack.c.l.bf16 %v7508
    %v7512 = vunpack.c.h.bf16 %v7508
    %7513 = vmatprep.subr.bf16.mxu0 %v3473
    %7514 = vmatpush1.bf16.msra.mxu0 %v3472
    %7515 = vmatprep.subr.bf16.mxu0 %v3477
    %7516 = vmatpush1.bf16.msra.mxu0 %v3476
    %7517 = vmatprep.subr.bf16.mxu0 %v3481
    %7518 = vmatpush1.bf16.msra.mxu0 %v3480
    %7519 = vmatprep.subr.bf16.mxu0 %v3485
    %7520 = vmatpush1.bf16.msra.mxu0 %v3484
    %7521 = vmatprep.subr.bf16.mxu0 %v3489
    %7522 = vmatpush1.bf16.msra.mxu0 %v3488
    %7523 = vmatprep.subr.bf16.mxu0 %v3493
    %7524 = vmatpush1.bf16.msra.mxu0 %v3492
    %7525 = vmatprep.subr.bf16.mxu0 %v3497
    %7526 = vmatpush1.bf16.msra.mxu0 %v3496
    %7527 = vmatprep.subr.bf16.mxu0 %v3501
    %7528 = vmatpush1.bf16.msra.mxu0 %v3500
    %7529 = vmatprep.subr.bf16.mxu0 %v3505
    %7530 = vmatpush1.bf16.msra.mxu0 %v3504
    %7531 = vmatprep.subr.bf16.mxu0 %v3509
    %7532 = vmatpush1.bf16.msra.mxu0 %v3508
    %7533 = vmatprep.subr.bf16.mxu0 %v3513
    %7534 = vmatpush1.bf16.msra.mxu0 %v3512
    %7535 = vmatprep.subr.bf16.mxu0 %v3517
    %7536 = vmatpush1.bf16.msra.mxu0 %v3516
    %7537 = vmatprep.subr.bf16.mxu0 %v3521
    %7538 = vmatpush1.bf16.msra.mxu0 %v3520
    %7539 = vmatprep.subr.bf16.mxu0 %v3525
    %7540 = vmatpush1.bf16.msra.mxu0 %v3524
    %7541 = vmatprep.subr.bf16.mxu0 %v3529
    %7542 = vmatpush1.bf16.msra.mxu0 %v3528
    %7543 = vmatprep.subr.bf16.mxu0 %v3533
    %7544 = vmatpush1.bf16.msra.mxu0 %v3532
    %7545 = vmatprep.mubr.bf16.mxu0 %v6945
    %7546 = vmatmul.mubr.bf16.gmra.mrb[0].mxu0 %v6944
    %v7547 = vpop.f32.mrb[0].mxu0
    %v7548 = vadd.f32 %v7509, %v7547
    %v7549 = vpop.f32.mrb[0].mxu0
    %v7550 = vadd.f32 %v7510, %v7549
    %v7551 = vpop.f32.mrb[0].mxu0
    %v7552 = vpop.f32.mrb[0].mxu0
    %7553 = vdwg.mxu0
    %7554 = vmatprep.subr.bf16.mxu0 %v3537
    %7555 = vmatpush1.bf16.msra.mxu0 %v3536
    %7556 = vmatprep.subr.bf16.mxu0 %v3541
    %7557 = vmatpush1.bf16.msra.mxu0 %v3540
    %7558 = vmatprep.subr.bf16.mxu0 %v3545
    %7559 = vmatpush1.bf16.msra.mxu0 %v3544
    %7560 = vmatprep.subr.bf16.mxu0 %v3549
    %7561 = vmatpush1.bf16.msra.mxu0 %v3548
    %7562 = vmatprep.subr.bf16.mxu0 %v3553
    %7563 = vmatpush1.bf16.msra.mxu0 %v3552
    %7564 = vmatprep.subr.bf16.mxu0 %v3557
    %7565 = vmatpush1.bf16.msra.mxu0 %v3556
    %7566 = vmatprep.subr.bf16.mxu0 %v3561
    %7567 = vmatpush1.bf16.msra.mxu0 %v3560
    %7568 = vmatprep.subr.bf16.mxu0 %v3565
    %7569 = vmatpush1.bf16.msra.mxu0 %v3564
    %7570 = vmatprep.subr.bf16.mxu0 %v3569
    %7571 = vmatpush1.bf16.msra.mxu0 %v3568
    %7572 = vmatprep.subr.bf16.mxu0 %v3573
    %7573 = vmatpush1.bf16.msra.mxu0 %v3572
    %7574 = vmatprep.subr.bf16.mxu0 %v3577
    %7575 = vmatpush1.bf16.msra.mxu0 %v3576
    %7576 = vmatprep.subr.bf16.mxu0 %v3581
    %7577 = vmatpush1.bf16.msra.mxu0 %v3580
    %7578 = vmatprep.subr.bf16.mxu0 %v3585
    %7579 = vmatpush1.bf16.msra.mxu0 %v3584
    %7580 = vmatprep.subr.bf16.mxu0 %v3589
    %7581 = vmatpush1.bf16.msra.mxu0 %v3588
    %7582 = vmatprep.subr.bf16.mxu0 %v3593
    %7583 = vmatpush1.bf16.msra.mxu0 %v3592
    %7584 = vmatprep.subr.bf16.mxu0 %v3597
    %7585 = vmatpush1.bf16.msra.mxu0 %v3596
    %7586 = vmatprep.mubr.bf16.mxu0 %v6947
    %7587 = vmatmul.mubr.bf16.gmra.mrb[0].mxu0 %v6946
    %v7588 = vpop.f32.mrb[0].mxu0
    %v7589 = vadd.f32 %v7548, %v7588
    %v7590 = vpop.f32.mrb[0].mxu0
    %v7591 = vadd.f32 %v7550, %v7590
    %v7592 = vpop.f32.mrb[0].mxu0
    %v7593 = vpop.f32.mrb[0].mxu0
    %7594 = vdwg.mxu0
    %7595 = vmatprep.subr.bf16.mxu0 %v3475
    %7596 = vmatpush1.bf16.msra.mxu0 %v3474
    %7597 = vmatprep.subr.bf16.mxu0 %v3479
    %7598 = vmatpush1.bf16.msra.mxu0 %v3478
    %7599 = vmatprep.subr.bf16.mxu0 %v3483
    %7600 = vmatpush1.bf16.msra.mxu0 %v3482
    %7601 = vmatprep.subr.bf16.mxu0 %v3487
    %7602 = vmatpush1.bf16.msra.mxu0 %v3486
    %7603 = vmatprep.subr.bf16.mxu0 %v3491
    %7604 = vmatpush1.bf16.msra.mxu0 %v3490
    %7605 = vmatprep.subr.bf16.mxu0 %v3495
    %7606 = vmatpush1.bf16.msra.mxu0 %v3494
    %7607 = vmatprep.subr.bf16.mxu0 %v3499
    %7608 = vmatpush1.bf16.msra.mxu0 %v3498
    %7609 = vmatprep.subr.bf16.mxu0 %v3503
    %7610 = vmatpush1.bf16.msra.mxu0 %v3502
    %7611 = vmatprep.subr.bf16.mxu0 %v3507
    %7612 = vmatpush1.bf16.msra.mxu0 %v3506
    %7613 = vmatprep.subr.bf16.mxu0 %v3511
    %7614 = vmatpush1.bf16.msra.mxu0 %v3510
    %7615 = vmatprep.subr.bf16.mxu0 %v3515
    %7616 = vmatpush1.bf16.msra.mxu0 %v3514
    %7617 = vmatprep.subr.bf16.mxu0 %v3519
    %7618 = vmatpush1.bf16.msra.mxu0 %v3518
    %7619 = vmatprep.subr.bf16.mxu0 %v3523
    %7620 = vmatpush1.bf16.msra.mxu0 %v3522
    %7621 = vmatprep.subr.bf16.mxu0 %v3527
    %7622 = vmatpush1.bf16.msra.mxu0 %v3526
    %7623 = vmatprep.subr.bf16.mxu0 %v3531
    %7624 = vmatpush1.bf16.msra.mxu0 %v3530
    %7625 = vmatprep.subr.bf16.mxu0 %v3535
    %7626 = vmatpush1.bf16.msra.mxu0 %v3534
    %7627 = vmatprep.mubr.bf16.mxu0 %v6945
    %7628 = vmatmul.mubr.bf16.gmra.mrb[0].mxu0 %v6944
    %v7629 = vpop.f32.mrb[0].mxu0
    %v7630 = vadd.f32 %v7511, %v7629
    %v7631 = vpop.f32.mrb[0].mxu0
    %v7632 = vadd.f32 %v7512, %v7631
    %v7633 = vpop.f32.mrb[0].mxu0
    %v7634 = vpop.f32.mrb[0].mxu0
    %7635 = vdwg.mxu0
    %7636 = vmatprep.subr.bf16.mxu0 %v3539
    %7637 = vmatpush1.bf16.msra.mxu0 %v3538
    %7638 = vmatprep.subr.bf16.mxu0 %v3543
    %7639 = vmatpush1.bf16.msra.mxu0 %v3542
    %7640 = vmatprep.subr.bf16.mxu0 %v3547
    %7641 = vmatpush1.bf16.msra.mxu0 %v3546
    %7642 = vmatprep.subr.bf16.mxu0 %v3551
    %7643 = vmatpush1.bf16.msra.mxu0 %v3550
    %7644 = vmatprep.subr.bf16.mxu0 %v3555
    %7645 = vmatpush1.bf16.msra.mxu0 %v3554
    %7646 = vmatprep.subr.bf16.mxu0 %v3559
    %7647 = vmatpush1.bf16.msra.mxu0 %v3558
    %7648 = vmatprep.subr.bf16.mxu0 %v3563
    %7649 = vmatpush1.bf16.msra.mxu0 %v3562
    %7650 = vmatprep.subr.bf16.mxu0 %v3567
    %7651 = vmatpush1.bf16.msra.mxu0 %v3566
    %7652 = vmatprep.subr.bf16.mxu0 %v3571
    %7653 = vmatpush1.bf16.msra.mxu0 %v3570
    %7654 = vmatprep.subr.bf16.mxu0 %v3575
    %7655 = vmatpush1.bf16.msra.mxu0 %v3574
    %7656 = vmatprep.subr.bf16.mxu0 %v3579
    %7657 = vmatpush1.bf16.msra.mxu0 %v3578
    %7658 = vmatprep.subr.bf16.mxu0 %v3583
    %7659 = vmatpush1.bf16.msra.mxu0 %v3582
    %7660 = vmatprep.subr.bf16.mxu0 %v3587
    %7661 = vmatpush1.bf16.msra.mxu0 %v3586
    %7662 = vmatprep.subr.bf16.mxu0 %v3591
    %7663 = vmatpush1.bf16.msra.mxu0 %v3590
    %7664 = vmatprep.subr.bf16.mxu0 %v3595
    %7665 = vmatpush1.bf16.msra.mxu0 %v3594
    %7666 = vmatprep.subr.bf16.mxu0 %v3599
    %7667 = vmatpush1.bf16.msra.mxu0 %v3598
    %7668 = vmatprep.mubr.bf16.mxu0 %v6947
    %7669 = vmatmul.mubr.bf16.gmra.mrb[0].mxu0 %v6946
    %v7670 = vpop.f32.mrb[0].mxu0
    %v7671 = vadd.f32 %v7630, %v7670
    %v7672 = vpop.f32.mrb[0].mxu0
    %v7673 = vadd.f32 %v7632, %v7672
    %v7674 = vpop.f32.mrb[0].mxu0
    %v7675 = vpop.f32.mrb[0].mxu0
    %7676 = vdwg.mxu0
    %v7677 = vmul.f32 %v7589, 0.5
    %v7678 = vmul.f32 %v7591, 0.5
    %v7679 = vmul.f32 %v7671, 0.5
    %v7680 = vmul.f32 %v7673, 0.5
    %v7681 = vtanh.pop %v7677
    %v7682 = vtanh.pop %v7678
    %v7683 = vtanh.pop %v7679
    %v7684 = vtanh.pop %v7680
    %v7685 = vmul.f32 %v7681, 0.5
    %v7686 = vmul.f32 %v7682, 0.5
    %v7687 = vmul.f32 %v7683, 0.5
    %v7688 = vmul.f32 %v7684, 0.5
    %v7689 = vadd.f32 %v7685, 0.5
    %v7690 = vadd.f32 %v7686, 0.5
    %v7691 = vadd.f32 %v7687, 0.5
    %v7692 = vadd.f32 %v7688, 0.5
    %v7693 = vtanh.pop %v7503
    %v7694 = vtanh.pop %v7504
    %v7695 = vtanh.pop %v7505
    %v7696 = vtanh.pop %v7506
    %v7697 = vmul.f32 %v7689, %v7693
    %v7698 = vmul.f32 %v7690, %v7694
    %v7699 = vmul.f32 %v7691, %v7695
    %v7700 = vmul.f32 %v7692, %v7696
    %v7701 = vpack.c.bf16 %v7697, %v7697
    %v7702 = vpack.c.bf16 %v7698, %v7698
    %v7703 = vpack.c.bf16 %v7699, %v7699
    %v7704 = vpack.c.bf16 %v7700, %v7700
    %s7705 = scalar_lea.vmem [#allocation5], 384
    %v7706 = vld [vmem:[%s7705] sm:$0xff]
    %v7707 = vld [vmem:[%s7705 + $0x8] sm:$0xff]
    %v7708 = vunpack.c.l.bf16 %v7706
    %v7709 = vunpack.c.h.bf16 %v7706
    %v7710 = vunpack.c.l.bf16 %v7707
    %v7711 = vunpack.c.h.bf16 %v7707
    %7712 = vmatprep.subr.bf16.mxu0 %v608
    %7713 = vmatpush1.bf16.msra.mxu0 %v607
    %7714 = vmatprep.subr.bf16.mxu0 %v612
    %7715 = vmatpush1.bf16.msra.mxu0 %v611
    %7716 = vmatprep.subr.bf16.mxu0 %v616
    %7717 = vmatpush1.bf16.msra.mxu0 %v615
    %7718 = vmatprep.subr.bf16.mxu0 %v620
    %7719 = vmatpush1.bf16.msra.mxu0 %v619
    %7720 = vmatprep.subr.bf16.mxu0 %v624
    %7721 = vmatpush1.bf16.msra.mxu0 %v623
    %7722 = vmatprep.subr.bf16.mxu0 %v628
    %7723 = vmatpush1.bf16.msra.mxu0 %v627
    %7724 = vmatprep.subr.bf16.mxu0 %v632
    %7725 = vmatpush1.bf16.msra.mxu0 %v631
    %7726 = vmatprep.subr.bf16.mxu0 %v636
    %7727 = vmatpush1.bf16.msra.mxu0 %v635
    %7728 = vmatprep.subr.bf16.mxu0 %v640
    %7729 = vmatpush1.bf16.msra.mxu0 %v639
    %7730 = vmatprep.subr.bf16.mxu0 %v644
    %7731 = vmatpush1.bf16.msra.mxu0 %v643
    %7732 = vmatprep.subr.bf16.mxu0 %v648
    %7733 = vmatpush1.bf16.msra.mxu0 %v647
    %7734 = vmatprep.subr.bf16.mxu0 %v652
    %7735 = vmatpush1.bf16.msra.mxu0 %v651
    %7736 = vmatprep.subr.bf16.mxu0 %v656
    %7737 = vmatpush1.bf16.msra.mxu0 %v655
    %7738 = vmatprep.subr.bf16.mxu0 %v660
    %7739 = vmatpush1.bf16.msra.mxu0 %v659
    %7740 = vmatprep.subr.bf16.mxu0 %v664
    %7741 = vmatpush1.bf16.msra.mxu0 %v663
    %7742 = vmatprep.subr.bf16.mxu0 %v668
    %7743 = vmatpush1.bf16.msra.mxu0 %v667
    %7744 = vmatprep.mubr.bf16.mxu0 %v7702
    %7745 = vmatmul.mubr.bf16.gmra.mrb[0].mxu0 %v7701
    %v7746 = vpop.f32.mrb[0].mxu0
    %v7747 = vadd.f32 %v7708, %v7746
    %v7748 = vpop.f32.mrb[0].mxu0
    %v7749 = vadd.f32 %v7709, %v7748
    %v7750 = vpop.f32.mrb[0].mxu0
    %v7751 = vpop.f32.mrb[0].mxu0
    %7752 = vdwg.mxu0
    %7753 = vmatprep.subr.bf16.mxu0 %v672
    %7754 = vmatpush1.bf16.msra.mxu0 %v671
    %7755 = vmatprep.subr.bf16.mxu0 %v676
    %7756 = vmatpush1.bf16.msra.mxu0 %v675
    %7757 = vmatprep.subr.bf16.mxu0 %v680
    %7758 = vmatpush1.bf16.msra.mxu0 %v679
    %7759 = vmatprep.subr.bf16.mxu0 %v684
    %7760 = vmatpush1.bf16.msra.mxu0 %v683
    %7761 = vmatprep.subr.bf16.mxu0 %v688
    %7762 = vmatpush1.bf16.msra.mxu0 %v687
    %7763 = vmatprep.subr.bf16.mxu0 %v692
    %7764 = vmatpush1.bf16.msra.mxu0 %v691
    %7765 = vmatprep.subr.bf16.mxu0 %v696
    %7766 = vmatpush1.bf16.msra.mxu0 %v695
    %7767 = vmatprep.subr.bf16.mxu0 %v700
    %7768 = vmatpush1.bf16.msra.mxu0 %v699
    %7769 = vmatprep.subr.bf16.mxu0 %v704
    %7770 = vmatpush1.bf16.msra.mxu0 %v703
    %7771 = vmatprep.subr.bf16.mxu0 %v708
    %7772 = vmatpush1.bf16.msra.mxu0 %v707
    %7773 = vmatprep.subr.bf16.mxu0 %v712
    %7774 = vmatpush1.bf16.msra.mxu0 %v711
    %7775 = vmatprep.subr.bf16.mxu0 %v716
    %7776 = vmatpush1.bf16.msra.mxu0 %v715
    %7777 = vmatprep.subr.bf16.mxu0 %v720
    %7778 = vmatpush1.bf16.msra.mxu0 %v719
    %7779 = vmatprep.subr.bf16.mxu0 %v724
    %7780 = vmatpush1.bf16.msra.mxu0 %v723
    %7781 = vmatprep.subr.bf16.mxu0 %v728
    %7782 = vmatpush1.bf16.msra.mxu0 %v727
    %7783 = vmatprep.subr.bf16.mxu0 %v732
    %7784 = vmatpush1.bf16.msra.mxu0 %v731
    %7785 = vmatprep.mubr.bf16.mxu0 %v7704
    %7786 = vmatmul.mubr.bf16.gmra.mrb[0].mxu0 %v7703
    %v7787 = vpop.f32.mrb[0].mxu0
    %v7788 = vadd.f32 %v7747, %v7787
    %v7789 = vpop.f32.mrb[0].mxu0
    %v7790 = vadd.f32 %v7749, %v7789
    %v7791 = vpop.f32.mrb[0].mxu0
    %v7792 = vpop.f32.mrb[0].mxu0
    %7793 = vdwg.mxu0
    %7794 = vmatprep.subr.bf16.mxu0 %v610
    %7795 = vmatpush1.bf16.msra.mxu0 %v609
    %7796 = vmatprep.subr.bf16.mxu0 %v614
    %7797 = vmatpush1.bf16.msra.mxu0 %v613
    %7798 = vmatprep.subr.bf16.mxu0 %v618
    %7799 = vmatpush1.bf16.msra.mxu0 %v617
    %7800 = vmatprep.subr.bf16.mxu0 %v622
    %7801 = vmatpush1.bf16.msra.mxu0 %v621
    %7802 = vmatprep.subr.bf16.mxu0 %v626
    %7803 = vmatpush1.bf16.msra.mxu0 %v625
    %7804 = vmatprep.subr.bf16.mxu0 %v630
    %7805 = vmatpush1.bf16.msra.mxu0 %v629
    %7806 = vmatprep.subr.bf16.mxu0 %v634
    %7807 = vmatpush1.bf16.msra.mxu0 %v633
    %7808 = vmatprep.subr.bf16.mxu0 %v638
    %7809 = vmatpush1.bf16.msra.mxu0 %v637
    %7810 = vmatprep.subr.bf16.mxu0 %v642
    %7811 = vmatpush1.bf16.msra.mxu0 %v641
    %7812 = vmatprep.subr.bf16.mxu0 %v646
    %7813 = vmatpush1.bf16.msra.mxu0 %v645
    %7814 = vmatprep.subr.bf16.mxu0 %v650
    %7815 = vmatpush1.bf16.msra.mxu0 %v649
    %7816 = vmatprep.subr.bf16.mxu0 %v654
    %7817 = vmatpush1.bf16.msra.mxu0 %v653
    %7818 = vmatprep.subr.bf16.mxu0 %v658
    %7819 = vmatpush1.bf16.msra.mxu0 %v657
    %7820 = vmatprep.subr.bf16.mxu0 %v662
    %7821 = vmatpush1.bf16.msra.mxu0 %v661
    %7822 = vmatprep.subr.bf16.mxu0 %v666
    %7823 = vmatpush1.bf16.msra.mxu0 %v665
    %7824 = vmatprep.subr.bf16.mxu0 %v670
    %7825 = vmatpush1.bf16.msra.mxu0 %v669
    %7826 = vmatprep.mubr.bf16.mxu0 %v7702
    %7827 = vmatmul.mubr.bf16.gmra.mrb[0].mxu0 %v7701
    %v7828 = vpop.f32.mrb[0].mxu0
    %v7829 = vadd.f32 %v7710, %v7828
    %v7830 = vpop.f32.mrb[0].mxu0
    %v7831 = vadd.f32 %v7711, %v7830
    %v7832 = vpop.f32.mrb[0].mxu0
    %v7833 = vpop.f32.mrb[0].mxu0
    %7834 = vdwg.mxu0
    %7835 = vmatprep.subr.bf16.mxu0 %v674
    %7836 = vmatpush1.bf16.msra.mxu0 %v673
    %7837 = vmatprep.subr.bf16.mxu0 %v678
    %7838 = vmatpush1.bf16.msra.mxu0 %v677
    %7839 = vmatprep.subr.bf16.mxu0 %v682
    %7840 = vmatpush1.bf16.msra.mxu0 %v681
    %7841 = vmatprep.subr.bf16.mxu0 %v686
    %7842 = vmatpush1.bf16.msra.mxu0 %v685
    %7843 = vmatprep.subr.bf16.mxu0 %v690
    %7844 = vmatpush1.bf16.msra.mxu0 %v689
    %7845 = vmatprep.subr.bf16.mxu0 %v694
    %7846 = vmatpush1.bf16.msra.mxu0 %v693
    %7847 = vmatprep.subr.bf16.mxu0 %v698
    %7848 = vmatpush1.bf16.msra.mxu0 %v697
    %7849 = vmatprep.subr.bf16.mxu0 %v702
    %7850 = vmatpush1.bf16.msra.mxu0 %v701
    %7851 = vmatprep.subr.bf16.mxu0 %v706
    %7852 = vmatpush1.bf16.msra.mxu0 %v705
    %7853 = vmatprep.subr.bf16.mxu0 %v710
    %7854 = vmatpush1.bf16.msra.mxu0 %v709
    %7855 = vmatprep.subr.bf16.mxu0 %v714
    %7856 = vmatpush1.bf16.msra.mxu0 %v713
    %7857 = vmatprep.subr.bf16.mxu0 %v718
    %7858 = vmatpush1.bf16.msra.mxu0 %v717
    %7859 = vmatprep.subr.bf16.mxu0 %v722
    %7860 = vmatpush1.bf16.msra.mxu0 %v721
    %7861 = vmatprep.subr.bf16.mxu0 %v726
    %7862 = vmatpush1.bf16.msra.mxu0 %v725
    %7863 = vmatprep.subr.bf16.mxu0 %v730
    %7864 = vmatpush1.bf16.msra.mxu0 %v729
    %7865 = vmatprep.subr.bf16.mxu0 %v734
    %7866 = vmatpush1.bf16.msra.mxu0 %v733
    %7867 = vmatprep.mubr.bf16.mxu0 %v7704
    %7868 = vmatmul.mubr.bf16.gmra.mrb[0].mxu0 %v7703
    %v7869 = vpop.f32.mrb[0].mxu0
    %v7870 = vadd.f32 %v7829, %v7869
    %v7871 = vpop.f32.mrb[0].mxu0
    %v7872 = vadd.f32 %v7831, %v7871
    %v7873 = vpop.f32.mrb[0].mxu0
    %v7874 = vpop.f32.mrb[0].mxu0
    %7875 = vdwg.mxu0
    %v7876 = vmul.f32 %v7788, 0.5
    %v7877 = vmul.f32 %v7790, 0.5
    %v7878 = vmul.f32 %v7870, 0.5
    %v7879 = vmul.f32 %v7872, 0.5
    %v7880 = vtanh.pop %v7876
    %v7881 = vtanh.pop %v7877
    %v7882 = vtanh.pop %v7878
    %v7883 = vtanh.pop %v7879
    %v7884 = vmul.f32 %v7880, 0.5
    %v7885 = vmul.f32 %v7881, 0.5
    %v7886 = vmul.f32 %v7882, 0.5
    %v7887 = vmul.f32 %v7883, 0.5
    %v7888 = vadd.f32 %v7884, 0.5
    %v7889 = vadd.f32 %v7885, 0.5
    %v7890 = vadd.f32 %v7886, 0.5
    %v7891 = vadd.f32 %v7887, 0.5
    %v7892 = vld [vmem:[%s7705 + $0x10] sm:$0xff]
    %v7893 = vld [vmem:[%s7705 + $0x18] sm:$0xff]
    %v7894 = vunpack.c.l.bf16 %v7892
    %v7895 = vunpack.c.h.bf16 %v7892
    %v7896 = vunpack.c.l.bf16 %v7893
    %v7897 = vunpack.c.h.bf16 %v7893
    %7898 = vmatprep.subr.bf16.mxu0 %v1563
    %7899 = vmatpush1.bf16.msra.mxu0 %v1562
    %7900 = vmatprep.subr.bf16.mxu0 %v1567
    %7901 = vmatpush1.bf16.msra.mxu0 %v1566
    %7902 = vmatprep.subr.bf16.mxu0 %v1571
    %7903 = vmatpush1.bf16.msra.mxu0 %v1570
    %7904 = vmatprep.subr.bf16.mxu0 %v1575
    %7905 = vmatpush1.bf16.msra.mxu0 %v1574
    %7906 = vmatprep.subr.bf16.mxu0 %v1579
    %7907 = vmatpush1.bf16.msra.mxu0 %v1578
    %7908 = vmatprep.subr.bf16.mxu0 %v1583
    %7909 = vmatpush1.bf16.msra.mxu0 %v1582
    %7910 = vmatprep.subr.bf16.mxu0 %v1587
    %7911 = vmatpush1.bf16.msra.mxu0 %v1586
    %7912 = vmatprep.subr.bf16.mxu0 %v1591
    %7913 = vmatpush1.bf16.msra.mxu0 %v1590
    %7914 = vmatprep.subr.bf16.mxu0 %v1595
    %7915 = vmatpush1.bf16.msra.mxu0 %v1594
    %7916 = vmatprep.subr.bf16.mxu0 %v1599
    %7917 = vmatpush1.bf16.msra.mxu0 %v1598
    %7918 = vmatprep.subr.bf16.mxu0 %v1603
    %7919 = vmatpush1.bf16.msra.mxu0 %v1602
    %7920 = vmatprep.subr.bf16.mxu0 %v1607
    %7921 = vmatpush1.bf16.msra.mxu0 %v1606
    %7922 = vmatprep.subr.bf16.mxu0 %v1611
    %7923 = vmatpush1.bf16.msra.mxu0 %v1610
    %7924 = vmatprep.subr.bf16.mxu0 %v1615
    %7925 = vmatpush1.bf16.msra.mxu0 %v1614
    %7926 = vmatprep.subr.bf16.mxu0 %v1619
    %7927 = vmatpush1.bf16.msra.mxu0 %v1618
    %7928 = vmatprep.subr.bf16.mxu0 %v1623
    %7929 = vmatpush1.bf16.msra.mxu0 %v1622
    %7930 = vmatprep.mubr.bf16.mxu0 %v7702
    %7931 = vmatmul.mubr.bf16.gmra.mrb[0].mxu0 %v7701
    %v7932 = vpop.f32.mrb[0].mxu0
    %v7933 = vadd.f32 %v7894, %v7932
    %v7934 = vpop.f32.mrb[0].mxu0
    %v7935 = vadd.f32 %v7895, %v7934
    %v7936 = vpop.f32.mrb[0].mxu0
    %v7937 = vpop.f32.mrb[0].mxu0
    %7938 = vdwg.mxu0
    %7939 = vmatprep.subr.bf16.mxu0 %v1627
    %7940 = vmatpush1.bf16.msra.mxu0 %v1626
    %7941 = vmatprep.subr.bf16.mxu0 %v1631
    %7942 = vmatpush1.bf16.msra.mxu0 %v1630
    %7943 = vmatprep.subr.bf16.mxu0 %v1635
    %7944 = vmatpush1.bf16.msra.mxu0 %v1634
    %7945 = vmatprep.subr.bf16.mxu0 %v1639
    %7946 = vmatpush1.bf16.msra.mxu0 %v1638
    %7947 = vmatprep.subr.bf16.mxu0 %v1643
    %7948 = vmatpush1.bf16.msra.mxu0 %v1642
    %7949 = vmatprep.subr.bf16.mxu0 %v1647
    %7950 = vmatpush1.bf16.msra.mxu0 %v1646
    %7951 = vmatprep.subr.bf16.mxu0 %v1651
    %7952 = vmatpush1.bf16.msra.mxu0 %v1650
    %7953 = vmatprep.subr.bf16.mxu0 %v1655
    %7954 = vmatpush1.bf16.msra.mxu0 %v1654
    %7955 = vmatprep.subr.bf16.mxu0 %v1659
    %7956 = vmatpush1.bf16.msra.mxu0 %v1658
    %7957 = vmatprep.subr.bf16.mxu0 %v1663
    %7958 = vmatpush1.bf16.msra.mxu0 %v1662
    %7959 = vmatprep.subr.bf16.mxu0 %v1667
    %7960 = vmatpush1.bf16.msra.mxu0 %v1666
    %7961 = vmatprep.subr.bf16.mxu0 %v1671
    %7962 = vmatpush1.bf16.msra.mxu0 %v1670
    %7963 = vmatprep.subr.bf16.mxu0 %v1675
    %7964 = vmatpush1.bf16.msra.mxu0 %v1674
    %7965 = vmatprep.subr.bf16.mxu0 %v1679
    %7966 = vmatpush1.bf16.msra.mxu0 %v1678
    %7967 = vmatprep.subr.bf16.mxu0 %v1683
    %7968 = vmatpush1.bf16.msra.mxu0 %v1682
    %7969 = vmatprep.subr.bf16.mxu0 %v1687
    %7970 = vmatpush1.bf16.msra.mxu0 %v1686
    %7971 = vmatprep.mubr.bf16.mxu0 %v7704
    %7972 = vmatmul.mubr.bf16.gmra.mrb[0].mxu0 %v7703
    %v7973 = vpop.f32.mrb[0].mxu0
    %v7974 = vadd.f32 %v7933, %v7973
    %v7975 = vpop.f32.mrb[0].mxu0
    %v7976 = vadd.f32 %v7935, %v7975
    %v7977 = vpop.f32.mrb[0].mxu0
    %v7978 = vpop.f32.mrb[0].mxu0
    %7979 = vdwg.mxu0
    %7980 = vmatprep.subr.bf16.mxu0 %v1565
    %7981 = vmatpush1.bf16.msra.mxu0 %v1564
    %7982 = vmatprep.subr.bf16.mxu0 %v1569
    %7983 = vmatpush1.bf16.msra.mxu0 %v1568
    %7984 = vmatprep.subr.bf16.mxu0 %v1573
    %7985 = vmatpush1.bf16.msra.mxu0 %v1572
    %7986 = vmatprep.subr.bf16.mxu0 %v1577
    %7987 = vmatpush1.bf16.msra.mxu0 %v1576
    %7988 = vmatprep.subr.bf16.mxu0 %v1581
    %7989 = vmatpush1.bf16.msra.mxu0 %v1580
    %7990 = vmatprep.subr.bf16.mxu0 %v1585
    %7991 = vmatpush1.bf16.msra.mxu0 %v1584
    %7992 = vmatprep.subr.bf16.mxu0 %v1589
    %7993 = vmatpush1.bf16.msra.mxu0 %v1588
    %7994 = vmatprep.subr.bf16.mxu0 %v1593
    %7995 = vmatpush1.bf16.msra.mxu0 %v1592
    %7996 = vmatprep.subr.bf16.mxu0 %v1597
    %7997 = vmatpush1.bf16.msra.mxu0 %v1596
    %7998 = vmatprep.subr.bf16.mxu0 %v1601
    %7999 = vmatpush1.bf16.msra.mxu0 %v1600
    %8000 = vmatprep.subr.bf16.mxu0 %v1605
    %8001 = vmatpush1.bf16.msra.mxu0 %v1604
    %8002 = vmatprep.subr.bf16.mxu0 %v1609
    %8003 = vmatpush1.bf16.msra.mxu0 %v1608
    %8004 = vmatprep.subr.bf16.mxu0 %v1613
    %8005 = vmatpush1.bf16.msra.mxu0 %v1612
    %8006 = vmatprep.subr.bf16.mxu0 %v1617
    %8007 = vmatpush1.bf16.msra.mxu0 %v1616
    %8008 = vmatprep.subr.bf16.mxu0 %v1621
    %8009 = vmatpush1.bf16.msra.mxu0 %v1620
    %8010 = vmatprep.subr.bf16.mxu0 %v1625
    %8011 = vmatpush1.bf16.msra.mxu0 %v1624
    %8012 = vmatprep.mubr.bf16.mxu0 %v7702
    %8013 = vmatmul.mubr.bf16.gmra.mrb[0].mxu0 %v7701
    %v8014 = vpop.f32.mrb[0].mxu0
    %v8015 = vadd.f32 %v7896, %v8014
    %v8016 = vpop.f32.mrb[0].mxu0
    %v8017 = vadd.f32 %v7897, %v8016
    %v8018 = vpop.f32.mrb[0].mxu0
    %v8019 = vpop.f32.mrb[0].mxu0
    %8020 = vdwg.mxu0
    %8021 = vmatprep.subr.bf16.mxu0 %v1629
    %8022 = vmatpush1.bf16.msra.mxu0 %v1628
    %8023 = vmatprep.subr.bf16.mxu0 %v1633
    %8024 = vmatpush1.bf16.msra.mxu0 %v1632
    %8025 = vmatprep.subr.bf16.mxu0 %v1637
    %8026 = vmatpush1.bf16.msra.mxu0 %v1636
    %8027 = vmatprep.subr.bf16.mxu0 %v1641
    %8028 = vmatpush1.bf16.msra.mxu0 %v1640
    %8029 = vmatprep.subr.bf16.mxu0 %v1645
    %8030 = vmatpush1.bf16.msra.mxu0 %v1644
    %8031 = vmatprep.subr.bf16.mxu0 %v1649
    %8032 = vmatpush1.bf16.msra.mxu0 %v1648
    %8033 = vmatprep.subr.bf16.mxu0 %v1653
    %8034 = vmatpush1.bf16.msra.mxu0 %v1652
    %8035 = vmatprep.subr.bf16.mxu0 %v1657
    %8036 = vmatpush1.bf16.msra.mxu0 %v1656
    %8037 = vmatprep.subr.bf16.mxu0 %v1661
    %8038 = vmatpush1.bf16.msra.mxu0 %v1660
    %8039 = vmatprep.subr.bf16.mxu0 %v1665
    %8040 = vmatpush1.bf16.msra.mxu0 %v1664
    %8041 = vmatprep.subr.bf16.mxu0 %v1669
    %8042 = vmatpush1.bf16.msra.mxu0 %v1668
    %8043 = vmatprep.subr.bf16.mxu0 %v1673
    %8044 = vmatpush1.bf16.msra.mxu0 %v1672
    %8045 = vmatprep.subr.bf16.mxu0 %v1677
    %8046 = vmatpush1.bf16.msra.mxu0 %v1676
    %8047 = vmatprep.subr.bf16.mxu0 %v1681
    %8048 = vmatpush1.bf16.msra.mxu0 %v1680
    %8049 = vmatprep.subr.bf16.mxu0 %v1685
    %8050 = vmatpush1.bf16.msra.mxu0 %v1684
    %8051 = vmatprep.subr.bf16.mxu0 %v1689
    %8052 = vmatpush1.bf16.msra.mxu0 %v1688
    %8053 = vmatprep.mubr.bf16.mxu0 %v7704
    %8054 = vmatmul.mubr.bf16.gmra.mrb[0].mxu0 %v7703
    %v8055 = vpop.f32.mrb[0].mxu0
    %v8056 = vadd.f32 %v8015, %v8055
    %v8057 = vpop.f32.mrb[0].mxu0
    %v8058 = vadd.f32 %v8017, %v8057
    %v8059 = vpop.f32.mrb[0].mxu0
    %v8060 = vpop.f32.mrb[0].mxu0
    %8061 = vdwg.mxu0
    %v8062 = vmul.f32 %v7974, 0.5
    %v8063 = vmul.f32 %v7976, 0.5
    %v8064 = vmul.f32 %v8056, 0.5
    %v8065 = vmul.f32 %v8058, 0.5
    %v8066 = vtanh.pop %v8062
    %v8067 = vtanh.pop %v8063
    %v8068 = vtanh.pop %v8064
    %v8069 = vtanh.pop %v8065
    %v8070 = vmul.f32 %v8066, 0.5
    %v8071 = vmul.f32 %v8067, 0.5
    %v8072 = vmul.f32 %v8068, 0.5
    %v8073 = vmul.f32 %v8069, 0.5
    %v8074 = vadd.f32 %v8070, 0.5
    %v8075 = vadd.f32 %v8071, 0.5
    %v8076 = vadd.f32 %v8072, 0.5
    %v8077 = vadd.f32 %v8073, 0.5
    %v8078 = vmul.f32 %v8074, %v7503
    %v8079 = vmul.f32 %v8075, %v7504
    %v8080 = vmul.f32 %v8076, %v7505
    %v8081 = vmul.f32 %v8077, %v7506
    %v8082 = vld [vmem:[%s7705 + $0x20] sm:$0xff]
    %v8083 = vld [vmem:[%s7705 + $0x28] sm:$0xff]
    %v8084 = vunpack.c.l.bf16 %v8082
    %v8085 = vunpack.c.h.bf16 %v8082
    %v8086 = vunpack.c.l.bf16 %v8083
    %v8087 = vunpack.c.h.bf16 %v8083
    %8088 = vmatprep.subr.bf16.mxu0 %v2522
    %8089 = vmatpush1.bf16.msra.mxu0 %v2521
    %8090 = vmatprep.subr.bf16.mxu0 %v2526
    %8091 = vmatpush1.bf16.msra.mxu0 %v2525
    %8092 = vmatprep.subr.bf16.mxu0 %v2530
    %8093 = vmatpush1.bf16.msra.mxu0 %v2529
    %8094 = vmatprep.subr.bf16.mxu0 %v2534
    %8095 = vmatpush1.bf16.msra.mxu0 %v2533
    %8096 = vmatprep.subr.bf16.mxu0 %v2538
    %8097 = vmatpush1.bf16.msra.mxu0 %v2537
    %8098 = vmatprep.subr.bf16.mxu0 %v2542
    %8099 = vmatpush1.bf16.msra.mxu0 %v2541
    %8100 = vmatprep.subr.bf16.mxu0 %v2546
    %8101 = vmatpush1.bf16.msra.mxu0 %v2545
    %8102 = vmatprep.subr.bf16.mxu0 %v2550
    %8103 = vmatpush1.bf16.msra.mxu0 %v2549
    %8104 = vmatprep.subr.bf16.mxu0 %v2554
    %8105 = vmatpush1.bf16.msra.mxu0 %v2553
    %8106 = vmatprep.subr.bf16.mxu0 %v2558
    %8107 = vmatpush1.bf16.msra.mxu0 %v2557
    %8108 = vmatprep.subr.bf16.mxu0 %v2562
    %8109 = vmatpush1.bf16.msra.mxu0 %v2561
    %8110 = vmatprep.subr.bf16.mxu0 %v2566
    %8111 = vmatpush1.bf16.msra.mxu0 %v2565
    %8112 = vmatprep.subr.bf16.mxu0 %v2570
    %8113 = vmatpush1.bf16.msra.mxu0 %v2569
    %8114 = vmatprep.subr.bf16.mxu0 %v2574
    %8115 = vmatpush1.bf16.msra.mxu0 %v2573
    %8116 = vmatprep.subr.bf16.mxu0 %v2578
    %8117 = vmatpush1.bf16.msra.mxu0 %v2577
    %8118 = vmatprep.subr.bf16.mxu0 %v2582
    %8119 = vmatpush1.bf16.msra.mxu0 %v2581
    %8120 = vmatprep.mubr.bf16.mxu0 %v7702
    %8121 = vmatmul.mubr.bf16.gmra.mrb[0].mxu0 %v7701
    %v8122 = vpop.f32.mrb[0].mxu0
    %v8123 = vadd.f32 %v8084, %v8122
    %v8124 = vpop.f32.mrb[0].mxu0
    %v8125 = vadd.f32 %v8085, %v8124
    %v8126 = vpop.f32.mrb[0].mxu0
    %v8127 = vpop.f32.mrb[0].mxu0
    %8128 = vdwg.mxu0
    %8129 = vmatprep.subr.bf16.mxu0 %v2586
    %8130 = vmatpush1.bf16.msra.mxu0 %v2585
    %8131 = vmatprep.subr.bf16.mxu0 %v2590
    %8132 = vmatpush1.bf16.msra.mxu0 %v2589
    %8133 = vmatprep.subr.bf16.mxu0 %v2594
    %8134 = vmatpush1.bf16.msra.mxu0 %v2593
    %8135 = vmatprep.subr.bf16.mxu0 %v2598
    %8136 = vmatpush1.bf16.msra.mxu0 %v2597
    %8137 = vmatprep.subr.bf16.mxu0 %v2602
    %8138 = vmatpush1.bf16.msra.mxu0 %v2601
    %8139 = vmatprep.subr.bf16.mxu0 %v2606
    %8140 = vmatpush1.bf16.msra.mxu0 %v2605
    %8141 = vmatprep.subr.bf16.mxu0 %v2610
    %8142 = vmatpush1.bf16.msra.mxu0 %v2609
    %8143 = vmatprep.subr.bf16.mxu0 %v2614
    %8144 = vmatpush1.bf16.msra.mxu0 %v2613
    %8145 = vmatprep.subr.bf16.mxu0 %v2618
    %8146 = vmatpush1.bf16.msra.mxu0 %v2617
    %8147 = vmatprep.subr.bf16.mxu0 %v2622
    %8148 = vmatpush1.bf16.msra.mxu0 %v2621
    %8149 = vmatprep.subr.bf16.mxu0 %v2626
    %8150 = vmatpush1.bf16.msra.mxu0 %v2625
    %8151 = vmatprep.subr.bf16.mxu0 %v2630
    %8152 = vmatpush1.bf16.msra.mxu0 %v2629
    %8153 = vmatprep.subr.bf16.mxu0 %v2634
    %8154 = vmatpush1.bf16.msra.mxu0 %v2633
    %8155 = vmatprep.subr.bf16.mxu0 %v2638
    %8156 = vmatpush1.bf16.msra.mxu0 %v2637
    %8157 = vmatprep.subr.bf16.mxu0 %v2642
    %8158 = vmatpush1.bf16.msra.mxu0 %v2641
    %8159 = vmatprep.subr.bf16.mxu0 %v2646
    %8160 = vmatpush1.bf16.msra.mxu0 %v2645
    %8161 = vmatprep.mubr.bf16.mxu0 %v7704
    %8162 = vmatmul.mubr.bf16.gmra.mrb[0].mxu0 %v7703
    %v8163 = vpop.f32.mrb[0].mxu0
    %v8164 = vadd.f32 %v8123, %v8163
    %v8165 = vpop.f32.mrb[0].mxu0
    %v8166 = vadd.f32 %v8125, %v8165
    %v8167 = vpop.f32.mrb[0].mxu0
    %v8168 = vpop.f32.mrb[0].mxu0
    %8169 = vdwg.mxu0
    %8170 = vmatprep.subr.bf16.mxu0 %v2524
    %8171 = vmatpush1.bf16.msra.mxu0 %v2523
    %8172 = vmatprep.subr.bf16.mxu0 %v2528
    %8173 = vmatpush1.bf16.msra.mxu0 %v2527
    %8174 = vmatprep.subr.bf16.mxu0 %v2532
    %8175 = vmatpush1.bf16.msra.mxu0 %v2531
    %8176 = vmatprep.subr.bf16.mxu0 %v2536
    %8177 = vmatpush1.bf16.msra.mxu0 %v2535
    %8178 = vmatprep.subr.bf16.mxu0 %v2540
    %8179 = vmatpush1.bf16.msra.mxu0 %v2539
    %8180 = vmatprep.subr.bf16.mxu0 %v2544
    %8181 = vmatpush1.bf16.msra.mxu0 %v2543
    %8182 = vmatprep.subr.bf16.mxu0 %v2548
    %8183 = vmatpush1.bf16.msra.mxu0 %v2547
    %8184 = vmatprep.subr.bf16.mxu0 %v2552
    %8185 = vmatpush1.bf16.msra.mxu0 %v2551
    %8186 = vmatprep.subr.bf16.mxu0 %v2556
    %8187 = vmatpush1.bf16.msra.mxu0 %v2555
    %8188 = vmatprep.subr.bf16.mxu0 %v2560
    %8189 = vmatpush1.bf16.msra.mxu0 %v2559
    %8190 = vmatprep.subr.bf16.mxu0 %v2564
    %8191 = vmatpush1.bf16.msra.mxu0 %v2563
    %8192 = vmatprep.subr.bf16.mxu0 %v2568
    %8193 = vmatpush1.bf16.msra.mxu0 %v2567
    %8194 = vmatprep.subr.bf16.mxu0 %v2572
    %8195 = vmatpush1.bf16.msra.mxu0 %v2571
    %8196 = vmatprep.subr.bf16.mxu0 %v2576
    %8197 = vmatpush1.bf16.msra.mxu0 %v2575
    %8198 = vmatprep.subr.bf16.mxu0 %v2580
    %8199 = vmatpush1.bf16.msra.mxu0 %v2579
    %8200 = vmatprep.subr.bf16.mxu0 %v2584
    %8201 = vmatpush1.bf16.msra.mxu0 %v2583
    %8202 = vmatprep.mubr.bf16.mxu0 %v7702
    %8203 = vmatmul.mubr.bf16.gmra.mrb[0].mxu0 %v7701
    %v8204 = vpop.f32.mrb[0].mxu0
    %v8205 = vadd.f32 %v8086, %v8204
    %v8206 = vpop.f32.mrb[0].mxu0
    %v8207 = vadd.f32 %v8087, %v8206
    %v8208 = vpop.f32.mrb[0].mxu0
    %v8209 = vpop.f32.mrb[0].mxu0
    %8210 = vdwg.mxu0
    %8211 = vmatprep.subr.bf16.mxu0 %v2588
    %8212 = vmatpush1.bf16.msra.mxu0 %v2587
    %8213 = vmatprep.subr.bf16.mxu0 %v2592
    %8214 = vmatpush1.bf16.msra.mxu0 %v2591
    %8215 = vmatprep.subr.bf16.mxu0 %v2596
    %8216 = vmatpush1.bf16.msra.mxu0 %v2595
    %8217 = vmatprep.subr.bf16.mxu0 %v2600
    %8218 = vmatpush1.bf16.msra.mxu0 %v2599
    %8219 = vmatprep.subr.bf16.mxu0 %v2604
    %8220 = vmatpush1.bf16.msra.mxu0 %v2603
    %8221 = vmatprep.subr.bf16.mxu0 %v2608
    %8222 = vmatpush1.bf16.msra.mxu0 %v2607
    %8223 = vmatprep.subr.bf16.mxu0 %v2612
    %8224 = vmatpush1.bf16.msra.mxu0 %v2611
    %8225 = vmatprep.subr.bf16.mxu0 %v2616
    %8226 = vmatpush1.bf16.msra.mxu0 %v2615
    %8227 = vmatprep.subr.bf16.mxu0 %v2620
    %8228 = vmatpush1.bf16.msra.mxu0 %v2619
    %8229 = vmatprep.subr.bf16.mxu0 %v2624
    %8230 = vmatpush1.bf16.msra.mxu0 %v2623
    %8231 = vmatprep.subr.bf16.mxu0 %v2628
    %8232 = vmatpush1.bf16.msra.mxu0 %v2627
    %8233 = vmatprep.subr.bf16.mxu0 %v2632
    %8234 = vmatpush1.bf16.msra.mxu0 %v2631
    %8235 = vmatprep.subr.bf16.mxu0 %v2636
    %8236 = vmatpush1.bf16.msra.mxu0 %v2635
    %8237 = vmatprep.subr.bf16.mxu0 %v2640
    %8238 = vmatpush1.bf16.msra.mxu0 %v2639
    %8239 = vmatprep.subr.bf16.mxu0 %v2644
    %8240 = vmatpush1.bf16.msra.mxu0 %v2643
    %8241 = vmatprep.subr.bf16.mxu0 %v2648
    %8242 = vmatpush1.bf16.msra.mxu0 %v2647
    %8243 = vmatprep.mubr.bf16.mxu0 %v7704
    %8244 = vmatmul.mubr.bf16.gmra.mrb[0].mxu0 %v7703
    %v8245 = vpop.f32.mrb[0].mxu0
    %v8246 = vadd.f32 %v8205, %v8245
    %v8247 = vpop.f32.mrb[0].mxu0
    %v8248 = vadd.f32 %v8207, %v8247
    %v8249 = vpop.f32.mrb[0].mxu0
    %v8250 = vpop.f32.mrb[0].mxu0
    %8251 = vdwg.mxu0
    %v8252 = vtanh.pop %v8164
    %v8253 = vtanh.pop %v8166
    %v8254 = vtanh.pop %v8246
    %v8255 = vtanh.pop %v8248
    %v8256 = vmul.f32 %v7888, %v8252
    %v8257 = vmul.f32 %v7889, %v8253
    %v8258 = vmul.f32 %v7890, %v8254
    %v8259 = vmul.f32 %v7891, %v8255
    %v8260 = vadd.f32 %v8078, %v8256
    %v8261 = vadd.f32 %v8079, %v8257
    %v8262 = vadd.f32 %v8080, %v8258
    %v8263 = vadd.f32 %v8081, %v8259
    %v8264 = vld [vmem:[%s7705 + $0x30] sm:$0xff]
    %v8265 = vld [vmem:[%s7705 + $0x38] sm:$0xff]
    %v8266 = vunpack.c.l.bf16 %v8264
    %v8267 = vunpack.c.h.bf16 %v8264
    %v8268 = vunpack.c.l.bf16 %v8265
    %v8269 = vunpack.c.h.bf16 %v8265
    %8270 = vmatprep.subr.bf16.mxu0 %v3473
    %8271 = vmatpush1.bf16.msra.mxu0 %v3472
    %8272 = vmatprep.subr.bf16.mxu0 %v3477
    %8273 = vmatpush1.bf16.msra.mxu0 %v3476
    %8274 = vmatprep.subr.bf16.mxu0 %v3481
    %8275 = vmatpush1.bf16.msra.mxu0 %v3480
    %8276 = vmatprep.subr.bf16.mxu0 %v3485
    %8277 = vmatpush1.bf16.msra.mxu0 %v3484
    %8278 = vmatprep.subr.bf16.mxu0 %v3489
    %8279 = vmatpush1.bf16.msra.mxu0 %v3488
    %8280 = vmatprep.subr.bf16.mxu0 %v3493
    %8281 = vmatpush1.bf16.msra.mxu0 %v3492
    %8282 = vmatprep.subr.bf16.mxu0 %v3497
    %8283 = vmatpush1.bf16.msra.mxu0 %v3496
    %8284 = vmatprep.subr.bf16.mxu0 %v3501
    %8285 = vmatpush1.bf16.msra.mxu0 %v3500
    %8286 = vmatprep.subr.bf16.mxu0 %v3505
    %8287 = vmatpush1.bf16.msra.mxu0 %v3504
    %8288 = vmatprep.subr.bf16.mxu0 %v3509
    %8289 = vmatpush1.bf16.msra.mxu0 %v3508
    %8290 = vmatprep.subr.bf16.mxu0 %v3513
    %8291 = vmatpush1.bf16.msra.mxu0 %v3512
    %8292 = vmatprep.subr.bf16.mxu0 %v3517
    %8293 = vmatpush1.bf16.msra.mxu0 %v3516
    %8294 = vmatprep.subr.bf16.mxu0 %v3521
    %8295 = vmatpush1.bf16.msra.mxu0 %v3520
    %8296 = vmatprep.subr.bf16.mxu0 %v3525
    %8297 = vmatpush1.bf16.msra.mxu0 %v3524
    %8298 = vmatprep.subr.bf16.mxu0 %v3529
    %8299 = vmatpush1.bf16.msra.mxu0 %v3528
    %8300 = vmatprep.subr.bf16.mxu0 %v3533
    %8301 = vmatpush1.bf16.msra.mxu0 %v3532
    %8302 = vmatprep.mubr.bf16.mxu0 %v7702
    %8303 = vmatmul.mubr.bf16.gmra.mrb[0].mxu0 %v7701
    %v8304 = vpop.f32.mrb[0].mxu0
    %v8305 = vadd.f32 %v8266, %v8304
    %v8306 = vpop.f32.mrb[0].mxu0
    %v8307 = vadd.f32 %v8267, %v8306
    %v8308 = vpop.f32.mrb[0].mxu0
    %v8309 = vpop.f32.mrb[0].mxu0
    %8310 = vdwg.mxu0
    %8311 = vmatprep.subr.bf16.mxu0 %v3537
    %8312 = vmatpush1.bf16.msra.mxu0 %v3536
    %8313 = vmatprep.subr.bf16.mxu0 %v3541
    %8314 = vmatpush1.bf16.msra.mxu0 %v3540
    %8315 = vmatprep.subr.bf16.mxu0 %v3545
    %8316 = vmatpush1.bf16.msra.mxu0 %v3544
    %8317 = vmatprep.subr.bf16.mxu0 %v3549
    %8318 = vmatpush1.bf16.msra.mxu0 %v3548
    %8319 = vmatprep.subr.bf16.mxu0 %v3553
    %8320 = vmatpush1.bf16.msra.mxu0 %v3552
    %8321 = vmatprep.subr.bf16.mxu0 %v3557
    %8322 = vmatpush1.bf16.msra.mxu0 %v3556
    %8323 = vmatprep.subr.bf16.mxu0 %v3561
    %8324 = vmatpush1.bf16.msra.mxu0 %v3560
    %8325 = vmatprep.subr.bf16.mxu0 %v3565
    %8326 = vmatpush1.bf16.msra.mxu0 %v3564
    %8327 = vmatprep.subr.bf16.mxu0 %v3569
    %8328 = vmatpush1.bf16.msra.mxu0 %v3568
    %8329 = vmatprep.subr.bf16.mxu0 %v3573
    %8330 = vmatpush1.bf16.msra.mxu0 %v3572
    %8331 = vmatprep.subr.bf16.mxu0 %v3577
    %8332 = vmatpush1.bf16.msra.mxu0 %v3576
    %8333 = vmatprep.subr.bf16.mxu0 %v3581
    %8334 = vmatpush1.bf16.msra.mxu0 %v3580
    %8335 = vmatprep.subr.bf16.mxu0 %v3585
    %8336 = vmatpush1.bf16.msra.mxu0 %v3584
    %8337 = vmatprep.subr.bf16.mxu0 %v3589
    %8338 = vmatpush1.bf16.msra.mxu0 %v3588
    %8339 = vmatprep.subr.bf16.mxu0 %v3593
    %8340 = vmatpush1.bf16.msra.mxu0 %v3592
    %8341 = vmatprep.subr.bf16.mxu0 %v3597
    %8342 = vmatpush1.bf16.msra.mxu0 %v3596
    %8343 = vmatprep.mubr.bf16.mxu0 %v7704
    %8344 = vmatmul.mubr.bf16.gmra.mrb[0].mxu0 %v7703
    %v8345 = vpop.f32.mrb[0].mxu0
    %v8346 = vadd.f32 %v8305, %v8345
    %v8347 = vpop.f32.mrb[0].mxu0
    %v8348 = vadd.f32 %v8307, %v8347
    %v8349 = vpop.f32.mrb[0].mxu0
    %v8350 = vpop.f32.mrb[0].mxu0
    %8351 = vdwg.mxu0
    %8352 = vmatprep.subr.bf16.mxu0 %v3475
    %8353 = vmatpush1.bf16.msra.mxu0 %v3474
    %8354 = vmatprep.subr.bf16.mxu0 %v3479
    %8355 = vmatpush1.bf16.msra.mxu0 %v3478
    %8356 = vmatprep.subr.bf16.mxu0 %v3483
    %8357 = vmatpush1.bf16.msra.mxu0 %v3482
    %8358 = vmatprep.subr.bf16.mxu0 %v3487
    %8359 = vmatpush1.bf16.msra.mxu0 %v3486
    %8360 = vmatprep.subr.bf16.mxu0 %v3491
    %8361 = vmatpush1.bf16.msra.mxu0 %v3490
    %8362 = vmatprep.subr.bf16.mxu0 %v3495
    %8363 = vmatpush1.bf16.msra.mxu0 %v3494
    %8364 = vmatprep.subr.bf16.mxu0 %v3499
    %8365 = vmatpush1.bf16.msra.mxu0 %v3498
    %8366 = vmatprep.subr.bf16.mxu0 %v3503
    %8367 = vmatpush1.bf16.msra.mxu0 %v3502
    %8368 = vmatprep.subr.bf16.mxu0 %v3507
    %8369 = vmatpush1.bf16.msra.mxu0 %v3506
    %8370 = vmatprep.subr.bf16.mxu0 %v3511
    %8371 = vmatpush1.bf16.msra.mxu0 %v3510
    %8372 = vmatprep.subr.bf16.mxu0 %v3515
    %8373 = vmatpush1.bf16.msra.mxu0 %v3514
    %8374 = vmatprep.subr.bf16.mxu0 %v3519
    %8375 = vmatpush1.bf16.msra.mxu0 %v3518
    %8376 = vmatprep.subr.bf16.mxu0 %v3523
    %8377 = vmatpush1.bf16.msra.mxu0 %v3522
    %8378 = vmatprep.subr.bf16.mxu0 %v3527
    %8379 = vmatpush1.bf16.msra.mxu0 %v3526
    %8380 = vmatprep.subr.bf16.mxu0 %v3531
    %8381 = vmatpush1.bf16.msra.mxu0 %v3530
    %8382 = vmatprep.subr.bf16.mxu0 %v3535
    %8383 = vmatpush1.bf16.msra.mxu0 %v3534
    %8384 = vmatprep.mubr.bf16.mxu0 %v7702
    %8385 = vmatmul.mubr.bf16.gmra.mrb[0].mxu0 %v7701
    %v8386 = vpop.f32.mrb[0].mxu0
    %v8387 = vadd.f32 %v8268, %v8386
    %v8388 = vpop.f32.mrb[0].mxu0
    %v8389 = vadd.f32 %v8269, %v8388
    %v8390 = vpop.f32.mrb[0].mxu0
    %v8391 = vpop.f32.mrb[0].mxu0
    %8392 = vdwg.mxu0
    %8393 = vmatprep.subr.bf16.mxu0 %v3539
    %8394 = vmatpush1.bf16.msra.mxu0 %v3538
    %8395 = vmatprep.subr.bf16.mxu0 %v3543
    %8396 = vmatpush1.bf16.msra.mxu0 %v3542
    %8397 = vmatprep.subr.bf16.mxu0 %v3547
    %8398 = vmatpush1.bf16.msra.mxu0 %v3546
    %8399 = vmatprep.subr.bf16.mxu0 %v3551
    %8400 = vmatpush1.bf16.msra.mxu0 %v3550
    %8401 = vmatprep.subr.bf16.mxu0 %v3555
    %8402 = vmatpush1.bf16.msra.mxu0 %v3554
    %8403 = vmatprep.subr.bf16.mxu0 %v3559
    %8404 = vmatpush1.bf16.msra.mxu0 %v3558
    %8405 = vmatprep.subr.bf16.mxu0 %v3563
    %8406 = vmatpush1.bf16.msra.mxu0 %v3562
    %8407 = vmatprep.subr.bf16.mxu0 %v3567
    %8408 = vmatpush1.bf16.msra.mxu0 %v3566
    %8409 = vmatprep.subr.bf16.mxu0 %v3571
    %8410 = vmatpush1.bf16.msra.mxu0 %v3570
    %8411 = vmatprep.subr.bf16.mxu0 %v3575
    %8412 = vmatpush1.bf16.msra.mxu0 %v3574
    %8413 = vmatprep.subr.bf16.mxu0 %v3579
    %8414 = vmatpush1.bf16.msra.mxu0 %v3578
    %8415 = vmatprep.subr.bf16.mxu0 %v3583
    %8416 = vmatpush1.bf16.msra.mxu0 %v3582
    %8417 = vmatprep.subr.bf16.mxu0 %v3587
    %8418 = vmatpush1.bf16.msra.mxu0 %v3586
    %8419 = vmatprep.subr.bf16.mxu0 %v3591
    %8420 = vmatpush1.bf16.msra.mxu0 %v3590
    %8421 = vmatprep.subr.bf16.mxu0 %v3595
    %8422 = vmatpush1.bf16.msra.mxu0 %v3594
    %8423 = vmatprep.subr.bf16.mxu0 %v3599
    %8424 = vmatpush1.bf16.msra.mxu0 %v3598
    %8425 = vmatprep.mubr.bf16.mxu0 %v7704
    %8426 = vmatmul.mubr.bf16.gmra.mrb[0].mxu0 %v7703
    %v8427 = vpop.f32.mrb[0].mxu0
    %v8428 = vadd.f32 %v8387, %v8427
    %v8429 = vpop.f32.mrb[0].mxu0
    %v8430 = vadd.f32 %v8389, %v8429
    %v8431 = vpop.f32.mrb[0].mxu0
    %v8432 = vpop.f32.mrb[0].mxu0
    %8433 = vdwg.mxu0
    %v8434 = vmul.f32 %v8346, 0.5
    %v8435 = vmul.f32 %v8348, 0.5
    %v8436 = vmul.f32 %v8428, 0.5
    %v8437 = vmul.f32 %v8430, 0.5
    %v8438 = vtanh.pop %v8434
    %v8439 = vtanh.pop %v8435
    %v8440 = vtanh.pop %v8436
    %v8441 = vtanh.pop %v8437
    %v8442 = vmul.f32 %v8438, 0.5
    %v8443 = vmul.f32 %v8439, 0.5
    %v8444 = vmul.f32 %v8440, 0.5
    %v8445 = vmul.f32 %v8441, 0.5
    %v8446 = vadd.f32 %v8442, 0.5
    %v8447 = vadd.f32 %v8443, 0.5
    %v8448 = vadd.f32 %v8444, 0.5
    %v8449 = vadd.f32 %v8445, 0.5
    %v8450 = vtanh.pop %v8260
    %v8451 = vtanh.pop %v8261
    %v8452 = vtanh.pop %v8262
    %v8453 = vtanh.pop %v8263
    %v8454 = vmul.f32 %v8446, %v8450
    %v8455 = vmul.f32 %v8447, %v8451
    %v8456 = vmul.f32 %v8448, %v8452
    %v8457 = vmul.f32 %v8449, %v8453
    %v8458 = vpack.c.bf16 %v8454, %v8454
    %v8459 = vpack.c.bf16 %v8455, %v8455
    %v8460 = vpack.c.bf16 %v8456, %v8456
    %v8461 = vpack.c.bf16 %v8457, %v8457
    %s8462 = scalar_lea.vmem [#allocation5], 448
    %v8463 = vld [vmem:[%s8462] sm:$0xff]
    %v8464 = vld [vmem:[%s8462 + $0x8] sm:$0xff]
    %v8465 = vunpack.c.l.bf16 %v8463
    %v8466 = vunpack.c.h.bf16 %v8463
    %v8467 = vunpack.c.l.bf16 %v8464
    %v8468 = vunpack.c.h.bf16 %v8464
    %8469 = vmatprep.subr.bf16.mxu0 %v608
    %8470 = vmatpush1.bf16.msra.mxu0 %v607
    %8471 = vmatprep.subr.bf16.mxu0 %v612
    %8472 = vmatpush1.bf16.msra.mxu0 %v611
    %8473 = vmatprep.subr.bf16.mxu0 %v616
    %8474 = vmatpush1.bf16.msra.mxu0 %v615
    %8475 = vmatprep.subr.bf16.mxu0 %v620
    %8476 = vmatpush1.bf16.msra.mxu0 %v619
    %8477 = vmatprep.subr.bf16.mxu0 %v624
    %8478 = vmatpush1.bf16.msra.mxu0 %v623
    %8479 = vmatprep.subr.bf16.mxu0 %v628
    %8480 = vmatpush1.bf16.msra.mxu0 %v627
    %8481 = vmatprep.subr.bf16.mxu0 %v632
    %8482 = vmatpush1.bf16.msra.mxu0 %v631
    %8483 = vmatprep.subr.bf16.mxu0 %v636
    %8484 = vmatpush1.bf16.msra.mxu0 %v635
    %8485 = vmatprep.subr.bf16.mxu0 %v640
    %8486 = vmatpush1.bf16.msra.mxu0 %v639
    %8487 = vmatprep.subr.bf16.mxu0 %v644
    %8488 = vmatpush1.bf16.msra.mxu0 %v643
    %8489 = vmatprep.subr.bf16.mxu0 %v648
    %8490 = vmatpush1.bf16.msra.mxu0 %v647
    %8491 = vmatprep.subr.bf16.mxu0 %v652
    %8492 = vmatpush1.bf16.msra.mxu0 %v651
    %8493 = vmatprep.subr.bf16.mxu0 %v656
    %8494 = vmatpush1.bf16.msra.mxu0 %v655
    %8495 = vmatprep.subr.bf16.mxu0 %v660
    %8496 = vmatpush1.bf16.msra.mxu0 %v659
    %8497 = vmatprep.subr.bf16.mxu0 %v664
    %8498 = vmatpush1.bf16.msra.mxu0 %v663
    %8499 = vmatprep.subr.bf16.mxu0 %v668
    %8500 = vmatpush1.bf16.msra.mxu0 %v667
    %8501 = vmatprep.mubr.bf16.mxu0 %v8459
    %8502 = vmatmul.mubr.bf16.gmra.mrb[0].mxu0 %v8458
    %v8503 = vpop.f32.mrb[0].mxu0
    %v8504 = vadd.f32 %v8465, %v8503
    %v8505 = vpop.f32.mrb[0].mxu0
    %v8506 = vadd.f32 %v8466, %v8505
    %v8507 = vpop.f32.mrb[0].mxu0
    %v8508 = vpop.f32.mrb[0].mxu0
    %8509 = vdwg.mxu0
    %8510 = vmatprep.subr.bf16.mxu0 %v672
    %8511 = vmatpush1.bf16.msra.mxu0 %v671
    %8512 = vmatprep.subr.bf16.mxu0 %v676
    %8513 = vmatpush1.bf16.msra.mxu0 %v675
    %8514 = vmatprep.subr.bf16.mxu0 %v680
    %8515 = vmatpush1.bf16.msra.mxu0 %v679
    %8516 = vmatprep.subr.bf16.mxu0 %v684
    %8517 = vmatpush1.bf16.msra.mxu0 %v683
    %8518 = vmatprep.subr.bf16.mxu0 %v688
    %8519 = vmatpush1.bf16.msra.mxu0 %v687
    %8520 = vmatprep.subr.bf16.mxu0 %v692
    %8521 = vmatpush1.bf16.msra.mxu0 %v691
    %8522 = vmatprep.subr.bf16.mxu0 %v696
    %8523 = vmatpush1.bf16.msra.mxu0 %v695
    %8524 = vmatprep.subr.bf16.mxu0 %v700
    %8525 = vmatpush1.bf16.msra.mxu0 %v699
    %8526 = vmatprep.subr.bf16.mxu0 %v704
    %8527 = vmatpush1.bf16.msra.mxu0 %v703
    %8528 = vmatprep.subr.bf16.mxu0 %v708
    %8529 = vmatpush1.bf16.msra.mxu0 %v707
    %8530 = vmatprep.subr.bf16.mxu0 %v712
    %8531 = vmatpush1.bf16.msra.mxu0 %v711
    %8532 = vmatprep.subr.bf16.mxu0 %v716
    %8533 = vmatpush1.bf16.msra.mxu0 %v715
    %8534 = vmatprep.subr.bf16.mxu0 %v720
    %8535 = vmatpush1.bf16.msra.mxu0 %v719
    %8536 = vmatprep.subr.bf16.mxu0 %v724
    %8537 = vmatpush1.bf16.msra.mxu0 %v723
    %8538 = vmatprep.subr.bf16.mxu0 %v728
    %8539 = vmatpush1.bf16.msra.mxu0 %v727
    %8540 = vmatprep.subr.bf16.mxu0 %v732
    %8541 = vmatpush1.bf16.msra.mxu0 %v731
    %8542 = vmatprep.mubr.bf16.mxu0 %v8461
    %8543 = vmatmul.mubr.bf16.gmra.mrb[0].mxu0 %v8460
    %v8544 = vpop.f32.mrb[0].mxu0
    %v8545 = vadd.f32 %v8504, %v8544
    %v8546 = vpop.f32.mrb[0].mxu0
    %v8547 = vadd.f32 %v8506, %v8546
    %v8548 = vpop.f32.mrb[0].mxu0
    %v8549 = vpop.f32.mrb[0].mxu0
    %8550 = vdwg.mxu0
    %8551 = vmatprep.subr.bf16.mxu0 %v610
    %8552 = vmatpush1.bf16.msra.mxu0 %v609
    %8553 = vmatprep.subr.bf16.mxu0 %v614
    %8554 = vmatpush1.bf16.msra.mxu0 %v613
    %8555 = vmatprep.subr.bf16.mxu0 %v618
    %8556 = vmatpush1.bf16.msra.mxu0 %v617
    %8557 = vmatprep.subr.bf16.mxu0 %v622
    %8558 = vmatpush1.bf16.msra.mxu0 %v621
    %8559 = vmatprep.subr.bf16.mxu0 %v626
    %8560 = vmatpush1.bf16.msra.mxu0 %v625
    %8561 = vmatprep.subr.bf16.mxu0 %v630
    %8562 = vmatpush1.bf16.msra.mxu0 %v629
    %8563 = vmatprep.subr.bf16.mxu0 %v634
    %8564 = vmatpush1.bf16.msra.mxu0 %v633
    %8565 = vmatprep.subr.bf16.mxu0 %v638
    %8566 = vmatpush1.bf16.msra.mxu0 %v637
    %8567 = vmatprep.subr.bf16.mxu0 %v642
    %8568 = vmatpush1.bf16.msra.mxu0 %v641
    %8569 = vmatprep.subr.bf16.mxu0 %v646
    %8570 = vmatpush1.bf16.msra.mxu0 %v645
    %8571 = vmatprep.subr.bf16.mxu0 %v650
    %8572 = vmatpush1.bf16.msra.mxu0 %v649
    %8573 = vmatprep.subr.bf16.mxu0 %v654
    %8574 = vmatpush1.bf16.msra.mxu0 %v653
    %8575 = vmatprep.subr.bf16.mxu0 %v658
    %8576 = vmatpush1.bf16.msra.mxu0 %v657
    %8577 = vmatprep.subr.bf16.mxu0 %v662
    %8578 = vmatpush1.bf16.msra.mxu0 %v661
    %8579 = vmatprep.subr.bf16.mxu0 %v666
    %8580 = vmatpush1.bf16.msra.mxu0 %v665
    %8581 = vmatprep.subr.bf16.mxu0 %v670
    %8582 = vmatpush1.bf16.msra.mxu0 %v669
    %8583 = vmatprep.mubr.bf16.mxu0 %v8459
    %8584 = vmatmul.mubr.bf16.gmra.mrb[0].mxu0 %v8458
    %v8585 = vpop.f32.mrb[0].mxu0
    %v8586 = vadd.f32 %v8467, %v8585
    %v8587 = vpop.f32.mrb[0].mxu0
    %v8588 = vadd.f32 %v8468, %v8587
    %v8589 = vpop.f32.mrb[0].mxu0
    %v8590 = vpop.f32.mrb[0].mxu0
    %8591 = vdwg.mxu0
    %8592 = vmatprep.subr.bf16.mxu0 %v674
    %8593 = vmatpush1.bf16.msra.mxu0 %v673
    %8594 = vmatprep.subr.bf16.mxu0 %v678
    %8595 = vmatpush1.bf16.msra.mxu0 %v677
    %8596 = vmatprep.subr.bf16.mxu0 %v682
    %8597 = vmatpush1.bf16.msra.mxu0 %v681
    %8598 = vmatprep.subr.bf16.mxu0 %v686
    %8599 = vmatpush1.bf16.msra.mxu0 %v685
    %8600 = vmatprep.subr.bf16.mxu0 %v690
    %8601 = vmatpush1.bf16.msra.mxu0 %v689
    %8602 = vmatprep.subr.bf16.mxu0 %v694
    %8603 = vmatpush1.bf16.msra.mxu0 %v693
    %8604 = vmatprep.subr.bf16.mxu0 %v698
    %8605 = vmatpush1.bf16.msra.mxu0 %v697
    %8606 = vmatprep.subr.bf16.mxu0 %v702
    %8607 = vmatpush1.bf16.msra.mxu0 %v701
    %8608 = vmatprep.subr.bf16.mxu0 %v706
    %8609 = vmatpush1.bf16.msra.mxu0 %v705
    %8610 = vmatprep.subr.bf16.mxu0 %v710
    %8611 = vmatpush1.bf16.msra.mxu0 %v709
    %8612 = vmatprep.subr.bf16.mxu0 %v714
    %8613 = vmatpush1.bf16.msra.mxu0 %v713
    %8614 = vmatprep.subr.bf16.mxu0 %v718
    %8615 = vmatpush1.bf16.msra.mxu0 %v717
    %8616 = vmatprep.subr.bf16.mxu0 %v722
    %8617 = vmatpush1.bf16.msra.mxu0 %v721
    %8618 = vmatprep.subr.bf16.mxu0 %v726
    %8619 = vmatpush1.bf16.msra.mxu0 %v725
    %8620 = vmatprep.subr.bf16.mxu0 %v730
    %8621 = vmatpush1.bf16.msra.mxu0 %v729
    %8622 = vmatprep.subr.bf16.mxu0 %v734
    %8623 = vmatpush1.bf16.msra.mxu0 %v733
    %8624 = vmatprep.mubr.bf16.mxu0 %v8461
    %8625 = vmatmul.mubr.bf16.gmra.mrb[0].mxu0 %v8460
    %v8626 = vpop.f32.mrb[0].mxu0
    %v8627 = vadd.f32 %v8586, %v8626
    %v8628 = vpop.f32.mrb[0].mxu0
    %v8629 = vadd.f32 %v8588, %v8628
    %v8630 = vpop.f32.mrb[0].mxu0
    %v8631 = vpop.f32.mrb[0].mxu0
    %8632 = vdwg.mxu0
    %v8633 = vmul.f32 %v8545, 0.5
    %v8634 = vmul.f32 %v8547, 0.5
    %v8635 = vmul.f32 %v8627, 0.5
    %v8636 = vmul.f32 %v8629, 0.5
    %v8637 = vtanh.pop %v8633
    %v8638 = vtanh.pop %v8634
    %v8639 = vtanh.pop %v8635
    %v8640 = vtanh.pop %v8636
    %v8641 = vmul.f32 %v8637, 0.5
    %v8642 = vmul.f32 %v8638, 0.5
    %v8643 = vmul.f32 %v8639, 0.5
    %v8644 = vmul.f32 %v8640, 0.5
    %v8645 = vadd.f32 %v8641, 0.5
    %v8646 = vadd.f32 %v8642, 0.5
    %v8647 = vadd.f32 %v8643, 0.5
    %v8648 = vadd.f32 %v8644, 0.5
    %v8649 = vld [vmem:[%s8462 + $0x10] sm:$0xff]
    %v8650 = vld [vmem:[%s8462 + $0x18] sm:$0xff]
    %v8651 = vunpack.c.l.bf16 %v8649
    %v8652 = vunpack.c.h.bf16 %v8649
    %v8653 = vunpack.c.l.bf16 %v8650
    %v8654 = vunpack.c.h.bf16 %v8650
    %8655 = vmatprep.subr.bf16.mxu0 %v1563
    %8656 = vmatpush1.bf16.msra.mxu0 %v1562
    %8657 = vmatprep.subr.bf16.mxu0 %v1567
    %8658 = vmatpush1.bf16.msra.mxu0 %v1566
    %8659 = vmatprep.subr.bf16.mxu0 %v1571
    %8660 = vmatpush1.bf16.msra.mxu0 %v1570
    %8661 = vmatprep.subr.bf16.mxu0 %v1575
    %8662 = vmatpush1.bf16.msra.mxu0 %v1574
    %8663 = vmatprep.subr.bf16.mxu0 %v1579
    %8664 = vmatpush1.bf16.msra.mxu0 %v1578
    %8665 = vmatprep.subr.bf16.mxu0 %v1583
    %8666 = vmatpush1.bf16.msra.mxu0 %v1582
    %8667 = vmatprep.subr.bf16.mxu0 %v1587
    %8668 = vmatpush1.bf16.msra.mxu0 %v1586
    %8669 = vmatprep.subr.bf16.mxu0 %v1591
    %8670 = vmatpush1.bf16.msra.mxu0 %v1590
    %8671 = vmatprep.subr.bf16.mxu0 %v1595
    %8672 = vmatpush1.bf16.msra.mxu0 %v1594
    %8673 = vmatprep.subr.bf16.mxu0 %v1599
    %8674 = vmatpush1.bf16.msra.mxu0 %v1598
    %8675 = vmatprep.subr.bf16.mxu0 %v1603
    %8676 = vmatpush1.bf16.msra.mxu0 %v1602
    %8677 = vmatprep.subr.bf16.mxu0 %v1607
    %8678 = vmatpush1.bf16.msra.mxu0 %v1606
    %8679 = vmatprep.subr.bf16.mxu0 %v1611
    %8680 = vmatpush1.bf16.msra.mxu0 %v1610
    %8681 = vmatprep.subr.bf16.mxu0 %v1615
    %8682 = vmatpush1.bf16.msra.mxu0 %v1614
    %8683 = vmatprep.subr.bf16.mxu0 %v1619
    %8684 = vmatpush1.bf16.msra.mxu0 %v1618
    %8685 = vmatprep.subr.bf16.mxu0 %v1623
    %8686 = vmatpush1.bf16.msra.mxu0 %v1622
    %8687 = vmatprep.mubr.bf16.mxu0 %v8459
    %8688 = vmatmul.mubr.bf16.gmra.mrb[0].mxu0 %v8458
    %v8689 = vpop.f32.mrb[0].mxu0
    %v8690 = vadd.f32 %v8651, %v8689
    %v8691 = vpop.f32.mrb[0].mxu0
    %v8692 = vadd.f32 %v8652, %v8691
    %v8693 = vpop.f32.mrb[0].mxu0
    %v8694 = vpop.f32.mrb[0].mxu0
    %8695 = vdwg.mxu0
    %8696 = vmatprep.subr.bf16.mxu0 %v1627
    %8697 = vmatpush1.bf16.msra.mxu0 %v1626
    %8698 = vmatprep.subr.bf16.mxu0 %v1631
    %8699 = vmatpush1.bf16.msra.mxu0 %v1630
    %8700 = vmatprep.subr.bf16.mxu0 %v1635
    %8701 = vmatpush1.bf16.msra.mxu0 %v1634
    %8702 = vmatprep.subr.bf16.mxu0 %v1639
    %8703 = vmatpush1.bf16.msra.mxu0 %v1638
    %8704 = vmatprep.subr.bf16.mxu0 %v1643
    %8705 = vmatpush1.bf16.msra.mxu0 %v1642
    %8706 = vmatprep.subr.bf16.mxu0 %v1647
    %8707 = vmatpush1.bf16.msra.mxu0 %v1646
    %8708 = vmatprep.subr.bf16.mxu0 %v1651
    %8709 = vmatpush1.bf16.msra.mxu0 %v1650
    %8710 = vmatprep.subr.bf16.mxu0 %v1655
    %8711 = vmatpush1.bf16.msra.mxu0 %v1654
    %8712 = vmatprep.subr.bf16.mxu0 %v1659
    %8713 = vmatpush1.bf16.msra.mxu0 %v1658
    %8714 = vmatprep.subr.bf16.mxu0 %v1663
    %8715 = vmatpush1.bf16.msra.mxu0 %v1662
    %8716 = vmatprep.subr.bf16.mxu0 %v1667
    %8717 = vmatpush1.bf16.msra.mxu0 %v1666
    %8718 = vmatprep.subr.bf16.mxu0 %v1671
    %8719 = vmatpush1.bf16.msra.mxu0 %v1670
    %8720 = vmatprep.subr.bf16.mxu0 %v1675
    %8721 = vmatpush1.bf16.msra.mxu0 %v1674
    %8722 = vmatprep.subr.bf16.mxu0 %v1679
    %8723 = vmatpush1.bf16.msra.mxu0 %v1678
    %8724 = vmatprep.subr.bf16.mxu0 %v1683
    %8725 = vmatpush1.bf16.msra.mxu0 %v1682
    %8726 = vmatprep.subr.bf16.mxu0 %v1687
    %8727 = vmatpush1.bf16.msra.mxu0 %v1686
    %8728 = vmatprep.mubr.bf16.mxu0 %v8461
    %8729 = vmatmul.mubr.bf16.gmra.mrb[0].mxu0 %v8460
    %v8730 = vpop.f32.mrb[0].mxu0
    %v8731 = vadd.f32 %v8690, %v8730
    %v8732 = vpop.f32.mrb[0].mxu0
    %v8733 = vadd.f32 %v8692, %v8732
    %v8734 = vpop.f32.mrb[0].mxu0
    %v8735 = vpop.f32.mrb[0].mxu0
    %8736 = vdwg.mxu0
    %8737 = vmatprep.subr.bf16.mxu0 %v1565
    %8738 = vmatpush1.bf16.msra.mxu0 %v1564
    %8739 = vmatprep.subr.bf16.mxu0 %v1569
    %8740 = vmatpush1.bf16.msra.mxu0 %v1568
    %8741 = vmatprep.subr.bf16.mxu0 %v1573
    %8742 = vmatpush1.bf16.msra.mxu0 %v1572
    %8743 = vmatprep.subr.bf16.mxu0 %v1577
    %8744 = vmatpush1.bf16.msra.mxu0 %v1576
    %8745 = vmatprep.subr.bf16.mxu0 %v1581
    %8746 = vmatpush1.bf16.msra.mxu0 %v1580
    %8747 = vmatprep.subr.bf16.mxu0 %v1585
    %8748 = vmatpush1.bf16.msra.mxu0 %v1584
    %8749 = vmatprep.subr.bf16.mxu0 %v1589
    %8750 = vmatpush1.bf16.msra.mxu0 %v1588
    %8751 = vmatprep.subr.bf16.mxu0 %v1593
    %8752 = vmatpush1.bf16.msra.mxu0 %v1592
    %8753 = vmatprep.subr.bf16.mxu0 %v1597
    %8754 = vmatpush1.bf16.msra.mxu0 %v1596
    %8755 = vmatprep.subr.bf16.mxu0 %v1601
    %8756 = vmatpush1.bf16.msra.mxu0 %v1600
    %8757 = vmatprep.subr.bf16.mxu0 %v1605
    %8758 = vmatpush1.bf16.msra.mxu0 %v1604
    %8759 = vmatprep.subr.bf16.mxu0 %v1609
    %8760 = vmatpush1.bf16.msra.mxu0 %v1608
    %8761 = vmatprep.subr.bf16.mxu0 %v1613
    %8762 = vmatpush1.bf16.msra.mxu0 %v1612
    %8763 = vmatprep.subr.bf16.mxu0 %v1617
    %8764 = vmatpush1.bf16.msra.mxu0 %v1616
    %8765 = vmatprep.subr.bf16.mxu0 %v1621
    %8766 = vmatpush1.bf16.msra.mxu0 %v1620
    %8767 = vmatprep.subr.bf16.mxu0 %v1625
    %8768 = vmatpush1.bf16.msra.mxu0 %v1624
    %8769 = vmatprep.mubr.bf16.mxu0 %v8459
    %8770 = vmatmul.mubr.bf16.gmra.mrb[0].mxu0 %v8458
    %v8771 = vpop.f32.mrb[0].mxu0
    %v8772 = vadd.f32 %v8653, %v8771
    %v8773 = vpop.f32.mrb[0].mxu0
    %v8774 = vadd.f32 %v8654, %v8773
    %v8775 = vpop.f32.mrb[0].mxu0
    %v8776 = vpop.f32.mrb[0].mxu0
    %8777 = vdwg.mxu0
    %8778 = vmatprep.subr.bf16.mxu0 %v1629
    %8779 = vmatpush1.bf16.msra.mxu0 %v1628
    %8780 = vmatprep.subr.bf16.mxu0 %v1633
    %8781 = vmatpush1.bf16.msra.mxu0 %v1632
    %8782 = vmatprep.subr.bf16.mxu0 %v1637
    %8783 = vmatpush1.bf16.msra.mxu0 %v1636
    %8784 = vmatprep.subr.bf16.mxu0 %v1641
    %8785 = vmatpush1.bf16.msra.mxu0 %v1640
    %8786 = vmatprep.subr.bf16.mxu0 %v1645
    %8787 = vmatpush1.bf16.msra.mxu0 %v1644
    %8788 = vmatprep.subr.bf16.mxu0 %v1649
    %8789 = vmatpush1.bf16.msra.mxu0 %v1648
    %8790 = vmatprep.subr.bf16.mxu0 %v1653
    %8791 = vmatpush1.bf16.msra.mxu0 %v1652
    %8792 = vmatprep.subr.bf16.mxu0 %v1657
    %8793 = vmatpush1.bf16.msra.mxu0 %v1656
    %8794 = vmatprep.subr.bf16.mxu0 %v1661
    %8795 = vmatpush1.bf16.msra.mxu0 %v1660
    %8796 = vmatprep.subr.bf16.mxu0 %v1665
    %8797 = vmatpush1.bf16.msra.mxu0 %v1664
    %8798 = vmatprep.subr.bf16.mxu0 %v1669
    %8799 = vmatpush1.bf16.msra.mxu0 %v1668
    %8800 = vmatprep.subr.bf16.mxu0 %v1673
    %8801 = vmatpush1.bf16.msra.mxu0 %v1672
    %8802 = vmatprep.subr.bf16.mxu0 %v1677
    %8803 = vmatpush1.bf16.msra.mxu0 %v1676
    %8804 = vmatprep.subr.bf16.mxu0 %v1681
    %8805 = vmatpush1.bf16.msra.mxu0 %v1680
    %8806 = vmatprep.subr.bf16.mxu0 %v1685
    %8807 = vmatpush1.bf16.msra.mxu0 %v1684
    %8808 = vmatprep.subr.bf16.mxu0 %v1689
    %8809 = vmatpush1.bf16.msra.mxu0 %v1688
    %8810 = vmatprep.mubr.bf16.mxu0 %v8461
    %8811 = vmatmul.mubr.bf16.gmra.mrb[0].mxu0 %v8460
    %v8812 = vpop.f32.mrb[0].mxu0
    %v8813 = vadd.f32 %v8772, %v8812
    %v8814 = vpop.f32.mrb[0].mxu0
    %v8815 = vadd.f32 %v8774, %v8814
    %v8816 = vpop.f32.mrb[0].mxu0
    %v8817 = vpop.f32.mrb[0].mxu0
    %8818 = vdwg.mxu0
    %v8819 = vmul.f32 %v8731, 0.5
    %v8820 = vmul.f32 %v8733, 0.5
    %v8821 = vmul.f32 %v8813, 0.5
    %v8822 = vmul.f32 %v8815, 0.5
    %v8823 = vtanh.pop %v8819
    %v8824 = vtanh.pop %v8820
    %v8825 = vtanh.pop %v8821
    %v8826 = vtanh.pop %v8822
    %v8827 = vmul.f32 %v8823, 0.5
    %v8828 = vmul.f32 %v8824, 0.5
    %v8829 = vmul.f32 %v8825, 0.5
    %v8830 = vmul.f32 %v8826, 0.5
    %v8831 = vadd.f32 %v8827, 0.5
    %v8832 = vadd.f32 %v8828, 0.5
    %v8833 = vadd.f32 %v8829, 0.5
    %v8834 = vadd.f32 %v8830, 0.5
    %v8835 = vmul.f32 %v8831, %v8260
    %v8836 = vmul.f32 %v8832, %v8261
    %v8837 = vmul.f32 %v8833, %v8262
    %v8838 = vmul.f32 %v8834, %v8263
    %v8839 = vld [vmem:[%s8462 + $0x20] sm:$0xff]
    %v8840 = vld [vmem:[%s8462 + $0x28] sm:$0xff]
    %v8841 = vunpack.c.l.bf16 %v8839
    %v8842 = vunpack.c.h.bf16 %v8839
    %v8843 = vunpack.c.l.bf16 %v8840
    %v8844 = vunpack.c.h.bf16 %v8840
    %8845 = vmatprep.subr.bf16.mxu0 %v2522
    %8846 = vmatpush1.bf16.msra.mxu0 %v2521
    %8847 = vmatprep.subr.bf16.mxu0 %v2526
    %8848 = vmatpush1.bf16.msra.mxu0 %v2525
    %8849 = vmatprep.subr.bf16.mxu0 %v2530
    %8850 = vmatpush1.bf16.msra.mxu0 %v2529
    %8851 = vmatprep.subr.bf16.mxu0 %v2534
    %8852 = vmatpush1.bf16.msra.mxu0 %v2533
    %8853 = vmatprep.subr.bf16.mxu0 %v2538
    %8854 = vmatpush1.bf16.msra.mxu0 %v2537
    %8855 = vmatprep.subr.bf16.mxu0 %v2542
    %8856 = vmatpush1.bf16.msra.mxu0 %v2541
    %8857 = vmatprep.subr.bf16.mxu0 %v2546
    %8858 = vmatpush1.bf16.msra.mxu0 %v2545
    %8859 = vmatprep.subr.bf16.mxu0 %v2550
    %8860 = vmatpush1.bf16.msra.mxu0 %v2549
    %8861 = vmatprep.subr.bf16.mxu0 %v2554
    %8862 = vmatpush1.bf16.msra.mxu0 %v2553
    %8863 = vmatprep.subr.bf16.mxu0 %v2558
    %8864 = vmatpush1.bf16.msra.mxu0 %v2557
    %8865 = vmatprep.subr.bf16.mxu0 %v2562
    %8866 = vmatpush1.bf16.msra.mxu0 %v2561
    %8867 = vmatprep.subr.bf16.mxu0 %v2566
    %8868 = vmatpush1.bf16.msra.mxu0 %v2565
    %8869 = vmatprep.subr.bf16.mxu0 %v2570
    %8870 = vmatpush1.bf16.msra.mxu0 %v2569
    %8871 = vmatprep.subr.bf16.mxu0 %v2574
    %8872 = vmatpush1.bf16.msra.mxu0 %v2573
    %8873 = vmatprep.subr.bf16.mxu0 %v2578
    %8874 = vmatpush1.bf16.msra.mxu0 %v2577
    %8875 = vmatprep.subr.bf16.mxu0 %v2582
    %8876 = vmatpush1.bf16.msra.mxu0 %v2581
    %8877 = vmatprep.mubr.bf16.mxu0 %v8459
    %8878 = vmatmul.mubr.bf16.gmra.mrb[0].mxu0 %v8458
    %v8879 = vpop.f32.mrb[0].mxu0
    %v8880 = vadd.f32 %v8841, %v8879
    %v8881 = vpop.f32.mrb[0].mxu0
    %v8882 = vadd.f32 %v8842, %v8881
    %v8883 = vpop.f32.mrb[0].mxu0
    %v8884 = vpop.f32.mrb[0].mxu0
    %8885 = vdwg.mxu0
    %8886 = vmatprep.subr.bf16.mxu0 %v2586
    %8887 = vmatpush1.bf16.msra.mxu0 %v2585
    %8888 = vmatprep.subr.bf16.mxu0 %v2590
    %8889 = vmatpush1.bf16.msra.mxu0 %v2589
    %8890 = vmatprep.subr.bf16.mxu0 %v2594
    %8891 = vmatpush1.bf16.msra.mxu0 %v2593
    %8892 = vmatprep.subr.bf16.mxu0 %v2598
    %8893 = vmatpush1.bf16.msra.mxu0 %v2597
    %8894 = vmatprep.subr.bf16.mxu0 %v2602
    %8895 = vmatpush1.bf16.msra.mxu0 %v2601
    %8896 = vmatprep.subr.bf16.mxu0 %v2606
    %8897 = vmatpush1.bf16.msra.mxu0 %v2605
    %8898 = vmatprep.subr.bf16.mxu0 %v2610
    %8899 = vmatpush1.bf16.msra.mxu0 %v2609
    %8900 = vmatprep.subr.bf16.mxu0 %v2614
    %8901 = vmatpush1.bf16.msra.mxu0 %v2613
    %8902 = vmatprep.subr.bf16.mxu0 %v2618
    %8903 = vmatpush1.bf16.msra.mxu0 %v2617
    %8904 = vmatprep.subr.bf16.mxu0 %v2622
    %8905 = vmatpush1.bf16.msra.mxu0 %v2621
    %8906 = vmatprep.subr.bf16.mxu0 %v2626
    %8907 = vmatpush1.bf16.msra.mxu0 %v2625
    %8908 = vmatprep.subr.bf16.mxu0 %v2630
    %8909 = vmatpush1.bf16.msra.mxu0 %v2629
    %8910 = vmatprep.subr.bf16.mxu0 %v2634
    %8911 = vmatpush1.bf16.msra.mxu0 %v2633
    %8912 = vmatprep.subr.bf16.mxu0 %v2638
    %8913 = vmatpush1.bf16.msra.mxu0 %v2637
    %8914 = vmatprep.subr.bf16.mxu0 %v2642
    %8915 = vmatpush1.bf16.msra.mxu0 %v2641
    %8916 = vmatprep.subr.bf16.mxu0 %v2646
    %8917 = vmatpush1.bf16.msra.mxu0 %v2645
    %8918 = vmatprep.mubr.bf16.mxu0 %v8461
    %8919 = vmatmul.mubr.bf16.gmra.mrb[0].mxu0 %v8460
    %v8920 = vpop.f32.mrb[0].mxu0
    %v8921 = vadd.f32 %v8880, %v8920
    %v8922 = vpop.f32.mrb[0].mxu0
    %v8923 = vadd.f32 %v8882, %v8922
    %v8924 = vpop.f32.mrb[0].mxu0
    %v8925 = vpop.f32.mrb[0].mxu0
    %8926 = vdwg.mxu0
    %8927 = vmatprep.subr.bf16.mxu0 %v2524
    %8928 = vmatpush1.bf16.msra.mxu0 %v2523
    %8929 = vmatprep.subr.bf16.mxu0 %v2528
    %8930 = vmatpush1.bf16.msra.mxu0 %v2527
    %8931 = vmatprep.subr.bf16.mxu0 %v2532
    %8932 = vmatpush1.bf16.msra.mxu0 %v2531
    %8933 = vmatprep.subr.bf16.mxu0 %v2536
    %8934 = vmatpush1.bf16.msra.mxu0 %v2535
    %8935 = vmatprep.subr.bf16.mxu0 %v2540
    %8936 = vmatpush1.bf16.msra.mxu0 %v2539
    %8937 = vmatprep.subr.bf16.mxu0 %v2544
    %8938 = vmatpush1.bf16.msra.mxu0 %v2543
    %8939 = vmatprep.subr.bf16.mxu0 %v2548
    %8940 = vmatpush1.bf16.msra.mxu0 %v2547
    %8941 = vmatprep.subr.bf16.mxu0 %v2552
    %8942 = vmatpush1.bf16.msra.mxu0 %v2551
    %8943 = vmatprep.subr.bf16.mxu0 %v2556
    %8944 = vmatpush1.bf16.msra.mxu0 %v2555
    %8945 = vmatprep.subr.bf16.mxu0 %v2560
    %8946 = vmatpush1.bf16.msra.mxu0 %v2559
    %8947 = vmatprep.subr.bf16.mxu0 %v2564
    %8948 = vmatpush1.bf16.msra.mxu0 %v2563
    %8949 = vmatprep.subr.bf16.mxu0 %v2568
    %8950 = vmatpush1.bf16.msra.mxu0 %v2567
    %8951 = vmatprep.subr.bf16.mxu0 %v2572
    %8952 = vmatpush1.bf16.msra.mxu0 %v2571
    %8953 = vmatprep.subr.bf16.mxu0 %v2576
    %8954 = vmatpush1.bf16.msra.mxu0 %v2575
    %8955 = vmatprep.subr.bf16.mxu0 %v2580
    %8956 = vmatpush1.bf16.msra.mxu0 %v2579
    %8957 = vmatprep.subr.bf16.mxu0 %v2584
    %8958 = vmatpush1.bf16.msra.mxu0 %v2583
    %8959 = vmatprep.mubr.bf16.mxu0 %v8459
    %8960 = vmatmul.mubr.bf16.gmra.mrb[0].mxu0 %v8458
    %v8961 = vpop.f32.mrb[0].mxu0
    %v8962 = vadd.f32 %v8843, %v8961
    %v8963 = vpop.f32.mrb[0].mxu0
    %v8964 = vadd.f32 %v8844, %v8963
    %v8965 = vpop.f32.mrb[0].mxu0
    %v8966 = vpop.f32.mrb[0].mxu0
    %8967 = vdwg.mxu0
    %8968 = vmatprep.subr.bf16.mxu0 %v2588
    %8969 = vmatpush1.bf16.msra.mxu0 %v2587
    %8970 = vmatprep.subr.bf16.mxu0 %v2592
    %8971 = vmatpush1.bf16.msra.mxu0 %v2591
    %8972 = vmatprep.subr.bf16.mxu0 %v2596
    %8973 = vmatpush1.bf16.msra.mxu0 %v2595
    %8974 = vmatprep.subr.bf16.mxu0 %v2600
    %8975 = vmatpush1.bf16.msra.mxu0 %v2599
    %8976 = vmatprep.subr.bf16.mxu0 %v2604
    %8977 = vmatpush1.bf16.msra.mxu0 %v2603
    %8978 = vmatprep.subr.bf16.mxu0 %v2608
    %8979 = vmatpush1.bf16.msra.mxu0 %v2607
    %8980 = vmatprep.subr.bf16.mxu0 %v2612
    %8981 = vmatpush1.bf16.msra.mxu0 %v2611
    %8982 = vmatprep.subr.bf16.mxu0 %v2616
    %8983 = vmatpush1.bf16.msra.mxu0 %v2615
    %8984 = vmatprep.subr.bf16.mxu0 %v2620
    %8985 = vmatpush1.bf16.msra.mxu0 %v2619
    %8986 = vmatprep.subr.bf16.mxu0 %v2624
    %8987 = vmatpush1.bf16.msra.mxu0 %v2623
    %8988 = vmatprep.subr.bf16.mxu0 %v2628
    %8989 = vmatpush1.bf16.msra.mxu0 %v2627
    %8990 = vmatprep.subr.bf16.mxu0 %v2632
    %8991 = vmatpush1.bf16.msra.mxu0 %v2631
    %8992 = vmatprep.subr.bf16.mxu0 %v2636
    %8993 = vmatpush1.bf16.msra.mxu0 %v2635
    %8994 = vmatprep.subr.bf16.mxu0 %v2640
    %8995 = vmatpush1.bf16.msra.mxu0 %v2639
    %8996 = vmatprep.subr.bf16.mxu0 %v2644
    %8997 = vmatpush1.bf16.msra.mxu0 %v2643
    %8998 = vmatprep.subr.bf16.mxu0 %v2648
    %8999 = vmatpush1.bf16.msra.mxu0 %v2647
    %9000 = vmatprep.mubr.bf16.mxu0 %v8461
    %9001 = vmatmul.mubr.bf16.gmra.mrb[0].mxu0 %v8460
    %v9002 = vpop.f32.mrb[0].mxu0
    %v9003 = vadd.f32 %v8962, %v9002
    %v9004 = vpop.f32.mrb[0].mxu0
    %v9005 = vadd.f32 %v8964, %v9004
    %v9006 = vpop.f32.mrb[0].mxu0
    %v9007 = vpop.f32.mrb[0].mxu0
    %9008 = vdwg.mxu0
    %v9009 = vtanh.pop %v8921
    %v9010 = vtanh.pop %v8923
    %v9011 = vtanh.pop %v9003
    %v9012 = vtanh.pop %v9005
    %v9013 = vmul.f32 %v8645, %v9009
    %v9014 = vmul.f32 %v8646, %v9010
    %v9015 = vmul.f32 %v8647, %v9011
    %v9016 = vmul.f32 %v8648, %v9012
    %v9017 = vadd.f32 %v8835, %v9013
    %v9018 = vadd.f32 %v8836, %v9014
    %v9019 = vadd.f32 %v8837, %v9015
    %v9020 = vadd.f32 %v8838, %v9016
    %v9021 = vld [vmem:[%s8462 + $0x30] sm:$0xff]
    %v9022 = vld [vmem:[%s8462 + $0x38] sm:$0xff]
    %v9023 = vunpack.c.l.bf16 %v9021
    %v9024 = vunpack.c.h.bf16 %v9021
    %v9025 = vunpack.c.l.bf16 %v9022
    %v9026 = vunpack.c.h.bf16 %v9022
    %9027 = vmatprep.subr.bf16.mxu0 %v3473
    %9028 = vmatpush1.bf16.msra.mxu0 %v3472
    %9029 = vmatprep.subr.bf16.mxu0 %v3477
    %9030 = vmatpush1.bf16.msra.mxu0 %v3476
    %9031 = vmatprep.subr.bf16.mxu0 %v3481
    %9032 = vmatpush1.bf16.msra.mxu0 %v3480
    %9033 = vmatprep.subr.bf16.mxu0 %v3485
    %9034 = vmatpush1.bf16.msra.mxu0 %v3484
    %9035 = vmatprep.subr.bf16.mxu0 %v3489
    %9036 = vmatpush1.bf16.msra.mxu0 %v3488
    %9037 = vmatprep.subr.bf16.mxu0 %v3493
    %9038 = vmatpush1.bf16.msra.mxu0 %v3492
    %9039 = vmatprep.subr.bf16.mxu0 %v3497
    %9040 = vmatpush1.bf16.msra.mxu0 %v3496
    %9041 = vmatprep.subr.bf16.mxu0 %v3501
    %9042 = vmatpush1.bf16.msra.mxu0 %v3500
    %9043 = vmatprep.subr.bf16.mxu0 %v3505
    %9044 = vmatpush1.bf16.msra.mxu0 %v3504
    %9045 = vmatprep.subr.bf16.mxu0 %v3509
    %9046 = vmatpush1.bf16.msra.mxu0 %v3508
    %9047 = vmatprep.subr.bf16.mxu0 %v3513
    %9048 = vmatpush1.bf16.msra.mxu0 %v3512
    %9049 = vmatprep.subr.bf16.mxu0 %v3517
    %9050 = vmatpush1.bf16.msra.mxu0 %v3516
    %9051 = vmatprep.subr.bf16.mxu0 %v3521
    %9052 = vmatpush1.bf16.msra.mxu0 %v3520
    %9053 = vmatprep.subr.bf16.mxu0 %v3525
    %9054 = vmatpush1.bf16.msra.mxu0 %v3524
    %9055 = vmatprep.subr.bf16.mxu0 %v3529
    %9056 = vmatpush1.bf16.msra.mxu0 %v3528
    %9057 = vmatprep.subr.bf16.mxu0 %v3533
    %9058 = vmatpush1.bf16.msra.mxu0 %v3532
    %9059 = vmatprep.mubr.bf16.mxu0 %v8459
    %9060 = vmatmul.mubr.bf16.gmra.mrb[0].mxu0 %v8458
    %v9061 = vpop.f32.mrb[0].mxu0
    %v9062 = vadd.f32 %v9023, %v9061
    %v9063 = vpop.f32.mrb[0].mxu0
    %v9064 = vadd.f32 %v9024, %v9063
    %v9065 = vpop.f32.mrb[0].mxu0
    %v9066 = vpop.f32.mrb[0].mxu0
    %9067 = vdwg.mxu0
    %9068 = vmatprep.subr.bf16.mxu0 %v3537
    %9069 = vmatpush1.bf16.msra.mxu0 %v3536
    %9070 = vmatprep.subr.bf16.mxu0 %v3541
    %9071 = vmatpush1.bf16.msra.mxu0 %v3540
    %9072 = vmatprep.subr.bf16.mxu0 %v3545
    %9073 = vmatpush1.bf16.msra.mxu0 %v3544
    %9074 = vmatprep.subr.bf16.mxu0 %v3549
    %9075 = vmatpush1.bf16.msra.mxu0 %v3548
    %9076 = vmatprep.subr.bf16.mxu0 %v3553
    %9077 = vmatpush1.bf16.msra.mxu0 %v3552
    %9078 = vmatprep.subr.bf16.mxu0 %v3557
    %9079 = vmatpush1.bf16.msra.mxu0 %v3556
    %9080 = vmatprep.subr.bf16.mxu0 %v3561
    %9081 = vmatpush1.bf16.msra.mxu0 %v3560
    %9082 = vmatprep.subr.bf16.mxu0 %v3565
    %9083 = vmatpush1.bf16.msra.mxu0 %v3564
    %9084 = vmatprep.subr.bf16.mxu0 %v3569
    %9085 = vmatpush1.bf16.msra.mxu0 %v3568
    %9086 = vmatprep.subr.bf16.mxu0 %v3573
    %9087 = vmatpush1.bf16.msra.mxu0 %v3572
    %9088 = vmatprep.subr.bf16.mxu0 %v3577
    %9089 = vmatpush1.bf16.msra.mxu0 %v3576
    %9090 = vmatprep.subr.bf16.mxu0 %v3581
    %9091 = vmatpush1.bf16.msra.mxu0 %v3580
    %9092 = vmatprep.subr.bf16.mxu0 %v3585
    %9093 = vmatpush1.bf16.msra.mxu0 %v3584
    %9094 = vmatprep.subr.bf16.mxu0 %v3589
    %9095 = vmatpush1.bf16.msra.mxu0 %v3588
    %9096 = vmatprep.subr.bf16.mxu0 %v3593
    %9097 = vmatpush1.bf16.msra.mxu0 %v3592
    %9098 = vmatprep.subr.bf16.mxu0 %v3597
    %9099 = vmatpush1.bf16.msra.mxu0 %v3596
    %9100 = vmatprep.mubr.bf16.mxu0 %v8461
    %9101 = vmatmul.mubr.bf16.gmra.mrb[0].mxu0 %v8460
    %v9102 = vpop.f32.mrb[0].mxu0
    %v9103 = vadd.f32 %v9062, %v9102
    %v9104 = vpop.f32.mrb[0].mxu0
    %v9105 = vadd.f32 %v9064, %v9104
    %v9106 = vpop.f32.mrb[0].mxu0
    %v9107 = vpop.f32.mrb[0].mxu0
    %9108 = vdwg.mxu0
    %9109 = vmatprep.subr.bf16.mxu0 %v3475
    %9110 = vmatpush1.bf16.msra.mxu0 %v3474
    %9111 = vmatprep.subr.bf16.mxu0 %v3479
    %9112 = vmatpush1.bf16.msra.mxu0 %v3478
    %9113 = vmatprep.subr.bf16.mxu0 %v3483
    %9114 = vmatpush1.bf16.msra.mxu0 %v3482
    %9115 = vmatprep.subr.bf16.mxu0 %v3487
    %9116 = vmatpush1.bf16.msra.mxu0 %v3486
    %9117 = vmatprep.subr.bf16.mxu0 %v3491
    %9118 = vmatpush1.bf16.msra.mxu0 %v3490
    %9119 = vmatprep.subr.bf16.mxu0 %v3495
    %9120 = vmatpush1.bf16.msra.mxu0 %v3494
    %9121 = vmatprep.subr.bf16.mxu0 %v3499
    %9122 = vmatpush1.bf16.msra.mxu0 %v3498
    %9123 = vmatprep.subr.bf16.mxu0 %v3503
    %9124 = vmatpush1.bf16.msra.mxu0 %v3502
    %9125 = vmatprep.subr.bf16.mxu0 %v3507
    %9126 = vmatpush1.bf16.msra.mxu0 %v3506
    %9127 = vmatprep.subr.bf16.mxu0 %v3511
    %9128 = vmatpush1.bf16.msra.mxu0 %v3510
    %9129 = vmatprep.subr.bf16.mxu0 %v3515
    %9130 = vmatpush1.bf16.msra.mxu0 %v3514
    %9131 = vmatprep.subr.bf16.mxu0 %v3519
    %9132 = vmatpush1.bf16.msra.mxu0 %v3518
    %9133 = vmatprep.subr.bf16.mxu0 %v3523
    %9134 = vmatpush1.bf16.msra.mxu0 %v3522
    %9135 = vmatprep.subr.bf16.mxu0 %v3527
    %9136 = vmatpush1.bf16.msra.mxu0 %v3526
    %9137 = vmatprep.subr.bf16.mxu0 %v3531
    %9138 = vmatpush1.bf16.msra.mxu0 %v3530
    %9139 = vmatprep.subr.bf16.mxu0 %v3535
    %9140 = vmatpush1.bf16.msra.mxu0 %v3534
    %9141 = vmatprep.mubr.bf16.mxu0 %v8459
    %9142 = vmatmul.mubr.bf16.gmra.mrb[0].mxu0 %v8458
    %v9143 = vpop.f32.mrb[0].mxu0
    %v9144 = vadd.f32 %v9025, %v9143
    %v9145 = vpop.f32.mrb[0].mxu0
    %v9146 = vadd.f32 %v9026, %v9145
    %v9147 = vpop.f32.mrb[0].mxu0
    %v9148 = vpop.f32.mrb[0].mxu0
    %9149 = vdwg.mxu0
    %9150 = vmatprep.subr.bf16.mxu0 %v3539
    %9151 = vmatpush1.bf16.msra.mxu0 %v3538
    %9152 = vmatprep.subr.bf16.mxu0 %v3543
    %9153 = vmatpush1.bf16.msra.mxu0 %v3542
    %9154 = vmatprep.subr.bf16.mxu0 %v3547
    %9155 = vmatpush1.bf16.msra.mxu0 %v3546
    %9156 = vmatprep.subr.bf16.mxu0 %v3551
    %9157 = vmatpush1.bf16.msra.mxu0 %v3550
    %9158 = vmatprep.subr.bf16.mxu0 %v3555
    %9159 = vmatpush1.bf16.msra.mxu0 %v3554
    %9160 = vmatprep.subr.bf16.mxu0 %v3559
    %9161 = vmatpush1.bf16.msra.mxu0 %v3558
    %9162 = vmatprep.subr.bf16.mxu0 %v3563
    %9163 = vmatpush1.bf16.msra.mxu0 %v3562
    %9164 = vmatprep.subr.bf16.mxu0 %v3567
    %9165 = vmatpush1.bf16.msra.mxu0 %v3566
    %9166 = vmatprep.subr.bf16.mxu0 %v3571
    %9167 = vmatpush1.bf16.msra.mxu0 %v3570
    %9168 = vmatprep.subr.bf16.mxu0 %v3575
    %9169 = vmatpush1.bf16.msra.mxu0 %v3574
    %9170 = vmatprep.subr.bf16.mxu0 %v3579
    %9171 = vmatpush1.bf16.msra.mxu0 %v3578
    %9172 = vmatprep.subr.bf16.mxu0 %v3583
    %9173 = vmatpush1.bf16.msra.mxu0 %v3582
    %9174 = vmatprep.subr.bf16.mxu0 %v3587
    %9175 = vmatpush1.bf16.msra.mxu0 %v3586
    %9176 = vmatprep.subr.bf16.mxu0 %v3591
    %9177 = vmatpush1.bf16.msra.mxu0 %v3590
    %9178 = vmatprep.subr.bf16.mxu0 %v3595
    %9179 = vmatpush1.bf16.msra.mxu0 %v3594
    %9180 = vmatprep.subr.bf16.mxu0 %v3599
    %9181 = vmatpush1.bf16.msra.mxu0 %v3598
    %9182 = vmatprep.mubr.bf16.mxu0 %v8461
    %9183 = vmatmul.mubr.bf16.gmra.mrb[0].mxu0 %v8460
    %v9184 = vpop.f32.mrb[0].mxu0
    %v9185 = vadd.f32 %v9144, %v9184
    %v9186 = vpop.f32.mrb[0].mxu0
    %v9187 = vadd.f32 %v9146, %v9186
    %v9188 = vpop.f32.mrb[0].mxu0
    %v9189 = vpop.f32.mrb[0].mxu0
    %9190 = vdwg.mxu0
    %v9191 = vmul.f32 %v9103, 0.5
    %v9192 = vmul.f32 %v9105, 0.5
    %v9193 = vmul.f32 %v9185, 0.5
    %v9194 = vmul.f32 %v9187, 0.5
    %v9195 = vtanh.pop %v9191
    %v9196 = vtanh.pop %v9192
    %v9197 = vtanh.pop %v9193
    %v9198 = vtanh.pop %v9194
    %v9199 = vmul.f32 %v9195, 0.5
    %v9200 = vmul.f32 %v9196, 0.5
    %v9201 = vmul.f32 %v9197, 0.5
    %v9202 = vmul.f32 %v9198, 0.5
    %v9203 = vadd.f32 %v9199, 0.5
    %v9204 = vadd.f32 %v9200, 0.5
    %v9205 = vadd.f32 %v9201, 0.5
    %v9206 = vadd.f32 %v9202, 0.5
    %v9207 = vtanh.pop %v9017
    %v9208 = vtanh.pop %v9018
    %v9209 = vtanh.pop %v9019
    %v9210 = vtanh.pop %v9020
    %v9211 = vmul.f32 %v9203, %v9207
    %v9212 = vmul.f32 %v9204, %v9208
    %v9213 = vmul.f32 %v9205, %v9209
    %v9214 = vmul.f32 %v9206, %v9210
    %v9215 = vpack.c.bf16 %v9211, %v9211
    %v9216 = vpack.c.bf16 %v9212, %v9212
    %v9217 = vpack.c.bf16 %v9213, %v9213
    %v9218 = vpack.c.bf16 %v9214, %v9214
    %v9223 = vunpack.c.l.b16 %v9215
    %v9224 = vunpack.c.l.b16 %v9216
    %v9225 = vunpack.c.l.b16 %v9217
    %v9226 = vunpack.c.l.b16 %v9218
    %v9227 = vpack.c.b16 %v9224, %v9223
    %v9228 = vpack.c.b16 %v9226, %v9225
    %9231 = vst [vmem:[#allocation2] sm:$0xff] %v9227
    %9232 = vst [vmem:[#allocation2 + $0x8] sm:$0xff] %v9228
    %9233 = vst [vmem:[#allocation3] sm:$0xff] %v9017
    %9234 = vst [vmem:[#allocation3 + $0x8] sm:$0xff] %v9018
    %9235 = vst [vmem:[#allocation3 + $0x10] sm:$0xff] %v9019
    %9236 = vst [vmem:[#allocation3 + $0x18] sm:$0xff] %v9020
    // Predicated region
    $region34: #{tpu_custom_call.1} parent=1 // pred_check
      %p9237 = pneg %p59
    $region35: #{tpu_custom_call.1} parent=1 // pred_check_branch
      %9239 = sbr.rel (%p9237) target = $region37
    $region36: #{tpu_custom_call.1} parent=1 // pred_region
      %v9240 = vld [vmem:[#allocation2] sm:$0xff]
      %v9241 = vld [vmem:[#allocation2 + $0x8] sm:$0xff]
      %v9242 = vunpack.c.l.bf16 %v9240
      %v9243 = vunpack.c.h.bf16 %v9240
      %v9244 = vunpack.c.l.bf16 %v9241
      %v9245 = vunpack.c.h.bf16 %v9241
      %v9246 = vld [vmem:[#allocation9] sm:$0xf]
      %v9248 = vlaneseq
      %v9249 = vshrl.u32 %v9248, 7
      %v9250 = vsub.s32 0, %v9249
      %v9251 = vrot.slane %v9246, %v9250
      %v9252 = vlaneseq
      %v9253 = vshrl.u32 %v9252, 7
      %v9254 = vsub.s32 1, %v9253
      %v9255 = vrot.slane %v9246, %v9254
      %v9256 = vlaneseq
      %v9257 = vshrl.u32 %v9256, 7
      %v9258 = vsub.s32 2, %v9257
      %v9259 = vrot.slane %v9246, %v9258
      %v9260 = vlaneseq
      %v9261 = vshrl.u32 %v9260, 7
      %v9262 = vsub.s32 3, %v9261
      %v9263 = vrot.slane %v9246, %v9262
      %v9268 = vmul.f32 %v9242, %v9251
      %v9269 = vmul.f32 %v9243, %v9255
      %v9270 = vmul.f32 %v9244, %v9259
      %v9271 = vmul.f32 %v9245, %v9263
      %v9272 = vadd.f32 %v9268, %v9269
      %v9273 = vadd.f32 %v9272, %v9270
      %v9274 = vadd.f32 %v9273, %v9271
      %9275 = vadd.xlane.f32.xlu0 %v9274
      %v9276 = vpop.xlane.xlu0 %9275
      %v9277 = vld [vmem:[#allocation4] sm:$0x1]
      %v9279 = vlaneseq
      %v9280 = vshrl.u32 %v9279, 7
      %v9281 = vsub.s32 0, %v9280
      %v9282 = vrot.slane %v9277, %v9281
      %v9284 = vadd.f32 %v9276, %v9282
      %v9285 = vsub.f32 0.0, %v9284
      %v9286 = vmul.f32 %v9285, 1.442695
      %v9287 = vpow.pop %v9286
      %v9288 = vadd.f32 %v9287, 1.0
      %v9289 = vrcp.pop %v9288
      %vm9290 = vcmask 7168
      %9291 = vst.msk [vmem:[%s4] sm:$0xff] %vm9290, %v9289
    $region37: #{tpu_custom_call.1} parent=1 // pred_fallthru
      _
    // Predicated region
    $region38: #{tpu_custom_call.1} parent=1 // pred_check
      _
    $region39: #{tpu_custom_call.1} parent=1 // pred_check_branch
      %9293 = sbr.rel (0) target = $region41
    $region40: #{tpu_custom_call.1} parent=1 // pred_region
      _
    $region41: #{tpu_custom_call.1} parent=1 // pred_fallthru
      _
    // Predicated region
    $region42: #{tpu_custom_call.1} parent=1 // pred_check
      _
    $region43: #{tpu_custom_call.1} parent=1 // pred_check_branch
      %9295 = sbr.rel (0) target = $region45
    $region44: #{tpu_custom_call.1} parent=1 // pred_region
      _
    $region45: #{tpu_custom_call.1} parent=1 // pred_fallthru
      _
    %9296 = vsyncpa [#allocation6], 1
    %9297 = vsyncpa [#allocation8], 1

</llo_original>
